<compile_context>
chip_gen: v5e
topology: v5e:2x2
jax: 0.10.0
libtpu: 0.0.40
codegen_flags: <defaults>
</compile_context>

<pallas_src>
import jax
import jax.numpy as jnp
import numpy as np
from jax.experimental import pallas as pl
from jax.experimental.pallas import tpu as pltpu

C = 64          # in/out channels hard-coded by the module
NUM_CONV = 10   # ten 3x3 conv + LeakyReLU layers
SLOPE = 0.2     # LeakyReLU negative slope

# (row-offset-into-padded-buffer, kernel-row-index) taps of the k=4,s=2,p=1
# transposed conv, per output-row parity py (verified against lax reference).
ROW_TAPS = (((1, 1), (0, 3)),   # py == 0: iy = j   (ky=1), iy = j-1 (ky=3)
            ((2, 0), (1, 2)))   # py == 1: iy = j+1 (ky=0), iy = j   (ky=2)

# (column-offset d, sub-pixel px) -> kernel-column index kx (same tap table).
COL_MAP = (((1, 0), 1), ((0, 0), 3), ((1, 1), 2), ((2, 1), 0))


def _leaky(x):
    return jnp.maximum(x, SLOPE * x)


def conv_block_kernel(x_ref, cw_ref, dw_ref, o_ref, pad_ref):
    """Full _Conv_Block forward for one image (grid iterates over batch N).

    x_ref:   (1, H, W, C)            input activations (NHWC)
    cw_ref:  (NUM_CONV, 3, 3C, C)    conv weights, kx folded into K:
                                     cw[l, ky, kx*C+ci, co]
    dw_ref:  (4, 3C, 2C)             deconv weights, column taps folded into K
                                     and both horizontal sub-pixels folded into
                                     the output columns: dw[ky, d*C+ci, px*C+co]
    o_ref:   (1, 2H, W, 2C)          output; lane px*C+co of column i holds the
                                     pixel (2i+px, co)   (lane-dense stores)
    pad_ref: (H+2, W+2, C)           persistent zero-padded activation scratch
    """
    _, H, W, _ = x_ref.shape
    Hp = H + 2

    # Zero the halo once per image, then place the input in the interior.
    pad_ref[...] = jnp.zeros_like(pad_ref)
    pad_ref[1:H + 1, 1:W + 1, :] = x_ref[0].astype(jnp.float32)

    def folded_patch():
        # patch[j, i, d*C + c] = pad[j, i + d, c]   ->   (Hp*W, 3C)
        cols = [pad_ref[:, d:d + W, :] for d in range(3)]
        return jnp.concatenate(cols, axis=-1).reshape(Hp * W, 3 * C)

    # ---- 10 x (3x3 conv, pad=1, no bias) + LeakyReLU(0.2) ------------------
    for l in range(NUM_CONV):
        patch = folded_patch()                               # (Hp*W, 3C)
        acc = None
        for ky in range(3):
            t = jnp.dot(patch, cw_ref[l, ky],                # K = 192 on MXU
                        preferred_element_type=jnp.float32)
            t = t.reshape(Hp, W, C)[ky:ky + H]               # free row slice
            acc = t if acc is None else acc + t
        pad_ref[1:H + 1, 1:W + 1, :] = _leaky(acc)

    # ---- ConvTranspose2d(k=4, s=2, p=1, no bias) + LeakyReLU(0.2) ----------
    patch = folded_patch()                                   # reuse same layout
    rows = []
    for py in range(2):
        acc = None
        for dy, ky in ROW_TAPS[py]:
            t = jnp.dot(patch, dw_ref[ky],                   # (Hp*W, 2C), K=192
                        preferred_element_type=jnp.float32)
            t = t.reshape(Hp, W, 2 * C)[dy:dy + H]           # free row slice
            acc = t if acc is None else acc + t
        rows.append(_leaky(acc))                             # (H, W, 2C)

    # Interleave the two row parities: out[2j+py, i, px*C+co] = y[2j+py, 2i+px, co]
    full = jnp.stack(rows, axis=1).reshape(2 * H, W, 2 * C)
    o_ref[0] = full.astype(o_ref.dtype)


def _pack_deconv_weights(deconv_w):
    """(4,4,C,C) [ky,kx,ci,co] -> (4, 3C, 2C) [ky, d*C+ci, px*C+co].

    Unused (d, px) combinations stay zero; the 128 output columns then hold
    both horizontal sub-pixels of one output row, already interleaved.
    """
    dwp = jnp.zeros((4, 3 * C, 2 * C), deconv_w.dtype)
    for (d, px), kx in COL_MAP:
        dwp = dwp.at[:, d * C:(d + 1) * C, px * C:(px + 1) * C].set(deconv_w[:, kx])
    return dwp


def conv_block_forward(x_nchw, conv_ws, deconv_w):
    """x_nchw: (N,64,H,W) f32; conv_ws: (10,3,3,64,64) HWIO; deconv_w: (4,4,64,64)."""
    N, Cin, H, W = x_nchw.shape
    assert Cin == C
    x = jnp.transpose(x_nchw, (0, 2, 3, 1))                  # NCHW -> NHWC
    cwp = conv_ws.reshape(NUM_CONV, 3, 3 * C, C)             # fold kx into K
    dwp = _pack_deconv_weights(deconv_w)

    y = pl.pallas_call(
        conv_block_kernel,
        out_shape=jax.ShapeDtypeStruct((N, 2 * H, W, 2 * C), jnp.float32),
        grid_spec=pltpu.PrefetchScalarGridSpec(
            num_scalar_prefetch=0,
            grid=(N,),
            in_specs=[
                pl.BlockSpec((1, H, W, C), lambda n: (n, 0, 0, 0)),
                pl.BlockSpec((NUM_CONV, 3, 3 * C, C), lambda n: (0, 0, 0, 0)),
                pl.BlockSpec((4, 3 * C, 2 * C), lambda n: (0, 0, 0)),
            ],
            out_specs=pl.BlockSpec((1, 2 * H, W, 2 * C), lambda n: (n, 0, 0, 0)),
            scratch_shapes=[pltpu.VMEM((H + 2, W + 2, C), jnp.float32)],
        ),
        compiler_params=pltpu.CompilerParams(
            dimension_semantics=("parallel",),
            vmem_limit_bytes=64 * 1024 * 1024,
        ),
    )(x, cwp, dwp)

    # Free reshape (no transpose): (N, 2H, W, 128) -> (N, 2H, 2W, 64).
    y = y.reshape(N, 2 * H, 2 * W, C)
    return jnp.transpose(y, (0, 3, 1, 2))                    # NHWC -> NCHW


def conv_block_reference(x_nchw, conv_ws, deconv_w):
    """Pure-JAX reference (lax conv) for correctness checking."""
    x = jnp.transpose(x_nchw, (0, 2, 3, 1))
    dn = ('NHWC', 'HWIO', 'NHWC')
    for l in range(NUM_CONV):
        x = jax.lax.conv_general_dilated(
            x, conv_ws[l], window_strides=(1, 1), padding=((1, 1), (1, 1)),
            dimension_numbers=dn, precision=jax.lax.Precision.HIGHEST)
        x = jnp.where(x >= 0, x, SLOPE * x)
    # ConvTranspose2d(k=4, s=2, p=1) == conv with lhs_dilation=2, pad=2, flipped kernel.
    x = jax.lax.conv_general_dilated(
        x, jnp.flip(deconv_w, axis=(0, 1)), window_strides=(1, 1),
        padding=((2, 2), (2, 2)), lhs_dilation=(2, 2),
        dimension_numbers=dn, precision=jax.lax.Precision.HIGHEST)
    x = jnp.where(x >= 0, x, SLOPE * x)
    return jnp.transpose(x, (0, 3, 1, 2))


if __name__ == "__main__":
    key = jax.random.PRNGKey(0)
    k_x, k_w, k_d = jax.random.split(key, 3)

    N, H, W = 2, 8, 8
    x = jax.random.normal(k_x, (N, C, H, W), jnp.float32)
    # Deterministic He-style init (shapes fixed by the module; no checkpoint load).
    conv_ws = jax.random.normal(k_w, (NUM_CONV, 3, 3, C, C), jnp.float32) * (2.0 / (9 * C)) ** 0.5
    deconv_w = jax.random.normal(k_d, (4, 4, C, C), jnp.float32) * (2.0 / (16 * C)) ** 0.5

    out = jax.jit(conv_block_forward)(x, conv_ws, deconv_w)
    out = jax.block_until_ready(out)
    assert out.shape == (N, C, 2 * H, 2 * W), out.shape

    ref = conv_block_reference(x, conv_ws, deconv_w)
    np.testing.assert_allclose(np.asarray(out), np.asarray(ref), rtol=1e-2, atol=1e-2)

    print("KERNEL_OK")
</pallas_src>

<mosaic_0001>
module attributes {stable_mosaic.version = 11 : i64} {
  func.func @conv_block_kernel(%arg0: i32, %arg1: memref<1x8x8x64xf32, #tpu.memory_space<vmem>>, %arg2: memref<10x3x192x64xf32, #tpu.memory_space<vmem>>, %arg3: memref<4x192x128xf32, #tpu.memory_space<vmem>>, %arg4: memref<1x16x8x128xf32, #tpu.memory_space<vmem>>, %arg5: memref<10x10x64xf32, #tpu.memory_space<vmem>>) attributes {dimension_semantics = [#tpu.dimension_semantics<parallel>], iteration_bounds = array<i64: 2>, scalar_prefetch = 0 : i64, scratch_operands = 1 : i64, tpu.core_type = #tpu.core_type<tc>, window_params = [{transform_indices = @transform_0, window_bounds = array<i64: 1, 8, 8, 64>}, {pipeline_mode = #tpu.pipeline_mode<synchronous>, transform_indices = @transform_1, window_bounds = array<i64: 10, 3, 192, 64>}, {pipeline_mode = #tpu.pipeline_mode<synchronous>, transform_indices = @transform_2, window_bounds = array<i64: 4, 192, 128>}, {transform_indices = @transform_3, window_bounds = array<i64: 1, 16, 8, 128>}]} {
    %cst = arith.constant 0.000000e+00 : f32
    %0 = vector.broadcast %cst : f32 to vector<10x10x64xf32>
    %c0 = arith.constant 0 : index
    %c0_0 = arith.constant 0 : index
    %c0_1 = arith.constant 0 : index
    %1 = vector.load %arg5[%c0, %c0_0, %c0_1] : memref<10x10x64xf32, #tpu.memory_space<vmem>>, vector<10x10x64xf32>
    tpu.vector_store %arg5[%c0, %c0_0, %c0_1], %0 {strides = array<i32>} : memref<10x10x64xf32, #tpu.memory_space<vmem>>, vector<10x10x64xf32>,
    %c0_2 = arith.constant 0 : index
    %c0_3 = arith.constant 0 : index
    %c0_4 = arith.constant 0 : index
    %c0_5 = arith.constant 0 : index
    %2 = vector.load %arg1[%c0_2, %c0_3, %c0_4, %c0_5] : memref<1x8x8x64xf32, #tpu.memory_space<vmem>>, vector<1x8x8x64xf32>
    %3 = vector.shape_cast %2 : vector<1x8x8x64xf32> to vector<8x8x64xf32>
    %c1 = arith.constant 1 : index
    %c1_6 = arith.constant 1 : index
    %c0_7 = arith.constant 0 : index
    %4 = vector.load %arg5[%c1, %c1_6, %c0_7] : memref<10x10x64xf32, #tpu.memory_space<vmem>>, vector<8x8x64xf32>
    tpu.vector_store %arg5[%c1, %c1_6, %c0_7], %3 {strides = array<i32>} : memref<10x10x64xf32, #tpu.memory_space<vmem>>, vector<8x8x64xf32>,
    %c0_8 = arith.constant 0 : index
    %c0_9 = arith.constant 0 : index
    %c0_10 = arith.constant 0 : index
    %5 = vector.load %arg5[%c0_8, %c0_9, %c0_10] : memref<10x10x64xf32, #tpu.memory_space<vmem>>, vector<10x8x64xf32>
    %c0_11 = arith.constant 0 : index
    %c1_12 = arith.constant 1 : index
    %c0_13 = arith.constant 0 : index
    %6 = vector.load %arg5[%c0_11, %c1_12, %c0_13] : memref<10x10x64xf32, #tpu.memory_space<vmem>>, vector<10x8x64xf32>
    %c0_14 = arith.constant 0 : index
    %c2 = arith.constant 2 : index
    %c0_15 = arith.constant 0 : index
    %7 = vector.load %arg5[%c0_14, %c2, %c0_15] : memref<10x10x64xf32, #tpu.memory_space<vmem>>, vector<10x8x64xf32>
    %8 = tpu.concatenate %5, %6, %7 in 2 : vector<10x8x64xf32>, vector<10x8x64xf32>, vector<10x8x64xf32> -> vector<10x8x192xf32>
    %9 = vector.shape_cast %8 : vector<10x8x192xf32> to vector<80x192xf32>
    %c0_16 = arith.constant 0 : index
    %c0_17 = arith.constant 0 : index
    %c0_18 = arith.constant 0 : index
    %c0_19 = arith.constant 0 : index
    %10 = vector.load %arg2[%c0_16, %c0_17, %c0_18, %c0_19] : memref<10x3x192x64xf32, #tpu.memory_space<vmem>>, vector<1x1x192x64xf32>
    %11 = vector.shape_cast %10 : vector<1x1x192x64xf32> to vector<192x64xf32>
    %cst_20 = arith.constant dense<0.000000e+00> : vector<80x64xf32>
    %12 = tpu.matmul %9, %11, %cst_20 {dimension_numbers = #tpu.dot_dimension_numbers<[1], [0], [0], [1], [0, 0, 1, 1], [], []>} : vector<80x192xf32>, vector<192x64xf32>, vector<80x64xf32> -> vector<80x64xf32>
    %13 = vector.shape_cast %12 : vector<80x64xf32> to vector<10x8x64xf32>
    %14 = vector.extract_strided_slice %13 {offsets = [0, 0, 0], sizes = [8, 8, 64], strides = [1, 1, 1]} : vector<10x8x64xf32> to vector<8x8x64xf32>
    %c0_21 = arith.constant 0 : index
    %c1_22 = arith.constant 1 : index
    %c0_23 = arith.constant 0 : index
    %c0_24 = arith.constant 0 : index
    %15 = vector.load %arg2[%c0_21, %c1_22, %c0_23, %c0_24] : memref<10x3x192x64xf32, #tpu.memory_space<vmem>>, vector<1x1x192x64xf32>
    %16 = vector.shape_cast %15 : vector<1x1x192x64xf32> to vector<192x64xf32>
    %cst_25 = arith.constant dense<0.000000e+00> : vector<80x64xf32>
    %17 = tpu.matmul %9, %16, %cst_25 {dimension_numbers = #tpu.dot_dimension_numbers<[1], [0], [0], [1], [0, 0, 1, 1], [], []>} : vector<80x192xf32>, vector<192x64xf32>, vector<80x64xf32> -> vector<80x64xf32>
    %18 = vector.shape_cast %17 : vector<80x64xf32> to vector<10x8x64xf32>
    %19 = vector.extract_strided_slice %18 {offsets = [1, 0, 0], sizes = [8, 8, 64], strides = [1, 1, 1]} : vector<10x8x64xf32> to vector<8x8x64xf32>
    %20 = arith.addf %14, %19 : vector<8x8x64xf32>
    %c0_26 = arith.constant 0 : index
    %c2_27 = arith.constant 2 : index
    %c0_28 = arith.constant 0 : index
    %c0_29 = arith.constant 0 : index
    %21 = vector.load %arg2[%c0_26, %c2_27, %c0_28, %c0_29] : memref<10x3x192x64xf32, #tpu.memory_space<vmem>>, vector<1x1x192x64xf32>
    %22 = vector.shape_cast %21 : vector<1x1x192x64xf32> to vector<192x64xf32>
    %cst_30 = arith.constant dense<0.000000e+00> : vector<80x64xf32>
    %23 = tpu.matmul %9, %22, %cst_30 {dimension_numbers = #tpu.dot_dimension_numbers<[1], [0], [0], [1], [0, 0, 1, 1], [], []>} : vector<80x192xf32>, vector<192x64xf32>, vector<80x64xf32> -> vector<80x64xf32>
    %24 = vector.shape_cast %23 : vector<80x64xf32> to vector<10x8x64xf32>
    %25 = vector.extract_strided_slice %24 {offsets = [2, 0, 0], sizes = [8, 8, 64], strides = [1, 1, 1]} : vector<10x8x64xf32> to vector<8x8x64xf32>
    %26 = arith.addf %20, %25 : vector<8x8x64xf32>
    %cst_31 = arith.constant 2.000000e-01 : f32
    %27 = vector.broadcast %cst_31 : f32 to vector<8x8x64xf32>
    %28 = arith.mulf %27, %26 : vector<8x8x64xf32>
    %29 = arith.maximumf %26, %28 : vector<8x8x64xf32>
    %c1_32 = arith.constant 1 : index
    %c1_33 = arith.constant 1 : index
    %c0_34 = arith.constant 0 : index
    %30 = vector.load %arg5[%c1_32, %c1_33, %c0_34] : memref<10x10x64xf32, #tpu.memory_space<vmem>>, vector<8x8x64xf32>
    tpu.vector_store %arg5[%c1_32, %c1_33, %c0_34], %29 {strides = array<i32>} : memref<10x10x64xf32, #tpu.memory_space<vmem>>, vector<8x8x64xf32>,
    %c0_35 = arith.constant 0 : index
    %c0_36 = arith.constant 0 : index
    %c0_37 = arith.constant 0 : index
    %31 = vector.load %arg5[%c0_35, %c0_36, %c0_37] : memref<10x10x64xf32, #tpu.memory_space<vmem>>, vector<10x8x64xf32>
    %c0_38 = arith.constant 0 : index
    %c1_39 = arith.constant 1 : index
    %c0_40 = arith.constant 0 : index
    %32 = vector.load %arg5[%c0_38, %c1_39, %c0_40] : memref<10x10x64xf32, #tpu.memory_space<vmem>>, vector<10x8x64xf32>
    %c0_41 = arith.constant 0 : index
    %c2_42 = arith.constant 2 : index
    %c0_43 = arith.constant 0 : index
    %33 = vector.load %arg5[%c0_41, %c2_42, %c0_43] : memref<10x10x64xf32, #tpu.memory_space<vmem>>, vector<10x8x64xf32>
    %34 = tpu.concatenate %31, %32, %33 in 2 : vector<10x8x64xf32>, vector<10x8x64xf32>, vector<10x8x64xf32> -> vector<10x8x192xf32>
    %35 = vector.shape_cast %34 : vector<10x8x192xf32> to vector<80x192xf32>
    %c1_44 = arith.constant 1 : index
    %c0_45 = arith.constant 0 : index
    %c0_46 = arith.constant 0 : index
    %c0_47 = arith.constant 0 : index
    %36 = vector.load %arg2[%c1_44, %c0_45, %c0_46, %c0_47] : memref<10x3x192x64xf32, #tpu.memory_space<vmem>>, vector<1x1x192x64xf32>
    %37 = vector.shape_cast %36 : vector<1x1x192x64xf32> to vector<192x64xf32>
    %cst_48 = arith.constant dense<0.000000e+00> : vector<80x64xf32>
    %38 = tpu.matmul %35, %37, %cst_48 {dimension_numbers = #tpu.dot_dimension_numbers<[1], [0], [0], [1], [0, 0, 1, 1], [], []>} : vector<80x192xf32>, vector<192x64xf32>, vector<80x64xf32> -> vector<80x64xf32>
    %39 = vector.shape_cast %38 : vector<80x64xf32> to vector<10x8x64xf32>
    %40 = vector.extract_strided_slice %39 {offsets = [0, 0, 0], sizes = [8, 8, 64], strides = [1, 1, 1]} : vector<10x8x64xf32> to vector<8x8x64xf32>
    %c1_49 = arith.constant 1 : index
    %c1_50 = arith.constant 1 : index
    %c0_51 = arith.constant 0 : index
    %c0_52 = arith.constant 0 : index
    %41 = vector.load %arg2[%c1_49, %c1_50, %c0_51, %c0_52] : memref<10x3x192x64xf32, #tpu.memory_space<vmem>>, vector<1x1x192x64xf32>
    %42 = vector.shape_cast %41 : vector<1x1x192x64xf32> to vector<192x64xf32>
    %cst_53 = arith.constant dense<0.000000e+00> : vector<80x64xf32>
    %43 = tpu.matmul %35, %42, %cst_53 {dimension_numbers = #tpu.dot_dimension_numbers<[1], [0], [0], [1], [0, 0, 1, 1], [], []>} : vector<80x192xf32>, vector<192x64xf32>, vector<80x64xf32> -> vector<80x64xf32>
    %44 = vector.shape_cast %43 : vector<80x64xf32> to vector<10x8x64xf32>
    %45 = vector.extract_strided_slice %44 {offsets = [1, 0, 0], sizes = [8, 8, 64], strides = [1, 1, 1]} : vector<10x8x64xf32> to vector<8x8x64xf32>
    %46 = arith.addf %40, %45 : vector<8x8x64xf32>
    %c1_54 = arith.constant 1 : index
    %c2_55 = arith.constant 2 : index
    %c0_56 = arith.constant 0 : index
    %c0_57 = arith.constant 0 : index
    %47 = vector.load %arg2[%c1_54, %c2_55, %c0_56, %c0_57] : memref<10x3x192x64xf32, #tpu.memory_space<vmem>>, vector<1x1x192x64xf32>
    %48 = vector.shape_cast %47 : vector<1x1x192x64xf32> to vector<192x64xf32>
    %cst_58 = arith.constant dense<0.000000e+00> : vector<80x64xf32>
    %49 = tpu.matmul %35, %48, %cst_58 {dimension_numbers = #tpu.dot_dimension_numbers<[1], [0], [0], [1], [0, 0, 1, 1], [], []>} : vector<80x192xf32>, vector<192x64xf32>, vector<80x64xf32> -> vector<80x64xf32>
    %50 = vector.shape_cast %49 : vector<80x64xf32> to vector<10x8x64xf32>
    %51 = vector.extract_strided_slice %50 {offsets = [2, 0, 0], sizes = [8, 8, 64], strides = [1, 1, 1]} : vector<10x8x64xf32> to vector<8x8x64xf32>
    %52 = arith.addf %46, %51 : vector<8x8x64xf32>
    %cst_59 = arith.constant 2.000000e-01 : f32
    %53 = vector.broadcast %cst_59 : f32 to vector<8x8x64xf32>
    %54 = arith.mulf %53, %52 : vector<8x8x64xf32>
    %55 = arith.maximumf %52, %54 : vector<8x8x64xf32>
    %c1_60 = arith.constant 1 : index
    %c1_61 = arith.constant 1 : index
    %c0_62 = arith.constant 0 : index
    %56 = vector.load %arg5[%c1_60, %c1_61, %c0_62] : memref<10x10x64xf32, #tpu.memory_space<vmem>>, vector<8x8x64xf32>
    tpu.vector_store %arg5[%c1_60, %c1_61, %c0_62], %55 {strides = array<i32>} : memref<10x10x64xf32, #tpu.memory_space<vmem>>, vector<8x8x64xf32>,
    %c0_63 = arith.constant 0 : index
    %c0_64 = arith.constant 0 : index
    %c0_65 = arith.constant 0 : index
    %57 = vector.load %arg5[%c0_63, %c0_64, %c0_65] : memref<10x10x64xf32, #tpu.memory_space<vmem>>, vector<10x8x64xf32>
    %c0_66 = arith.constant 0 : index
    %c1_67 = arith.constant 1 : index
    %c0_68 = arith.constant 0 : index
    %58 = vector.load %arg5[%c0_66, %c1_67, %c0_68] : memref<10x10x64xf32, #tpu.memory_space<vmem>>, vector<10x8x64xf32>
    %c0_69 = arith.constant 0 : index
    %c2_70 = arith.constant 2 : index
    %c0_71 = arith.constant 0 : index
    %59 = vector.load %arg5[%c0_69, %c2_70, %c0_71] : memref<10x10x64xf32, #tpu.memory_space<vmem>>, vector<10x8x64xf32>
    %60 = tpu.concatenate %57, %58, %59 in 2 : vector<10x8x64xf32>, vector<10x8x64xf32>, vector<10x8x64xf32> -> vector<10x8x192xf32>
    %61 = vector.shape_cast %60 : vector<10x8x192xf32> to vector<80x192xf32>
    %c2_72 = arith.constant 2 : index
    %c0_73 = arith.constant 0 : index
    %c0_74 = arith.constant 0 : index
    %c0_75 = arith.constant 0 : index
    %62 = vector.load %arg2[%c2_72, %c0_73, %c0_74, %c0_75] : memref<10x3x192x64xf32, #tpu.memory_space<vmem>>, vector<1x1x192x64xf32>
    %63 = vector.shape_cast %62 : vector<1x1x192x64xf32> to vector<192x64xf32>
    %cst_76 = arith.constant dense<0.000000e+00> : vector<80x64xf32>
    %64 = tpu.matmul %61, %63, %cst_76 {dimension_numbers = #tpu.dot_dimension_numbers<[1], [0], [0], [1], [0, 0, 1, 1], [], []>} : vector<80x192xf32>, vector<192x64xf32>, vector<80x64xf32> -> vector<80x64xf32>
    %65 = vector.shape_cast %64 : vector<80x64xf32> to vector<10x8x64xf32>
    %66 = vector.extract_strided_slice %65 {offsets = [0, 0, 0], sizes = [8, 8, 64], strides = [1, 1, 1]} : vector<10x8x64xf32> to vector<8x8x64xf32>
    %c2_77 = arith.constant 2 : index
    %c1_78 = arith.constant 1 : index
    %c0_79 = arith.constant 0 : index
    %c0_80 = arith.constant 0 : index
    %67 = vector.load %arg2[%c2_77, %c1_78, %c0_79, %c0_80] : memref<10x3x192x64xf32, #tpu.memory_space<vmem>>, vector<1x1x192x64xf32>
    %68 = vector.shape_cast %67 : vector<1x1x192x64xf32> to vector<192x64xf32>
    %cst_81 = arith.constant dense<0.000000e+00> : vector<80x64xf32>
    %69 = tpu.matmul %61, %68, %cst_81 {dimension_numbers = #tpu.dot_dimension_numbers<[1], [0], [0], [1], [0, 0, 1, 1], [], []>} : vector<80x192xf32>, vector<192x64xf32>, vector<80x64xf32> -> vector<80x64xf32>
    %70 = vector.shape_cast %69 : vector<80x64xf32> to vector<10x8x64xf32>
    %71 = vector.extract_strided_slice %70 {offsets = [1, 0, 0], sizes = [8, 8, 64], strides = [1, 1, 1]} : vector<10x8x64xf32> to vector<8x8x64xf32>
    %72 = arith.addf %66, %71 : vector<8x8x64xf32>
    %c2_82 = arith.constant 2 : index
    %c2_83 = arith.constant 2 : index
    %c0_84 = arith.constant 0 : index
    %c0_85 = arith.constant 0 : index
    %73 = vector.load %arg2[%c2_82, %c2_83, %c0_84, %c0_85] : memref<10x3x192x64xf32, #tpu.memory_space<vmem>>, vector<1x1x192x64xf32>
    %74 = vector.shape_cast %73 : vector<1x1x192x64xf32> to vector<192x64xf32>
    %cst_86 = arith.constant dense<0.000000e+00> : vector<80x64xf32>
    %75 = tpu.matmul %61, %74, %cst_86 {dimension_numbers = #tpu.dot_dimension_numbers<[1], [0], [0], [1], [0, 0, 1, 1], [], []>} : vector<80x192xf32>, vector<192x64xf32>, vector<80x64xf32> -> vector<80x64xf32>
    %76 = vector.shape_cast %75 : vector<80x64xf32> to vector<10x8x64xf32>
    %77 = vector.extract_strided_slice %76 {offsets = [2, 0, 0], sizes = [8, 8, 64], strides = [1, 1, 1]} : vector<10x8x64xf32> to vector<8x8x64xf32>
    %78 = arith.addf %72, %77 : vector<8x8x64xf32>
    %cst_87 = arith.constant 2.000000e-01 : f32
    %79 = vector.broadcast %cst_87 : f32 to vector<8x8x64xf32>
    %80 = arith.mulf %79, %78 : vector<8x8x64xf32>
    %81 = arith.maximumf %78, %80 : vector<8x8x64xf32>
    %c1_88 = arith.constant 1 : index
    %c1_89 = arith.constant 1 : index
    %c0_90 = arith.constant 0 : index
    %82 = vector.load %arg5[%c1_88, %c1_89, %c0_90] : memref<10x10x64xf32, #tpu.memory_space<vmem>>, vector<8x8x64xf32>
    tpu.vector_store %arg5[%c1_88, %c1_89, %c0_90], %81 {strides = array<i32>} : memref<10x10x64xf32, #tpu.memory_space<vmem>>, vector<8x8x64xf32>,
    %c0_91 = arith.constant 0 : index
    %c0_92 = arith.constant 0 : index
    %c0_93 = arith.constant 0 : index
    %83 = vector.load %arg5[%c0_91, %c0_92, %c0_93] : memref<10x10x64xf32, #tpu.memory_space<vmem>>, vector<10x8x64xf32>
    %c0_94 = arith.constant 0 : index
    %c1_95 = arith.constant 1 : index
    %c0_96 = arith.constant 0 : index
    %84 = vector.load %arg5[%c0_94, %c1_95, %c0_96] : memref<10x10x64xf32, #tpu.memory_space<vmem>>, vector<10x8x64xf32>
    %c0_97 = arith.constant 0 : index
    %c2_98 = arith.constant 2 : index
    %c0_99 = arith.constant 0 : index
    %85 = vector.load %arg5[%c0_97, %c2_98, %c0_99] : memref<10x10x64xf32, #tpu.memory_space<vmem>>, vector<10x8x64xf32>
    %86 = tpu.concatenate %83, %84, %85 in 2 : vector<10x8x64xf32>, vector<10x8x64xf32>, vector<10x8x64xf32> -> vector<10x8x192xf32>
    %87 = vector.shape_cast %86 : vector<10x8x192xf32> to vector<80x192xf32>
    %c3 = arith.constant 3 : index
    %c0_100 = arith.constant 0 : index
    %c0_101 = arith.constant 0 : index
    %c0_102 = arith.constant 0 : index
    %88 = vector.load %arg2[%c3, %c0_100, %c0_101, %c0_102] : memref<10x3x192x64xf32, #tpu.memory_space<vmem>>, vector<1x1x192x64xf32>
    %89 = vector.shape_cast %88 : vector<1x1x192x64xf32> to vector<192x64xf32>
    %cst_103 = arith.constant dense<0.000000e+00> : vector<80x64xf32>
    %90 = tpu.matmul %87, %89, %cst_103 {dimension_numbers = #tpu.dot_dimension_numbers<[1], [0], [0], [1], [0, 0, 1, 1], [], []>} : vector<80x192xf32>, vector<192x64xf32>, vector<80x64xf32> -> vector<80x64xf32>
    %91 = vector.shape_cast %90 : vector<80x64xf32> to vector<10x8x64xf32>
    %92 = vector.extract_strided_slice %91 {offsets = [0, 0, 0], sizes = [8, 8, 64], strides = [1, 1, 1]} : vector<10x8x64xf32> to vector<8x8x64xf32>
    %c3_104 = arith.constant 3 : index
    %c1_105 = arith.constant 1 : index
    %c0_106 = arith.constant 0 : index
    %c0_107 = arith.constant 0 : index
    %93 = vector.load %arg2[%c3_104, %c1_105, %c0_106, %c0_107] : memref<10x3x192x64xf32, #tpu.memory_space<vmem>>, vector<1x1x192x64xf32>
    %94 = vector.shape_cast %93 : vector<1x1x192x64xf32> to vector<192x64xf32>
    %cst_108 = arith.constant dense<0.000000e+00> : vector<80x64xf32>
    %95 = tpu.matmul %87, %94, %cst_108 {dimension_numbers = #tpu.dot_dimension_numbers<[1], [0], [0], [1], [0, 0, 1, 1], [], []>} : vector<80x192xf32>, vector<192x64xf32>, vector<80x64xf32> -> vector<80x64xf32>
    %96 = vector.shape_cast %95 : vector<80x64xf32> to vector<10x8x64xf32>
    %97 = vector.extract_strided_slice %96 {offsets = [1, 0, 0], sizes = [8, 8, 64], strides = [1, 1, 1]} : vector<10x8x64xf32> to vector<8x8x64xf32>
    %98 = arith.addf %92, %97 : vector<8x8x64xf32>
    %c3_109 = arith.constant 3 : index
    %c2_110 = arith.constant 2 : index
    %c0_111 = arith.constant 0 : index
    %c0_112 = arith.constant 0 : index
    %99 = vector.load %arg2[%c3_109, %c2_110, %c0_111, %c0_112] : memref<10x3x192x64xf32, #tpu.memory_space<vmem>>, vector<1x1x192x64xf32>
    %100 = vector.shape_cast %99 : vector<1x1x192x64xf32> to vector<192x64xf32>
    %cst_113 = arith.constant dense<0.000000e+00> : vector<80x64xf32>
    %101 = tpu.matmul %87, %100, %cst_113 {dimension_numbers = #tpu.dot_dimension_numbers<[1], [0], [0], [1], [0, 0, 1, 1], [], []>} : vector<80x192xf32>, vector<192x64xf32>, vector<80x64xf32> -> vector<80x64xf32>
    %102 = vector.shape_cast %101 : vector<80x64xf32> to vector<10x8x64xf32>
    %103 = vector.extract_strided_slice %102 {offsets = [2, 0, 0], sizes = [8, 8, 64], strides = [1, 1, 1]} : vector<10x8x64xf32> to vector<8x8x64xf32>
    %104 = arith.addf %98, %103 : vector<8x8x64xf32>
    %cst_114 = arith.constant 2.000000e-01 : f32
    %105 = vector.broadcast %cst_114 : f32 to vector<8x8x64xf32>
    %106 = arith.mulf %105, %104 : vector<8x8x64xf32>
    %107 = arith.maximumf %104, %106 : vector<8x8x64xf32>
    %c1_115 = arith.constant 1 : index
    %c1_116 = arith.constant 1 : index
    %c0_117 = arith.constant 0 : index
    %108 = vector.load %arg5[%c1_115, %c1_116, %c0_117] : memref<10x10x64xf32, #tpu.memory_space<vmem>>, vector<8x8x64xf32>
    tpu.vector_store %arg5[%c1_115, %c1_116, %c0_117], %107 {strides = array<i32>} : memref<10x10x64xf32, #tpu.memory_space<vmem>>, vector<8x8x64xf32>,
    %c0_118 = arith.constant 0 : index
    %c0_119 = arith.constant 0 : index
    %c0_120 = arith.constant 0 : index
    %109 = vector.load %arg5[%c0_118, %c0_119, %c0_120] : memref<10x10x64xf32, #tpu.memory_space<vmem>>, vector<10x8x64xf32>
    %c0_121 = arith.constant 0 : index
    %c1_122 = arith.constant 1 : index
    %c0_123 = arith.constant 0 : index
    %110 = vector.load %arg5[%c0_121, %c1_122, %c0_123] : memref<10x10x64xf32, #tpu.memory_space<vmem>>, vector<10x8x64xf32>
    %c0_124 = arith.constant 0 : index
    %c2_125 = arith.constant 2 : index
    %c0_126 = arith.constant 0 : index
    %111 = vector.load %arg5[%c0_124, %c2_125, %c0_126] : memref<10x10x64xf32, #tpu.memory_space<vmem>>, vector<10x8x64xf32>
    %112 = tpu.concatenate %109, %110, %111 in 2 : vector<10x8x64xf32>, vector<10x8x64xf32>, vector<10x8x64xf32> -> vector<10x8x192xf32>
    %113 = vector.shape_cast %112 : vector<10x8x192xf32> to vector<80x192xf32>
    %c4 = arith.constant 4 : index
    %c0_127 = arith.constant 0 : index
    %c0_128 = arith.constant 0 : index
    %c0_129 = arith.constant 0 : index
    %114 = vector.load %arg2[%c4, %c0_127, %c0_128, %c0_129] : memref<10x3x192x64xf32, #tpu.memory_space<vmem>>, vector<1x1x192x64xf32>
    %115 = vector.shape_cast %114 : vector<1x1x192x64xf32> to vector<192x64xf32>
    %cst_130 = arith.constant dense<0.000000e+00> : vector<80x64xf32>
    %116 = tpu.matmul %113, %115, %cst_130 {dimension_numbers = #tpu.dot_dimension_numbers<[1], [0], [0], [1], [0, 0, 1, 1], [], []>} : vector<80x192xf32>, vector<192x64xf32>, vector<80x64xf32> -> vector<80x64xf32>
    %117 = vector.shape_cast %116 : vector<80x64xf32> to vector<10x8x64xf32>
    %118 = vector.extract_strided_slice %117 {offsets = [0, 0, 0], sizes = [8, 8, 64], strides = [1, 1, 1]} : vector<10x8x64xf32> to vector<8x8x64xf32>
    %c4_131 = arith.constant 4 : index
    %c1_132 = arith.constant 1 : index
    %c0_133 = arith.constant 0 : index
    %c0_134 = arith.constant 0 : index
    %119 = vector.load %arg2[%c4_131, %c1_132, %c0_133, %c0_134] : memref<10x3x192x64xf32, #tpu.memory_space<vmem>>, vector<1x1x192x64xf32>
    %120 = vector.shape_cast %119 : vector<1x1x192x64xf32> to vector<192x64xf32>
    %cst_135 = arith.constant dense<0.000000e+00> : vector<80x64xf32>
    %121 = tpu.matmul %113, %120, %cst_135 {dimension_numbers = #tpu.dot_dimension_numbers<[1], [0], [0], [1], [0, 0, 1, 1], [], []>} : vector<80x192xf32>, vector<192x64xf32>, vector<80x64xf32> -> vector<80x64xf32>
    %122 = vector.shape_cast %121 : vector<80x64xf32> to vector<10x8x64xf32>
    %123 = vector.extract_strided_slice %122 {offsets = [1, 0, 0], sizes = [8, 8, 64], strides = [1, 1, 1]} : vector<10x8x64xf32> to vector<8x8x64xf32>
    %124 = arith.addf %118, %123 : vector<8x8x64xf32>
    %c4_136 = arith.constant 4 : index
    %c2_137 = arith.constant 2 : index
    %c0_138 = arith.constant 0 : index
    %c0_139 = arith.constant 0 : index
    %125 = vector.load %arg2[%c4_136, %c2_137, %c0_138, %c0_139] : memref<10x3x192x64xf32, #tpu.memory_space<vmem>>, vector<1x1x192x64xf32>
    %126 = vector.shape_cast %125 : vector<1x1x192x64xf32> to vector<192x64xf32>
    %cst_140 = arith.constant dense<0.000000e+00> : vector<80x64xf32>
    %127 = tpu.matmul %113, %126, %cst_140 {dimension_numbers = #tpu.dot_dimension_numbers<[1], [0], [0], [1], [0, 0, 1, 1], [], []>} : vector<80x192xf32>, vector<192x64xf32>, vector<80x64xf32> -> vector<80x64xf32>
    %128 = vector.shape_cast %127 : vector<80x64xf32> to vector<10x8x64xf32>
    %129 = vector.extract_strided_slice %128 {offsets = [2, 0, 0], sizes = [8, 8, 64], strides = [1, 1, 1]} : vector<10x8x64xf32> to vector<8x8x64xf32>
    %130 = arith.addf %124, %129 : vector<8x8x64xf32>
    %cst_141 = arith.constant 2.000000e-01 : f32
    %131 = vector.broadcast %cst_141 : f32 to vector<8x8x64xf32>
    %132 = arith.mulf %131, %130 : vector<8x8x64xf32>
    %133 = arith.maximumf %130, %132 : vector<8x8x64xf32>
    %c1_142 = arith.constant 1 : index
    %c1_143 = arith.constant 1 : index
    %c0_144 = arith.constant 0 : index
    %134 = vector.load %arg5[%c1_142, %c1_143, %c0_144] : memref<10x10x64xf32, #tpu.memory_space<vmem>>, vector<8x8x64xf32>
    tpu.vector_store %arg5[%c1_142, %c1_143, %c0_144], %133 {strides = array<i32>} : memref<10x10x64xf32, #tpu.memory_space<vmem>>, vector<8x8x64xf32>,
    %c0_145 = arith.constant 0 : index
    %c0_146 = arith.constant 0 : index
    %c0_147 = arith.constant 0 : index
    %135 = vector.load %arg5[%c0_145, %c0_146, %c0_147] : memref<10x10x64xf32, #tpu.memory_space<vmem>>, vector<10x8x64xf32>
    %c0_148 = arith.constant 0 : index
    %c1_149 = arith.constant 1 : index
    %c0_150 = arith.constant 0 : index
    %136 = vector.load %arg5[%c0_148, %c1_149, %c0_150] : memref<10x10x64xf32, #tpu.memory_space<vmem>>, vector<10x8x64xf32>
    %c0_151 = arith.constant 0 : index
    %c2_152 = arith.constant 2 : index
    %c0_153 = arith.constant 0 : index
    %137 = vector.load %arg5[%c0_151, %c2_152, %c0_153] : memref<10x10x64xf32, #tpu.memory_space<vmem>>, vector<10x8x64xf32>
    %138 = tpu.concatenate %135, %136, %137 in 2 : vector<10x8x64xf32>, vector<10x8x64xf32>, vector<10x8x64xf32> -> vector<10x8x192xf32>
    %139 = vector.shape_cast %138 : vector<10x8x192xf32> to vector<80x192xf32>
    %c5 = arith.constant 5 : index
    %c0_154 = arith.constant 0 : index
    %c0_155 = arith.constant 0 : index
    %c0_156 = arith.constant 0 : index
    %140 = vector.load %arg2[%c5, %c0_154, %c0_155, %c0_156] : memref<10x3x192x64xf32, #tpu.memory_space<vmem>>, vector<1x1x192x64xf32>
    %141 = vector.shape_cast %140 : vector<1x1x192x64xf32> to vector<192x64xf32>
    %cst_157 = arith.constant dense<0.000000e+00> : vector<80x64xf32>
    %142 = tpu.matmul %139, %141, %cst_157 {dimension_numbers = #tpu.dot_dimension_numbers<[1], [0], [0], [1], [0, 0, 1, 1], [], []>} : vector<80x192xf32>, vector<192x64xf32>, vector<80x64xf32> -> vector<80x64xf32>
    %143 = vector.shape_cast %142 : vector<80x64xf32> to vector<10x8x64xf32>
    %144 = vector.extract_strided_slice %143 {offsets = [0, 0, 0], sizes = [8, 8, 64], strides = [1, 1, 1]} : vector<10x8x64xf32> to vector<8x8x64xf32>
    %c5_158 = arith.constant 5 : index
    %c1_159 = arith.constant 1 : index
    %c0_160 = arith.constant 0 : index
    %c0_161 = arith.constant 0 : index
    %145 = vector.load %arg2[%c5_158, %c1_159, %c0_160, %c0_161] : memref<10x3x192x64xf32, #tpu.memory_space<vmem>>, vector<1x1x192x64xf32>
    %146 = vector.shape_cast %145 : vector<1x1x192x64xf32> to vector<192x64xf32>
    %cst_162 = arith.constant dense<0.000000e+00> : vector<80x64xf32>
    %147 = tpu.matmul %139, %146, %cst_162 {dimension_numbers = #tpu.dot_dimension_numbers<[1], [0], [0], [1], [0, 0, 1, 1], [], []>} : vector<80x192xf32>, vector<192x64xf32>, vector<80x64xf32> -> vector<80x64xf32>
    %148 = vector.shape_cast %147 : vector<80x64xf32> to vector<10x8x64xf32>
    %149 = vector.extract_strided_slice %148 {offsets = [1, 0, 0], sizes = [8, 8, 64], strides = [1, 1, 1]} : vector<10x8x64xf32> to vector<8x8x64xf32>
    %150 = arith.addf %144, %149 : vector<8x8x64xf32>
    %c5_163 = arith.constant 5 : index
    %c2_164 = arith.constant 2 : index
    %c0_165 = arith.constant 0 : index
    %c0_166 = arith.constant 0 : index
    %151 = vector.load %arg2[%c5_163, %c2_164, %c0_165, %c0_166] : memref<10x3x192x64xf32, #tpu.memory_space<vmem>>, vector<1x1x192x64xf32>
    %152 = vector.shape_cast %151 : vector<1x1x192x64xf32> to vector<192x64xf32>
    %cst_167 = arith.constant dense<0.000000e+00> : vector<80x64xf32>
    %153 = tpu.matmul %139, %152, %cst_167 {dimension_numbers = #tpu.dot_dimension_numbers<[1], [0], [0], [1], [0, 0, 1, 1], [], []>} : vector<80x192xf32>, vector<192x64xf32>, vector<80x64xf32> -> vector<80x64xf32>
    %154 = vector.shape_cast %153 : vector<80x64xf32> to vector<10x8x64xf32>
    %155 = vector.extract_strided_slice %154 {offsets = [2, 0, 0], sizes = [8, 8, 64], strides = [1, 1, 1]} : vector<10x8x64xf32> to vector<8x8x64xf32>
    %156 = arith.addf %150, %155 : vector<8x8x64xf32>
    %cst_168 = arith.constant 2.000000e-01 : f32
    %157 = vector.broadcast %cst_168 : f32 to vector<8x8x64xf32>
    %158 = arith.mulf %157, %156 : vector<8x8x64xf32>
    %159 = arith.maximumf %156, %158 : vector<8x8x64xf32>
    %c1_169 = arith.constant 1 : index
    %c1_170 = arith.constant 1 : index
    %c0_171 = arith.constant 0 : index
    %160 = vector.load %arg5[%c1_169, %c1_170, %c0_171] : memref<10x10x64xf32, #tpu.memory_space<vmem>>, vector<8x8x64xf32>
    tpu.vector_store %arg5[%c1_169, %c1_170, %c0_171], %159 {strides = array<i32>} : memref<10x10x64xf32, #tpu.memory_space<vmem>>, vector<8x8x64xf32>,
    %c0_172 = arith.constant 0 : index
    %c0_173 = arith.constant 0 : index
    %c0_174 = arith.constant 0 : index
    %161 = vector.load %arg5[%c0_172, %c0_173, %c0_174] : memref<10x10x64xf32, #tpu.memory_space<vmem>>, vector<10x8x64xf32>
    %c0_175 = arith.constant 0 : index
    %c1_176 = arith.constant 1 : index
    %c0_177 = arith.constant 0 : index
    %162 = vector.load %arg5[%c0_175, %c1_176, %c0_177] : memref<10x10x64xf32, #tpu.memory_space<vmem>>, vector<10x8x64xf32>
    %c0_178 = arith.constant 0 : index
    %c2_179 = arith.constant 2 : index
    %c0_180 = arith.constant 0 : index
    %163 = vector.load %arg5[%c0_178, %c2_179, %c0_180] : memref<10x10x64xf32, #tpu.memory_space<vmem>>, vector<10x8x64xf32>
    %164 = tpu.concatenate %161, %162, %163 in 2 : vector<10x8x64xf32>, vector<10x8x64xf32>, vector<10x8x64xf32> -> vector<10x8x192xf32>
    %165 = vector.shape_cast %164 : vector<10x8x192xf32> to vector<80x192xf32>
    %c6 = arith.constant 6 : index
    %c0_181 = arith.constant 0 : index
    %c0_182 = arith.constant 0 : index
    %c0_183 = arith.constant 0 : index
    %166 = vector.load %arg2[%c6, %c0_181, %c0_182, %c0_183] : memref<10x3x192x64xf32, #tpu.memory_space<vmem>>, vector<1x1x192x64xf32>
    %167 = vector.shape_cast %166 : vector<1x1x192x64xf32> to vector<192x64xf32>
    %cst_184 = arith.constant dense<0.000000e+00> : vector<80x64xf32>
    %168 = tpu.matmul %165, %167, %cst_184 {dimension_numbers = #tpu.dot_dimension_numbers<[1], [0], [0], [1], [0, 0, 1, 1], [], []>} : vector<80x192xf32>, vector<192x64xf32>, vector<80x64xf32> -> vector<80x64xf32>
    %169 = vector.shape_cast %168 : vector<80x64xf32> to vector<10x8x64xf32>
    %170 = vector.extract_strided_slice %169 {offsets = [0, 0, 0], sizes = [8, 8, 64], strides = [1, 1, 1]} : vector<10x8x64xf32> to vector<8x8x64xf32>
    %c6_185 = arith.constant 6 : index
    %c1_186 = arith.constant 1 : index
    %c0_187 = arith.constant 0 : index
    %c0_188 = arith.constant 0 : index
    %171 = vector.load %arg2[%c6_185, %c1_186, %c0_187, %c0_188] : memref<10x3x192x64xf32, #tpu.memory_space<vmem>>, vector<1x1x192x64xf32>
    %172 = vector.shape_cast %171 : vector<1x1x192x64xf32> to vector<192x64xf32>
    %cst_189 = arith.constant dense<0.000000e+00> : vector<80x64xf32>
    %173 = tpu.matmul %165, %172, %cst_189 {dimension_numbers = #tpu.dot_dimension_numbers<[1], [0], [0], [1], [0, 0, 1, 1], [], []>} : vector<80x192xf32>, vector<192x64xf32>, vector<80x64xf32> -> vector<80x64xf32>
    %174 = vector.shape_cast %173 : vector<80x64xf32> to vector<10x8x64xf32>
    %175 = vector.extract_strided_slice %174 {offsets = [1, 0, 0], sizes = [8, 8, 64], strides = [1, 1, 1]} : vector<10x8x64xf32> to vector<8x8x64xf32>
    %176 = arith.addf %170, %175 : vector<8x8x64xf32>
    %c6_190 = arith.constant 6 : index
    %c2_191 = arith.constant 2 : index
    %c0_192 = arith.constant 0 : index
    %c0_193 = arith.constant 0 : index
    %177 = vector.load %arg2[%c6_190, %c2_191, %c0_192, %c0_193] : memref<10x3x192x64xf32, #tpu.memory_space<vmem>>, vector<1x1x192x64xf32>
    %178 = vector.shape_cast %177 : vector<1x1x192x64xf32> to vector<192x64xf32>
    %cst_194 = arith.constant dense<0.000000e+00> : vector<80x64xf32>
    %179 = tpu.matmul %165, %178, %cst_194 {dimension_numbers = #tpu.dot_dimension_numbers<[1], [0], [0], [1], [0, 0, 1, 1], [], []>} : vector<80x192xf32>, vector<192x64xf32>, vector<80x64xf32> -> vector<80x64xf32>
    %180 = vector.shape_cast %179 : vector<80x64xf32> to vector<10x8x64xf32>
    %181 = vector.extract_strided_slice %180 {offsets = [2, 0, 0], sizes = [8, 8, 64], strides = [1, 1, 1]} : vector<10x8x64xf32> to vector<8x8x64xf32>
    %182 = arith.addf %176, %181 : vector<8x8x64xf32>
    %cst_195 = arith.constant 2.000000e-01 : f32
    %183 = vector.broadcast %cst_195 : f32 to vector<8x8x64xf32>
    %184 = arith.mulf %183, %182 : vector<8x8x64xf32>
    %185 = arith.maximumf %182, %184 : vector<8x8x64xf32>
    %c1_196 = arith.constant 1 : index
    %c1_197 = arith.constant 1 : index
    %c0_198 = arith.constant 0 : index
    %186 = vector.load %arg5[%c1_196, %c1_197, %c0_198] : memref<10x10x64xf32, #tpu.memory_space<vmem>>, vector<8x8x64xf32>
    tpu.vector_store %arg5[%c1_196, %c1_197, %c0_198], %185 {strides = array<i32>} : memref<10x10x64xf32, #tpu.memory_space<vmem>>, vector<8x8x64xf32>,
    %c0_199 = arith.constant 0 : index
    %c0_200 = arith.constant 0 : index
    %c0_201 = arith.constant 0 : index
    %187 = vector.load %arg5[%c0_199, %c0_200, %c0_201] : memref<10x10x64xf32, #tpu.memory_space<vmem>>, vector<10x8x64xf32>
    %c0_202 = arith.constant 0 : index
    %c1_203 = arith.constant 1 : index
    %c0_204 = arith.constant 0 : index
    %188 = vector.load %arg5[%c0_202, %c1_203, %c0_204] : memref<10x10x64xf32, #tpu.memory_space<vmem>>, vector<10x8x64xf32>
    %c0_205 = arith.constant 0 : index
    %c2_206 = arith.constant 2 : index
    %c0_207 = arith.constant 0 : index
    %189 = vector.load %arg5[%c0_205, %c2_206, %c0_207] : memref<10x10x64xf32, #tpu.memory_space<vmem>>, vector<10x8x64xf32>
    %190 = tpu.concatenate %187, %188, %189 in 2 : vector<10x8x64xf32>, vector<10x8x64xf32>, vector<10x8x64xf32> -> vector<10x8x192xf32>
    %191 = vector.shape_cast %190 : vector<10x8x192xf32> to vector<80x192xf32>
    %c7 = arith.constant 7 : index
    %c0_208 = arith.constant 0 : index
    %c0_209 = arith.constant 0 : index
    %c0_210 = arith.constant 0 : index
    %192 = vector.load %arg2[%c7, %c0_208, %c0_209, %c0_210] : memref<10x3x192x64xf32, #tpu.memory_space<vmem>>, vector<1x1x192x64xf32>
    %193 = vector.shape_cast %192 : vector<1x1x192x64xf32> to vector<192x64xf32>
    %cst_211 = arith.constant dense<0.000000e+00> : vector<80x64xf32>
    %194 = tpu.matmul %191, %193, %cst_211 {dimension_numbers = #tpu.dot_dimension_numbers<[1], [0], [0], [1], [0, 0, 1, 1], [], []>} : vector<80x192xf32>, vector<192x64xf32>, vector<80x64xf32> -> vector<80x64xf32>
    %195 = vector.shape_cast %194 : vector<80x64xf32> to vector<10x8x64xf32>
    %196 = vector.extract_strided_slice %195 {offsets = [0, 0, 0], sizes = [8, 8, 64], strides = [1, 1, 1]} : vector<10x8x64xf32> to vector<8x8x64xf32>
    %c7_212 = arith.constant 7 : index
    %c1_213 = arith.constant 1 : index
    %c0_214 = arith.constant 0 : index
    %c0_215 = arith.constant 0 : index
    %197 = vector.load %arg2[%c7_212, %c1_213, %c0_214, %c0_215] : memref<10x3x192x64xf32, #tpu.memory_space<vmem>>, vector<1x1x192x64xf32>
    %198 = vector.shape_cast %197 : vector<1x1x192x64xf32> to vector<192x64xf32>
    %cst_216 = arith.constant dense<0.000000e+00> : vector<80x64xf32>
    %199 = tpu.matmul %191, %198, %cst_216 {dimension_numbers = #tpu.dot_dimension_numbers<[1], [0], [0], [1], [0, 0, 1, 1], [], []>} : vector<80x192xf32>, vector<192x64xf32>, vector<80x64xf32> -> vector<80x64xf32>
    %200 = vector.shape_cast %199 : vector<80x64xf32> to vector<10x8x64xf32>
    %201 = vector.extract_strided_slice %200 {offsets = [1, 0, 0], sizes = [8, 8, 64], strides = [1, 1, 1]} : vector<10x8x64xf32> to vector<8x8x64xf32>
    %202 = arith.addf %196, %201 : vector<8x8x64xf32>
    %c7_217 = arith.constant 7 : index
    %c2_218 = arith.constant 2 : index
    %c0_219 = arith.constant 0 : index
    %c0_220 = arith.constant 0 : index
    %203 = vector.load %arg2[%c7_217, %c2_218, %c0_219, %c0_220] : memref<10x3x192x64xf32, #tpu.memory_space<vmem>>, vector<1x1x192x64xf32>
    %204 = vector.shape_cast %203 : vector<1x1x192x64xf32> to vector<192x64xf32>
    %cst_221 = arith.constant dense<0.000000e+00> : vector<80x64xf32>
    %205 = tpu.matmul %191, %204, %cst_221 {dimension_numbers = #tpu.dot_dimension_numbers<[1], [0], [0], [1], [0, 0, 1, 1], [], []>} : vector<80x192xf32>, vector<192x64xf32>, vector<80x64xf32> -> vector<80x64xf32>
    %206 = vector.shape_cast %205 : vector<80x64xf32> to vector<10x8x64xf32>
    %207 = vector.extract_strided_slice %206 {offsets = [2, 0, 0], sizes = [8, 8, 64], strides = [1, 1, 1]} : vector<10x8x64xf32> to vector<8x8x64xf32>
    %208 = arith.addf %202, %207 : vector<8x8x64xf32>
    %cst_222 = arith.constant 2.000000e-01 : f32
    %209 = vector.broadcast %cst_222 : f32 to vector<8x8x64xf32>
    %210 = arith.mulf %209, %208 : vector<8x8x64xf32>
    %211 = arith.maximumf %208, %210 : vector<8x8x64xf32>
    %c1_223 = arith.constant 1 : index
    %c1_224 = arith.constant 1 : index
    %c0_225 = arith.constant 0 : index
    %212 = vector.load %arg5[%c1_223, %c1_224, %c0_225] : memref<10x10x64xf32, #tpu.memory_space<vmem>>, vector<8x8x64xf32>
    tpu.vector_store %arg5[%c1_223, %c1_224, %c0_225], %211 {strides = array<i32>} : memref<10x10x64xf32, #tpu.memory_space<vmem>>, vector<8x8x64xf32>,
    %c0_226 = arith.constant 0 : index
    %c0_227 = arith.constant 0 : index
    %c0_228 = arith.constant 0 : index
    %213 = vector.load %arg5[%c0_226, %c0_227, %c0_228] : memref<10x10x64xf32, #tpu.memory_space<vmem>>, vector<10x8x64xf32>
    %c0_229 = arith.constant 0 : index
    %c1_230 = arith.constant 1 : index
    %c0_231 = arith.constant 0 : index
    %214 = vector.load %arg5[%c0_229, %c1_230, %c0_231] : memref<10x10x64xf32, #tpu.memory_space<vmem>>, vector<10x8x64xf32>
    %c0_232 = arith.constant 0 : index
    %c2_233 = arith.constant 2 : index
    %c0_234 = arith.constant 0 : index
    %215 = vector.load %arg5[%c0_232, %c2_233, %c0_234] : memref<10x10x64xf32, #tpu.memory_space<vmem>>, vector<10x8x64xf32>
    %216 = tpu.concatenate %213, %214, %215 in 2 : vector<10x8x64xf32>, vector<10x8x64xf32>, vector<10x8x64xf32> -> vector<10x8x192xf32>
    %217 = vector.shape_cast %216 : vector<10x8x192xf32> to vector<80x192xf32>
    %c8 = arith.constant 8 : index
    %c0_235 = arith.constant 0 : index
    %c0_236 = arith.constant 0 : index
    %c0_237 = arith.constant 0 : index
    %218 = vector.load %arg2[%c8, %c0_235, %c0_236, %c0_237] : memref<10x3x192x64xf32, #tpu.memory_space<vmem>>, vector<1x1x192x64xf32>
    %219 = vector.shape_cast %218 : vector<1x1x192x64xf32> to vector<192x64xf32>
    %cst_238 = arith.constant dense<0.000000e+00> : vector<80x64xf32>
    %220 = tpu.matmul %217, %219, %cst_238 {dimension_numbers = #tpu.dot_dimension_numbers<[1], [0], [0], [1], [0, 0, 1, 1], [], []>} : vector<80x192xf32>, vector<192x64xf32>, vector<80x64xf32> -> vector<80x64xf32>
    %221 = vector.shape_cast %220 : vector<80x64xf32> to vector<10x8x64xf32>
    %222 = vector.extract_strided_slice %221 {offsets = [0, 0, 0], sizes = [8, 8, 64], strides = [1, 1, 1]} : vector<10x8x64xf32> to vector<8x8x64xf32>
    %c8_239 = arith.constant 8 : index
    %c1_240 = arith.constant 1 : index
    %c0_241 = arith.constant 0 : index
    %c0_242 = arith.constant 0 : index
    %223 = vector.load %arg2[%c8_239, %c1_240, %c0_241, %c0_242] : memref<10x3x192x64xf32, #tpu.memory_space<vmem>>, vector<1x1x192x64xf32>
    %224 = vector.shape_cast %223 : vector<1x1x192x64xf32> to vector<192x64xf32>
    %cst_243 = arith.constant dense<0.000000e+00> : vector<80x64xf32>
    %225 = tpu.matmul %217, %224, %cst_243 {dimension_numbers = #tpu.dot_dimension_numbers<[1], [0], [0], [1], [0, 0, 1, 1], [], []>} : vector<80x192xf32>, vector<192x64xf32>, vector<80x64xf32> -> vector<80x64xf32>
    %226 = vector.shape_cast %225 : vector<80x64xf32> to vector<10x8x64xf32>
    %227 = vector.extract_strided_slice %226 {offsets = [1, 0, 0], sizes = [8, 8, 64], strides = [1, 1, 1]} : vector<10x8x64xf32> to vector<8x8x64xf32>
    %228 = arith.addf %222, %227 : vector<8x8x64xf32>
    %c8_244 = arith.constant 8 : index
    %c2_245 = arith.constant 2 : index
    %c0_246 = arith.constant 0 : index
    %c0_247 = arith.constant 0 : index
    %229 = vector.load %arg2[%c8_244, %c2_245, %c0_246, %c0_247] : memref<10x3x192x64xf32, #tpu.memory_space<vmem>>, vector<1x1x192x64xf32>
    %230 = vector.shape_cast %229 : vector<1x1x192x64xf32> to vector<192x64xf32>
    %cst_248 = arith.constant dense<0.000000e+00> : vector<80x64xf32>
    %231 = tpu.matmul %217, %230, %cst_248 {dimension_numbers = #tpu.dot_dimension_numbers<[1], [0], [0], [1], [0, 0, 1, 1], [], []>} : vector<80x192xf32>, vector<192x64xf32>, vector<80x64xf32> -> vector<80x64xf32>
    %232 = vector.shape_cast %231 : vector<80x64xf32> to vector<10x8x64xf32>
    %233 = vector.extract_strided_slice %232 {offsets = [2, 0, 0], sizes = [8, 8, 64], strides = [1, 1, 1]} : vector<10x8x64xf32> to vector<8x8x64xf32>
    %234 = arith.addf %228, %233 : vector<8x8x64xf32>
    %cst_249 = arith.constant 2.000000e-01 : f32
    %235 = vector.broadcast %cst_249 : f32 to vector<8x8x64xf32>
    %236 = arith.mulf %235, %234 : vector<8x8x64xf32>
    %237 = arith.maximumf %234, %236 : vector<8x8x64xf32>
    %c1_250 = arith.constant 1 : index
    %c1_251 = arith.constant 1 : index
    %c0_252 = arith.constant 0 : index
    %238 = vector.load %arg5[%c1_250, %c1_251, %c0_252] : memref<10x10x64xf32, #tpu.memory_space<vmem>>, vector<8x8x64xf32>
    tpu.vector_store %arg5[%c1_250, %c1_251, %c0_252], %237 {strides = array<i32>} : memref<10x10x64xf32, #tpu.memory_space<vmem>>, vector<8x8x64xf32>,
    %c0_253 = arith.constant 0 : index
    %c0_254 = arith.constant 0 : index
    %c0_255 = arith.constant 0 : index
    %239 = vector.load %arg5[%c0_253, %c0_254, %c0_255] : memref<10x10x64xf32, #tpu.memory_space<vmem>>, vector<10x8x64xf32>
    %c0_256 = arith.constant 0 : index
    %c1_257 = arith.constant 1 : index
    %c0_258 = arith.constant 0 : index
    %240 = vector.load %arg5[%c0_256, %c1_257, %c0_258] : memref<10x10x64xf32, #tpu.memory_space<vmem>>, vector<10x8x64xf32>
    %c0_259 = arith.constant 0 : index
    %c2_260 = arith.constant 2 : index
    %c0_261 = arith.constant 0 : index
    %241 = vector.load %arg5[%c0_259, %c2_260, %c0_261] : memref<10x10x64xf32, #tpu.memory_space<vmem>>, vector<10x8x64xf32>
    %242 = tpu.concatenate %239, %240, %241 in 2 : vector<10x8x64xf32>, vector<10x8x64xf32>, vector<10x8x64xf32> -> vector<10x8x192xf32>
    %243 = vector.shape_cast %242 : vector<10x8x192xf32> to vector<80x192xf32>
    %c9 = arith.constant 9 : index
    %c0_262 = arith.constant 0 : index
    %c0_263 = arith.constant 0 : index
    %c0_264 = arith.constant 0 : index
    %244 = vector.load %arg2[%c9, %c0_262, %c0_263, %c0_264] : memref<10x3x192x64xf32, #tpu.memory_space<vmem>>, vector<1x1x192x64xf32>
    %245 = vector.shape_cast %244 : vector<1x1x192x64xf32> to vector<192x64xf32>
    %cst_265 = arith.constant dense<0.000000e+00> : vector<80x64xf32>
    %246 = tpu.matmul %243, %245, %cst_265 {dimension_numbers = #tpu.dot_dimension_numbers<[1], [0], [0], [1], [0, 0, 1, 1], [], []>} : vector<80x192xf32>, vector<192x64xf32>, vector<80x64xf32> -> vector<80x64xf32>
    %247 = vector.shape_cast %246 : vector<80x64xf32> to vector<10x8x64xf32>
    %248 = vector.extract_strided_slice %247 {offsets = [0, 0, 0], sizes = [8, 8, 64], strides = [1, 1, 1]} : vector<10x8x64xf32> to vector<8x8x64xf32>
    %c9_266 = arith.constant 9 : index
    %c1_267 = arith.constant 1 : index
    %c0_268 = arith.constant 0 : index
    %c0_269 = arith.constant 0 : index
    %249 = vector.load %arg2[%c9_266, %c1_267, %c0_268, %c0_269] : memref<10x3x192x64xf32, #tpu.memory_space<vmem>>, vector<1x1x192x64xf32>
    %250 = vector.shape_cast %249 : vector<1x1x192x64xf32> to vector<192x64xf32>
    %cst_270 = arith.constant dense<0.000000e+00> : vector<80x64xf32>
    %251 = tpu.matmul %243, %250, %cst_270 {dimension_numbers = #tpu.dot_dimension_numbers<[1], [0], [0], [1], [0, 0, 1, 1], [], []>} : vector<80x192xf32>, vector<192x64xf32>, vector<80x64xf32> -> vector<80x64xf32>
    %252 = vector.shape_cast %251 : vector<80x64xf32> to vector<10x8x64xf32>
    %253 = vector.extract_strided_slice %252 {offsets = [1, 0, 0], sizes = [8, 8, 64], strides = [1, 1, 1]} : vector<10x8x64xf32> to vector<8x8x64xf32>
    %254 = arith.addf %248, %253 : vector<8x8x64xf32>
    %c9_271 = arith.constant 9 : index
    %c2_272 = arith.constant 2 : index
    %c0_273 = arith.constant 0 : index
    %c0_274 = arith.constant 0 : index
    %255 = vector.load %arg2[%c9_271, %c2_272, %c0_273, %c0_274] : memref<10x3x192x64xf32, #tpu.memory_space<vmem>>, vector<1x1x192x64xf32>
    %256 = vector.shape_cast %255 : vector<1x1x192x64xf32> to vector<192x64xf32>
    %cst_275 = arith.constant dense<0.000000e+00> : vector<80x64xf32>
    %257 = tpu.matmul %243, %256, %cst_275 {dimension_numbers = #tpu.dot_dimension_numbers<[1], [0], [0], [1], [0, 0, 1, 1], [], []>} : vector<80x192xf32>, vector<192x64xf32>, vector<80x64xf32> -> vector<80x64xf32>
    %258 = vector.shape_cast %257 : vector<80x64xf32> to vector<10x8x64xf32>
    %259 = vector.extract_strided_slice %258 {offsets = [2, 0, 0], sizes = [8, 8, 64], strides = [1, 1, 1]} : vector<10x8x64xf32> to vector<8x8x64xf32>
    %260 = arith.addf %254, %259 : vector<8x8x64xf32>
    %cst_276 = arith.constant 2.000000e-01 : f32
    %261 = vector.broadcast %cst_276 : f32 to vector<8x8x64xf32>
    %262 = arith.mulf %261, %260 : vector<8x8x64xf32>
    %263 = arith.maximumf %260, %262 : vector<8x8x64xf32>
    %c1_277 = arith.constant 1 : index
    %c1_278 = arith.constant 1 : index
    %c0_279 = arith.constant 0 : index
    %264 = vector.load %arg5[%c1_277, %c1_278, %c0_279] : memref<10x10x64xf32, #tpu.memory_space<vmem>>, vector<8x8x64xf32>
    tpu.vector_store %arg5[%c1_277, %c1_278, %c0_279], %263 {strides = array<i32>} : memref<10x10x64xf32, #tpu.memory_space<vmem>>, vector<8x8x64xf32>,
    %c0_280 = arith.constant 0 : index
    %c0_281 = arith.constant 0 : index
    %c0_282 = arith.constant 0 : index
    %265 = vector.load %arg5[%c0_280, %c0_281, %c0_282] : memref<10x10x64xf32, #tpu.memory_space<vmem>>, vector<10x8x64xf32>
    %c0_283 = arith.constant 0 : index
    %c1_284 = arith.constant 1 : index
    %c0_285 = arith.constant 0 : index
    %266 = vector.load %arg5[%c0_283, %c1_284, %c0_285] : memref<10x10x64xf32, #tpu.memory_space<vmem>>, vector<10x8x64xf32>
    %c0_286 = arith.constant 0 : index
    %c2_287 = arith.constant 2 : index
    %c0_288 = arith.constant 0 : index
    %267 = vector.load %arg5[%c0_286, %c2_287, %c0_288] : memref<10x10x64xf32, #tpu.memory_space<vmem>>, vector<10x8x64xf32>
    %268 = tpu.concatenate %265, %266, %267 in 2 : vector<10x8x64xf32>, vector<10x8x64xf32>, vector<10x8x64xf32> -> vector<10x8x192xf32>
    %269 = vector.shape_cast %268 : vector<10x8x192xf32> to vector<80x192xf32>
    %c1_289 = arith.constant 1 : index
    %c0_290 = arith.constant 0 : index
    %c0_291 = arith.constant 0 : index
    %270 = vector.load %arg3[%c1_289, %c0_290, %c0_291] : memref<4x192x128xf32, #tpu.memory_space<vmem>>, vector<1x192x128xf32>
    %271 = vector.shape_cast %270 : vector<1x192x128xf32> to vector<192x128xf32>
    %cst_292 = arith.constant dense<0.000000e+00> : vector<80x128xf32>
    %272 = tpu.matmul %269, %271, %cst_292 {dimension_numbers = #tpu.dot_dimension_numbers<[1], [0], [0], [1], [0, 0, 1, 1], [], []>} : vector<80x192xf32>, vector<192x128xf32>, vector<80x128xf32> -> vector<80x128xf32>
    %273 = vector.shape_cast %272 : vector<80x128xf32> to vector<10x8x128xf32>
    %274 = vector.extract_strided_slice %273 {offsets = [1, 0, 0], sizes = [8, 8, 128], strides = [1, 1, 1]} : vector<10x8x128xf32> to vector<8x8x128xf32>
    %c3_293 = arith.constant 3 : index
    %c0_294 = arith.constant 0 : index
    %c0_295 = arith.constant 0 : index
    %275 = vector.load %arg3[%c3_293, %c0_294, %c0_295] : memref<4x192x128xf32, #tpu.memory_space<vmem>>, vector<1x192x128xf32>
    %276 = vector.shape_cast %275 : vector<1x192x128xf32> to vector<192x128xf32>
    %cst_296 = arith.constant dense<0.000000e+00> : vector<80x128xf32>
    %277 = tpu.matmul %269, %276, %cst_296 {dimension_numbers = #tpu.dot_dimension_numbers<[1], [0], [0], [1], [0, 0, 1, 1], [], []>} : vector<80x192xf32>, vector<192x128xf32>, vector<80x128xf32> -> vector<80x128xf32>
    %278 = vector.shape_cast %277 : vector<80x128xf32> to vector<10x8x128xf32>
    %279 = vector.extract_strided_slice %278 {offsets = [0, 0, 0], sizes = [8, 8, 128], strides = [1, 1, 1]} : vector<10x8x128xf32> to vector<8x8x128xf32>
    %280 = arith.addf %274, %279 : vector<8x8x128xf32>
    %cst_297 = arith.constant 2.000000e-01 : f32
    %281 = vector.broadcast %cst_297 : f32 to vector<8x8x128xf32>
    %282 = arith.mulf %281, %280 : vector<8x8x128xf32>
    %283 = arith.maximumf %280, %282 : vector<8x8x128xf32>
    %c0_298 = arith.constant 0 : index
    %c0_299 = arith.constant 0 : index
    %c0_300 = arith.constant 0 : index
    %284 = vector.load %arg3[%c0_298, %c0_299, %c0_300] : memref<4x192x128xf32, #tpu.memory_space<vmem>>, vector<1x192x128xf32>
    %285 = vector.shape_cast %284 : vector<1x192x128xf32> to vector<192x128xf32>
    %cst_301 = arith.constant dense<0.000000e+00> : vector<80x128xf32>
    %286 = tpu.matmul %269, %285, %cst_301 {dimension_numbers = #tpu.dot_dimension_numbers<[1], [0], [0], [1], [0, 0, 1, 1], [], []>} : vector<80x192xf32>, vector<192x128xf32>, vector<80x128xf32> -> vector<80x128xf32>
    %287 = vector.shape_cast %286 : vector<80x128xf32> to vector<10x8x128xf32>
    %288 = vector.extract_strided_slice %287 {offsets = [2, 0, 0], sizes = [8, 8, 128], strides = [1, 1, 1]} : vector<10x8x128xf32> to vector<8x8x128xf32>
    %c2_302 = arith.constant 2 : index
    %c0_303 = arith.constant 0 : index
    %c0_304 = arith.constant 0 : index
    %289 = vector.load %arg3[%c2_302, %c0_303, %c0_304] : memref<4x192x128xf32, #tpu.memory_space<vmem>>, vector<1x192x128xf32>
    %290 = vector.shape_cast %289 : vector<1x192x128xf32> to vector<192x128xf32>
    %cst_305 = arith.constant dense<0.000000e+00> : vector<80x128xf32>
    %291 = tpu.matmul %269, %290, %cst_305 {dimension_numbers = #tpu.dot_dimension_numbers<[1], [0], [0], [1], [0, 0, 1, 1], [], []>} : vector<80x192xf32>, vector<192x128xf32>, vector<80x128xf32> -> vector<80x128xf32>
    %292 = vector.shape_cast %291 : vector<80x128xf32> to vector<10x8x128xf32>
    %293 = vector.extract_strided_slice %292 {offsets = [1, 0, 0], sizes = [8, 8, 128], strides = [1, 1, 1]} : vector<10x8x128xf32> to vector<8x8x128xf32>
    %294 = arith.addf %288, %293 : vector<8x8x128xf32>
    %cst_306 = arith.constant 2.000000e-01 : f32
    %295 = vector.broadcast %cst_306 : f32 to vector<8x8x128xf32>
    %296 = arith.mulf %295, %294 : vector<8x8x128xf32>
    %297 = arith.maximumf %294, %296 : vector<8x8x128xf32>
    %298 = vector.shape_cast %283 : vector<8x8x128xf32> to vector<8x1x8x128xf32>
    %299 = vector.shape_cast %297 : vector<8x8x128xf32> to vector<8x1x8x128xf32>
    %300 = tpu.concatenate %298, %299 in 1 : vector<8x1x8x128xf32>, vector<8x1x8x128xf32> -> vector<8x2x8x128xf32>
    %301 = vector.shape_cast %300 : vector<8x2x8x128xf32> to vector<16x8x128xf32>
    %c0_307 = arith.constant 0 : index
    %c0_308 = arith.constant 0 : index
    %c0_309 = arith.constant 0 : index
    %c0_310 = arith.constant 0 : index
    %302 = vector.load %arg4[%c0_307, %c0_308, %c0_309, %c0_310] : memref<1x16x8x128xf32, #tpu.memory_space<vmem>>, vector<1x16x8x128xf32>
    %303 = vector.shape_cast %302 : vector<1x16x8x128xf32> to vector<16x8x128xf32>
    %304 = vector.shape_cast %301 : vector<16x8x128xf32> to vector<1x16x8x128xf32>
    tpu.vector_store %arg4[%c0_307, %c0_308, %c0_309, %c0_310], %304 {strides = array<i32>} : memref<1x16x8x128xf32, #tpu.memory_space<vmem>>, vector<1x16x8x128xf32>,
    return
  }
  func.func @transform_0(%arg0: i32) -> (i32, i32, i32, i32) {
    %c0_i32 = arith.constant 0 : i32
    %c0_i32_0 = arith.constant 0 : i32
    %c0_i32_1 = arith.constant 0 : i32
    %c0_i32_2 = arith.constant 0 : i32
    return %arg0, %c0_i32, %c0_i32_0, %c0_i32_1 : i32, i32, i32, i32
  }
  func.func @transform_1(%arg0: i32) -> (i32, i32, i32, i32) {
    %c0_i32 = arith.constant 0 : i32
    %c0_i32_0 = arith.constant 0 : i32
    %c0_i32_1 = arith.constant 0 : i32
    %c0_i32_2 = arith.constant 0 : i32
    %c0_i32_3 = arith.constant 0 : i32
    return %c0_i32, %c0_i32_0, %c0_i32_1, %c0_i32_2 : i32, i32, i32, i32
  }
  func.func @transform_2(%arg0: i32) -> (i32, i32, i32) {
    %c0_i32 = arith.constant 0 : i32
    %c0_i32_0 = arith.constant 0 : i32
    %c0_i32_1 = arith.constant 0 : i32
    %c0_i32_2 = arith.constant 0 : i32
    return %c0_i32, %c0_i32_0, %c0_i32_1 : i32, i32, i32
  }
  func.func @transform_3(%arg0: i32) -> (i32, i32, i32, i32) {
    %c0_i32 = arith.constant 0 : i32
    %c0_i32_0 = arith.constant 0 : i32
    %c0_i32_1 = arith.constant 0 : i32
    %c0_i32_2 = arith.constant 0 : i32
    return %arg0, %c0_i32, %c0_i32_0, %c0_i32_1 : i32, i32, i32, i32
  }
}

</mosaic_0001>

<llo_original>
// kernel: conv_block_forward.1
$region0: #{conv_block_forward.1}
  #allocation0 [shape = 'u32[]', space=smem, size = 0x4, offset = 0x4, fixed_abs, tag = 'smem constant byte address 0x4 - core index']
  #allocation1 [shape = 'u32[72,128]{1,0:T(1,128)}', space=vmem, size = 0x9000, scoped, tag = 'internal scratch']
  #allocation2 [shape = 'f32[10,10,64]{2,1,0:T(8,128)}', space=vmem, size = 0x14000, scoped, tag = 'scratch operand']
  %s0 = inlined_call_operand.hbm [shape: f32[2,8,8,64], index: 0, kind: input, shape index: {}]
  %s1 = inlined_call_operand.hbm [shape: f32[10,3,192,64], index: 1, kind: input, shape index: {}]
  %s2 = inlined_call_operand.vmem [shape: f32[4,192,128], index: 2, kind: input, shape index: {}]
  %s3 = inlined_call_operand.vmem [shape: f32[2,16,8,128], index: 3, kind: output, shape index: {}]
  %s4 = sld [smem:[#allocation0]]
  $region53: #{conv_block_forward.1} parent=0
    _
  %s6 = ssub.s32 1, %s4
  %s7 = scalar_select 0, %s6, %s4
  $region1: #{conv_block_forward.1} parent=0
    #allocation3 [shape = 'u8[65536]{0}', space=vmem, size = 0x10000, scoped, tag = 'input window, operand 0']
    #allocation4 [shape = 's32[2]{0}', space=sflag, size = 0x8, scoped, tag = 'scoped memory for conv_block_forward.1']
    #allocation5 [shape = 'u8[2949120]{0}', space=vmem, size = 0x2d0000, scoped, tag = 'input window, operand 1, single buffered']
    #allocation6 [shape = 's32[1]{0}', space=sflag, size = 0x4, scoped, tag = 'scoped memory for conv_block_forward.1']
    %8 = vsyncpa [#allocation4], 0
    %s9 = scalar_lea.sflag [#allocation4], 1
    %10 = vsyncpa %s9, 0
    %11 = vsyncpa [#allocation6], 0
    loop: start=0, step=1, limit=4
    $region2: #{conv_block_forward.1} parent=1 // loop_pre_header
      _
    $region3: #{conv_block_forward.1} parent=1 // loop_header
      %s13 = sphi 0, %s17
      %p14 = scmp.ge.s32.totalorder %s13, 4
      %s23 = sphi 0, %s25
      %s26 = sphi 0, %s23
      %s27 = sphi 0, %s26
      %s43 = sphi 0, %s27
      %s47 = sphi 0, %s47
      %s49 = sphi 0, %s47
      %s50 = sphi 0, %s49
      %s64 = sphi 0, %s50
      %s68 = sphi 0, %s68
      %s70 = sphi 0, %s68
      %s71 = sphi 0, %s70
      %s85 = sphi 0, %s71
      %s91 = sphi 0, %s93
      %s94 = sphi 0, %s91
      %s95 = sphi 0, %s94
      %s111 = sphi 0, %s95
    $region4: #{conv_block_forward.1} parent=1 // loop_header_branch
      %16 = sbr.rel (%p14) target = $region8
    $region5: #{conv_block_forward.1} parent=1 // loop_body
      %s18 = ssub.s32 %s13, 1
      %s19 = ssub.s32 %s13, 2
      %s20 = sadd.s32 %s13, 1
      %s21 = ssub.s32 %s13, %s20
      %p22 = scmp.eq.s32.totalorder %s21, 0
      %s24 = sadd.s32 %s23, 1
      %s25 = scalar_select %p22, %s23, %s24
      %p28 = pneg %p22
      %p29 = scmp.eq.s32.totalorder %s13, 1
      %p30 = por %p28, %p29
      %p31 = scmp.ne.s32.totalorder %s23, %s26
      %p32 = scmp.eq.s32.totalorder %s13, 0
      %p33 = por %p31, %p32
      %p34 = scmp.ne.s32.totalorder %s23, %s26
      %p35 = scmp.eq.s32.totalorder %s18, 1
      %p36 = por %p34, %p35
      %p37 = scmp.ne.s32.totalorder %s26, %s27
      %p38 = scmp.eq.s32.totalorder %s18, 0
      %p39 = por %p37, %p38
      %p40 = scmp.ne.s32.totalorder %s26, %s27
      %p41 = scmp.eq.s32.totalorder %s19, 1
      %p42 = por %p40, %p41
      %p44 = scmp.ne.s32.totalorder %s27, %s43
      %p45 = scmp.eq.s32.totalorder %s19, 0
      %p46 = por %p44, %p45
      %s48 = sadd.s32 %s47, 1
      %p51 = scmp.eq.s32.totalorder %s13, 1
      %p52 = scmp.ne.s32.totalorder %s47, %s49
      %p53 = scmp.eq.s32.totalorder %s13, 0
      %p54 = por %p52, %p53
      %p55 = scmp.ne.s32.totalorder %s47, %s49
      %p56 = scmp.eq.s32.totalorder %s18, 1
      %p57 = por %p55, %p56
      %p58 = scmp.ne.s32.totalorder %s49, %s50
      %p59 = scmp.eq.s32.totalorder %s18, 0
      %p60 = por %p58, %p59
      %p61 = scmp.ne.s32.totalorder %s49, %s50
      %p62 = scmp.eq.s32.totalorder %s19, 1
      %p63 = por %p61, %p62
      %p65 = scmp.ne.s32.totalorder %s50, %s64
      %p66 = scmp.eq.s32.totalorder %s19, 0
      %p67 = por %p65, %p66
      %s69 = sadd.s32 %s68, 1
      %p72 = scmp.eq.s32.totalorder %s13, 1
      %p73 = scmp.ne.s32.totalorder %s68, %s70
      %p74 = scmp.eq.s32.totalorder %s13, 0
      %p75 = por %p73, %p74
      %p76 = scmp.ne.s32.totalorder %s68, %s70
      %p77 = scmp.eq.s32.totalorder %s18, 1
      %p78 = por %p76, %p77
      %p79 = scmp.ne.s32.totalorder %s70, %s71
      %p80 = scmp.eq.s32.totalorder %s18, 0
      %p81 = por %p79, %p80
      %p82 = scmp.ne.s32.totalorder %s70, %s71
      %p83 = scmp.eq.s32.totalorder %s19, 1
      %p84 = por %p82, %p83
      %p86 = scmp.ne.s32.totalorder %s71, %s85
      %p87 = scmp.eq.s32.totalorder %s19, 0
      %p88 = por %p86, %p87
      %s89 = ssub.s32 %s13, %s20
      %p90 = scmp.eq.s32.totalorder %s89, 0
      %s92 = sadd.s32 %s91, 1
      %s93 = scalar_select %p90, %s91, %s92
      %p96 = pneg %p90
      %p97 = scmp.eq.s32.totalorder %s13, 1
      %p98 = por %p96, %p97
      %p99 = scmp.ne.s32.totalorder %s91, %s94
      %p100 = scmp.eq.s32.totalorder %s13, 0
      %p101 = por %p99, %p100
      %p102 = scmp.ne.s32.totalorder %s91, %s94
      %p103 = scmp.eq.s32.totalorder %s18, 1
      %p104 = por %p102, %p103
      %p105 = scmp.ne.s32.totalorder %s94, %s95
      %p106 = scmp.eq.s32.totalorder %s18, 0
      %p107 = por %p105, %p106
      %p108 = scmp.ne.s32.totalorder %s94, %s95
      %p109 = scmp.eq.s32.totalorder %s19, 1
      %p110 = por %p108, %p109
      %p112 = scmp.ne.s32.totalorder %s95, %s111
      %p113 = scmp.eq.s32.totalorder %s19, 0
      %p114 = por %p112, %p113
      %p115 = scmp.le.s32.totalorder 1, %s13
      %p116 = scmp.lt.s32.totalorder %s13, 3
      %p117 = pnand %p115, %p116
      %p118 = pneg %p117
      // Predicated region
      $region9: #{conv_block_forward.1} parent=5 // pred_check
        _
      $region10: #{conv_block_forward.1} parent=5 // pred_check_branch
        %120 = sbr.rel (%p117) target = $region12
      $region11: #{conv_block_forward.1} parent=5 // pred_region
        %s121 = ssub.s32 %s13, 1
        // Predicated region
        $region13: #{conv_block_forward.1} parent=11 // pred_check
          %p122 = pneg %p60
        $region14: #{conv_block_forward.1} parent=11 // pred_check_branch
          %124 = sbr.rel (%p122) target = $region16
        $region15: #{conv_block_forward.1} parent=11 // pred_region
          %126 = vsyncadd [#allocation6], 0
          %s127 = sshll.u32 %s1, 4
          %s128 = int_to_ptr.hbm [resolvable:$true] %s127
          %s129 = sshll.u32 [#allocation5], 4
          %s130 = int_to_ptr.vmem [resolvable:$true] %s129
          %135 = dma.hbm_to_vmem [thread:$0]  %s128, 92160, %s130, [#allocation6], 128, 128, 8
        $region16: #{conv_block_forward.1} parent=11 // pred_fallthru
          _
        // Predicated region
        $region17: #{conv_block_forward.1} parent=11 // pred_check
          %p136 = pneg %p81
        $region18: #{conv_block_forward.1} parent=11 // pred_check_branch
          %138 = sbr.rel (%p136) target = $region20
        $region19: #{conv_block_forward.1} parent=11 // pred_region
          _
        $region20: #{conv_block_forward.1} parent=11 // pred_fallthru
          _
      $region12: #{conv_block_forward.1} parent=5 // pred_fallthru
        _
      %p139 = scmp.lt.s32.totalorder %s13, 2
      // Predicated region
      $region21: #{conv_block_forward.1} parent=5 // pred_check
        %p140 = pneg %p139
      $region22: #{conv_block_forward.1} parent=5 // pred_check_branch
        %142 = sbr.rel (%p140) target = $region24
      $region23: #{conv_block_forward.1} parent=5 // pred_region
        // Predicated region
        $region25: #{conv_block_forward.1} parent=23 // pred_check
          %p143 = pneg %p33
        $region26: #{conv_block_forward.1} parent=23 // pred_check_branch
          %145 = sbr.rel (%p143) target = $region28
        $region27: #{conv_block_forward.1} parent=23 // pred_region
          %s146 = sand.u32 %s23, 1
          %s147 = scalar_lea.sflag [#allocation4], %s146
          %s148 = sand.u32 %s23, 1
          %s149 = smul.addr %s148, 64
          %s150 = scalar_lea.vmem [#allocation3], %s149
          %152 = vsyncadd %s147, 0
          %s153 = smul.addr %s13, 8
          %s154 = smul.addr %s153, 8
          %s155 = scalar_lea.hbm %s0, %s154
          %s156 = sshll.u32 %s155, 4
          %s157 = int_to_ptr.hbm [resolvable:$true] %s156
          %s158 = sshll.u32 %s150, 4
          %s159 = int_to_ptr.vmem [resolvable:$true] %s158
          %164 = dma.hbm_to_vmem [thread:$0]  %s157, 1024, %s159, %s147, 128, 128, 8
        $region28: #{conv_block_forward.1} parent=23 // pred_fallthru
          _
      $region24: #{conv_block_forward.1} parent=5 // pred_fallthru
        _
      %p165 = scmp.le.s32.totalorder 1, %s13
      %p166 = scmp.lt.s32.totalorder %s13, 3
      %p167 = pnand %p165, %p166
      %p168 = pneg %p167
      // Predicated region
      $region29: #{conv_block_forward.1} parent=5 // pred_check
        _
      $region30: #{conv_block_forward.1} parent=5 // pred_check_branch
        %170 = sbr.rel (%p167) target = $region32
      $region31: #{conv_block_forward.1} parent=5 // pred_region
        %s171 = ssub.s32 %s13, 1
        %s172 = sand.u32 %s26, 1
        %s173 = scalar_lea.sflag [#allocation4], %s172
        %s174 = sand.u32 %s26, 1
        %s175 = smul.addr %s174, 64
        %s176 = scalar_lea.vmem [#allocation3], %s175
        // Predicated region
        $region33: #{conv_block_forward.1} parent=31 // pred_check
          %p177 = pneg %p39
        $region34: #{conv_block_forward.1} parent=31 // pred_check_branch
          %179 = sbr.rel (%p177) target = $region36
        $region35: #{conv_block_forward.1} parent=31 // pred_region
          %181 = dma.done %s173, 1024
        $region36: #{conv_block_forward.1} parent=31 // pred_fallthru
          _
        // Predicated region
        $region37: #{conv_block_forward.1} parent=31 // pred_check
          %p182 = pneg %p60
        $region38: #{conv_block_forward.1} parent=31 // pred_check_branch
          %184 = sbr.rel (%p182) target = $region40
        $region39: #{conv_block_forward.1} parent=31 // pred_region
          %186 = dma.done [#allocation6], 92160
        $region40: #{conv_block_forward.1} parent=31 // pred_fallthru
          _
        %s187 = sand.u32 %s26, 1
        %s188 = scalar_lea.sflag [#allocation4], %s187
        %s189 = sand.u32 %s26, 1
        %s190 = smul.addr %s189, 64
        %s191 = scalar_lea.vmem [#allocation3], %s190
        %p192 = pneg %p39
        %p193 = pneg %p36
        %p194 = pneg %p60
        %p195 = pneg %p57
        %p196 = pneg %p81
        %p197 = pneg %p78
        %p198 = pneg %p107
        %p199 = pneg %p104
        %p200 = scmp.lt.s32.totalorder %s18, 1
        %s201 = scalar_select %p200, %s18, 1
        %s202 = smul.addr %s201, 16
        %s203 = smul.addr %s202, 8
        %s204 = scalar_lea.vmem %s3, %s203
        %p205 = scmp.lt.s32.totalorder %s18, 1
        %s206 = scalar_select %p205, %s18, 1
        %s207 = smul.addr %s206, 16
        %s208 = smul.addr %s207, 8
        %s209 = scalar_lea.vmem %s3, %s208
        %vm210 = vcmask 523264
        %211 = vst.msk [vmem:[#allocation2] sm:$0xff] %vm210, 0.0
        %vm212 = vcmask 517120
        %213 = vst.msk [vmem:[#allocation2 + $0x8] sm:$0x3] %vm212, 0.0
        %214 = vst.msk [vmem:[#allocation2 + $0x10] sm:$0xff] %vm210, 0.0
        %215 = vst.msk [vmem:[#allocation2 + $0x18] sm:$0x3] %vm212, 0.0
        %216 = vst.msk [vmem:[#allocation2 + $0x20] sm:$0xff] %vm210, 0.0
        %217 = vst.msk [vmem:[#allocation2 + $0x28] sm:$0x3] %vm212, 0.0
        %218 = vst.msk [vmem:[#allocation2 + $0x30] sm:$0xff] %vm210, 0.0
        %219 = vst.msk [vmem:[#allocation2 + $0x38] sm:$0x3] %vm212, 0.0
        %220 = vst.msk [vmem:[#allocation2 + $0x40] sm:$0xff] %vm210, 0.0
        %221 = vst.msk [vmem:[#allocation2 + $0x48] sm:$0x3] %vm212, 0.0
        %222 = vst.msk [vmem:[#allocation2 + $0x50] sm:$0xff] %vm210, 0.0
        %223 = vst.msk [vmem:[#allocation2 + $0x58] sm:$0x3] %vm212, 0.0
        %224 = vst.msk [vmem:[#allocation2 + $0x60] sm:$0xff] %vm210, 0.0
        %225 = vst.msk [vmem:[#allocation2 + $0x68] sm:$0x3] %vm212, 0.0
        %226 = vst.msk [vmem:[#allocation2 + $0x70] sm:$0xff] %vm210, 0.0
        %227 = vst.msk [vmem:[#allocation2 + $0x78] sm:$0x3] %vm212, 0.0
        %228 = vst.msk [vmem:[#allocation2 + $0x80] sm:$0xff] %vm210, 0.0
        %229 = vst.msk [vmem:[#allocation2 + $0x88] sm:$0x3] %vm212, 0.0
        %230 = vst.msk [vmem:[#allocation2 + $0x90] sm:$0xff] %vm210, 0.0
        %231 = vst.msk [vmem:[#allocation2 + $0x98] sm:$0x3] %vm212, 0.0
        %v232 = vld [vmem:[%s176] sm:$0xff]
        %v233 = vld [vmem:[%s176 + $0x8] sm:$0xff]
        %v234 = vld [vmem:[%s176 + $0x10] sm:$0xff]
        %v235 = vld [vmem:[%s176 + $0x18] sm:$0xff]
        %v236 = vld [vmem:[%s176 + $0x20] sm:$0xff]
        %v237 = vld [vmem:[%s176 + $0x28] sm:$0xff]
        %v238 = vld [vmem:[%s176 + $0x30] sm:$0xff]
        %v239 = vld [vmem:[%s176 + $0x38] sm:$0xff]
        %s240 = scalar_lea.vmem [#allocation2], 16
        %241 = vst.msk [vmem:[%s240 + $0x1] sm:$0xff] %vm210, %v232
        %242 = vst.msk [vmem:[%s240 + $0x11] sm:$0xff] %vm210, %v233
        %243 = vst.msk [vmem:[%s240 + $0x21] sm:$0xff] %vm210, %v234
        %244 = vst.msk [vmem:[%s240 + $0x31] sm:$0xff] %vm210, %v235
        %245 = vst.msk [vmem:[%s240 + $0x41] sm:$0xff] %vm210, %v236
        %246 = vst.msk [vmem:[%s240 + $0x51] sm:$0xff] %vm210, %v237
        %247 = vst.msk [vmem:[%s240 + $0x61] sm:$0xff] %vm210, %v238
        %248 = vst.msk [vmem:[%s240 + $0x71] sm:$0xff] %vm210, %v239
        %v249 = vld [vmem:[#allocation2] sm:$0xff]
        %v250 = vld [vmem:[#allocation2 + $0x10] sm:$0xff]
        %v251 = vld [vmem:[#allocation2 + $0x20] sm:$0xff]
        %v252 = vld [vmem:[#allocation2 + $0x30] sm:$0xff]
        %v253 = vld [vmem:[#allocation2 + $0x40] sm:$0xff]
        %v254 = vld [vmem:[#allocation2 + $0x50] sm:$0xff]
        %v255 = vld [vmem:[#allocation2 + $0x60] sm:$0xff]
        %v256 = vld [vmem:[#allocation2 + $0x70] sm:$0xff]
        %v257 = vld [vmem:[#allocation2 + $0x80] sm:$0xff]
        %v258 = vld [vmem:[#allocation2 + $0x90] sm:$0xff]
        %v259 = vld [vmem:[#allocation2 + $0x1] sm:$0xff]
        %v260 = vld [vmem:[#allocation2 + $0x11] sm:$0xff]
        %v261 = vld [vmem:[#allocation2 + $0x21] sm:$0xff]
        %v262 = vld [vmem:[#allocation2 + $0x31] sm:$0xff]
        %v263 = vld [vmem:[#allocation2 + $0x41] sm:$0xff]
        %v264 = vld [vmem:[#allocation2 + $0x51] sm:$0xff]
        %v265 = vld [vmem:[#allocation2 + $0x61] sm:$0xff]
        %v266 = vld [vmem:[#allocation2 + $0x71] sm:$0xff]
        %v267 = vld [vmem:[#allocation2 + $0x81] sm:$0xff]
        %v268 = vld [vmem:[#allocation2 + $0x91] sm:$0xff]
        %v269 = vld [vmem:[#allocation2 + $0x2] sm:$0xff]
        %v270 = vld [vmem:[#allocation2 + $0x12] sm:$0xff]
        %v271 = vld [vmem:[#allocation2 + $0x22] sm:$0xff]
        %v272 = vld [vmem:[#allocation2 + $0x32] sm:$0xff]
        %v273 = vld [vmem:[#allocation2 + $0x42] sm:$0xff]
        %v274 = vld [vmem:[#allocation2 + $0x52] sm:$0xff]
        %v275 = vld [vmem:[#allocation2 + $0x62] sm:$0xff]
        %v276 = vld [vmem:[#allocation2 + $0x72] sm:$0xff]
        %v277 = vld [vmem:[#allocation2 + $0x82] sm:$0xff]
        %v278 = vld [vmem:[#allocation2 + $0x92] sm:$0xff]
        %289 = vrot.lane.b32.xlu0 %v259, 64
        %v290 = vpop.permute.xlu0 %289
        %291 = vrot.lane.b32.xlu0 %v260, 64
        %v292 = vpop.permute.xlu0 %291
        %293 = vrot.lane.b32.xlu0 %v261, 64
        %v294 = vpop.permute.xlu0 %293
        %295 = vrot.lane.b32.xlu0 %v262, 64
        %v296 = vpop.permute.xlu0 %295
        %297 = vrot.lane.b32.xlu0 %v263, 64
        %v298 = vpop.permute.xlu0 %297
        %299 = vrot.lane.b32.xlu0 %v264, 64
        %v300 = vpop.permute.xlu0 %299
        %301 = vrot.lane.b32.xlu0 %v265, 64
        %v302 = vpop.permute.xlu0 %301
        %303 = vrot.lane.b32.xlu0 %v266, 64
        %v304 = vpop.permute.xlu0 %303
        %305 = vrot.lane.b32.xlu0 %v267, 64
        %v306 = vpop.permute.xlu0 %305
        %307 = vrot.lane.b32.xlu0 %v268, 64
        %v308 = vpop.permute.xlu0 %307
        %v319 = vsel %vm210, %v249, %v290
        %v320 = vsel %vm210, %v250, %v292
        %v321 = vsel %vm210, %v251, %v294
        %v322 = vsel %vm210, %v252, %v296
        %v323 = vsel %vm210, %v253, %v298
        %v324 = vsel %vm210, %v254, %v300
        %v325 = vsel %vm210, %v255, %v302
        %v326 = vsel %vm210, %v256, %v304
        %v327 = vsel %vm210, %v257, %v306
        %v328 = vsel %vm210, %v258, %v308
        %v329 = vld [vmem:[#allocation5] sm:$0xff]
        %v330 = vld [vmem:[#allocation5 + $0x8] sm:$0xff]
        %v331 = vld [vmem:[#allocation5 + $0x10] sm:$0xff]
        %v332 = vld [vmem:[#allocation5 + $0x18] sm:$0xff]
        %v333 = vld [vmem:[#allocation5 + $0x20] sm:$0xff]
        %v334 = vld [vmem:[#allocation5 + $0x28] sm:$0xff]
        %v335 = vld [vmem:[#allocation5 + $0x30] sm:$0xff]
        %v336 = vld [vmem:[#allocation5 + $0x38] sm:$0xff]
        %v337 = vld [vmem:[#allocation5 + $0x40] sm:$0xff]
        %v338 = vld [vmem:[#allocation5 + $0x48] sm:$0xff]
        %v339 = vld [vmem:[#allocation5 + $0x50] sm:$0xff]
        %v340 = vld [vmem:[#allocation5 + $0x58] sm:$0xff]
        %v341 = vld [vmem:[#allocation5 + $0x60] sm:$0xff]
        %v342 = vld [vmem:[#allocation5 + $0x68] sm:$0xff]
        %v343 = vld [vmem:[#allocation5 + $0x70] sm:$0xff]
        %v344 = vld [vmem:[#allocation5 + $0x78] sm:$0xff]
        %v345 = vld [vmem:[#allocation5 + $0x80] sm:$0xff]
        %v346 = vld [vmem:[#allocation5 + $0x88] sm:$0xff]
        %v347 = vld [vmem:[#allocation5 + $0x90] sm:$0xff]
        %v348 = vld [vmem:[#allocation5 + $0x98] sm:$0xff]
        %v349 = vld [vmem:[#allocation5 + $0xa0] sm:$0xff]
        %v350 = vld [vmem:[#allocation5 + $0xa8] sm:$0xff]
        %v351 = vld [vmem:[#allocation5 + $0xb0] sm:$0xff]
        %v352 = vld [vmem:[#allocation5 + $0xb8] sm:$0xff]
        %v354 = vsel %vm210, %v269, 0
        %v357 = vsel %vm210, %v270, 0
        %v360 = vsel %vm210, %v271, 0
        %v363 = vsel %vm210, %v272, 0
        %v366 = vsel %vm210, %v273, 0
        %v369 = vsel %vm210, %v274, 0
        %v372 = vsel %vm210, %v275, 0
        %v375 = vsel %vm210, %v276, 0
        %v378 = vsel %vm210, %v277, 0
        %v381 = vsel %vm210, %v278, 0
        %383 = vmatpush.msra.mxu0 %v344
        %384 = vmatpush.msra.mxu0 %v343
        %385 = vmatpush.msra.mxu0 %v342
        %386 = vmatpush.msra.mxu0 %v341
        %387 = vmatpush.msra.mxu0 %v340
        %388 = vmatpush.msra.mxu0 %v339
        %389 = vmatpush.msra.mxu0 %v338
        %390 = vmatpush.msra.mxu0 %v337
        %391 = vmatpush.msra.mxu0 %v336
        %392 = vmatpush.msra.mxu0 %v335
        %393 = vmatpush.msra.mxu0 %v334
        %394 = vmatpush.msra.mxu0 %v333
        %395 = vmatpush.msra.mxu0 %v332
        %396 = vmatpush.msra.mxu0 %v331
        %397 = vmatpush.msra.mxu0 %v330
        %398 = vmatpush.msra.mxu0 %v329
        %399 = vmatmul.f32.gmra.mxu0 %v319
        %v400 = vpop.f32.mrf.mxu0
        %v401 = vadd.f32 0.0, %v400
        %402 = vmatmul.f32.gmra.mxu0 %v320
        %v403 = vpop.f32.mrf.mxu0
        %v404 = vadd.f32 0.0, %v403
        %405 = vmatmul.f32.gmra.mxu0 %v321
        %v406 = vpop.f32.mrf.mxu0
        %v407 = vadd.f32 0.0, %v406
        %408 = vmatmul.f32.gmra.mxu0 %v322
        %v409 = vpop.f32.mrf.mxu0
        %v410 = vadd.f32 0.0, %v409
        %411 = vmatmul.f32.gmra.mxu0 %v323
        %v412 = vpop.f32.mrf.mxu0
        %v413 = vadd.f32 0.0, %v412
        %414 = vmatmul.f32.gmra.mxu0 %v324
        %v415 = vpop.f32.mrf.mxu0
        %v416 = vadd.f32 0.0, %v415
        %417 = vmatmul.f32.gmra.mxu0 %v325
        %v418 = vpop.f32.mrf.mxu0
        %v419 = vadd.f32 0.0, %v418
        %420 = vmatmul.f32.gmra.mxu0 %v326
        %v421 = vpop.f32.mrf.mxu0
        %v422 = vadd.f32 0.0, %v421
        %423 = vmatmul.f32.gmra.mxu0 %v327
        %v424 = vpop.f32.mrf.mxu0
        %425 = vmatmul.f32.gmra.mxu0 %v328
        %v426 = vpop.f32.mrf.mxu0
        %427 = vdwg.mxu0
        %428 = vmatpush.msra.mxu0 0.0
        %429 = vmatpush.msra.mxu0 0.0
        %430 = vmatpush.msra.mxu0 0.0
        %431 = vmatpush.msra.mxu0 0.0
        %432 = vmatpush.msra.mxu0 0.0
        %433 = vmatpush.msra.mxu0 0.0
        %434 = vmatpush.msra.mxu0 0.0
        %435 = vmatpush.msra.mxu0 0.0
        %436 = vmatpush.msra.mxu0 %v352
        %437 = vmatpush.msra.mxu0 %v351
        %438 = vmatpush.msra.mxu0 %v350
        %439 = vmatpush.msra.mxu0 %v349
        %440 = vmatpush.msra.mxu0 %v348
        %441 = vmatpush.msra.mxu0 %v347
        %442 = vmatpush.msra.mxu0 %v346
        %443 = vmatpush.msra.mxu0 %v345
        %444 = vmatmul.f32.gmra.mxu0 %v354
        %v445 = vpop.f32.mrf.mxu0
        %v446 = vadd.f32 %v401, %v445
        %447 = vmatmul.f32.gmra.mxu0 %v357
        %v448 = vpop.f32.mrf.mxu0
        %v449 = vadd.f32 %v404, %v448
        %450 = vmatmul.f32.gmra.mxu0 %v360
        %v451 = vpop.f32.mrf.mxu0
        %v452 = vadd.f32 %v407, %v451
        %453 = vmatmul.f32.gmra.mxu0 %v363
        %v454 = vpop.f32.mrf.mxu0
        %v455 = vadd.f32 %v410, %v454
        %456 = vmatmul.f32.gmra.mxu0 %v366
        %v457 = vpop.f32.mrf.mxu0
        %v458 = vadd.f32 %v413, %v457
        %459 = vmatmul.f32.gmra.mxu0 %v369
        %v460 = vpop.f32.mrf.mxu0
        %v461 = vadd.f32 %v416, %v460
        %462 = vmatmul.f32.gmra.mxu0 %v372
        %v463 = vpop.f32.mrf.mxu0
        %v464 = vadd.f32 %v419, %v463
        %465 = vmatmul.f32.gmra.mxu0 %v375
        %v466 = vpop.f32.mrf.mxu0
        %v467 = vadd.f32 %v422, %v466
        %468 = vmatmul.f32.gmra.mxu0 %v378
        %v469 = vpop.f32.mrf.mxu0
        %470 = vmatmul.f32.gmra.mxu0 %v381
        %v471 = vpop.f32.mrf.mxu0
        %472 = vdwg.mxu0
        %s473 = scalar_lea.vmem [#allocation5], 192
        %v474 = vld [vmem:[%s473] sm:$0xff]
        %v475 = vld [vmem:[%s473 + $0x8] sm:$0xff]
        %v476 = vld [vmem:[%s473 + $0x10] sm:$0xff]
        %v477 = vld [vmem:[%s473 + $0x18] sm:$0xff]
        %v478 = vld [vmem:[%s473 + $0x20] sm:$0xff]
        %v479 = vld [vmem:[%s473 + $0x28] sm:$0xff]
        %v480 = vld [vmem:[%s473 + $0x30] sm:$0xff]
        %v481 = vld [vmem:[%s473 + $0x38] sm:$0xff]
        %v482 = vld [vmem:[%s473 + $0x40] sm:$0xff]
        %v483 = vld [vmem:[%s473 + $0x48] sm:$0xff]
        %v484 = vld [vmem:[%s473 + $0x50] sm:$0xff]
        %v485 = vld [vmem:[%s473 + $0x58] sm:$0xff]
        %v486 = vld [vmem:[%s473 + $0x60] sm:$0xff]
        %v487 = vld [vmem:[%s473 + $0x68] sm:$0xff]
        %v488 = vld [vmem:[%s473 + $0x70] sm:$0xff]
        %v489 = vld [vmem:[%s473 + $0x78] sm:$0xff]
        %v490 = vld [vmem:[%s473 + $0x80] sm:$0xff]
        %v491 = vld [vmem:[%s473 + $0x88] sm:$0xff]
        %v492 = vld [vmem:[%s473 + $0x90] sm:$0xff]
        %v493 = vld [vmem:[%s473 + $0x98] sm:$0xff]
        %v494 = vld [vmem:[%s473 + $0xa0] sm:$0xff]
        %v495 = vld [vmem:[%s473 + $0xa8] sm:$0xff]
        %v496 = vld [vmem:[%s473 + $0xb0] sm:$0xff]
        %v497 = vld [vmem:[%s473 + $0xb8] sm:$0xff]
        %498 = vmatpush.msra.mxu0 %v489
        %499 = vmatpush.msra.mxu0 %v488
        %500 = vmatpush.msra.mxu0 %v487
        %501 = vmatpush.msra.mxu0 %v486
        %502 = vmatpush.msra.mxu0 %v485
        %503 = vmatpush.msra.mxu0 %v484
        %504 = vmatpush.msra.mxu0 %v483
        %505 = vmatpush.msra.mxu0 %v482
        %506 = vmatpush.msra.mxu0 %v481
        %507 = vmatpush.msra.mxu0 %v480
        %508 = vmatpush.msra.mxu0 %v479
        %509 = vmatpush.msra.mxu0 %v478
        %510 = vmatpush.msra.mxu0 %v477
        %511 = vmatpush.msra.mxu0 %v476
        %512 = vmatpush.msra.mxu0 %v475
        %513 = vmatpush.msra.mxu0 %v474
        %514 = vmatmul.f32.gmra.mxu0 %v319
        %v515 = vpop.f32.mrf.mxu0
        %516 = vmatmul.f32.gmra.mxu0 %v320
        %v517 = vpop.f32.mrf.mxu0
        %v518 = vadd.f32 0.0, %v517
        %519 = vmatmul.f32.gmra.mxu0 %v321
        %v520 = vpop.f32.mrf.mxu0
        %v521 = vadd.f32 0.0, %v520
        %522 = vmatmul.f32.gmra.mxu0 %v322
        %v523 = vpop.f32.mrf.mxu0
        %v524 = vadd.f32 0.0, %v523
        %525 = vmatmul.f32.gmra.mxu0 %v323
        %v526 = vpop.f32.mrf.mxu0
        %v527 = vadd.f32 0.0, %v526
        %528 = vmatmul.f32.gmra.mxu0 %v324
        %v529 = vpop.f32.mrf.mxu0
        %v530 = vadd.f32 0.0, %v529
        %531 = vmatmul.f32.gmra.mxu0 %v325
        %v532 = vpop.f32.mrf.mxu0
        %v533 = vadd.f32 0.0, %v532
        %534 = vmatmul.f32.gmra.mxu0 %v326
        %v535 = vpop.f32.mrf.mxu0
        %v536 = vadd.f32 0.0, %v535
        %537 = vmatmul.f32.gmra.mxu0 %v327
        %v538 = vpop.f32.mrf.mxu0
        %v539 = vadd.f32 0.0, %v538
        %540 = vmatmul.f32.gmra.mxu0 %v328
        %v541 = vpop.f32.mrf.mxu0
        %542 = vdwg.mxu0
        %543 = vmatpush.msra.mxu0 0.0
        %544 = vmatpush.msra.mxu0 0.0
        %545 = vmatpush.msra.mxu0 0.0
        %546 = vmatpush.msra.mxu0 0.0
        %547 = vmatpush.msra.mxu0 0.0
        %548 = vmatpush.msra.mxu0 0.0
        %549 = vmatpush.msra.mxu0 0.0
        %550 = vmatpush.msra.mxu0 0.0
        %551 = vmatpush.msra.mxu0 %v497
        %552 = vmatpush.msra.mxu0 %v496
        %553 = vmatpush.msra.mxu0 %v495
        %554 = vmatpush.msra.mxu0 %v494
        %555 = vmatpush.msra.mxu0 %v493
        %556 = vmatpush.msra.mxu0 %v492
        %557 = vmatpush.msra.mxu0 %v491
        %558 = vmatpush.msra.mxu0 %v490
        %559 = vmatmul.f32.gmra.mxu0 %v354
        %v560 = vpop.f32.mrf.mxu0
        %561 = vmatmul.f32.gmra.mxu0 %v357
        %v562 = vpop.f32.mrf.mxu0
        %v563 = vadd.f32 %v518, %v562
        %564 = vmatmul.f32.gmra.mxu0 %v360
        %v565 = vpop.f32.mrf.mxu0
        %v566 = vadd.f32 %v521, %v565
        %567 = vmatmul.f32.gmra.mxu0 %v363
        %v568 = vpop.f32.mrf.mxu0
        %v569 = vadd.f32 %v524, %v568
        %570 = vmatmul.f32.gmra.mxu0 %v366
        %v571 = vpop.f32.mrf.mxu0
        %v572 = vadd.f32 %v527, %v571
        %573 = vmatmul.f32.gmra.mxu0 %v369
        %v574 = vpop.f32.mrf.mxu0
        %v575 = vadd.f32 %v530, %v574
        %576 = vmatmul.f32.gmra.mxu0 %v372
        %v577 = vpop.f32.mrf.mxu0
        %v578 = vadd.f32 %v533, %v577
        %579 = vmatmul.f32.gmra.mxu0 %v375
        %v580 = vpop.f32.mrf.mxu0
        %v581 = vadd.f32 %v536, %v580
        %582 = vmatmul.f32.gmra.mxu0 %v378
        %v583 = vpop.f32.mrf.mxu0
        %v584 = vadd.f32 %v539, %v583
        %585 = vmatmul.f32.gmra.mxu0 %v381
        %v586 = vpop.f32.mrf.mxu0
        %587 = vdwg.mxu0
        %v588 = vadd.f32 %v446, %v563
        %v589 = vadd.f32 %v449, %v566
        %v590 = vadd.f32 %v452, %v569
        %v591 = vadd.f32 %v455, %v572
        %v592 = vadd.f32 %v458, %v575
        %v593 = vadd.f32 %v461, %v578
        %v594 = vadd.f32 %v464, %v581
        %v595 = vadd.f32 %v467, %v584
        %s596 = scalar_lea.vmem [#allocation5], 384
        %v597 = vld [vmem:[%s596] sm:$0xff]
        %v598 = vld [vmem:[%s596 + $0x8] sm:$0xff]
        %v599 = vld [vmem:[%s596 + $0x10] sm:$0xff]
        %v600 = vld [vmem:[%s596 + $0x18] sm:$0xff]
        %v601 = vld [vmem:[%s596 + $0x20] sm:$0xff]
        %v602 = vld [vmem:[%s596 + $0x28] sm:$0xff]
        %v603 = vld [vmem:[%s596 + $0x30] sm:$0xff]
        %v604 = vld [vmem:[%s596 + $0x38] sm:$0xff]
        %v605 = vld [vmem:[%s596 + $0x40] sm:$0xff]
        %v606 = vld [vmem:[%s596 + $0x48] sm:$0xff]
        %v607 = vld [vmem:[%s596 + $0x50] sm:$0xff]
        %v608 = vld [vmem:[%s596 + $0x58] sm:$0xff]
        %v609 = vld [vmem:[%s596 + $0x60] sm:$0xff]
        %v610 = vld [vmem:[%s596 + $0x68] sm:$0xff]
        %v611 = vld [vmem:[%s596 + $0x70] sm:$0xff]
        %v612 = vld [vmem:[%s596 + $0x78] sm:$0xff]
        %v613 = vld [vmem:[%s596 + $0x80] sm:$0xff]
        %v614 = vld [vmem:[%s596 + $0x88] sm:$0xff]
        %v615 = vld [vmem:[%s596 + $0x90] sm:$0xff]
        %v616 = vld [vmem:[%s596 + $0x98] sm:$0xff]
        %v617 = vld [vmem:[%s596 + $0xa0] sm:$0xff]
        %v618 = vld [vmem:[%s596 + $0xa8] sm:$0xff]
        %v619 = vld [vmem:[%s596 + $0xb0] sm:$0xff]
        %v620 = vld [vmem:[%s596 + $0xb8] sm:$0xff]
        %621 = vmatpush.msra.mxu0 %v612
        %622 = vmatpush.msra.mxu0 %v611
        %623 = vmatpush.msra.mxu0 %v610
        %624 = vmatpush.msra.mxu0 %v609
        %625 = vmatpush.msra.mxu0 %v608
        %626 = vmatpush.msra.mxu0 %v607
        %627 = vmatpush.msra.mxu0 %v606
        %628 = vmatpush.msra.mxu0 %v605
        %629 = vmatpush.msra.mxu0 %v604
        %630 = vmatpush.msra.mxu0 %v603
        %631 = vmatpush.msra.mxu0 %v602
        %632 = vmatpush.msra.mxu0 %v601
        %633 = vmatpush.msra.mxu0 %v600
        %634 = vmatpush.msra.mxu0 %v599
        %635 = vmatpush.msra.mxu0 %v598
        %636 = vmatpush.msra.mxu0 %v597
        %637 = vmatmul.f32.gmra.mxu0 %v319
        %v638 = vpop.f32.mrf.mxu0
        %639 = vmatmul.f32.gmra.mxu0 %v320
        %v640 = vpop.f32.mrf.mxu0
        %641 = vmatmul.f32.gmra.mxu0 %v321
        %v642 = vpop.f32.mrf.mxu0
        %v643 = vadd.f32 0.0, %v642
        %644 = vmatmul.f32.gmra.mxu0 %v322
        %v645 = vpop.f32.mrf.mxu0
        %v646 = vadd.f32 0.0, %v645
        %647 = vmatmul.f32.gmra.mxu0 %v323
        %v648 = vpop.f32.mrf.mxu0
        %v649 = vadd.f32 0.0, %v648
        %650 = vmatmul.f32.gmra.mxu0 %v324
        %v651 = vpop.f32.mrf.mxu0
        %v652 = vadd.f32 0.0, %v651
        %653 = vmatmul.f32.gmra.mxu0 %v325
        %v654 = vpop.f32.mrf.mxu0
        %v655 = vadd.f32 0.0, %v654
        %656 = vmatmul.f32.gmra.mxu0 %v326
        %v657 = vpop.f32.mrf.mxu0
        %v658 = vadd.f32 0.0, %v657
        %659 = vmatmul.f32.gmra.mxu0 %v327
        %v660 = vpop.f32.mrf.mxu0
        %v661 = vadd.f32 0.0, %v660
        %662 = vmatmul.f32.gmra.mxu0 %v328
        %v663 = vpop.f32.mrf.mxu0
        %v664 = vadd.f32 0.0, %v663
        %665 = vdwg.mxu0
        %666 = vmatpush.msra.mxu0 0.0
        %667 = vmatpush.msra.mxu0 0.0
        %668 = vmatpush.msra.mxu0 0.0
        %669 = vmatpush.msra.mxu0 0.0
        %670 = vmatpush.msra.mxu0 0.0
        %671 = vmatpush.msra.mxu0 0.0
        %672 = vmatpush.msra.mxu0 0.0
        %673 = vmatpush.msra.mxu0 0.0
        %674 = vmatpush.msra.mxu0 %v620
        %675 = vmatpush.msra.mxu0 %v619
        %676 = vmatpush.msra.mxu0 %v618
        %677 = vmatpush.msra.mxu0 %v617
        %678 = vmatpush.msra.mxu0 %v616
        %679 = vmatpush.msra.mxu0 %v615
        %680 = vmatpush.msra.mxu0 %v614
        %681 = vmatpush.msra.mxu0 %v613
        %682 = vmatmul.f32.gmra.mxu0 %v354
        %v683 = vpop.f32.mrf.mxu0
        %684 = vmatmul.f32.gmra.mxu0 %v357
        %v685 = vpop.f32.mrf.mxu0
        %686 = vmatmul.f32.gmra.mxu0 %v360
        %v687 = vpop.f32.mrf.mxu0
        %v688 = vadd.f32 %v643, %v687
        %689 = vmatmul.f32.gmra.mxu0 %v363
        %v690 = vpop.f32.mrf.mxu0
        %v691 = vadd.f32 %v646, %v690
        %692 = vmatmul.f32.gmra.mxu0 %v366
        %v693 = vpop.f32.mrf.mxu0
        %v694 = vadd.f32 %v649, %v693
        %695 = vmatmul.f32.gmra.mxu0 %v369
        %v696 = vpop.f32.mrf.mxu0
        %v697 = vadd.f32 %v652, %v696
        %698 = vmatmul.f32.gmra.mxu0 %v372
        %v699 = vpop.f32.mrf.mxu0
        %v700 = vadd.f32 %v655, %v699
        %701 = vmatmul.f32.gmra.mxu0 %v375
        %v702 = vpop.f32.mrf.mxu0
        %v703 = vadd.f32 %v658, %v702
        %704 = vmatmul.f32.gmra.mxu0 %v378
        %v705 = vpop.f32.mrf.mxu0
        %v706 = vadd.f32 %v661, %v705
        %707 = vmatmul.f32.gmra.mxu0 %v381
        %v708 = vpop.f32.mrf.mxu0
        %v709 = vadd.f32 %v664, %v708
        %710 = vdwg.mxu0
        %v711 = vadd.f32 %v588, %v688
        %v712 = vadd.f32 %v589, %v691
        %v713 = vadd.f32 %v590, %v694
        %v714 = vadd.f32 %v591, %v697
        %v715 = vadd.f32 %v592, %v700
        %v716 = vadd.f32 %v593, %v703
        %v717 = vadd.f32 %v594, %v706
        %v718 = vadd.f32 %v595, %v709
        %v719 = vmul.f32 %v711, 0.2
        %v720 = vmul.f32 %v712, 0.2
        %v721 = vmul.f32 %v713, 0.2
        %v722 = vmul.f32 %v714, 0.2
        %v723 = vmul.f32 %v715, 0.2
        %v724 = vmul.f32 %v716, 0.2
        %v725 = vmul.f32 %v717, 0.2
        %v726 = vmul.f32 %v718, 0.2
        %v727 = vmax.f32 %v711, %v719
        %v728 = vmax.f32 %v712, %v720
        %v729 = vmax.f32 %v713, %v721
        %v730 = vmax.f32 %v714, %v722
        %v731 = vmax.f32 %v715, %v723
        %v732 = vmax.f32 %v716, %v724
        %v733 = vmax.f32 %v717, %v725
        %v734 = vmax.f32 %v718, %v726
        %735 = vst.msk [vmem:[%s240 + $0x1] sm:$0xff] %vm210, %v727
        %736 = vst.msk [vmem:[%s240 + $0x11] sm:$0xff] %vm210, %v728
        %737 = vst.msk [vmem:[%s240 + $0x21] sm:$0xff] %vm210, %v729
        %738 = vst.msk [vmem:[%s240 + $0x31] sm:$0xff] %vm210, %v730
        %739 = vst.msk [vmem:[%s240 + $0x41] sm:$0xff] %vm210, %v731
        %740 = vst.msk [vmem:[%s240 + $0x51] sm:$0xff] %vm210, %v732
        %741 = vst.msk [vmem:[%s240 + $0x61] sm:$0xff] %vm210, %v733
        %742 = vst.msk [vmem:[%s240 + $0x71] sm:$0xff] %vm210, %v734
        %v743 = vld [vmem:[#allocation2] sm:$0xff]
        %v744 = vld [vmem:[#allocation2 + $0x10] sm:$0xff]
        %v745 = vld [vmem:[#allocation2 + $0x20] sm:$0xff]
        %v746 = vld [vmem:[#allocation2 + $0x30] sm:$0xff]
        %v747 = vld [vmem:[#allocation2 + $0x40] sm:$0xff]
        %v748 = vld [vmem:[#allocation2 + $0x50] sm:$0xff]
        %v749 = vld [vmem:[#allocation2 + $0x60] sm:$0xff]
        %v750 = vld [vmem:[#allocation2 + $0x70] sm:$0xff]
        %v751 = vld [vmem:[#allocation2 + $0x80] sm:$0xff]
        %v752 = vld [vmem:[#allocation2 + $0x90] sm:$0xff]
        %v753 = vld [vmem:[#allocation2 + $0x1] sm:$0xff]
        %v754 = vld [vmem:[#allocation2 + $0x11] sm:$0xff]
        %v755 = vld [vmem:[#allocation2 + $0x21] sm:$0xff]
        %v756 = vld [vmem:[#allocation2 + $0x31] sm:$0xff]
        %v757 = vld [vmem:[#allocation2 + $0x41] sm:$0xff]
        %v758 = vld [vmem:[#allocation2 + $0x51] sm:$0xff]
        %v759 = vld [vmem:[#allocation2 + $0x61] sm:$0xff]
        %v760 = vld [vmem:[#allocation2 + $0x71] sm:$0xff]
        %v761 = vld [vmem:[#allocation2 + $0x81] sm:$0xff]
        %v762 = vld [vmem:[#allocation2 + $0x91] sm:$0xff]
        %v763 = vld [vmem:[#allocation2 + $0x2] sm:$0xff]
        %v764 = vld [vmem:[#allocation2 + $0x12] sm:$0xff]
        %v765 = vld [vmem:[#allocation2 + $0x22] sm:$0xff]
        %v766 = vld [vmem:[#allocation2 + $0x32] sm:$0xff]
        %v767 = vld [vmem:[#allocation2 + $0x42] sm:$0xff]
        %v768 = vld [vmem:[#allocation2 + $0x52] sm:$0xff]
        %v769 = vld [vmem:[#allocation2 + $0x62] sm:$0xff]
        %v770 = vld [vmem:[#allocation2 + $0x72] sm:$0xff]
        %v771 = vld [vmem:[#allocation2 + $0x82] sm:$0xff]
        %v772 = vld [vmem:[#allocation2 + $0x92] sm:$0xff]
        %783 = vrot.lane.b32.xlu0 %v753, 64
        %v784 = vpop.permute.xlu0 %783
        %785 = vrot.lane.b32.xlu0 %v754, 64
        %v786 = vpop.permute.xlu0 %785
        %787 = vrot.lane.b32.xlu0 %v755, 64
        %v788 = vpop.permute.xlu0 %787
        %789 = vrot.lane.b32.xlu0 %v756, 64
        %v790 = vpop.permute.xlu0 %789
        %791 = vrot.lane.b32.xlu0 %v757, 64
        %v792 = vpop.permute.xlu0 %791
        %793 = vrot.lane.b32.xlu0 %v758, 64
        %v794 = vpop.permute.xlu0 %793
        %795 = vrot.lane.b32.xlu0 %v759, 64
        %v796 = vpop.permute.xlu0 %795
        %797 = vrot.lane.b32.xlu0 %v760, 64
        %v798 = vpop.permute.xlu0 %797
        %799 = vrot.lane.b32.xlu0 %v761, 64
        %v800 = vpop.permute.xlu0 %799
        %801 = vrot.lane.b32.xlu0 %v762, 64
        %v802 = vpop.permute.xlu0 %801
        %v813 = vsel %vm210, %v743, %v784
        %v814 = vsel %vm210, %v744, %v786
        %v815 = vsel %vm210, %v745, %v788
        %v816 = vsel %vm210, %v746, %v790
        %v817 = vsel %vm210, %v747, %v792
        %v818 = vsel %vm210, %v748, %v794
        %v819 = vsel %vm210, %v749, %v796
        %v820 = vsel %vm210, %v750, %v798
        %v821 = vsel %vm210, %v751, %v800
        %v822 = vsel %vm210, %v752, %v802
        %s823 = scalar_lea.vmem [#allocation5], 576
        %v824 = vld [vmem:[%s823] sm:$0xff]
        %v825 = vld [vmem:[%s823 + $0x8] sm:$0xff]
        %v826 = vld [vmem:[%s823 + $0x10] sm:$0xff]
        %v827 = vld [vmem:[%s823 + $0x18] sm:$0xff]
        %v828 = vld [vmem:[%s823 + $0x20] sm:$0xff]
        %v829 = vld [vmem:[%s823 + $0x28] sm:$0xff]
        %v830 = vld [vmem:[%s823 + $0x30] sm:$0xff]
        %v831 = vld [vmem:[%s823 + $0x38] sm:$0xff]
        %v832 = vld [vmem:[%s823 + $0x40] sm:$0xff]
        %v833 = vld [vmem:[%s823 + $0x48] sm:$0xff]
        %v834 = vld [vmem:[%s823 + $0x50] sm:$0xff]
        %v835 = vld [vmem:[%s823 + $0x58] sm:$0xff]
        %v836 = vld [vmem:[%s823 + $0x60] sm:$0xff]
        %v837 = vld [vmem:[%s823 + $0x68] sm:$0xff]
        %v838 = vld [vmem:[%s823 + $0x70] sm:$0xff]
        %v839 = vld [vmem:[%s823 + $0x78] sm:$0xff]
        %v840 = vld [vmem:[%s823 + $0x80] sm:$0xff]
        %v841 = vld [vmem:[%s823 + $0x88] sm:$0xff]
        %v842 = vld [vmem:[%s823 + $0x90] sm:$0xff]
        %v843 = vld [vmem:[%s823 + $0x98] sm:$0xff]
        %v844 = vld [vmem:[%s823 + $0xa0] sm:$0xff]
        %v845 = vld [vmem:[%s823 + $0xa8] sm:$0xff]
        %v846 = vld [vmem:[%s823 + $0xb0] sm:$0xff]
        %v847 = vld [vmem:[%s823 + $0xb8] sm:$0xff]
        %v849 = vsel %vm210, %v763, 0
        %v852 = vsel %vm210, %v764, 0
        %v855 = vsel %vm210, %v765, 0
        %v858 = vsel %vm210, %v766, 0
        %v861 = vsel %vm210, %v767, 0
        %v864 = vsel %vm210, %v768, 0
        %v867 = vsel %vm210, %v769, 0
        %v870 = vsel %vm210, %v770, 0
        %v873 = vsel %vm210, %v771, 0
        %v876 = vsel %vm210, %v772, 0
        %878 = vmatpush.msra.mxu0 %v839
        %879 = vmatpush.msra.mxu0 %v838
        %880 = vmatpush.msra.mxu0 %v837
        %881 = vmatpush.msra.mxu0 %v836
        %882 = vmatpush.msra.mxu0 %v835
        %883 = vmatpush.msra.mxu0 %v834
        %884 = vmatpush.msra.mxu0 %v833
        %885 = vmatpush.msra.mxu0 %v832
        %886 = vmatpush.msra.mxu0 %v831
        %887 = vmatpush.msra.mxu0 %v830
        %888 = vmatpush.msra.mxu0 %v829
        %889 = vmatpush.msra.mxu0 %v828
        %890 = vmatpush.msra.mxu0 %v827
        %891 = vmatpush.msra.mxu0 %v826
        %892 = vmatpush.msra.mxu0 %v825
        %893 = vmatpush.msra.mxu0 %v824
        %894 = vmatmul.f32.gmra.mxu0 %v813
        %v895 = vpop.f32.mrf.mxu0
        %v896 = vadd.f32 0.0, %v895
        %897 = vmatmul.f32.gmra.mxu0 %v814
        %v898 = vpop.f32.mrf.mxu0
        %v899 = vadd.f32 0.0, %v898
        %900 = vmatmul.f32.gmra.mxu0 %v815
        %v901 = vpop.f32.mrf.mxu0
        %v902 = vadd.f32 0.0, %v901
        %903 = vmatmul.f32.gmra.mxu0 %v816
        %v904 = vpop.f32.mrf.mxu0
        %v905 = vadd.f32 0.0, %v904
        %906 = vmatmul.f32.gmra.mxu0 %v817
        %v907 = vpop.f32.mrf.mxu0
        %v908 = vadd.f32 0.0, %v907
        %909 = vmatmul.f32.gmra.mxu0 %v818
        %v910 = vpop.f32.mrf.mxu0
        %v911 = vadd.f32 0.0, %v910
        %912 = vmatmul.f32.gmra.mxu0 %v819
        %v913 = vpop.f32.mrf.mxu0
        %v914 = vadd.f32 0.0, %v913
        %915 = vmatmul.f32.gmra.mxu0 %v820
        %v916 = vpop.f32.mrf.mxu0
        %v917 = vadd.f32 0.0, %v916
        %918 = vmatmul.f32.gmra.mxu0 %v821
        %v919 = vpop.f32.mrf.mxu0
        %920 = vmatmul.f32.gmra.mxu0 %v822
        %v921 = vpop.f32.mrf.mxu0
        %922 = vdwg.mxu0
        %923 = vmatpush.msra.mxu0 0.0
        %924 = vmatpush.msra.mxu0 0.0
        %925 = vmatpush.msra.mxu0 0.0
        %926 = vmatpush.msra.mxu0 0.0
        %927 = vmatpush.msra.mxu0 0.0
        %928 = vmatpush.msra.mxu0 0.0
        %929 = vmatpush.msra.mxu0 0.0
        %930 = vmatpush.msra.mxu0 0.0
        %931 = vmatpush.msra.mxu0 %v847
        %932 = vmatpush.msra.mxu0 %v846
        %933 = vmatpush.msra.mxu0 %v845
        %934 = vmatpush.msra.mxu0 %v844
        %935 = vmatpush.msra.mxu0 %v843
        %936 = vmatpush.msra.mxu0 %v842
        %937 = vmatpush.msra.mxu0 %v841
        %938 = vmatpush.msra.mxu0 %v840
        %939 = vmatmul.f32.gmra.mxu0 %v849
        %v940 = vpop.f32.mrf.mxu0
        %v941 = vadd.f32 %v896, %v940
        %942 = vmatmul.f32.gmra.mxu0 %v852
        %v943 = vpop.f32.mrf.mxu0
        %v944 = vadd.f32 %v899, %v943
        %945 = vmatmul.f32.gmra.mxu0 %v855
        %v946 = vpop.f32.mrf.mxu0
        %v947 = vadd.f32 %v902, %v946
        %948 = vmatmul.f32.gmra.mxu0 %v858
        %v949 = vpop.f32.mrf.mxu0
        %v950 = vadd.f32 %v905, %v949
        %951 = vmatmul.f32.gmra.mxu0 %v861
        %v952 = vpop.f32.mrf.mxu0
        %v953 = vadd.f32 %v908, %v952
        %954 = vmatmul.f32.gmra.mxu0 %v864
        %v955 = vpop.f32.mrf.mxu0
        %v956 = vadd.f32 %v911, %v955
        %957 = vmatmul.f32.gmra.mxu0 %v867
        %v958 = vpop.f32.mrf.mxu0
        %v959 = vadd.f32 %v914, %v958
        %960 = vmatmul.f32.gmra.mxu0 %v870
        %v961 = vpop.f32.mrf.mxu0
        %v962 = vadd.f32 %v917, %v961
        %963 = vmatmul.f32.gmra.mxu0 %v873
        %v964 = vpop.f32.mrf.mxu0
        %965 = vmatmul.f32.gmra.mxu0 %v876
        %v966 = vpop.f32.mrf.mxu0
        %967 = vdwg.mxu0
        %s968 = scalar_lea.vmem [#allocation5], 768
        %v969 = vld [vmem:[%s968] sm:$0xff]
        %v970 = vld [vmem:[%s968 + $0x8] sm:$0xff]
        %v971 = vld [vmem:[%s968 + $0x10] sm:$0xff]
        %v972 = vld [vmem:[%s968 + $0x18] sm:$0xff]
        %v973 = vld [vmem:[%s968 + $0x20] sm:$0xff]
        %v974 = vld [vmem:[%s968 + $0x28] sm:$0xff]
        %v975 = vld [vmem:[%s968 + $0x30] sm:$0xff]
        %v976 = vld [vmem:[%s968 + $0x38] sm:$0xff]
        %v977 = vld [vmem:[%s968 + $0x40] sm:$0xff]
        %v978 = vld [vmem:[%s968 + $0x48] sm:$0xff]
        %v979 = vld [vmem:[%s968 + $0x50] sm:$0xff]
        %v980 = vld [vmem:[%s968 + $0x58] sm:$0xff]
        %v981 = vld [vmem:[%s968 + $0x60] sm:$0xff]
        %v982 = vld [vmem:[%s968 + $0x68] sm:$0xff]
        %v983 = vld [vmem:[%s968 + $0x70] sm:$0xff]
        %v984 = vld [vmem:[%s968 + $0x78] sm:$0xff]
        %v985 = vld [vmem:[%s968 + $0x80] sm:$0xff]
        %v986 = vld [vmem:[%s968 + $0x88] sm:$0xff]
        %v987 = vld [vmem:[%s968 + $0x90] sm:$0xff]
        %v988 = vld [vmem:[%s968 + $0x98] sm:$0xff]
        %v989 = vld [vmem:[%s968 + $0xa0] sm:$0xff]
        %v990 = vld [vmem:[%s968 + $0xa8] sm:$0xff]
        %v991 = vld [vmem:[%s968 + $0xb0] sm:$0xff]
        %v992 = vld [vmem:[%s968 + $0xb8] sm:$0xff]
        %993 = vmatpush.msra.mxu0 %v984
        %994 = vmatpush.msra.mxu0 %v983
        %995 = vmatpush.msra.mxu0 %v982
        %996 = vmatpush.msra.mxu0 %v981
        %997 = vmatpush.msra.mxu0 %v980
        %998 = vmatpush.msra.mxu0 %v979
        %999 = vmatpush.msra.mxu0 %v978
        %1000 = vmatpush.msra.mxu0 %v977
        %1001 = vmatpush.msra.mxu0 %v976
        %1002 = vmatpush.msra.mxu0 %v975
        %1003 = vmatpush.msra.mxu0 %v974
        %1004 = vmatpush.msra.mxu0 %v973
        %1005 = vmatpush.msra.mxu0 %v972
        %1006 = vmatpush.msra.mxu0 %v971
        %1007 = vmatpush.msra.mxu0 %v970
        %1008 = vmatpush.msra.mxu0 %v969
        %1009 = vmatmul.f32.gmra.mxu0 %v813
        %v1010 = vpop.f32.mrf.mxu0
        %1011 = vmatmul.f32.gmra.mxu0 %v814
        %v1012 = vpop.f32.mrf.mxu0
        %v1013 = vadd.f32 0.0, %v1012
        %1014 = vmatmul.f32.gmra.mxu0 %v815
        %v1015 = vpop.f32.mrf.mxu0
        %v1016 = vadd.f32 0.0, %v1015
        %1017 = vmatmul.f32.gmra.mxu0 %v816
        %v1018 = vpop.f32.mrf.mxu0
        %v1019 = vadd.f32 0.0, %v1018
        %1020 = vmatmul.f32.gmra.mxu0 %v817
        %v1021 = vpop.f32.mrf.mxu0
        %v1022 = vadd.f32 0.0, %v1021
        %1023 = vmatmul.f32.gmra.mxu0 %v818
        %v1024 = vpop.f32.mrf.mxu0
        %v1025 = vadd.f32 0.0, %v1024
        %1026 = vmatmul.f32.gmra.mxu0 %v819
        %v1027 = vpop.f32.mrf.mxu0
        %v1028 = vadd.f32 0.0, %v1027
        %1029 = vmatmul.f32.gmra.mxu0 %v820
        %v1030 = vpop.f32.mrf.mxu0
        %v1031 = vadd.f32 0.0, %v1030
        %1032 = vmatmul.f32.gmra.mxu0 %v821
        %v1033 = vpop.f32.mrf.mxu0
        %v1034 = vadd.f32 0.0, %v1033
        %1035 = vmatmul.f32.gmra.mxu0 %v822
        %v1036 = vpop.f32.mrf.mxu0
        %1037 = vdwg.mxu0
        %1038 = vmatpush.msra.mxu0 0.0
        %1039 = vmatpush.msra.mxu0 0.0
        %1040 = vmatpush.msra.mxu0 0.0
        %1041 = vmatpush.msra.mxu0 0.0
        %1042 = vmatpush.msra.mxu0 0.0
        %1043 = vmatpush.msra.mxu0 0.0
        %1044 = vmatpush.msra.mxu0 0.0
        %1045 = vmatpush.msra.mxu0 0.0
        %1046 = vmatpush.msra.mxu0 %v992
        %1047 = vmatpush.msra.mxu0 %v991
        %1048 = vmatpush.msra.mxu0 %v990
        %1049 = vmatpush.msra.mxu0 %v989
        %1050 = vmatpush.msra.mxu0 %v988
        %1051 = vmatpush.msra.mxu0 %v987
        %1052 = vmatpush.msra.mxu0 %v986
        %1053 = vmatpush.msra.mxu0 %v985
        %1054 = vmatmul.f32.gmra.mxu0 %v849
        %v1055 = vpop.f32.mrf.mxu0
        %1056 = vmatmul.f32.gmra.mxu0 %v852
        %v1057 = vpop.f32.mrf.mxu0
        %v1058 = vadd.f32 %v1013, %v1057
        %1059 = vmatmul.f32.gmra.mxu0 %v855
        %v1060 = vpop.f32.mrf.mxu0
        %v1061 = vadd.f32 %v1016, %v1060
        %1062 = vmatmul.f32.gmra.mxu0 %v858
        %v1063 = vpop.f32.mrf.mxu0
        %v1064 = vadd.f32 %v1019, %v1063
        %1065 = vmatmul.f32.gmra.mxu0 %v861
        %v1066 = vpop.f32.mrf.mxu0
        %v1067 = vadd.f32 %v1022, %v1066
        %1068 = vmatmul.f32.gmra.mxu0 %v864
        %v1069 = vpop.f32.mrf.mxu0
        %v1070 = vadd.f32 %v1025, %v1069
        %1071 = vmatmul.f32.gmra.mxu0 %v867
        %v1072 = vpop.f32.mrf.mxu0
        %v1073 = vadd.f32 %v1028, %v1072
        %1074 = vmatmul.f32.gmra.mxu0 %v870
        %v1075 = vpop.f32.mrf.mxu0
        %v1076 = vadd.f32 %v1031, %v1075
        %1077 = vmatmul.f32.gmra.mxu0 %v873
        %v1078 = vpop.f32.mrf.mxu0
        %v1079 = vadd.f32 %v1034, %v1078
        %1080 = vmatmul.f32.gmra.mxu0 %v876
        %v1081 = vpop.f32.mrf.mxu0
        %1082 = vdwg.mxu0
        %v1083 = vadd.f32 %v941, %v1058
        %v1084 = vadd.f32 %v944, %v1061
        %v1085 = vadd.f32 %v947, %v1064
        %v1086 = vadd.f32 %v950, %v1067
        %v1087 = vadd.f32 %v953, %v1070
        %v1088 = vadd.f32 %v956, %v1073
        %v1089 = vadd.f32 %v959, %v1076
        %v1090 = vadd.f32 %v962, %v1079
        %s1091 = scalar_lea.vmem [#allocation5], 960
        %v1092 = vld [vmem:[%s1091] sm:$0xff]
        %v1093 = vld [vmem:[%s1091 + $0x8] sm:$0xff]
        %v1094 = vld [vmem:[%s1091 + $0x10] sm:$0xff]
        %v1095 = vld [vmem:[%s1091 + $0x18] sm:$0xff]
        %v1096 = vld [vmem:[%s1091 + $0x20] sm:$0xff]
        %v1097 = vld [vmem:[%s1091 + $0x28] sm:$0xff]
        %v1098 = vld [vmem:[%s1091 + $0x30] sm:$0xff]
        %v1099 = vld [vmem:[%s1091 + $0x38] sm:$0xff]
        %v1100 = vld [vmem:[%s1091 + $0x40] sm:$0xff]
        %v1101 = vld [vmem:[%s1091 + $0x48] sm:$0xff]
        %v1102 = vld [vmem:[%s1091 + $0x50] sm:$0xff]
        %v1103 = vld [vmem:[%s1091 + $0x58] sm:$0xff]
        %v1104 = vld [vmem:[%s1091 + $0x60] sm:$0xff]
        %v1105 = vld [vmem:[%s1091 + $0x68] sm:$0xff]
        %v1106 = vld [vmem:[%s1091 + $0x70] sm:$0xff]
        %v1107 = vld [vmem:[%s1091 + $0x78] sm:$0xff]
        %v1108 = vld [vmem:[%s1091 + $0x80] sm:$0xff]
        %v1109 = vld [vmem:[%s1091 + $0x88] sm:$0xff]
        %v1110 = vld [vmem:[%s1091 + $0x90] sm:$0xff]
        %v1111 = vld [vmem:[%s1091 + $0x98] sm:$0xff]
        %v1112 = vld [vmem:[%s1091 + $0xa0] sm:$0xff]
        %v1113 = vld [vmem:[%s1091 + $0xa8] sm:$0xff]
        %v1114 = vld [vmem:[%s1091 + $0xb0] sm:$0xff]
        %v1115 = vld [vmem:[%s1091 + $0xb8] sm:$0xff]
        %1116 = vmatpush.msra.mxu0 %v1107
        %1117 = vmatpush.msra.mxu0 %v1106
        %1118 = vmatpush.msra.mxu0 %v1105
        %1119 = vmatpush.msra.mxu0 %v1104
        %1120 = vmatpush.msra.mxu0 %v1103
        %1121 = vmatpush.msra.mxu0 %v1102
        %1122 = vmatpush.msra.mxu0 %v1101
        %1123 = vmatpush.msra.mxu0 %v1100
        %1124 = vmatpush.msra.mxu0 %v1099
        %1125 = vmatpush.msra.mxu0 %v1098
        %1126 = vmatpush.msra.mxu0 %v1097
        %1127 = vmatpush.msra.mxu0 %v1096
        %1128 = vmatpush.msra.mxu0 %v1095
        %1129 = vmatpush.msra.mxu0 %v1094
        %1130 = vmatpush.msra.mxu0 %v1093
        %1131 = vmatpush.msra.mxu0 %v1092
        %1132 = vmatmul.f32.gmra.mxu0 %v813
        %v1133 = vpop.f32.mrf.mxu0
        %1134 = vmatmul.f32.gmra.mxu0 %v814
        %v1135 = vpop.f32.mrf.mxu0
        %1136 = vmatmul.f32.gmra.mxu0 %v815
        %v1137 = vpop.f32.mrf.mxu0
        %v1138 = vadd.f32 0.0, %v1137
        %1139 = vmatmul.f32.gmra.mxu0 %v816
        %v1140 = vpop.f32.mrf.mxu0
        %v1141 = vadd.f32 0.0, %v1140
        %1142 = vmatmul.f32.gmra.mxu0 %v817
        %v1143 = vpop.f32.mrf.mxu0
        %v1144 = vadd.f32 0.0, %v1143
        %1145 = vmatmul.f32.gmra.mxu0 %v818
        %v1146 = vpop.f32.mrf.mxu0
        %v1147 = vadd.f32 0.0, %v1146
        %1148 = vmatmul.f32.gmra.mxu0 %v819
        %v1149 = vpop.f32.mrf.mxu0
        %v1150 = vadd.f32 0.0, %v1149
        %1151 = vmatmul.f32.gmra.mxu0 %v820
        %v1152 = vpop.f32.mrf.mxu0
        %v1153 = vadd.f32 0.0, %v1152
        %1154 = vmatmul.f32.gmra.mxu0 %v821
        %v1155 = vpop.f32.mrf.mxu0
        %v1156 = vadd.f32 0.0, %v1155
        %1157 = vmatmul.f32.gmra.mxu0 %v822
        %v1158 = vpop.f32.mrf.mxu0
        %v1159 = vadd.f32 0.0, %v1158
        %1160 = vdwg.mxu0
        %1161 = vmatpush.msra.mxu0 0.0
        %1162 = vmatpush.msra.mxu0 0.0
        %1163 = vmatpush.msra.mxu0 0.0
        %1164 = vmatpush.msra.mxu0 0.0
        %1165 = vmatpush.msra.mxu0 0.0
        %1166 = vmatpush.msra.mxu0 0.0
        %1167 = vmatpush.msra.mxu0 0.0
        %1168 = vmatpush.msra.mxu0 0.0
        %1169 = vmatpush.msra.mxu0 %v1115
        %1170 = vmatpush.msra.mxu0 %v1114
        %1171 = vmatpush.msra.mxu0 %v1113
        %1172 = vmatpush.msra.mxu0 %v1112
        %1173 = vmatpush.msra.mxu0 %v1111
        %1174 = vmatpush.msra.mxu0 %v1110
        %1175 = vmatpush.msra.mxu0 %v1109
        %1176 = vmatpush.msra.mxu0 %v1108
        %1177 = vmatmul.f32.gmra.mxu0 %v849
        %v1178 = vpop.f32.mrf.mxu0
        %1179 = vmatmul.f32.gmra.mxu0 %v852
        %v1180 = vpop.f32.mrf.mxu0
        %1181 = vmatmul.f32.gmra.mxu0 %v855
        %v1182 = vpop.f32.mrf.mxu0
        %v1183 = vadd.f32 %v1138, %v1182
        %1184 = vmatmul.f32.gmra.mxu0 %v858
        %v1185 = vpop.f32.mrf.mxu0
        %v1186 = vadd.f32 %v1141, %v1185
        %1187 = vmatmul.f32.gmra.mxu0 %v861
        %v1188 = vpop.f32.mrf.mxu0
        %v1189 = vadd.f32 %v1144, %v1188
        %1190 = vmatmul.f32.gmra.mxu0 %v864
        %v1191 = vpop.f32.mrf.mxu0
        %v1192 = vadd.f32 %v1147, %v1191
        %1193 = vmatmul.f32.gmra.mxu0 %v867
        %v1194 = vpop.f32.mrf.mxu0
        %v1195 = vadd.f32 %v1150, %v1194
        %1196 = vmatmul.f32.gmra.mxu0 %v870
        %v1197 = vpop.f32.mrf.mxu0
        %v1198 = vadd.f32 %v1153, %v1197
        %1199 = vmatmul.f32.gmra.mxu0 %v873
        %v1200 = vpop.f32.mrf.mxu0
        %v1201 = vadd.f32 %v1156, %v1200
        %1202 = vmatmul.f32.gmra.mxu0 %v876
        %v1203 = vpop.f32.mrf.mxu0
        %v1204 = vadd.f32 %v1159, %v1203
        %1205 = vdwg.mxu0
        %v1206 = vadd.f32 %v1083, %v1183
        %v1207 = vadd.f32 %v1084, %v1186
        %v1208 = vadd.f32 %v1085, %v1189
        %v1209 = vadd.f32 %v1086, %v1192
        %v1210 = vadd.f32 %v1087, %v1195
        %v1211 = vadd.f32 %v1088, %v1198
        %v1212 = vadd.f32 %v1089, %v1201
        %v1213 = vadd.f32 %v1090, %v1204
        %v1214 = vmul.f32 %v1206, 0.2
        %v1215 = vmul.f32 %v1207, 0.2
        %v1216 = vmul.f32 %v1208, 0.2
        %v1217 = vmul.f32 %v1209, 0.2
        %v1218 = vmul.f32 %v1210, 0.2
        %v1219 = vmul.f32 %v1211, 0.2
        %v1220 = vmul.f32 %v1212, 0.2
        %v1221 = vmul.f32 %v1213, 0.2
        %v1222 = vmax.f32 %v1206, %v1214
        %v1223 = vmax.f32 %v1207, %v1215
        %v1224 = vmax.f32 %v1208, %v1216
        %v1225 = vmax.f32 %v1209, %v1217
        %v1226 = vmax.f32 %v1210, %v1218
        %v1227 = vmax.f32 %v1211, %v1219
        %v1228 = vmax.f32 %v1212, %v1220
        %v1229 = vmax.f32 %v1213, %v1221
        %1230 = vst.msk [vmem:[%s240 + $0x1] sm:$0xff] %vm210, %v1222
        %1231 = vst.msk [vmem:[%s240 + $0x11] sm:$0xff] %vm210, %v1223
        %1232 = vst.msk [vmem:[%s240 + $0x21] sm:$0xff] %vm210, %v1224
        %1233 = vst.msk [vmem:[%s240 + $0x31] sm:$0xff] %vm210, %v1225
        %1234 = vst.msk [vmem:[%s240 + $0x41] sm:$0xff] %vm210, %v1226
        %1235 = vst.msk [vmem:[%s240 + $0x51] sm:$0xff] %vm210, %v1227
        %1236 = vst.msk [vmem:[%s240 + $0x61] sm:$0xff] %vm210, %v1228
        %1237 = vst.msk [vmem:[%s240 + $0x71] sm:$0xff] %vm210, %v1229
        %v1238 = vld [vmem:[#allocation2] sm:$0xff]
        %v1239 = vld [vmem:[#allocation2 + $0x10] sm:$0xff]
        %v1240 = vld [vmem:[#allocation2 + $0x20] sm:$0xff]
        %v1241 = vld [vmem:[#allocation2 + $0x30] sm:$0xff]
        %v1242 = vld [vmem:[#allocation2 + $0x40] sm:$0xff]
        %v1243 = vld [vmem:[#allocation2 + $0x50] sm:$0xff]
        %v1244 = vld [vmem:[#allocation2 + $0x60] sm:$0xff]
        %v1245 = vld [vmem:[#allocation2 + $0x70] sm:$0xff]
        %v1246 = vld [vmem:[#allocation2 + $0x80] sm:$0xff]
        %v1247 = vld [vmem:[#allocation2 + $0x90] sm:$0xff]
        %v1248 = vld [vmem:[#allocation2 + $0x1] sm:$0xff]
        %v1249 = vld [vmem:[#allocation2 + $0x11] sm:$0xff]
        %v1250 = vld [vmem:[#allocation2 + $0x21] sm:$0xff]
        %v1251 = vld [vmem:[#allocation2 + $0x31] sm:$0xff]
        %v1252 = vld [vmem:[#allocation2 + $0x41] sm:$0xff]
        %v1253 = vld [vmem:[#allocation2 + $0x51] sm:$0xff]
        %v1254 = vld [vmem:[#allocation2 + $0x61] sm:$0xff]
        %v1255 = vld [vmem:[#allocation2 + $0x71] sm:$0xff]
        %v1256 = vld [vmem:[#allocation2 + $0x81] sm:$0xff]
        %v1257 = vld [vmem:[#allocation2 + $0x91] sm:$0xff]
        %v1258 = vld [vmem:[#allocation2 + $0x2] sm:$0xff]
        %v1259 = vld [vmem:[#allocation2 + $0x12] sm:$0xff]
        %v1260 = vld [vmem:[#allocation2 + $0x22] sm:$0xff]
        %v1261 = vld [vmem:[#allocation2 + $0x32] sm:$0xff]
        %v1262 = vld [vmem:[#allocation2 + $0x42] sm:$0xff]
        %v1263 = vld [vmem:[#allocation2 + $0x52] sm:$0xff]
        %v1264 = vld [vmem:[#allocation2 + $0x62] sm:$0xff]
        %v1265 = vld [vmem:[#allocation2 + $0x72] sm:$0xff]
        %v1266 = vld [vmem:[#allocation2 + $0x82] sm:$0xff]
        %v1267 = vld [vmem:[#allocation2 + $0x92] sm:$0xff]
        %1278 = vrot.lane.b32.xlu0 %v1248, 64
        %v1279 = vpop.permute.xlu0 %1278
        %1280 = vrot.lane.b32.xlu0 %v1249, 64
        %v1281 = vpop.permute.xlu0 %1280
        %1282 = vrot.lane.b32.xlu0 %v1250, 64
        %v1283 = vpop.permute.xlu0 %1282
        %1284 = vrot.lane.b32.xlu0 %v1251, 64
        %v1285 = vpop.permute.xlu0 %1284
        %1286 = vrot.lane.b32.xlu0 %v1252, 64
        %v1287 = vpop.permute.xlu0 %1286
        %1288 = vrot.lane.b32.xlu0 %v1253, 64
        %v1289 = vpop.permute.xlu0 %1288
        %1290 = vrot.lane.b32.xlu0 %v1254, 64
        %v1291 = vpop.permute.xlu0 %1290
        %1292 = vrot.lane.b32.xlu0 %v1255, 64
        %v1293 = vpop.permute.xlu0 %1292
        %1294 = vrot.lane.b32.xlu0 %v1256, 64
        %v1295 = vpop.permute.xlu0 %1294
        %1296 = vrot.lane.b32.xlu0 %v1257, 64
        %v1297 = vpop.permute.xlu0 %1296
        %v1308 = vsel %vm210, %v1238, %v1279
        %v1309 = vsel %vm210, %v1239, %v1281
        %v1310 = vsel %vm210, %v1240, %v1283
        %v1311 = vsel %vm210, %v1241, %v1285
        %v1312 = vsel %vm210, %v1242, %v1287
        %v1313 = vsel %vm210, %v1243, %v1289
        %v1314 = vsel %vm210, %v1244, %v1291
        %v1315 = vsel %vm210, %v1245, %v1293
        %v1316 = vsel %vm210, %v1246, %v1295
        %v1317 = vsel %vm210, %v1247, %v1297
        %s1318 = scalar_lea.vmem [#allocation5], 1152
        %v1319 = vld [vmem:[%s1318] sm:$0xff]
        %v1320 = vld [vmem:[%s1318 + $0x8] sm:$0xff]
        %v1321 = vld [vmem:[%s1318 + $0x10] sm:$0xff]
        %v1322 = vld [vmem:[%s1318 + $0x18] sm:$0xff]
        %v1323 = vld [vmem:[%s1318 + $0x20] sm:$0xff]
        %v1324 = vld [vmem:[%s1318 + $0x28] sm:$0xff]
        %v1325 = vld [vmem:[%s1318 + $0x30] sm:$0xff]
        %v1326 = vld [vmem:[%s1318 + $0x38] sm:$0xff]
        %v1327 = vld [vmem:[%s1318 + $0x40] sm:$0xff]
        %v1328 = vld [vmem:[%s1318 + $0x48] sm:$0xff]
        %v1329 = vld [vmem:[%s1318 + $0x50] sm:$0xff]
        %v1330 = vld [vmem:[%s1318 + $0x58] sm:$0xff]
        %v1331 = vld [vmem:[%s1318 + $0x60] sm:$0xff]
        %v1332 = vld [vmem:[%s1318 + $0x68] sm:$0xff]
        %v1333 = vld [vmem:[%s1318 + $0x70] sm:$0xff]
        %v1334 = vld [vmem:[%s1318 + $0x78] sm:$0xff]
        %v1335 = vld [vmem:[%s1318 + $0x80] sm:$0xff]
        %v1336 = vld [vmem:[%s1318 + $0x88] sm:$0xff]
        %v1337 = vld [vmem:[%s1318 + $0x90] sm:$0xff]
        %v1338 = vld [vmem:[%s1318 + $0x98] sm:$0xff]
        %v1339 = vld [vmem:[%s1318 + $0xa0] sm:$0xff]
        %v1340 = vld [vmem:[%s1318 + $0xa8] sm:$0xff]
        %v1341 = vld [vmem:[%s1318 + $0xb0] sm:$0xff]
        %v1342 = vld [vmem:[%s1318 + $0xb8] sm:$0xff]
        %v1344 = vsel %vm210, %v1258, 0
        %v1347 = vsel %vm210, %v1259, 0
        %v1350 = vsel %vm210, %v1260, 0
        %v1353 = vsel %vm210, %v1261, 0
        %v1356 = vsel %vm210, %v1262, 0
        %v1359 = vsel %vm210, %v1263, 0
        %v1362 = vsel %vm210, %v1264, 0
        %v1365 = vsel %vm210, %v1265, 0
        %v1368 = vsel %vm210, %v1266, 0
        %v1371 = vsel %vm210, %v1267, 0
        %1373 = vmatpush.msra.mxu0 %v1334
        %1374 = vmatpush.msra.mxu0 %v1333
        %1375 = vmatpush.msra.mxu0 %v1332
        %1376 = vmatpush.msra.mxu0 %v1331
        %1377 = vmatpush.msra.mxu0 %v1330
        %1378 = vmatpush.msra.mxu0 %v1329
        %1379 = vmatpush.msra.mxu0 %v1328
        %1380 = vmatpush.msra.mxu0 %v1327
        %1381 = vmatpush.msra.mxu0 %v1326
        %1382 = vmatpush.msra.mxu0 %v1325
        %1383 = vmatpush.msra.mxu0 %v1324
        %1384 = vmatpush.msra.mxu0 %v1323
        %1385 = vmatpush.msra.mxu0 %v1322
        %1386 = vmatpush.msra.mxu0 %v1321
        %1387 = vmatpush.msra.mxu0 %v1320
        %1388 = vmatpush.msra.mxu0 %v1319
        %1389 = vmatmul.f32.gmra.mxu0 %v1308
        %v1390 = vpop.f32.mrf.mxu0
        %v1391 = vadd.f32 0.0, %v1390
        %1392 = vmatmul.f32.gmra.mxu0 %v1309
        %v1393 = vpop.f32.mrf.mxu0
        %v1394 = vadd.f32 0.0, %v1393
        %1395 = vmatmul.f32.gmra.mxu0 %v1310
        %v1396 = vpop.f32.mrf.mxu0
        %v1397 = vadd.f32 0.0, %v1396
        %1398 = vmatmul.f32.gmra.mxu0 %v1311
        %v1399 = vpop.f32.mrf.mxu0
        %v1400 = vadd.f32 0.0, %v1399
        %1401 = vmatmul.f32.gmra.mxu0 %v1312
        %v1402 = vpop.f32.mrf.mxu0
        %v1403 = vadd.f32 0.0, %v1402
        %1404 = vmatmul.f32.gmra.mxu0 %v1313
        %v1405 = vpop.f32.mrf.mxu0
        %v1406 = vadd.f32 0.0, %v1405
        %1407 = vmatmul.f32.gmra.mxu0 %v1314
        %v1408 = vpop.f32.mrf.mxu0
        %v1409 = vadd.f32 0.0, %v1408
        %1410 = vmatmul.f32.gmra.mxu0 %v1315
        %v1411 = vpop.f32.mrf.mxu0
        %v1412 = vadd.f32 0.0, %v1411
        %1413 = vmatmul.f32.gmra.mxu0 %v1316
        %v1414 = vpop.f32.mrf.mxu0
        %1415 = vmatmul.f32.gmra.mxu0 %v1317
        %v1416 = vpop.f32.mrf.mxu0
        %1417 = vdwg.mxu0
        %1418 = vmatpush.msra.mxu0 0.0
        %1419 = vmatpush.msra.mxu0 0.0
        %1420 = vmatpush.msra.mxu0 0.0
        %1421 = vmatpush.msra.mxu0 0.0
        %1422 = vmatpush.msra.mxu0 0.0
        %1423 = vmatpush.msra.mxu0 0.0
        %1424 = vmatpush.msra.mxu0 0.0
        %1425 = vmatpush.msra.mxu0 0.0
        %1426 = vmatpush.msra.mxu0 %v1342
        %1427 = vmatpush.msra.mxu0 %v1341
        %1428 = vmatpush.msra.mxu0 %v1340
        %1429 = vmatpush.msra.mxu0 %v1339
        %1430 = vmatpush.msra.mxu0 %v1338
        %1431 = vmatpush.msra.mxu0 %v1337
        %1432 = vmatpush.msra.mxu0 %v1336
        %1433 = vmatpush.msra.mxu0 %v1335
        %1434 = vmatmul.f32.gmra.mxu0 %v1344
        %v1435 = vpop.f32.mrf.mxu0
        %v1436 = vadd.f32 %v1391, %v1435
        %1437 = vmatmul.f32.gmra.mxu0 %v1347
        %v1438 = vpop.f32.mrf.mxu0
        %v1439 = vadd.f32 %v1394, %v1438
        %1440 = vmatmul.f32.gmra.mxu0 %v1350
        %v1441 = vpop.f32.mrf.mxu0
        %v1442 = vadd.f32 %v1397, %v1441
        %1443 = vmatmul.f32.gmra.mxu0 %v1353
        %v1444 = vpop.f32.mrf.mxu0
        %v1445 = vadd.f32 %v1400, %v1444
        %1446 = vmatmul.f32.gmra.mxu0 %v1356
        %v1447 = vpop.f32.mrf.mxu0
        %v1448 = vadd.f32 %v1403, %v1447
        %1449 = vmatmul.f32.gmra.mxu0 %v1359
        %v1450 = vpop.f32.mrf.mxu0
        %v1451 = vadd.f32 %v1406, %v1450
        %1452 = vmatmul.f32.gmra.mxu0 %v1362
        %v1453 = vpop.f32.mrf.mxu0
        %v1454 = vadd.f32 %v1409, %v1453
        %1455 = vmatmul.f32.gmra.mxu0 %v1365
        %v1456 = vpop.f32.mrf.mxu0
        %v1457 = vadd.f32 %v1412, %v1456
        %1458 = vmatmul.f32.gmra.mxu0 %v1368
        %v1459 = vpop.f32.mrf.mxu0
        %1460 = vmatmul.f32.gmra.mxu0 %v1371
        %v1461 = vpop.f32.mrf.mxu0
        %1462 = vdwg.mxu0
        %s1463 = scalar_lea.vmem [#allocation5], 1344
        %v1464 = vld [vmem:[%s1463] sm:$0xff]
        %v1465 = vld [vmem:[%s1463 + $0x8] sm:$0xff]
        %v1466 = vld [vmem:[%s1463 + $0x10] sm:$0xff]
        %v1467 = vld [vmem:[%s1463 + $0x18] sm:$0xff]
        %v1468 = vld [vmem:[%s1463 + $0x20] sm:$0xff]
        %v1469 = vld [vmem:[%s1463 + $0x28] sm:$0xff]
        %v1470 = vld [vmem:[%s1463 + $0x30] sm:$0xff]
        %v1471 = vld [vmem:[%s1463 + $0x38] sm:$0xff]
        %v1472 = vld [vmem:[%s1463 + $0x40] sm:$0xff]
        %v1473 = vld [vmem:[%s1463 + $0x48] sm:$0xff]
        %v1474 = vld [vmem:[%s1463 + $0x50] sm:$0xff]
        %v1475 = vld [vmem:[%s1463 + $0x58] sm:$0xff]
        %v1476 = vld [vmem:[%s1463 + $0x60] sm:$0xff]
        %v1477 = vld [vmem:[%s1463 + $0x68] sm:$0xff]
        %v1478 = vld [vmem:[%s1463 + $0x70] sm:$0xff]
        %v1479 = vld [vmem:[%s1463 + $0x78] sm:$0xff]
        %v1480 = vld [vmem:[%s1463 + $0x80] sm:$0xff]
        %v1481 = vld [vmem:[%s1463 + $0x88] sm:$0xff]
        %v1482 = vld [vmem:[%s1463 + $0x90] sm:$0xff]
        %v1483 = vld [vmem:[%s1463 + $0x98] sm:$0xff]
        %v1484 = vld [vmem:[%s1463 + $0xa0] sm:$0xff]
        %v1485 = vld [vmem:[%s1463 + $0xa8] sm:$0xff]
        %v1486 = vld [vmem:[%s1463 + $0xb0] sm:$0xff]
        %v1487 = vld [vmem:[%s1463 + $0xb8] sm:$0xff]
        %1488 = vmatpush.msra.mxu0 %v1479
        %1489 = vmatpush.msra.mxu0 %v1478
        %1490 = vmatpush.msra.mxu0 %v1477
        %1491 = vmatpush.msra.mxu0 %v1476
        %1492 = vmatpush.msra.mxu0 %v1475
        %1493 = vmatpush.msra.mxu0 %v1474
        %1494 = vmatpush.msra.mxu0 %v1473
        %1495 = vmatpush.msra.mxu0 %v1472
        %1496 = vmatpush.msra.mxu0 %v1471
        %1497 = vmatpush.msra.mxu0 %v1470
        %1498 = vmatpush.msra.mxu0 %v1469
        %1499 = vmatpush.msra.mxu0 %v1468
        %1500 = vmatpush.msra.mxu0 %v1467
        %1501 = vmatpush.msra.mxu0 %v1466
        %1502 = vmatpush.msra.mxu0 %v1465
        %1503 = vmatpush.msra.mxu0 %v1464
        %1504 = vmatmul.f32.gmra.mxu0 %v1308
        %v1505 = vpop.f32.mrf.mxu0
        %1506 = vmatmul.f32.gmra.mxu0 %v1309
        %v1507 = vpop.f32.mrf.mxu0
        %v1508 = vadd.f32 0.0, %v1507
        %1509 = vmatmul.f32.gmra.mxu0 %v1310
        %v1510 = vpop.f32.mrf.mxu0
        %v1511 = vadd.f32 0.0, %v1510
        %1512 = vmatmul.f32.gmra.mxu0 %v1311
        %v1513 = vpop.f32.mrf.mxu0
        %v1514 = vadd.f32 0.0, %v1513
        %1515 = vmatmul.f32.gmra.mxu0 %v1312
        %v1516 = vpop.f32.mrf.mxu0
        %v1517 = vadd.f32 0.0, %v1516
        %1518 = vmatmul.f32.gmra.mxu0 %v1313
        %v1519 = vpop.f32.mrf.mxu0
        %v1520 = vadd.f32 0.0, %v1519
        %1521 = vmatmul.f32.gmra.mxu0 %v1314
        %v1522 = vpop.f32.mrf.mxu0
        %v1523 = vadd.f32 0.0, %v1522
        %1524 = vmatmul.f32.gmra.mxu0 %v1315
        %v1525 = vpop.f32.mrf.mxu0
        %v1526 = vadd.f32 0.0, %v1525
        %1527 = vmatmul.f32.gmra.mxu0 %v1316
        %v1528 = vpop.f32.mrf.mxu0
        %v1529 = vadd.f32 0.0, %v1528
        %1530 = vmatmul.f32.gmra.mxu0 %v1317
        %v1531 = vpop.f32.mrf.mxu0
        %1532 = vdwg.mxu0
        %1533 = vmatpush.msra.mxu0 0.0
        %1534 = vmatpush.msra.mxu0 0.0
        %1535 = vmatpush.msra.mxu0 0.0
        %1536 = vmatpush.msra.mxu0 0.0
        %1537 = vmatpush.msra.mxu0 0.0
        %1538 = vmatpush.msra.mxu0 0.0
        %1539 = vmatpush.msra.mxu0 0.0
        %1540 = vmatpush.msra.mxu0 0.0
        %1541 = vmatpush.msra.mxu0 %v1487
        %1542 = vmatpush.msra.mxu0 %v1486
        %1543 = vmatpush.msra.mxu0 %v1485
        %1544 = vmatpush.msra.mxu0 %v1484
        %1545 = vmatpush.msra.mxu0 %v1483
        %1546 = vmatpush.msra.mxu0 %v1482
        %1547 = vmatpush.msra.mxu0 %v1481
        %1548 = vmatpush.msra.mxu0 %v1480
        %1549 = vmatmul.f32.gmra.mxu0 %v1344
        %v1550 = vpop.f32.mrf.mxu0
        %1551 = vmatmul.f32.gmra.mxu0 %v1347
        %v1552 = vpop.f32.mrf.mxu0
        %v1553 = vadd.f32 %v1508, %v1552
        %1554 = vmatmul.f32.gmra.mxu0 %v1350
        %v1555 = vpop.f32.mrf.mxu0
        %v1556 = vadd.f32 %v1511, %v1555
        %1557 = vmatmul.f32.gmra.mxu0 %v1353
        %v1558 = vpop.f32.mrf.mxu0
        %v1559 = vadd.f32 %v1514, %v1558
        %1560 = vmatmul.f32.gmra.mxu0 %v1356
        %v1561 = vpop.f32.mrf.mxu0
        %v1562 = vadd.f32 %v1517, %v1561
        %1563 = vmatmul.f32.gmra.mxu0 %v1359
        %v1564 = vpop.f32.mrf.mxu0
        %v1565 = vadd.f32 %v1520, %v1564
        %1566 = vmatmul.f32.gmra.mxu0 %v1362
        %v1567 = vpop.f32.mrf.mxu0
        %v1568 = vadd.f32 %v1523, %v1567
        %1569 = vmatmul.f32.gmra.mxu0 %v1365
        %v1570 = vpop.f32.mrf.mxu0
        %v1571 = vadd.f32 %v1526, %v1570
        %1572 = vmatmul.f32.gmra.mxu0 %v1368
        %v1573 = vpop.f32.mrf.mxu0
        %v1574 = vadd.f32 %v1529, %v1573
        %1575 = vmatmul.f32.gmra.mxu0 %v1371
        %v1576 = vpop.f32.mrf.mxu0
        %1577 = vdwg.mxu0
        %v1578 = vadd.f32 %v1436, %v1553
        %v1579 = vadd.f32 %v1439, %v1556
        %v1580 = vadd.f32 %v1442, %v1559
        %v1581 = vadd.f32 %v1445, %v1562
        %v1582 = vadd.f32 %v1448, %v1565
        %v1583 = vadd.f32 %v1451, %v1568
        %v1584 = vadd.f32 %v1454, %v1571
        %v1585 = vadd.f32 %v1457, %v1574
        %s1586 = scalar_lea.vmem [#allocation5], 1536
        %v1587 = vld [vmem:[%s1586] sm:$0xff]
        %v1588 = vld [vmem:[%s1586 + $0x8] sm:$0xff]
        %v1589 = vld [vmem:[%s1586 + $0x10] sm:$0xff]
        %v1590 = vld [vmem:[%s1586 + $0x18] sm:$0xff]
        %v1591 = vld [vmem:[%s1586 + $0x20] sm:$0xff]
        %v1592 = vld [vmem:[%s1586 + $0x28] sm:$0xff]
        %v1593 = vld [vmem:[%s1586 + $0x30] sm:$0xff]
        %v1594 = vld [vmem:[%s1586 + $0x38] sm:$0xff]
        %v1595 = vld [vmem:[%s1586 + $0x40] sm:$0xff]
        %v1596 = vld [vmem:[%s1586 + $0x48] sm:$0xff]
        %v1597 = vld [vmem:[%s1586 + $0x50] sm:$0xff]
        %v1598 = vld [vmem:[%s1586 + $0x58] sm:$0xff]
        %v1599 = vld [vmem:[%s1586 + $0x60] sm:$0xff]
        %v1600 = vld [vmem:[%s1586 + $0x68] sm:$0xff]
        %v1601 = vld [vmem:[%s1586 + $0x70] sm:$0xff]
        %v1602 = vld [vmem:[%s1586 + $0x78] sm:$0xff]
        %v1603 = vld [vmem:[%s1586 + $0x80] sm:$0xff]
        %v1604 = vld [vmem:[%s1586 + $0x88] sm:$0xff]
        %v1605 = vld [vmem:[%s1586 + $0x90] sm:$0xff]
        %v1606 = vld [vmem:[%s1586 + $0x98] sm:$0xff]
        %v1607 = vld [vmem:[%s1586 + $0xa0] sm:$0xff]
        %v1608 = vld [vmem:[%s1586 + $0xa8] sm:$0xff]
        %v1609 = vld [vmem:[%s1586 + $0xb0] sm:$0xff]
        %v1610 = vld [vmem:[%s1586 + $0xb8] sm:$0xff]
        %1611 = vmatpush.msra.mxu0 %v1602
        %1612 = vmatpush.msra.mxu0 %v1601
        %1613 = vmatpush.msra.mxu0 %v1600
        %1614 = vmatpush.msra.mxu0 %v1599
        %1615 = vmatpush.msra.mxu0 %v1598
        %1616 = vmatpush.msra.mxu0 %v1597
        %1617 = vmatpush.msra.mxu0 %v1596
        %1618 = vmatpush.msra.mxu0 %v1595
        %1619 = vmatpush.msra.mxu0 %v1594
        %1620 = vmatpush.msra.mxu0 %v1593
        %1621 = vmatpush.msra.mxu0 %v1592
        %1622 = vmatpush.msra.mxu0 %v1591
        %1623 = vmatpush.msra.mxu0 %v1590
        %1624 = vmatpush.msra.mxu0 %v1589
        %1625 = vmatpush.msra.mxu0 %v1588
        %1626 = vmatpush.msra.mxu0 %v1587
        %1627 = vmatmul.f32.gmra.mxu0 %v1308
        %v1628 = vpop.f32.mrf.mxu0
        %1629 = vmatmul.f32.gmra.mxu0 %v1309
        %v1630 = vpop.f32.mrf.mxu0
        %1631 = vmatmul.f32.gmra.mxu0 %v1310
        %v1632 = vpop.f32.mrf.mxu0
        %v1633 = vadd.f32 0.0, %v1632
        %1634 = vmatmul.f32.gmra.mxu0 %v1311
        %v1635 = vpop.f32.mrf.mxu0
        %v1636 = vadd.f32 0.0, %v1635
        %1637 = vmatmul.f32.gmra.mxu0 %v1312
        %v1638 = vpop.f32.mrf.mxu0
        %v1639 = vadd.f32 0.0, %v1638
        %1640 = vmatmul.f32.gmra.mxu0 %v1313
        %v1641 = vpop.f32.mrf.mxu0
        %v1642 = vadd.f32 0.0, %v1641
        %1643 = vmatmul.f32.gmra.mxu0 %v1314
        %v1644 = vpop.f32.mrf.mxu0
        %v1645 = vadd.f32 0.0, %v1644
        %1646 = vmatmul.f32.gmra.mxu0 %v1315
        %v1647 = vpop.f32.mrf.mxu0
        %v1648 = vadd.f32 0.0, %v1647
        %1649 = vmatmul.f32.gmra.mxu0 %v1316
        %v1650 = vpop.f32.mrf.mxu0
        %v1651 = vadd.f32 0.0, %v1650
        %1652 = vmatmul.f32.gmra.mxu0 %v1317
        %v1653 = vpop.f32.mrf.mxu0
        %v1654 = vadd.f32 0.0, %v1653
        %1655 = vdwg.mxu0
        %1656 = vmatpush.msra.mxu0 0.0
        %1657 = vmatpush.msra.mxu0 0.0
        %1658 = vmatpush.msra.mxu0 0.0
        %1659 = vmatpush.msra.mxu0 0.0
        %1660 = vmatpush.msra.mxu0 0.0
        %1661 = vmatpush.msra.mxu0 0.0
        %1662 = vmatpush.msra.mxu0 0.0
        %1663 = vmatpush.msra.mxu0 0.0
        %1664 = vmatpush.msra.mxu0 %v1610
        %1665 = vmatpush.msra.mxu0 %v1609
        %1666 = vmatpush.msra.mxu0 %v1608
        %1667 = vmatpush.msra.mxu0 %v1607
        %1668 = vmatpush.msra.mxu0 %v1606
        %1669 = vmatpush.msra.mxu0 %v1605
        %1670 = vmatpush.msra.mxu0 %v1604
        %1671 = vmatpush.msra.mxu0 %v1603
        %1672 = vmatmul.f32.gmra.mxu0 %v1344
        %v1673 = vpop.f32.mrf.mxu0
        %1674 = vmatmul.f32.gmra.mxu0 %v1347
        %v1675 = vpop.f32.mrf.mxu0
        %1676 = vmatmul.f32.gmra.mxu0 %v1350
        %v1677 = vpop.f32.mrf.mxu0
        %v1678 = vadd.f32 %v1633, %v1677
        %1679 = vmatmul.f32.gmra.mxu0 %v1353
        %v1680 = vpop.f32.mrf.mxu0
        %v1681 = vadd.f32 %v1636, %v1680
        %1682 = vmatmul.f32.gmra.mxu0 %v1356
        %v1683 = vpop.f32.mrf.mxu0
        %v1684 = vadd.f32 %v1639, %v1683
        %1685 = vmatmul.f32.gmra.mxu0 %v1359
        %v1686 = vpop.f32.mrf.mxu0
        %v1687 = vadd.f32 %v1642, %v1686
        %1688 = vmatmul.f32.gmra.mxu0 %v1362
        %v1689 = vpop.f32.mrf.mxu0
        %v1690 = vadd.f32 %v1645, %v1689
        %1691 = vmatmul.f32.gmra.mxu0 %v1365
        %v1692 = vpop.f32.mrf.mxu0
        %v1693 = vadd.f32 %v1648, %v1692
        %1694 = vmatmul.f32.gmra.mxu0 %v1368
        %v1695 = vpop.f32.mrf.mxu0
        %v1696 = vadd.f32 %v1651, %v1695
        %1697 = vmatmul.f32.gmra.mxu0 %v1371
        %v1698 = vpop.f32.mrf.mxu0
        %v1699 = vadd.f32 %v1654, %v1698
        %1700 = vdwg.mxu0
        %v1701 = vadd.f32 %v1578, %v1678
        %v1702 = vadd.f32 %v1579, %v1681
        %v1703 = vadd.f32 %v1580, %v1684
        %v1704 = vadd.f32 %v1581, %v1687
        %v1705 = vadd.f32 %v1582, %v1690
        %v1706 = vadd.f32 %v1583, %v1693
        %v1707 = vadd.f32 %v1584, %v1696
        %v1708 = vadd.f32 %v1585, %v1699
        %v1709 = vmul.f32 %v1701, 0.2
        %v1710 = vmul.f32 %v1702, 0.2
        %v1711 = vmul.f32 %v1703, 0.2
        %v1712 = vmul.f32 %v1704, 0.2
        %v1713 = vmul.f32 %v1705, 0.2
        %v1714 = vmul.f32 %v1706, 0.2
        %v1715 = vmul.f32 %v1707, 0.2
        %v1716 = vmul.f32 %v1708, 0.2
        %v1717 = vmax.f32 %v1701, %v1709
        %v1718 = vmax.f32 %v1702, %v1710
        %v1719 = vmax.f32 %v1703, %v1711
        %v1720 = vmax.f32 %v1704, %v1712
        %v1721 = vmax.f32 %v1705, %v1713
        %v1722 = vmax.f32 %v1706, %v1714
        %v1723 = vmax.f32 %v1707, %v1715
        %v1724 = vmax.f32 %v1708, %v1716
        %1725 = vst.msk [vmem:[%s240 + $0x1] sm:$0xff] %vm210, %v1717
        %1726 = vst.msk [vmem:[%s240 + $0x11] sm:$0xff] %vm210, %v1718
        %1727 = vst.msk [vmem:[%s240 + $0x21] sm:$0xff] %vm210, %v1719
        %1728 = vst.msk [vmem:[%s240 + $0x31] sm:$0xff] %vm210, %v1720
        %1729 = vst.msk [vmem:[%s240 + $0x41] sm:$0xff] %vm210, %v1721
        %1730 = vst.msk [vmem:[%s240 + $0x51] sm:$0xff] %vm210, %v1722
        %1731 = vst.msk [vmem:[%s240 + $0x61] sm:$0xff] %vm210, %v1723
        %1732 = vst.msk [vmem:[%s240 + $0x71] sm:$0xff] %vm210, %v1724
        %v1733 = vld [vmem:[#allocation2] sm:$0xff]
        %v1734 = vld [vmem:[#allocation2 + $0x10] sm:$0xff]
        %v1735 = vld [vmem:[#allocation2 + $0x20] sm:$0xff]
        %v1736 = vld [vmem:[#allocation2 + $0x30] sm:$0xff]
        %v1737 = vld [vmem:[#allocation2 + $0x40] sm:$0xff]
        %v1738 = vld [vmem:[#allocation2 + $0x50] sm:$0xff]
        %v1739 = vld [vmem:[#allocation2 + $0x60] sm:$0xff]
        %v1740 = vld [vmem:[#allocation2 + $0x70] sm:$0xff]
        %v1741 = vld [vmem:[#allocation2 + $0x80] sm:$0xff]
        %v1742 = vld [vmem:[#allocation2 + $0x90] sm:$0xff]
        %v1743 = vld [vmem:[#allocation2 + $0x1] sm:$0xff]
        %v1744 = vld [vmem:[#allocation2 + $0x11] sm:$0xff]
        %v1745 = vld [vmem:[#allocation2 + $0x21] sm:$0xff]
        %v1746 = vld [vmem:[#allocation2 + $0x31] sm:$0xff]
        %v1747 = vld [vmem:[#allocation2 + $0x41] sm:$0xff]
        %v1748 = vld [vmem:[#allocation2 + $0x51] sm:$0xff]
        %v1749 = vld [vmem:[#allocation2 + $0x61] sm:$0xff]
        %v1750 = vld [vmem:[#allocation2 + $0x71] sm:$0xff]
        %v1751 = vld [vmem:[#allocation2 + $0x81] sm:$0xff]
        %v1752 = vld [vmem:[#allocation2 + $0x91] sm:$0xff]
        %v1753 = vld [vmem:[#allocation2 + $0x2] sm:$0xff]
        %v1754 = vld [vmem:[#allocation2 + $0x12] sm:$0xff]
        %v1755 = vld [vmem:[#allocation2 + $0x22] sm:$0xff]
        %v1756 = vld [vmem:[#allocation2 + $0x32] sm:$0xff]
        %v1757 = vld [vmem:[#allocation2 + $0x42] sm:$0xff]
        %v1758 = vld [vmem:[#allocation2 + $0x52] sm:$0xff]
        %v1759 = vld [vmem:[#allocation2 + $0x62] sm:$0xff]
        %v1760 = vld [vmem:[#allocation2 + $0x72] sm:$0xff]
        %v1761 = vld [vmem:[#allocation2 + $0x82] sm:$0xff]
        %v1762 = vld [vmem:[#allocation2 + $0x92] sm:$0xff]
        %1773 = vrot.lane.b32.xlu0 %v1743, 64
        %v1774 = vpop.permute.xlu0 %1773
        %1775 = vrot.lane.b32.xlu0 %v1744, 64
        %v1776 = vpop.permute.xlu0 %1775
        %1777 = vrot.lane.b32.xlu0 %v1745, 64
        %v1778 = vpop.permute.xlu0 %1777
        %1779 = vrot.lane.b32.xlu0 %v1746, 64
        %v1780 = vpop.permute.xlu0 %1779
        %1781 = vrot.lane.b32.xlu0 %v1747, 64
        %v1782 = vpop.permute.xlu0 %1781
        %1783 = vrot.lane.b32.xlu0 %v1748, 64
        %v1784 = vpop.permute.xlu0 %1783
        %1785 = vrot.lane.b32.xlu0 %v1749, 64
        %v1786 = vpop.permute.xlu0 %1785
        %1787 = vrot.lane.b32.xlu0 %v1750, 64
        %v1788 = vpop.permute.xlu0 %1787
        %1789 = vrot.lane.b32.xlu0 %v1751, 64
        %v1790 = vpop.permute.xlu0 %1789
        %1791 = vrot.lane.b32.xlu0 %v1752, 64
        %v1792 = vpop.permute.xlu0 %1791
        %v1803 = vsel %vm210, %v1733, %v1774
        %v1804 = vsel %vm210, %v1734, %v1776
        %v1805 = vsel %vm210, %v1735, %v1778
        %v1806 = vsel %vm210, %v1736, %v1780
        %v1807 = vsel %vm210, %v1737, %v1782
        %v1808 = vsel %vm210, %v1738, %v1784
        %v1809 = vsel %vm210, %v1739, %v1786
        %v1810 = vsel %vm210, %v1740, %v1788
        %v1811 = vsel %vm210, %v1741, %v1790
        %v1812 = vsel %vm210, %v1742, %v1792
        %s1813 = scalar_lea.vmem [#allocation5], 1728
        %v1814 = vld [vmem:[%s1813] sm:$0xff]
        %v1815 = vld [vmem:[%s1813 + $0x8] sm:$0xff]
        %v1816 = vld [vmem:[%s1813 + $0x10] sm:$0xff]
        %v1817 = vld [vmem:[%s1813 + $0x18] sm:$0xff]
        %v1818 = vld [vmem:[%s1813 + $0x20] sm:$0xff]
        %v1819 = vld [vmem:[%s1813 + $0x28] sm:$0xff]
        %v1820 = vld [vmem:[%s1813 + $0x30] sm:$0xff]
        %v1821 = vld [vmem:[%s1813 + $0x38] sm:$0xff]
        %v1822 = vld [vmem:[%s1813 + $0x40] sm:$0xff]
        %v1823 = vld [vmem:[%s1813 + $0x48] sm:$0xff]
        %v1824 = vld [vmem:[%s1813 + $0x50] sm:$0xff]
        %v1825 = vld [vmem:[%s1813 + $0x58] sm:$0xff]
        %v1826 = vld [vmem:[%s1813 + $0x60] sm:$0xff]
        %v1827 = vld [vmem:[%s1813 + $0x68] sm:$0xff]
        %v1828 = vld [vmem:[%s1813 + $0x70] sm:$0xff]
        %v1829 = vld [vmem:[%s1813 + $0x78] sm:$0xff]
        %v1830 = vld [vmem:[%s1813 + $0x80] sm:$0xff]
        %v1831 = vld [vmem:[%s1813 + $0x88] sm:$0xff]
        %v1832 = vld [vmem:[%s1813 + $0x90] sm:$0xff]
        %v1833 = vld [vmem:[%s1813 + $0x98] sm:$0xff]
        %v1834 = vld [vmem:[%s1813 + $0xa0] sm:$0xff]
        %v1835 = vld [vmem:[%s1813 + $0xa8] sm:$0xff]
        %v1836 = vld [vmem:[%s1813 + $0xb0] sm:$0xff]
        %v1837 = vld [vmem:[%s1813 + $0xb8] sm:$0xff]
        %v1839 = vsel %vm210, %v1753, 0
        %v1842 = vsel %vm210, %v1754, 0
        %v1845 = vsel %vm210, %v1755, 0
        %v1848 = vsel %vm210, %v1756, 0
        %v1851 = vsel %vm210, %v1757, 0
        %v1854 = vsel %vm210, %v1758, 0
        %v1857 = vsel %vm210, %v1759, 0
        %v1860 = vsel %vm210, %v1760, 0
        %v1863 = vsel %vm210, %v1761, 0
        %v1866 = vsel %vm210, %v1762, 0
        %1868 = vmatpush.msra.mxu0 %v1829
        %1869 = vmatpush.msra.mxu0 %v1828
        %1870 = vmatpush.msra.mxu0 %v1827
        %1871 = vmatpush.msra.mxu0 %v1826
        %1872 = vmatpush.msra.mxu0 %v1825
        %1873 = vmatpush.msra.mxu0 %v1824
        %1874 = vmatpush.msra.mxu0 %v1823
        %1875 = vmatpush.msra.mxu0 %v1822
        %1876 = vmatpush.msra.mxu0 %v1821
        %1877 = vmatpush.msra.mxu0 %v1820
        %1878 = vmatpush.msra.mxu0 %v1819
        %1879 = vmatpush.msra.mxu0 %v1818
        %1880 = vmatpush.msra.mxu0 %v1817
        %1881 = vmatpush.msra.mxu0 %v1816
        %1882 = vmatpush.msra.mxu0 %v1815
        %1883 = vmatpush.msra.mxu0 %v1814
        %1884 = vmatmul.f32.gmra.mxu0 %v1803
        %v1885 = vpop.f32.mrf.mxu0
        %v1886 = vadd.f32 0.0, %v1885
        %1887 = vmatmul.f32.gmra.mxu0 %v1804
        %v1888 = vpop.f32.mrf.mxu0
        %v1889 = vadd.f32 0.0, %v1888
        %1890 = vmatmul.f32.gmra.mxu0 %v1805
        %v1891 = vpop.f32.mrf.mxu0
        %v1892 = vadd.f32 0.0, %v1891
        %1893 = vmatmul.f32.gmra.mxu0 %v1806
        %v1894 = vpop.f32.mrf.mxu0
        %v1895 = vadd.f32 0.0, %v1894
        %1896 = vmatmul.f32.gmra.mxu0 %v1807
        %v1897 = vpop.f32.mrf.mxu0
        %v1898 = vadd.f32 0.0, %v1897
        %1899 = vmatmul.f32.gmra.mxu0 %v1808
        %v1900 = vpop.f32.mrf.mxu0
        %v1901 = vadd.f32 0.0, %v1900
        %1902 = vmatmul.f32.gmra.mxu0 %v1809
        %v1903 = vpop.f32.mrf.mxu0
        %v1904 = vadd.f32 0.0, %v1903
        %1905 = vmatmul.f32.gmra.mxu0 %v1810
        %v1906 = vpop.f32.mrf.mxu0
        %v1907 = vadd.f32 0.0, %v1906
        %1908 = vmatmul.f32.gmra.mxu0 %v1811
        %v1909 = vpop.f32.mrf.mxu0
        %1910 = vmatmul.f32.gmra.mxu0 %v1812
        %v1911 = vpop.f32.mrf.mxu0
        %1912 = vdwg.mxu0
        %1913 = vmatpush.msra.mxu0 0.0
        %1914 = vmatpush.msra.mxu0 0.0
        %1915 = vmatpush.msra.mxu0 0.0
        %1916 = vmatpush.msra.mxu0 0.0
        %1917 = vmatpush.msra.mxu0 0.0
        %1918 = vmatpush.msra.mxu0 0.0
        %1919 = vmatpush.msra.mxu0 0.0
        %1920 = vmatpush.msra.mxu0 0.0
        %1921 = vmatpush.msra.mxu0 %v1837
        %1922 = vmatpush.msra.mxu0 %v1836
        %1923 = vmatpush.msra.mxu0 %v1835
        %1924 = vmatpush.msra.mxu0 %v1834
        %1925 = vmatpush.msra.mxu0 %v1833
        %1926 = vmatpush.msra.mxu0 %v1832
        %1927 = vmatpush.msra.mxu0 %v1831
        %1928 = vmatpush.msra.mxu0 %v1830
        %1929 = vmatmul.f32.gmra.mxu0 %v1839
        %v1930 = vpop.f32.mrf.mxu0
        %v1931 = vadd.f32 %v1886, %v1930
        %1932 = vmatmul.f32.gmra.mxu0 %v1842
        %v1933 = vpop.f32.mrf.mxu0
        %v1934 = vadd.f32 %v1889, %v1933
        %1935 = vmatmul.f32.gmra.mxu0 %v1845
        %v1936 = vpop.f32.mrf.mxu0
        %v1937 = vadd.f32 %v1892, %v1936
        %1938 = vmatmul.f32.gmra.mxu0 %v1848
        %v1939 = vpop.f32.mrf.mxu0
        %v1940 = vadd.f32 %v1895, %v1939
        %1941 = vmatmul.f32.gmra.mxu0 %v1851
        %v1942 = vpop.f32.mrf.mxu0
        %v1943 = vadd.f32 %v1898, %v1942
        %1944 = vmatmul.f32.gmra.mxu0 %v1854
        %v1945 = vpop.f32.mrf.mxu0
        %v1946 = vadd.f32 %v1901, %v1945
        %1947 = vmatmul.f32.gmra.mxu0 %v1857
        %v1948 = vpop.f32.mrf.mxu0
        %v1949 = vadd.f32 %v1904, %v1948
        %1950 = vmatmul.f32.gmra.mxu0 %v1860
        %v1951 = vpop.f32.mrf.mxu0
        %v1952 = vadd.f32 %v1907, %v1951
        %1953 = vmatmul.f32.gmra.mxu0 %v1863
        %v1954 = vpop.f32.mrf.mxu0
        %1955 = vmatmul.f32.gmra.mxu0 %v1866
        %v1956 = vpop.f32.mrf.mxu0
        %1957 = vdwg.mxu0
        %s1958 = scalar_lea.vmem [#allocation5], 1920
        %v1959 = vld [vmem:[%s1958] sm:$0xff]
        %v1960 = vld [vmem:[%s1958 + $0x8] sm:$0xff]
        %v1961 = vld [vmem:[%s1958 + $0x10] sm:$0xff]
        %v1962 = vld [vmem:[%s1958 + $0x18] sm:$0xff]
        %v1963 = vld [vmem:[%s1958 + $0x20] sm:$0xff]
        %v1964 = vld [vmem:[%s1958 + $0x28] sm:$0xff]
        %v1965 = vld [vmem:[%s1958 + $0x30] sm:$0xff]
        %v1966 = vld [vmem:[%s1958 + $0x38] sm:$0xff]
        %v1967 = vld [vmem:[%s1958 + $0x40] sm:$0xff]
        %v1968 = vld [vmem:[%s1958 + $0x48] sm:$0xff]
        %v1969 = vld [vmem:[%s1958 + $0x50] sm:$0xff]
        %v1970 = vld [vmem:[%s1958 + $0x58] sm:$0xff]
        %v1971 = vld [vmem:[%s1958 + $0x60] sm:$0xff]
        %v1972 = vld [vmem:[%s1958 + $0x68] sm:$0xff]
        %v1973 = vld [vmem:[%s1958 + $0x70] sm:$0xff]
        %v1974 = vld [vmem:[%s1958 + $0x78] sm:$0xff]
        %v1975 = vld [vmem:[%s1958 + $0x80] sm:$0xff]
        %v1976 = vld [vmem:[%s1958 + $0x88] sm:$0xff]
        %v1977 = vld [vmem:[%s1958 + $0x90] sm:$0xff]
        %v1978 = vld [vmem:[%s1958 + $0x98] sm:$0xff]
        %v1979 = vld [vmem:[%s1958 + $0xa0] sm:$0xff]
        %v1980 = vld [vmem:[%s1958 + $0xa8] sm:$0xff]
        %v1981 = vld [vmem:[%s1958 + $0xb0] sm:$0xff]
        %v1982 = vld [vmem:[%s1958 + $0xb8] sm:$0xff]
        %1983 = vmatpush.msra.mxu0 %v1974
        %1984 = vmatpush.msra.mxu0 %v1973
        %1985 = vmatpush.msra.mxu0 %v1972
        %1986 = vmatpush.msra.mxu0 %v1971
        %1987 = vmatpush.msra.mxu0 %v1970
        %1988 = vmatpush.msra.mxu0 %v1969
        %1989 = vmatpush.msra.mxu0 %v1968
        %1990 = vmatpush.msra.mxu0 %v1967
        %1991 = vmatpush.msra.mxu0 %v1966
        %1992 = vmatpush.msra.mxu0 %v1965
        %1993 = vmatpush.msra.mxu0 %v1964
        %1994 = vmatpush.msra.mxu0 %v1963
        %1995 = vmatpush.msra.mxu0 %v1962
        %1996 = vmatpush.msra.mxu0 %v1961
        %1997 = vmatpush.msra.mxu0 %v1960
        %1998 = vmatpush.msra.mxu0 %v1959
        %1999 = vmatmul.f32.gmra.mxu0 %v1803
        %v2000 = vpop.f32.mrf.mxu0
        %2001 = vmatmul.f32.gmra.mxu0 %v1804
        %v2002 = vpop.f32.mrf.mxu0
        %v2003 = vadd.f32 0.0, %v2002
        %2004 = vmatmul.f32.gmra.mxu0 %v1805
        %v2005 = vpop.f32.mrf.mxu0
        %v2006 = vadd.f32 0.0, %v2005
        %2007 = vmatmul.f32.gmra.mxu0 %v1806
        %v2008 = vpop.f32.mrf.mxu0
        %v2009 = vadd.f32 0.0, %v2008
        %2010 = vmatmul.f32.gmra.mxu0 %v1807
        %v2011 = vpop.f32.mrf.mxu0
        %v2012 = vadd.f32 0.0, %v2011
        %2013 = vmatmul.f32.gmra.mxu0 %v1808
        %v2014 = vpop.f32.mrf.mxu0
        %v2015 = vadd.f32 0.0, %v2014
        %2016 = vmatmul.f32.gmra.mxu0 %v1809
        %v2017 = vpop.f32.mrf.mxu0
        %v2018 = vadd.f32 0.0, %v2017
        %2019 = vmatmul.f32.gmra.mxu0 %v1810
        %v2020 = vpop.f32.mrf.mxu0
        %v2021 = vadd.f32 0.0, %v2020
        %2022 = vmatmul.f32.gmra.mxu0 %v1811
        %v2023 = vpop.f32.mrf.mxu0
        %v2024 = vadd.f32 0.0, %v2023
        %2025 = vmatmul.f32.gmra.mxu0 %v1812
        %v2026 = vpop.f32.mrf.mxu0
        %2027 = vdwg.mxu0
        %2028 = vmatpush.msra.mxu0 0.0
        %2029 = vmatpush.msra.mxu0 0.0
        %2030 = vmatpush.msra.mxu0 0.0
        %2031 = vmatpush.msra.mxu0 0.0
        %2032 = vmatpush.msra.mxu0 0.0
        %2033 = vmatpush.msra.mxu0 0.0
        %2034 = vmatpush.msra.mxu0 0.0
        %2035 = vmatpush.msra.mxu0 0.0
        %2036 = vmatpush.msra.mxu0 %v1982
        %2037 = vmatpush.msra.mxu0 %v1981
        %2038 = vmatpush.msra.mxu0 %v1980
        %2039 = vmatpush.msra.mxu0 %v1979
        %2040 = vmatpush.msra.mxu0 %v1978
        %2041 = vmatpush.msra.mxu0 %v1977
        %2042 = vmatpush.msra.mxu0 %v1976
        %2043 = vmatpush.msra.mxu0 %v1975
        %2044 = vmatmul.f32.gmra.mxu0 %v1839
        %v2045 = vpop.f32.mrf.mxu0
        %2046 = vmatmul.f32.gmra.mxu0 %v1842
        %v2047 = vpop.f32.mrf.mxu0
        %v2048 = vadd.f32 %v2003, %v2047
        %2049 = vmatmul.f32.gmra.mxu0 %v1845
        %v2050 = vpop.f32.mrf.mxu0
        %v2051 = vadd.f32 %v2006, %v2050
        %2052 = vmatmul.f32.gmra.mxu0 %v1848
        %v2053 = vpop.f32.mrf.mxu0
        %v2054 = vadd.f32 %v2009, %v2053
        %2055 = vmatmul.f32.gmra.mxu0 %v1851
        %v2056 = vpop.f32.mrf.mxu0
        %v2057 = vadd.f32 %v2012, %v2056
        %2058 = vmatmul.f32.gmra.mxu0 %v1854
        %v2059 = vpop.f32.mrf.mxu0
        %v2060 = vadd.f32 %v2015, %v2059
        %2061 = vmatmul.f32.gmra.mxu0 %v1857
        %v2062 = vpop.f32.mrf.mxu0
        %v2063 = vadd.f32 %v2018, %v2062
        %2064 = vmatmul.f32.gmra.mxu0 %v1860
        %v2065 = vpop.f32.mrf.mxu0
        %v2066 = vadd.f32 %v2021, %v2065
        %2067 = vmatmul.f32.gmra.mxu0 %v1863
        %v2068 = vpop.f32.mrf.mxu0
        %v2069 = vadd.f32 %v2024, %v2068
        %2070 = vmatmul.f32.gmra.mxu0 %v1866
        %v2071 = vpop.f32.mrf.mxu0
        %2072 = vdwg.mxu0
        %v2073 = vadd.f32 %v1931, %v2048
        %v2074 = vadd.f32 %v1934, %v2051
        %v2075 = vadd.f32 %v1937, %v2054
        %v2076 = vadd.f32 %v1940, %v2057
        %v2077 = vadd.f32 %v1943, %v2060
        %v2078 = vadd.f32 %v1946, %v2063
        %v2079 = vadd.f32 %v1949, %v2066
        %v2080 = vadd.f32 %v1952, %v2069
        %s2081 = scalar_lea.vmem [#allocation5], 2112
        %v2082 = vld [vmem:[%s2081] sm:$0xff]
        %v2083 = vld [vmem:[%s2081 + $0x8] sm:$0xff]
        %v2084 = vld [vmem:[%s2081 + $0x10] sm:$0xff]
        %v2085 = vld [vmem:[%s2081 + $0x18] sm:$0xff]
        %v2086 = vld [vmem:[%s2081 + $0x20] sm:$0xff]
        %v2087 = vld [vmem:[%s2081 + $0x28] sm:$0xff]
        %v2088 = vld [vmem:[%s2081 + $0x30] sm:$0xff]
        %v2089 = vld [vmem:[%s2081 + $0x38] sm:$0xff]
        %v2090 = vld [vmem:[%s2081 + $0x40] sm:$0xff]
        %v2091 = vld [vmem:[%s2081 + $0x48] sm:$0xff]
        %v2092 = vld [vmem:[%s2081 + $0x50] sm:$0xff]
        %v2093 = vld [vmem:[%s2081 + $0x58] sm:$0xff]
        %v2094 = vld [vmem:[%s2081 + $0x60] sm:$0xff]
        %v2095 = vld [vmem:[%s2081 + $0x68] sm:$0xff]
        %v2096 = vld [vmem:[%s2081 + $0x70] sm:$0xff]
        %v2097 = vld [vmem:[%s2081 + $0x78] sm:$0xff]
        %v2098 = vld [vmem:[%s2081 + $0x80] sm:$0xff]
        %v2099 = vld [vmem:[%s2081 + $0x88] sm:$0xff]
        %v2100 = vld [vmem:[%s2081 + $0x90] sm:$0xff]
        %v2101 = vld [vmem:[%s2081 + $0x98] sm:$0xff]
        %v2102 = vld [vmem:[%s2081 + $0xa0] sm:$0xff]
        %v2103 = vld [vmem:[%s2081 + $0xa8] sm:$0xff]
        %v2104 = vld [vmem:[%s2081 + $0xb0] sm:$0xff]
        %v2105 = vld [vmem:[%s2081 + $0xb8] sm:$0xff]
        %2106 = vmatpush.msra.mxu0 %v2097
        %2107 = vmatpush.msra.mxu0 %v2096
        %2108 = vmatpush.msra.mxu0 %v2095
        %2109 = vmatpush.msra.mxu0 %v2094
        %2110 = vmatpush.msra.mxu0 %v2093
        %2111 = vmatpush.msra.mxu0 %v2092
        %2112 = vmatpush.msra.mxu0 %v2091
        %2113 = vmatpush.msra.mxu0 %v2090
        %2114 = vmatpush.msra.mxu0 %v2089
        %2115 = vmatpush.msra.mxu0 %v2088
        %2116 = vmatpush.msra.mxu0 %v2087
        %2117 = vmatpush.msra.mxu0 %v2086
        %2118 = vmatpush.msra.mxu0 %v2085
        %2119 = vmatpush.msra.mxu0 %v2084
        %2120 = vmatpush.msra.mxu0 %v2083
        %2121 = vmatpush.msra.mxu0 %v2082
        %2122 = vmatmul.f32.gmra.mxu0 %v1803
        %v2123 = vpop.f32.mrf.mxu0
        %2124 = vmatmul.f32.gmra.mxu0 %v1804
        %v2125 = vpop.f32.mrf.mxu0
        %2126 = vmatmul.f32.gmra.mxu0 %v1805
        %v2127 = vpop.f32.mrf.mxu0
        %v2128 = vadd.f32 0.0, %v2127
        %2129 = vmatmul.f32.gmra.mxu0 %v1806
        %v2130 = vpop.f32.mrf.mxu0
        %v2131 = vadd.f32 0.0, %v2130
        %2132 = vmatmul.f32.gmra.mxu0 %v1807
        %v2133 = vpop.f32.mrf.mxu0
        %v2134 = vadd.f32 0.0, %v2133
        %2135 = vmatmul.f32.gmra.mxu0 %v1808
        %v2136 = vpop.f32.mrf.mxu0
        %v2137 = vadd.f32 0.0, %v2136
        %2138 = vmatmul.f32.gmra.mxu0 %v1809
        %v2139 = vpop.f32.mrf.mxu0
        %v2140 = vadd.f32 0.0, %v2139
        %2141 = vmatmul.f32.gmra.mxu0 %v1810
        %v2142 = vpop.f32.mrf.mxu0
        %v2143 = vadd.f32 0.0, %v2142
        %2144 = vmatmul.f32.gmra.mxu0 %v1811
        %v2145 = vpop.f32.mrf.mxu0
        %v2146 = vadd.f32 0.0, %v2145
        %2147 = vmatmul.f32.gmra.mxu0 %v1812
        %v2148 = vpop.f32.mrf.mxu0
        %v2149 = vadd.f32 0.0, %v2148
        %2150 = vdwg.mxu0
        %2151 = vmatpush.msra.mxu0 0.0
        %2152 = vmatpush.msra.mxu0 0.0
        %2153 = vmatpush.msra.mxu0 0.0
        %2154 = vmatpush.msra.mxu0 0.0
        %2155 = vmatpush.msra.mxu0 0.0
        %2156 = vmatpush.msra.mxu0 0.0
        %2157 = vmatpush.msra.mxu0 0.0
        %2158 = vmatpush.msra.mxu0 0.0
        %2159 = vmatpush.msra.mxu0 %v2105
        %2160 = vmatpush.msra.mxu0 %v2104
        %2161 = vmatpush.msra.mxu0 %v2103
        %2162 = vmatpush.msra.mxu0 %v2102
        %2163 = vmatpush.msra.mxu0 %v2101
        %2164 = vmatpush.msra.mxu0 %v2100
        %2165 = vmatpush.msra.mxu0 %v2099
        %2166 = vmatpush.msra.mxu0 %v2098
        %2167 = vmatmul.f32.gmra.mxu0 %v1839
        %v2168 = vpop.f32.mrf.mxu0
        %2169 = vmatmul.f32.gmra.mxu0 %v1842
        %v2170 = vpop.f32.mrf.mxu0
        %2171 = vmatmul.f32.gmra.mxu0 %v1845
        %v2172 = vpop.f32.mrf.mxu0
        %v2173 = vadd.f32 %v2128, %v2172
        %2174 = vmatmul.f32.gmra.mxu0 %v1848
        %v2175 = vpop.f32.mrf.mxu0
        %v2176 = vadd.f32 %v2131, %v2175
        %2177 = vmatmul.f32.gmra.mxu0 %v1851
        %v2178 = vpop.f32.mrf.mxu0
        %v2179 = vadd.f32 %v2134, %v2178
        %2180 = vmatmul.f32.gmra.mxu0 %v1854
        %v2181 = vpop.f32.mrf.mxu0
        %v2182 = vadd.f32 %v2137, %v2181
        %2183 = vmatmul.f32.gmra.mxu0 %v1857
        %v2184 = vpop.f32.mrf.mxu0
        %v2185 = vadd.f32 %v2140, %v2184
        %2186 = vmatmul.f32.gmra.mxu0 %v1860
        %v2187 = vpop.f32.mrf.mxu0
        %v2188 = vadd.f32 %v2143, %v2187
        %2189 = vmatmul.f32.gmra.mxu0 %v1863
        %v2190 = vpop.f32.mrf.mxu0
        %v2191 = vadd.f32 %v2146, %v2190
        %2192 = vmatmul.f32.gmra.mxu0 %v1866
        %v2193 = vpop.f32.mrf.mxu0
        %v2194 = vadd.f32 %v2149, %v2193
        %2195 = vdwg.mxu0
        %v2196 = vadd.f32 %v2073, %v2173
        %v2197 = vadd.f32 %v2074, %v2176
        %v2198 = vadd.f32 %v2075, %v2179
        %v2199 = vadd.f32 %v2076, %v2182
        %v2200 = vadd.f32 %v2077, %v2185
        %v2201 = vadd.f32 %v2078, %v2188
        %v2202 = vadd.f32 %v2079, %v2191
        %v2203 = vadd.f32 %v2080, %v2194
        %v2204 = vmul.f32 %v2196, 0.2
        %v2205 = vmul.f32 %v2197, 0.2
        %v2206 = vmul.f32 %v2198, 0.2
        %v2207 = vmul.f32 %v2199, 0.2
        %v2208 = vmul.f32 %v2200, 0.2
        %v2209 = vmul.f32 %v2201, 0.2
        %v2210 = vmul.f32 %v2202, 0.2
        %v2211 = vmul.f32 %v2203, 0.2
        %v2212 = vmax.f32 %v2196, %v2204
        %v2213 = vmax.f32 %v2197, %v2205
        %v2214 = vmax.f32 %v2198, %v2206
        %v2215 = vmax.f32 %v2199, %v2207
        %v2216 = vmax.f32 %v2200, %v2208
        %v2217 = vmax.f32 %v2201, %v2209
        %v2218 = vmax.f32 %v2202, %v2210
        %v2219 = vmax.f32 %v2203, %v2211
        %2220 = vst.msk [vmem:[%s240 + $0x1] sm:$0xff] %vm210, %v2212
        %2221 = vst.msk [vmem:[%s240 + $0x11] sm:$0xff] %vm210, %v2213
        %2222 = vst.msk [vmem:[%s240 + $0x21] sm:$0xff] %vm210, %v2214
        %2223 = vst.msk [vmem:[%s240 + $0x31] sm:$0xff] %vm210, %v2215
        %2224 = vst.msk [vmem:[%s240 + $0x41] sm:$0xff] %vm210, %v2216
        %2225 = vst.msk [vmem:[%s240 + $0x51] sm:$0xff] %vm210, %v2217
        %2226 = vst.msk [vmem:[%s240 + $0x61] sm:$0xff] %vm210, %v2218
        %2227 = vst.msk [vmem:[%s240 + $0x71] sm:$0xff] %vm210, %v2219
        %v2228 = vld [vmem:[#allocation2] sm:$0xff]
        %v2229 = vld [vmem:[#allocation2 + $0x10] sm:$0xff]
        %v2230 = vld [vmem:[#allocation2 + $0x20] sm:$0xff]
        %v2231 = vld [vmem:[#allocation2 + $0x30] sm:$0xff]
        %v2232 = vld [vmem:[#allocation2 + $0x40] sm:$0xff]
        %v2233 = vld [vmem:[#allocation2 + $0x50] sm:$0xff]
        %v2234 = vld [vmem:[#allocation2 + $0x60] sm:$0xff]
        %v2235 = vld [vmem:[#allocation2 + $0x70] sm:$0xff]
        %v2236 = vld [vmem:[#allocation2 + $0x80] sm:$0xff]
        %v2237 = vld [vmem:[#allocation2 + $0x90] sm:$0xff]
        %v2238 = vld [vmem:[#allocation2 + $0x1] sm:$0xff]
        %v2239 = vld [vmem:[#allocation2 + $0x11] sm:$0xff]
        %v2240 = vld [vmem:[#allocation2 + $0x21] sm:$0xff]
        %v2241 = vld [vmem:[#allocation2 + $0x31] sm:$0xff]
        %v2242 = vld [vmem:[#allocation2 + $0x41] sm:$0xff]
        %v2243 = vld [vmem:[#allocation2 + $0x51] sm:$0xff]
        %v2244 = vld [vmem:[#allocation2 + $0x61] sm:$0xff]
        %v2245 = vld [vmem:[#allocation2 + $0x71] sm:$0xff]
        %v2246 = vld [vmem:[#allocation2 + $0x81] sm:$0xff]
        %v2247 = vld [vmem:[#allocation2 + $0x91] sm:$0xff]
        %v2248 = vld [vmem:[#allocation2 + $0x2] sm:$0xff]
        %v2249 = vld [vmem:[#allocation2 + $0x12] sm:$0xff]
        %v2250 = vld [vmem:[#allocation2 + $0x22] sm:$0xff]
        %v2251 = vld [vmem:[#allocation2 + $0x32] sm:$0xff]
        %v2252 = vld [vmem:[#allocation2 + $0x42] sm:$0xff]
        %v2253 = vld [vmem:[#allocation2 + $0x52] sm:$0xff]
        %v2254 = vld [vmem:[#allocation2 + $0x62] sm:$0xff]
        %v2255 = vld [vmem:[#allocation2 + $0x72] sm:$0xff]
        %v2256 = vld [vmem:[#allocation2 + $0x82] sm:$0xff]
        %v2257 = vld [vmem:[#allocation2 + $0x92] sm:$0xff]
        %2268 = vrot.lane.b32.xlu0 %v2238, 64
        %v2269 = vpop.permute.xlu0 %2268
        %2270 = vrot.lane.b32.xlu0 %v2239, 64
        %v2271 = vpop.permute.xlu0 %2270
        %2272 = vrot.lane.b32.xlu0 %v2240, 64
        %v2273 = vpop.permute.xlu0 %2272
        %2274 = vrot.lane.b32.xlu0 %v2241, 64
        %v2275 = vpop.permute.xlu0 %2274
        %2276 = vrot.lane.b32.xlu0 %v2242, 64
        %v2277 = vpop.permute.xlu0 %2276
        %2278 = vrot.lane.b32.xlu0 %v2243, 64
        %v2279 = vpop.permute.xlu0 %2278
        %2280 = vrot.lane.b32.xlu0 %v2244, 64
        %v2281 = vpop.permute.xlu0 %2280
        %2282 = vrot.lane.b32.xlu0 %v2245, 64
        %v2283 = vpop.permute.xlu0 %2282
        %2284 = vrot.lane.b32.xlu0 %v2246, 64
        %v2285 = vpop.permute.xlu0 %2284
        %2286 = vrot.lane.b32.xlu0 %v2247, 64
        %v2287 = vpop.permute.xlu0 %2286
        %v2298 = vsel %vm210, %v2228, %v2269
        %v2299 = vsel %vm210, %v2229, %v2271
        %v2300 = vsel %vm210, %v2230, %v2273
        %v2301 = vsel %vm210, %v2231, %v2275
        %v2302 = vsel %vm210, %v2232, %v2277
        %v2303 = vsel %vm210, %v2233, %v2279
        %v2304 = vsel %vm210, %v2234, %v2281
        %v2305 = vsel %vm210, %v2235, %v2283
        %v2306 = vsel %vm210, %v2236, %v2285
        %v2307 = vsel %vm210, %v2237, %v2287
        %s2308 = scalar_lea.vmem [#allocation5], 2304
        %v2309 = vld [vmem:[%s2308] sm:$0xff]
        %v2310 = vld [vmem:[%s2308 + $0x8] sm:$0xff]
        %v2311 = vld [vmem:[%s2308 + $0x10] sm:$0xff]
        %v2312 = vld [vmem:[%s2308 + $0x18] sm:$0xff]
        %v2313 = vld [vmem:[%s2308 + $0x20] sm:$0xff]
        %v2314 = vld [vmem:[%s2308 + $0x28] sm:$0xff]
        %v2315 = vld [vmem:[%s2308 + $0x30] sm:$0xff]
        %v2316 = vld [vmem:[%s2308 + $0x38] sm:$0xff]
        %v2317 = vld [vmem:[%s2308 + $0x40] sm:$0xff]
        %v2318 = vld [vmem:[%s2308 + $0x48] sm:$0xff]
        %v2319 = vld [vmem:[%s2308 + $0x50] sm:$0xff]
        %v2320 = vld [vmem:[%s2308 + $0x58] sm:$0xff]
        %v2321 = vld [vmem:[%s2308 + $0x60] sm:$0xff]
        %v2322 = vld [vmem:[%s2308 + $0x68] sm:$0xff]
        %v2323 = vld [vmem:[%s2308 + $0x70] sm:$0xff]
        %v2324 = vld [vmem:[%s2308 + $0x78] sm:$0xff]
        %v2325 = vld [vmem:[%s2308 + $0x80] sm:$0xff]
        %v2326 = vld [vmem:[%s2308 + $0x88] sm:$0xff]
        %v2327 = vld [vmem:[%s2308 + $0x90] sm:$0xff]
        %v2328 = vld [vmem:[%s2308 + $0x98] sm:$0xff]
        %v2329 = vld [vmem:[%s2308 + $0xa0] sm:$0xff]
        %v2330 = vld [vmem:[%s2308 + $0xa8] sm:$0xff]
        %v2331 = vld [vmem:[%s2308 + $0xb0] sm:$0xff]
        %v2332 = vld [vmem:[%s2308 + $0xb8] sm:$0xff]
        %v2334 = vsel %vm210, %v2248, 0
        %v2337 = vsel %vm210, %v2249, 0
        %v2340 = vsel %vm210, %v2250, 0
        %v2343 = vsel %vm210, %v2251, 0
        %v2346 = vsel %vm210, %v2252, 0
        %v2349 = vsel %vm210, %v2253, 0
        %v2352 = vsel %vm210, %v2254, 0
        %v2355 = vsel %vm210, %v2255, 0
        %v2358 = vsel %vm210, %v2256, 0
        %v2361 = vsel %vm210, %v2257, 0
        %2363 = vmatpush.msra.mxu0 %v2324
        %2364 = vmatpush.msra.mxu0 %v2323
        %2365 = vmatpush.msra.mxu0 %v2322
        %2366 = vmatpush.msra.mxu0 %v2321
        %2367 = vmatpush.msra.mxu0 %v2320
        %2368 = vmatpush.msra.mxu0 %v2319
        %2369 = vmatpush.msra.mxu0 %v2318
        %2370 = vmatpush.msra.mxu0 %v2317
        %2371 = vmatpush.msra.mxu0 %v2316
        %2372 = vmatpush.msra.mxu0 %v2315
        %2373 = vmatpush.msra.mxu0 %v2314
        %2374 = vmatpush.msra.mxu0 %v2313
        %2375 = vmatpush.msra.mxu0 %v2312
        %2376 = vmatpush.msra.mxu0 %v2311
        %2377 = vmatpush.msra.mxu0 %v2310
        %2378 = vmatpush.msra.mxu0 %v2309
        %2379 = vmatmul.f32.gmra.mxu0 %v2298
        %v2380 = vpop.f32.mrf.mxu0
        %v2381 = vadd.f32 0.0, %v2380
        %2382 = vmatmul.f32.gmra.mxu0 %v2299
        %v2383 = vpop.f32.mrf.mxu0
        %v2384 = vadd.f32 0.0, %v2383
        %2385 = vmatmul.f32.gmra.mxu0 %v2300
        %v2386 = vpop.f32.mrf.mxu0
        %v2387 = vadd.f32 0.0, %v2386
        %2388 = vmatmul.f32.gmra.mxu0 %v2301
        %v2389 = vpop.f32.mrf.mxu0
        %v2390 = vadd.f32 0.0, %v2389
        %2391 = vmatmul.f32.gmra.mxu0 %v2302
        %v2392 = vpop.f32.mrf.mxu0
        %v2393 = vadd.f32 0.0, %v2392
        %2394 = vmatmul.f32.gmra.mxu0 %v2303
        %v2395 = vpop.f32.mrf.mxu0
        %v2396 = vadd.f32 0.0, %v2395
        %2397 = vmatmul.f32.gmra.mxu0 %v2304
        %v2398 = vpop.f32.mrf.mxu0
        %v2399 = vadd.f32 0.0, %v2398
        %2400 = vmatmul.f32.gmra.mxu0 %v2305
        %v2401 = vpop.f32.mrf.mxu0
        %v2402 = vadd.f32 0.0, %v2401
        %2403 = vmatmul.f32.gmra.mxu0 %v2306
        %v2404 = vpop.f32.mrf.mxu0
        %2405 = vmatmul.f32.gmra.mxu0 %v2307
        %v2406 = vpop.f32.mrf.mxu0
        %2407 = vdwg.mxu0
        %2408 = vmatpush.msra.mxu0 0.0
        %2409 = vmatpush.msra.mxu0 0.0
        %2410 = vmatpush.msra.mxu0 0.0
        %2411 = vmatpush.msra.mxu0 0.0
        %2412 = vmatpush.msra.mxu0 0.0
        %2413 = vmatpush.msra.mxu0 0.0
        %2414 = vmatpush.msra.mxu0 0.0
        %2415 = vmatpush.msra.mxu0 0.0
        %2416 = vmatpush.msra.mxu0 %v2332
        %2417 = vmatpush.msra.mxu0 %v2331
        %2418 = vmatpush.msra.mxu0 %v2330
        %2419 = vmatpush.msra.mxu0 %v2329
        %2420 = vmatpush.msra.mxu0 %v2328
        %2421 = vmatpush.msra.mxu0 %v2327
        %2422 = vmatpush.msra.mxu0 %v2326
        %2423 = vmatpush.msra.mxu0 %v2325
        %2424 = vmatmul.f32.gmra.mxu0 %v2334
        %v2425 = vpop.f32.mrf.mxu0
        %v2426 = vadd.f32 %v2381, %v2425
        %2427 = vmatmul.f32.gmra.mxu0 %v2337
        %v2428 = vpop.f32.mrf.mxu0
        %v2429 = vadd.f32 %v2384, %v2428
        %2430 = vmatmul.f32.gmra.mxu0 %v2340
        %v2431 = vpop.f32.mrf.mxu0
        %v2432 = vadd.f32 %v2387, %v2431
        %2433 = vmatmul.f32.gmra.mxu0 %v2343
        %v2434 = vpop.f32.mrf.mxu0
        %v2435 = vadd.f32 %v2390, %v2434
        %2436 = vmatmul.f32.gmra.mxu0 %v2346
        %v2437 = vpop.f32.mrf.mxu0
        %v2438 = vadd.f32 %v2393, %v2437
        %2439 = vmatmul.f32.gmra.mxu0 %v2349
        %v2440 = vpop.f32.mrf.mxu0
        %v2441 = vadd.f32 %v2396, %v2440
        %2442 = vmatmul.f32.gmra.mxu0 %v2352
        %v2443 = vpop.f32.mrf.mxu0
        %v2444 = vadd.f32 %v2399, %v2443
        %2445 = vmatmul.f32.gmra.mxu0 %v2355
        %v2446 = vpop.f32.mrf.mxu0
        %v2447 = vadd.f32 %v2402, %v2446
        %2448 = vmatmul.f32.gmra.mxu0 %v2358
        %v2449 = vpop.f32.mrf.mxu0
        %2450 = vmatmul.f32.gmra.mxu0 %v2361
        %v2451 = vpop.f32.mrf.mxu0
        %2452 = vdwg.mxu0
        %s2453 = scalar_lea.vmem [#allocation5], 2496
        %v2454 = vld [vmem:[%s2453] sm:$0xff]
        %v2455 = vld [vmem:[%s2453 + $0x8] sm:$0xff]
        %v2456 = vld [vmem:[%s2453 + $0x10] sm:$0xff]
        %v2457 = vld [vmem:[%s2453 + $0x18] sm:$0xff]
        %v2458 = vld [vmem:[%s2453 + $0x20] sm:$0xff]
        %v2459 = vld [vmem:[%s2453 + $0x28] sm:$0xff]
        %v2460 = vld [vmem:[%s2453 + $0x30] sm:$0xff]
        %v2461 = vld [vmem:[%s2453 + $0x38] sm:$0xff]
        %v2462 = vld [vmem:[%s2453 + $0x40] sm:$0xff]
        %v2463 = vld [vmem:[%s2453 + $0x48] sm:$0xff]
        %v2464 = vld [vmem:[%s2453 + $0x50] sm:$0xff]
        %v2465 = vld [vmem:[%s2453 + $0x58] sm:$0xff]
        %v2466 = vld [vmem:[%s2453 + $0x60] sm:$0xff]
        %v2467 = vld [vmem:[%s2453 + $0x68] sm:$0xff]
        %v2468 = vld [vmem:[%s2453 + $0x70] sm:$0xff]
        %v2469 = vld [vmem:[%s2453 + $0x78] sm:$0xff]
        %v2470 = vld [vmem:[%s2453 + $0x80] sm:$0xff]
        %v2471 = vld [vmem:[%s2453 + $0x88] sm:$0xff]
        %v2472 = vld [vmem:[%s2453 + $0x90] sm:$0xff]
        %v2473 = vld [vmem:[%s2453 + $0x98] sm:$0xff]
        %v2474 = vld [vmem:[%s2453 + $0xa0] sm:$0xff]
        %v2475 = vld [vmem:[%s2453 + $0xa8] sm:$0xff]
        %v2476 = vld [vmem:[%s2453 + $0xb0] sm:$0xff]
        %v2477 = vld [vmem:[%s2453 + $0xb8] sm:$0xff]
        %2478 = vmatpush.msra.mxu0 %v2469
        %2479 = vmatpush.msra.mxu0 %v2468
        %2480 = vmatpush.msra.mxu0 %v2467
        %2481 = vmatpush.msra.mxu0 %v2466
        %2482 = vmatpush.msra.mxu0 %v2465
        %2483 = vmatpush.msra.mxu0 %v2464
        %2484 = vmatpush.msra.mxu0 %v2463
        %2485 = vmatpush.msra.mxu0 %v2462
        %2486 = vmatpush.msra.mxu0 %v2461
        %2487 = vmatpush.msra.mxu0 %v2460
        %2488 = vmatpush.msra.mxu0 %v2459
        %2489 = vmatpush.msra.mxu0 %v2458
        %2490 = vmatpush.msra.mxu0 %v2457
        %2491 = vmatpush.msra.mxu0 %v2456
        %2492 = vmatpush.msra.mxu0 %v2455
        %2493 = vmatpush.msra.mxu0 %v2454
        %2494 = vmatmul.f32.gmra.mxu0 %v2298
        %v2495 = vpop.f32.mrf.mxu0
        %2496 = vmatmul.f32.gmra.mxu0 %v2299
        %v2497 = vpop.f32.mrf.mxu0
        %v2498 = vadd.f32 0.0, %v2497
        %2499 = vmatmul.f32.gmra.mxu0 %v2300
        %v2500 = vpop.f32.mrf.mxu0
        %v2501 = vadd.f32 0.0, %v2500
        %2502 = vmatmul.f32.gmra.mxu0 %v2301
        %v2503 = vpop.f32.mrf.mxu0
        %v2504 = vadd.f32 0.0, %v2503
        %2505 = vmatmul.f32.gmra.mxu0 %v2302
        %v2506 = vpop.f32.mrf.mxu0
        %v2507 = vadd.f32 0.0, %v2506
        %2508 = vmatmul.f32.gmra.mxu0 %v2303
        %v2509 = vpop.f32.mrf.mxu0
        %v2510 = vadd.f32 0.0, %v2509
        %2511 = vmatmul.f32.gmra.mxu0 %v2304
        %v2512 = vpop.f32.mrf.mxu0
        %v2513 = vadd.f32 0.0, %v2512
        %2514 = vmatmul.f32.gmra.mxu0 %v2305
        %v2515 = vpop.f32.mrf.mxu0
        %v2516 = vadd.f32 0.0, %v2515
        %2517 = vmatmul.f32.gmra.mxu0 %v2306
        %v2518 = vpop.f32.mrf.mxu0
        %v2519 = vadd.f32 0.0, %v2518
        %2520 = vmatmul.f32.gmra.mxu0 %v2307
        %v2521 = vpop.f32.mrf.mxu0
        %2522 = vdwg.mxu0
        %2523 = vmatpush.msra.mxu0 0.0
        %2524 = vmatpush.msra.mxu0 0.0
        %2525 = vmatpush.msra.mxu0 0.0
        %2526 = vmatpush.msra.mxu0 0.0
        %2527 = vmatpush.msra.mxu0 0.0
        %2528 = vmatpush.msra.mxu0 0.0
        %2529 = vmatpush.msra.mxu0 0.0
        %2530 = vmatpush.msra.mxu0 0.0
        %2531 = vmatpush.msra.mxu0 %v2477
        %2532 = vmatpush.msra.mxu0 %v2476
        %2533 = vmatpush.msra.mxu0 %v2475
        %2534 = vmatpush.msra.mxu0 %v2474
        %2535 = vmatpush.msra.mxu0 %v2473
        %2536 = vmatpush.msra.mxu0 %v2472
        %2537 = vmatpush.msra.mxu0 %v2471
        %2538 = vmatpush.msra.mxu0 %v2470
        %2539 = vmatmul.f32.gmra.mxu0 %v2334
        %v2540 = vpop.f32.mrf.mxu0
        %2541 = vmatmul.f32.gmra.mxu0 %v2337
        %v2542 = vpop.f32.mrf.mxu0
        %v2543 = vadd.f32 %v2498, %v2542
        %2544 = vmatmul.f32.gmra.mxu0 %v2340
        %v2545 = vpop.f32.mrf.mxu0
        %v2546 = vadd.f32 %v2501, %v2545
        %2547 = vmatmul.f32.gmra.mxu0 %v2343
        %v2548 = vpop.f32.mrf.mxu0
        %v2549 = vadd.f32 %v2504, %v2548
        %2550 = vmatmul.f32.gmra.mxu0 %v2346
        %v2551 = vpop.f32.mrf.mxu0
        %v2552 = vadd.f32 %v2507, %v2551
        %2553 = vmatmul.f32.gmra.mxu0 %v2349
        %v2554 = vpop.f32.mrf.mxu0
        %v2555 = vadd.f32 %v2510, %v2554
        %2556 = vmatmul.f32.gmra.mxu0 %v2352
        %v2557 = vpop.f32.mrf.mxu0
        %v2558 = vadd.f32 %v2513, %v2557
        %2559 = vmatmul.f32.gmra.mxu0 %v2355
        %v2560 = vpop.f32.mrf.mxu0
        %v2561 = vadd.f32 %v2516, %v2560
        %2562 = vmatmul.f32.gmra.mxu0 %v2358
        %v2563 = vpop.f32.mrf.mxu0
        %v2564 = vadd.f32 %v2519, %v2563
        %2565 = vmatmul.f32.gmra.mxu0 %v2361
        %v2566 = vpop.f32.mrf.mxu0
        %2567 = vdwg.mxu0
        %v2568 = vadd.f32 %v2426, %v2543
        %v2569 = vadd.f32 %v2429, %v2546
        %v2570 = vadd.f32 %v2432, %v2549
        %v2571 = vadd.f32 %v2435, %v2552
        %v2572 = vadd.f32 %v2438, %v2555
        %v2573 = vadd.f32 %v2441, %v2558
        %v2574 = vadd.f32 %v2444, %v2561
        %v2575 = vadd.f32 %v2447, %v2564
        %s2576 = scalar_lea.vmem [#allocation5], 2688
        %v2577 = vld [vmem:[%s2576] sm:$0xff]
        %v2578 = vld [vmem:[%s2576 + $0x8] sm:$0xff]
        %v2579 = vld [vmem:[%s2576 + $0x10] sm:$0xff]
        %v2580 = vld [vmem:[%s2576 + $0x18] sm:$0xff]
        %v2581 = vld [vmem:[%s2576 + $0x20] sm:$0xff]
        %v2582 = vld [vmem:[%s2576 + $0x28] sm:$0xff]
        %v2583 = vld [vmem:[%s2576 + $0x30] sm:$0xff]
        %v2584 = vld [vmem:[%s2576 + $0x38] sm:$0xff]
        %v2585 = vld [vmem:[%s2576 + $0x40] sm:$0xff]
        %v2586 = vld [vmem:[%s2576 + $0x48] sm:$0xff]
        %v2587 = vld [vmem:[%s2576 + $0x50] sm:$0xff]
        %v2588 = vld [vmem:[%s2576 + $0x58] sm:$0xff]
        %v2589 = vld [vmem:[%s2576 + $0x60] sm:$0xff]
        %v2590 = vld [vmem:[%s2576 + $0x68] sm:$0xff]
        %v2591 = vld [vmem:[%s2576 + $0x70] sm:$0xff]
        %v2592 = vld [vmem:[%s2576 + $0x78] sm:$0xff]
        %v2593 = vld [vmem:[%s2576 + $0x80] sm:$0xff]
        %v2594 = vld [vmem:[%s2576 + $0x88] sm:$0xff]
        %v2595 = vld [vmem:[%s2576 + $0x90] sm:$0xff]
        %v2596 = vld [vmem:[%s2576 + $0x98] sm:$0xff]
        %v2597 = vld [vmem:[%s2576 + $0xa0] sm:$0xff]
        %v2598 = vld [vmem:[%s2576 + $0xa8] sm:$0xff]
        %v2599 = vld [vmem:[%s2576 + $0xb0] sm:$0xff]
        %v2600 = vld [vmem:[%s2576 + $0xb8] sm:$0xff]
        %2601 = vmatpush.msra.mxu0 %v2592
        %2602 = vmatpush.msra.mxu0 %v2591
        %2603 = vmatpush.msra.mxu0 %v2590
        %2604 = vmatpush.msra.mxu0 %v2589
        %2605 = vmatpush.msra.mxu0 %v2588
        %2606 = vmatpush.msra.mxu0 %v2587
        %2607 = vmatpush.msra.mxu0 %v2586
        %2608 = vmatpush.msra.mxu0 %v2585
        %2609 = vmatpush.msra.mxu0 %v2584
        %2610 = vmatpush.msra.mxu0 %v2583
        %2611 = vmatpush.msra.mxu0 %v2582
        %2612 = vmatpush.msra.mxu0 %v2581
        %2613 = vmatpush.msra.mxu0 %v2580
        %2614 = vmatpush.msra.mxu0 %v2579
        %2615 = vmatpush.msra.mxu0 %v2578
        %2616 = vmatpush.msra.mxu0 %v2577
        %2617 = vmatmul.f32.gmra.mxu0 %v2298
        %v2618 = vpop.f32.mrf.mxu0
        %2619 = vmatmul.f32.gmra.mxu0 %v2299
        %v2620 = vpop.f32.mrf.mxu0
        %2621 = vmatmul.f32.gmra.mxu0 %v2300
        %v2622 = vpop.f32.mrf.mxu0
        %v2623 = vadd.f32 0.0, %v2622
        %2624 = vmatmul.f32.gmra.mxu0 %v2301
        %v2625 = vpop.f32.mrf.mxu0
        %v2626 = vadd.f32 0.0, %v2625
        %2627 = vmatmul.f32.gmra.mxu0 %v2302
        %v2628 = vpop.f32.mrf.mxu0
        %v2629 = vadd.f32 0.0, %v2628
        %2630 = vmatmul.f32.gmra.mxu0 %v2303
        %v2631 = vpop.f32.mrf.mxu0
        %v2632 = vadd.f32 0.0, %v2631
        %2633 = vmatmul.f32.gmra.mxu0 %v2304
        %v2634 = vpop.f32.mrf.mxu0
        %v2635 = vadd.f32 0.0, %v2634
        %2636 = vmatmul.f32.gmra.mxu0 %v2305
        %v2637 = vpop.f32.mrf.mxu0
        %v2638 = vadd.f32 0.0, %v2637
        %2639 = vmatmul.f32.gmra.mxu0 %v2306
        %v2640 = vpop.f32.mrf.mxu0
        %v2641 = vadd.f32 0.0, %v2640
        %2642 = vmatmul.f32.gmra.mxu0 %v2307
        %v2643 = vpop.f32.mrf.mxu0
        %v2644 = vadd.f32 0.0, %v2643
        %2645 = vdwg.mxu0
        %2646 = vmatpush.msra.mxu0 0.0
        %2647 = vmatpush.msra.mxu0 0.0
        %2648 = vmatpush.msra.mxu0 0.0
        %2649 = vmatpush.msra.mxu0 0.0
        %2650 = vmatpush.msra.mxu0 0.0
        %2651 = vmatpush.msra.mxu0 0.0
        %2652 = vmatpush.msra.mxu0 0.0
        %2653 = vmatpush.msra.mxu0 0.0
        %2654 = vmatpush.msra.mxu0 %v2600
        %2655 = vmatpush.msra.mxu0 %v2599
        %2656 = vmatpush.msra.mxu0 %v2598
        %2657 = vmatpush.msra.mxu0 %v2597
        %2658 = vmatpush.msra.mxu0 %v2596
        %2659 = vmatpush.msra.mxu0 %v2595
        %2660 = vmatpush.msra.mxu0 %v2594
        %2661 = vmatpush.msra.mxu0 %v2593
        %2662 = vmatmul.f32.gmra.mxu0 %v2334
        %v2663 = vpop.f32.mrf.mxu0
        %2664 = vmatmul.f32.gmra.mxu0 %v2337
        %v2665 = vpop.f32.mrf.mxu0
        %2666 = vmatmul.f32.gmra.mxu0 %v2340
        %v2667 = vpop.f32.mrf.mxu0
        %v2668 = vadd.f32 %v2623, %v2667
        %2669 = vmatmul.f32.gmra.mxu0 %v2343
        %v2670 = vpop.f32.mrf.mxu0
        %v2671 = vadd.f32 %v2626, %v2670
        %2672 = vmatmul.f32.gmra.mxu0 %v2346
        %v2673 = vpop.f32.mrf.mxu0
        %v2674 = vadd.f32 %v2629, %v2673
        %2675 = vmatmul.f32.gmra.mxu0 %v2349
        %v2676 = vpop.f32.mrf.mxu0
        %v2677 = vadd.f32 %v2632, %v2676
        %2678 = vmatmul.f32.gmra.mxu0 %v2352
        %v2679 = vpop.f32.mrf.mxu0
        %v2680 = vadd.f32 %v2635, %v2679
        %2681 = vmatmul.f32.gmra.mxu0 %v2355
        %v2682 = vpop.f32.mrf.mxu0
        %v2683 = vadd.f32 %v2638, %v2682
        %2684 = vmatmul.f32.gmra.mxu0 %v2358
        %v2685 = vpop.f32.mrf.mxu0
        %v2686 = vadd.f32 %v2641, %v2685
        %2687 = vmatmul.f32.gmra.mxu0 %v2361
        %v2688 = vpop.f32.mrf.mxu0
        %v2689 = vadd.f32 %v2644, %v2688
        %2690 = vdwg.mxu0
        %v2691 = vadd.f32 %v2568, %v2668
        %v2692 = vadd.f32 %v2569, %v2671
        %v2693 = vadd.f32 %v2570, %v2674
        %v2694 = vadd.f32 %v2571, %v2677
        %v2695 = vadd.f32 %v2572, %v2680
        %v2696 = vadd.f32 %v2573, %v2683
        %v2697 = vadd.f32 %v2574, %v2686
        %v2698 = vadd.f32 %v2575, %v2689
        %v2699 = vmul.f32 %v2691, 0.2
        %v2700 = vmul.f32 %v2692, 0.2
        %v2701 = vmul.f32 %v2693, 0.2
        %v2702 = vmul.f32 %v2694, 0.2
        %v2703 = vmul.f32 %v2695, 0.2
        %v2704 = vmul.f32 %v2696, 0.2
        %v2705 = vmul.f32 %v2697, 0.2
        %v2706 = vmul.f32 %v2698, 0.2
        %v2707 = vmax.f32 %v2691, %v2699
        %v2708 = vmax.f32 %v2692, %v2700
        %v2709 = vmax.f32 %v2693, %v2701
        %v2710 = vmax.f32 %v2694, %v2702
        %v2711 = vmax.f32 %v2695, %v2703
        %v2712 = vmax.f32 %v2696, %v2704
        %v2713 = vmax.f32 %v2697, %v2705
        %v2714 = vmax.f32 %v2698, %v2706
        %2715 = vst.msk [vmem:[%s240 + $0x1] sm:$0xff] %vm210, %v2707
        %2716 = vst.msk [vmem:[%s240 + $0x11] sm:$0xff] %vm210, %v2708
        %2717 = vst.msk [vmem:[%s240 + $0x21] sm:$0xff] %vm210, %v2709
        %2718 = vst.msk [vmem:[%s240 + $0x31] sm:$0xff] %vm210, %v2710
        %2719 = vst.msk [vmem:[%s240 + $0x41] sm:$0xff] %vm210, %v2711
        %2720 = vst.msk [vmem:[%s240 + $0x51] sm:$0xff] %vm210, %v2712
        %2721 = vst.msk [vmem:[%s240 + $0x61] sm:$0xff] %vm210, %v2713
        %2722 = vst.msk [vmem:[%s240 + $0x71] sm:$0xff] %vm210, %v2714
        %v2723 = vld [vmem:[#allocation2] sm:$0xff]
        %v2724 = vld [vmem:[#allocation2 + $0x10] sm:$0xff]
        %v2725 = vld [vmem:[#allocation2 + $0x20] sm:$0xff]
        %v2726 = vld [vmem:[#allocation2 + $0x30] sm:$0xff]
        %v2727 = vld [vmem:[#allocation2 + $0x40] sm:$0xff]
        %v2728 = vld [vmem:[#allocation2 + $0x50] sm:$0xff]
        %v2729 = vld [vmem:[#allocation2 + $0x60] sm:$0xff]
        %v2730 = vld [vmem:[#allocation2 + $0x70] sm:$0xff]
        %v2731 = vld [vmem:[#allocation2 + $0x80] sm:$0xff]
        %v2732 = vld [vmem:[#allocation2 + $0x90] sm:$0xff]
        %v2733 = vld [vmem:[#allocation2 + $0x1] sm:$0xff]
        %v2734 = vld [vmem:[#allocation2 + $0x11] sm:$0xff]
        %v2735 = vld [vmem:[#allocation2 + $0x21] sm:$0xff]
        %v2736 = vld [vmem:[#allocation2 + $0x31] sm:$0xff]
        %v2737 = vld [vmem:[#allocation2 + $0x41] sm:$0xff]
        %v2738 = vld [vmem:[#allocation2 + $0x51] sm:$0xff]
        %v2739 = vld [vmem:[#allocation2 + $0x61] sm:$0xff]
        %v2740 = vld [vmem:[#allocation2 + $0x71] sm:$0xff]
        %v2741 = vld [vmem:[#allocation2 + $0x81] sm:$0xff]
        %v2742 = vld [vmem:[#allocation2 + $0x91] sm:$0xff]
        %v2743 = vld [vmem:[#allocation2 + $0x2] sm:$0xff]
        %v2744 = vld [vmem:[#allocation2 + $0x12] sm:$0xff]
        %v2745 = vld [vmem:[#allocation2 + $0x22] sm:$0xff]
        %v2746 = vld [vmem:[#allocation2 + $0x32] sm:$0xff]
        %v2747 = vld [vmem:[#allocation2 + $0x42] sm:$0xff]
        %v2748 = vld [vmem:[#allocation2 + $0x52] sm:$0xff]
        %v2749 = vld [vmem:[#allocation2 + $0x62] sm:$0xff]
        %v2750 = vld [vmem:[#allocation2 + $0x72] sm:$0xff]
        %v2751 = vld [vmem:[#allocation2 + $0x82] sm:$0xff]
        %v2752 = vld [vmem:[#allocation2 + $0x92] sm:$0xff]
        %2763 = vrot.lane.b32.xlu0 %v2733, 64
        %v2764 = vpop.permute.xlu0 %2763
        %2765 = vrot.lane.b32.xlu0 %v2734, 64
        %v2766 = vpop.permute.xlu0 %2765
        %2767 = vrot.lane.b32.xlu0 %v2735, 64
        %v2768 = vpop.permute.xlu0 %2767
        %2769 = vrot.lane.b32.xlu0 %v2736, 64
        %v2770 = vpop.permute.xlu0 %2769
        %2771 = vrot.lane.b32.xlu0 %v2737, 64
        %v2772 = vpop.permute.xlu0 %2771
        %2773 = vrot.lane.b32.xlu0 %v2738, 64
        %v2774 = vpop.permute.xlu0 %2773
        %2775 = vrot.lane.b32.xlu0 %v2739, 64
        %v2776 = vpop.permute.xlu0 %2775
        %2777 = vrot.lane.b32.xlu0 %v2740, 64
        %v2778 = vpop.permute.xlu0 %2777
        %2779 = vrot.lane.b32.xlu0 %v2741, 64
        %v2780 = vpop.permute.xlu0 %2779
        %2781 = vrot.lane.b32.xlu0 %v2742, 64
        %v2782 = vpop.permute.xlu0 %2781
        %v2793 = vsel %vm210, %v2723, %v2764
        %v2794 = vsel %vm210, %v2724, %v2766
        %v2795 = vsel %vm210, %v2725, %v2768
        %v2796 = vsel %vm210, %v2726, %v2770
        %v2797 = vsel %vm210, %v2727, %v2772
        %v2798 = vsel %vm210, %v2728, %v2774
        %v2799 = vsel %vm210, %v2729, %v2776
        %v2800 = vsel %vm210, %v2730, %v2778
        %v2801 = vsel %vm210, %v2731, %v2780
        %v2802 = vsel %vm210, %v2732, %v2782
        %s2803 = scalar_lea.vmem [#allocation5], 2880
        %v2804 = vld [vmem:[%s2803] sm:$0xff]
        %v2805 = vld [vmem:[%s2803 + $0x8] sm:$0xff]
        %v2806 = vld [vmem:[%s2803 + $0x10] sm:$0xff]
        %v2807 = vld [vmem:[%s2803 + $0x18] sm:$0xff]
        %v2808 = vld [vmem:[%s2803 + $0x20] sm:$0xff]
        %v2809 = vld [vmem:[%s2803 + $0x28] sm:$0xff]
        %v2810 = vld [vmem:[%s2803 + $0x30] sm:$0xff]
        %v2811 = vld [vmem:[%s2803 + $0x38] sm:$0xff]
        %v2812 = vld [vmem:[%s2803 + $0x40] sm:$0xff]
        %v2813 = vld [vmem:[%s2803 + $0x48] sm:$0xff]
        %v2814 = vld [vmem:[%s2803 + $0x50] sm:$0xff]
        %v2815 = vld [vmem:[%s2803 + $0x58] sm:$0xff]
        %v2816 = vld [vmem:[%s2803 + $0x60] sm:$0xff]
        %v2817 = vld [vmem:[%s2803 + $0x68] sm:$0xff]
        %v2818 = vld [vmem:[%s2803 + $0x70] sm:$0xff]
        %v2819 = vld [vmem:[%s2803 + $0x78] sm:$0xff]
        %v2820 = vld [vmem:[%s2803 + $0x80] sm:$0xff]
        %v2821 = vld [vmem:[%s2803 + $0x88] sm:$0xff]
        %v2822 = vld [vmem:[%s2803 + $0x90] sm:$0xff]
        %v2823 = vld [vmem:[%s2803 + $0x98] sm:$0xff]
        %v2824 = vld [vmem:[%s2803 + $0xa0] sm:$0xff]
        %v2825 = vld [vmem:[%s2803 + $0xa8] sm:$0xff]
        %v2826 = vld [vmem:[%s2803 + $0xb0] sm:$0xff]
        %v2827 = vld [vmem:[%s2803 + $0xb8] sm:$0xff]
        %v2829 = vsel %vm210, %v2743, 0
        %v2832 = vsel %vm210, %v2744, 0
        %v2835 = vsel %vm210, %v2745, 0
        %v2838 = vsel %vm210, %v2746, 0
        %v2841 = vsel %vm210, %v2747, 0
        %v2844 = vsel %vm210, %v2748, 0
        %v2847 = vsel %vm210, %v2749, 0
        %v2850 = vsel %vm210, %v2750, 0
        %v2853 = vsel %vm210, %v2751, 0
        %v2856 = vsel %vm210, %v2752, 0
        %2858 = vmatpush.msra.mxu0 %v2819
        %2859 = vmatpush.msra.mxu0 %v2818
        %2860 = vmatpush.msra.mxu0 %v2817
        %2861 = vmatpush.msra.mxu0 %v2816
        %2862 = vmatpush.msra.mxu0 %v2815
        %2863 = vmatpush.msra.mxu0 %v2814
        %2864 = vmatpush.msra.mxu0 %v2813
        %2865 = vmatpush.msra.mxu0 %v2812
        %2866 = vmatpush.msra.mxu0 %v2811
        %2867 = vmatpush.msra.mxu0 %v2810
        %2868 = vmatpush.msra.mxu0 %v2809
        %2869 = vmatpush.msra.mxu0 %v2808
        %2870 = vmatpush.msra.mxu0 %v2807
        %2871 = vmatpush.msra.mxu0 %v2806
        %2872 = vmatpush.msra.mxu0 %v2805
        %2873 = vmatpush.msra.mxu0 %v2804
        %2874 = vmatmul.f32.gmra.mxu0 %v2793
        %v2875 = vpop.f32.mrf.mxu0
        %v2876 = vadd.f32 0.0, %v2875
        %2877 = vmatmul.f32.gmra.mxu0 %v2794
        %v2878 = vpop.f32.mrf.mxu0
        %v2879 = vadd.f32 0.0, %v2878
        %2880 = vmatmul.f32.gmra.mxu0 %v2795
        %v2881 = vpop.f32.mrf.mxu0
        %v2882 = vadd.f32 0.0, %v2881
        %2883 = vmatmul.f32.gmra.mxu0 %v2796
        %v2884 = vpop.f32.mrf.mxu0
        %v2885 = vadd.f32 0.0, %v2884
        %2886 = vmatmul.f32.gmra.mxu0 %v2797
        %v2887 = vpop.f32.mrf.mxu0
        %v2888 = vadd.f32 0.0, %v2887
        %2889 = vmatmul.f32.gmra.mxu0 %v2798
        %v2890 = vpop.f32.mrf.mxu0
        %v2891 = vadd.f32 0.0, %v2890
        %2892 = vmatmul.f32.gmra.mxu0 %v2799
        %v2893 = vpop.f32.mrf.mxu0
        %v2894 = vadd.f32 0.0, %v2893
        %2895 = vmatmul.f32.gmra.mxu0 %v2800
        %v2896 = vpop.f32.mrf.mxu0
        %v2897 = vadd.f32 0.0, %v2896
        %2898 = vmatmul.f32.gmra.mxu0 %v2801
        %v2899 = vpop.f32.mrf.mxu0
        %2900 = vmatmul.f32.gmra.mxu0 %v2802
        %v2901 = vpop.f32.mrf.mxu0
        %2902 = vdwg.mxu0
        %2903 = vmatpush.msra.mxu0 0.0
        %2904 = vmatpush.msra.mxu0 0.0
        %2905 = vmatpush.msra.mxu0 0.0
        %2906 = vmatpush.msra.mxu0 0.0
        %2907 = vmatpush.msra.mxu0 0.0
        %2908 = vmatpush.msra.mxu0 0.0
        %2909 = vmatpush.msra.mxu0 0.0
        %2910 = vmatpush.msra.mxu0 0.0
        %2911 = vmatpush.msra.mxu0 %v2827
        %2912 = vmatpush.msra.mxu0 %v2826
        %2913 = vmatpush.msra.mxu0 %v2825
        %2914 = vmatpush.msra.mxu0 %v2824
        %2915 = vmatpush.msra.mxu0 %v2823
        %2916 = vmatpush.msra.mxu0 %v2822
        %2917 = vmatpush.msra.mxu0 %v2821
        %2918 = vmatpush.msra.mxu0 %v2820
        %2919 = vmatmul.f32.gmra.mxu0 %v2829
        %v2920 = vpop.f32.mrf.mxu0
        %v2921 = vadd.f32 %v2876, %v2920
        %2922 = vmatmul.f32.gmra.mxu0 %v2832
        %v2923 = vpop.f32.mrf.mxu0
        %v2924 = vadd.f32 %v2879, %v2923
        %2925 = vmatmul.f32.gmra.mxu0 %v2835
        %v2926 = vpop.f32.mrf.mxu0
        %v2927 = vadd.f32 %v2882, %v2926
        %2928 = vmatmul.f32.gmra.mxu0 %v2838
        %v2929 = vpop.f32.mrf.mxu0
        %v2930 = vadd.f32 %v2885, %v2929
        %2931 = vmatmul.f32.gmra.mxu0 %v2841
        %v2932 = vpop.f32.mrf.mxu0
        %v2933 = vadd.f32 %v2888, %v2932
        %2934 = vmatmul.f32.gmra.mxu0 %v2844
        %v2935 = vpop.f32.mrf.mxu0
        %v2936 = vadd.f32 %v2891, %v2935
        %2937 = vmatmul.f32.gmra.mxu0 %v2847
        %v2938 = vpop.f32.mrf.mxu0
        %v2939 = vadd.f32 %v2894, %v2938
        %2940 = vmatmul.f32.gmra.mxu0 %v2850
        %v2941 = vpop.f32.mrf.mxu0
        %v2942 = vadd.f32 %v2897, %v2941
        %2943 = vmatmul.f32.gmra.mxu0 %v2853
        %v2944 = vpop.f32.mrf.mxu0
        %2945 = vmatmul.f32.gmra.mxu0 %v2856
        %v2946 = vpop.f32.mrf.mxu0
        %2947 = vdwg.mxu0
        %s2948 = scalar_lea.vmem [#allocation5], 3072
        %v2949 = vld [vmem:[%s2948] sm:$0xff]
        %v2950 = vld [vmem:[%s2948 + $0x8] sm:$0xff]
        %v2951 = vld [vmem:[%s2948 + $0x10] sm:$0xff]
        %v2952 = vld [vmem:[%s2948 + $0x18] sm:$0xff]
        %v2953 = vld [vmem:[%s2948 + $0x20] sm:$0xff]
        %v2954 = vld [vmem:[%s2948 + $0x28] sm:$0xff]
        %v2955 = vld [vmem:[%s2948 + $0x30] sm:$0xff]
        %v2956 = vld [vmem:[%s2948 + $0x38] sm:$0xff]
        %v2957 = vld [vmem:[%s2948 + $0x40] sm:$0xff]
        %v2958 = vld [vmem:[%s2948 + $0x48] sm:$0xff]
        %v2959 = vld [vmem:[%s2948 + $0x50] sm:$0xff]
        %v2960 = vld [vmem:[%s2948 + $0x58] sm:$0xff]
        %v2961 = vld [vmem:[%s2948 + $0x60] sm:$0xff]
        %v2962 = vld [vmem:[%s2948 + $0x68] sm:$0xff]
        %v2963 = vld [vmem:[%s2948 + $0x70] sm:$0xff]
        %v2964 = vld [vmem:[%s2948 + $0x78] sm:$0xff]
        %v2965 = vld [vmem:[%s2948 + $0x80] sm:$0xff]
        %v2966 = vld [vmem:[%s2948 + $0x88] sm:$0xff]
        %v2967 = vld [vmem:[%s2948 + $0x90] sm:$0xff]
        %v2968 = vld [vmem:[%s2948 + $0x98] sm:$0xff]
        %v2969 = vld [vmem:[%s2948 + $0xa0] sm:$0xff]
        %v2970 = vld [vmem:[%s2948 + $0xa8] sm:$0xff]
        %v2971 = vld [vmem:[%s2948 + $0xb0] sm:$0xff]
        %v2972 = vld [vmem:[%s2948 + $0xb8] sm:$0xff]
        %2973 = vmatpush.msra.mxu0 %v2964
        %2974 = vmatpush.msra.mxu0 %v2963
        %2975 = vmatpush.msra.mxu0 %v2962
        %2976 = vmatpush.msra.mxu0 %v2961
        %2977 = vmatpush.msra.mxu0 %v2960
        %2978 = vmatpush.msra.mxu0 %v2959
        %2979 = vmatpush.msra.mxu0 %v2958
        %2980 = vmatpush.msra.mxu0 %v2957
        %2981 = vmatpush.msra.mxu0 %v2956
        %2982 = vmatpush.msra.mxu0 %v2955
        %2983 = vmatpush.msra.mxu0 %v2954
        %2984 = vmatpush.msra.mxu0 %v2953
        %2985 = vmatpush.msra.mxu0 %v2952
        %2986 = vmatpush.msra.mxu0 %v2951
        %2987 = vmatpush.msra.mxu0 %v2950
        %2988 = vmatpush.msra.mxu0 %v2949
        %2989 = vmatmul.f32.gmra.mxu0 %v2793
        %v2990 = vpop.f32.mrf.mxu0
        %2991 = vmatmul.f32.gmra.mxu0 %v2794
        %v2992 = vpop.f32.mrf.mxu0
        %v2993 = vadd.f32 0.0, %v2992
        %2994 = vmatmul.f32.gmra.mxu0 %v2795
        %v2995 = vpop.f32.mrf.mxu0
        %v2996 = vadd.f32 0.0, %v2995
        %2997 = vmatmul.f32.gmra.mxu0 %v2796
        %v2998 = vpop.f32.mrf.mxu0
        %v2999 = vadd.f32 0.0, %v2998
        %3000 = vmatmul.f32.gmra.mxu0 %v2797
        %v3001 = vpop.f32.mrf.mxu0
        %v3002 = vadd.f32 0.0, %v3001
        %3003 = vmatmul.f32.gmra.mxu0 %v2798
        %v3004 = vpop.f32.mrf.mxu0
        %v3005 = vadd.f32 0.0, %v3004
        %3006 = vmatmul.f32.gmra.mxu0 %v2799
        %v3007 = vpop.f32.mrf.mxu0
        %v3008 = vadd.f32 0.0, %v3007
        %3009 = vmatmul.f32.gmra.mxu0 %v2800
        %v3010 = vpop.f32.mrf.mxu0
        %v3011 = vadd.f32 0.0, %v3010
        %3012 = vmatmul.f32.gmra.mxu0 %v2801
        %v3013 = vpop.f32.mrf.mxu0
        %v3014 = vadd.f32 0.0, %v3013
        %3015 = vmatmul.f32.gmra.mxu0 %v2802
        %v3016 = vpop.f32.mrf.mxu0
        %3017 = vdwg.mxu0
        %3018 = vmatpush.msra.mxu0 0.0
        %3019 = vmatpush.msra.mxu0 0.0
        %3020 = vmatpush.msra.mxu0 0.0
        %3021 = vmatpush.msra.mxu0 0.0
        %3022 = vmatpush.msra.mxu0 0.0
        %3023 = vmatpush.msra.mxu0 0.0
        %3024 = vmatpush.msra.mxu0 0.0
        %3025 = vmatpush.msra.mxu0 0.0
        %3026 = vmatpush.msra.mxu0 %v2972
        %3027 = vmatpush.msra.mxu0 %v2971
        %3028 = vmatpush.msra.mxu0 %v2970
        %3029 = vmatpush.msra.mxu0 %v2969
        %3030 = vmatpush.msra.mxu0 %v2968
        %3031 = vmatpush.msra.mxu0 %v2967
        %3032 = vmatpush.msra.mxu0 %v2966
        %3033 = vmatpush.msra.mxu0 %v2965
        %3034 = vmatmul.f32.gmra.mxu0 %v2829
        %v3035 = vpop.f32.mrf.mxu0
        %3036 = vmatmul.f32.gmra.mxu0 %v2832
        %v3037 = vpop.f32.mrf.mxu0
        %v3038 = vadd.f32 %v2993, %v3037
        %3039 = vmatmul.f32.gmra.mxu0 %v2835
        %v3040 = vpop.f32.mrf.mxu0
        %v3041 = vadd.f32 %v2996, %v3040
        %3042 = vmatmul.f32.gmra.mxu0 %v2838
        %v3043 = vpop.f32.mrf.mxu0
        %v3044 = vadd.f32 %v2999, %v3043
        %3045 = vmatmul.f32.gmra.mxu0 %v2841
        %v3046 = vpop.f32.mrf.mxu0
        %v3047 = vadd.f32 %v3002, %v3046
        %3048 = vmatmul.f32.gmra.mxu0 %v2844
        %v3049 = vpop.f32.mrf.mxu0
        %v3050 = vadd.f32 %v3005, %v3049
        %3051 = vmatmul.f32.gmra.mxu0 %v2847
        %v3052 = vpop.f32.mrf.mxu0
        %v3053 = vadd.f32 %v3008, %v3052
        %3054 = vmatmul.f32.gmra.mxu0 %v2850
        %v3055 = vpop.f32.mrf.mxu0
        %v3056 = vadd.f32 %v3011, %v3055
        %3057 = vmatmul.f32.gmra.mxu0 %v2853
        %v3058 = vpop.f32.mrf.mxu0
        %v3059 = vadd.f32 %v3014, %v3058
        %3060 = vmatmul.f32.gmra.mxu0 %v2856
        %v3061 = vpop.f32.mrf.mxu0
        %3062 = vdwg.mxu0
        %v3063 = vadd.f32 %v2921, %v3038
        %v3064 = vadd.f32 %v2924, %v3041
        %v3065 = vadd.f32 %v2927, %v3044
        %v3066 = vadd.f32 %v2930, %v3047
        %v3067 = vadd.f32 %v2933, %v3050
        %v3068 = vadd.f32 %v2936, %v3053
        %v3069 = vadd.f32 %v2939, %v3056
        %v3070 = vadd.f32 %v2942, %v3059
        %s3071 = scalar_lea.vmem [#allocation5], 3264
        %v3072 = vld [vmem:[%s3071] sm:$0xff]
        %v3073 = vld [vmem:[%s3071 + $0x8] sm:$0xff]
        %v3074 = vld [vmem:[%s3071 + $0x10] sm:$0xff]
        %v3075 = vld [vmem:[%s3071 + $0x18] sm:$0xff]
        %v3076 = vld [vmem:[%s3071 + $0x20] sm:$0xff]
        %v3077 = vld [vmem:[%s3071 + $0x28] sm:$0xff]
        %v3078 = vld [vmem:[%s3071 + $0x30] sm:$0xff]
        %v3079 = vld [vmem:[%s3071 + $0x38] sm:$0xff]
        %v3080 = vld [vmem:[%s3071 + $0x40] sm:$0xff]
        %v3081 = vld [vmem:[%s3071 + $0x48] sm:$0xff]
        %v3082 = vld [vmem:[%s3071 + $0x50] sm:$0xff]
        %v3083 = vld [vmem:[%s3071 + $0x58] sm:$0xff]
        %v3084 = vld [vmem:[%s3071 + $0x60] sm:$0xff]
        %v3085 = vld [vmem:[%s3071 + $0x68] sm:$0xff]
        %v3086 = vld [vmem:[%s3071 + $0x70] sm:$0xff]
        %v3087 = vld [vmem:[%s3071 + $0x78] sm:$0xff]
        %v3088 = vld [vmem:[%s3071 + $0x80] sm:$0xff]
        %v3089 = vld [vmem:[%s3071 + $0x88] sm:$0xff]
        %v3090 = vld [vmem:[%s3071 + $0x90] sm:$0xff]
        %v3091 = vld [vmem:[%s3071 + $0x98] sm:$0xff]
        %v3092 = vld [vmem:[%s3071 + $0xa0] sm:$0xff]
        %v3093 = vld [vmem:[%s3071 + $0xa8] sm:$0xff]
        %v3094 = vld [vmem:[%s3071 + $0xb0] sm:$0xff]
        %v3095 = vld [vmem:[%s3071 + $0xb8] sm:$0xff]
        %3096 = vmatpush.msra.mxu0 %v3087
        %3097 = vmatpush.msra.mxu0 %v3086
        %3098 = vmatpush.msra.mxu0 %v3085
        %3099 = vmatpush.msra.mxu0 %v3084
        %3100 = vmatpush.msra.mxu0 %v3083
        %3101 = vmatpush.msra.mxu0 %v3082
        %3102 = vmatpush.msra.mxu0 %v3081
        %3103 = vmatpush.msra.mxu0 %v3080
        %3104 = vmatpush.msra.mxu0 %v3079
        %3105 = vmatpush.msra.mxu0 %v3078
        %3106 = vmatpush.msra.mxu0 %v3077
        %3107 = vmatpush.msra.mxu0 %v3076
        %3108 = vmatpush.msra.mxu0 %v3075
        %3109 = vmatpush.msra.mxu0 %v3074
        %3110 = vmatpush.msra.mxu0 %v3073
        %3111 = vmatpush.msra.mxu0 %v3072
        %3112 = vmatmul.f32.gmra.mxu0 %v2793
        %v3113 = vpop.f32.mrf.mxu0
        %3114 = vmatmul.f32.gmra.mxu0 %v2794
        %v3115 = vpop.f32.mrf.mxu0
        %3116 = vmatmul.f32.gmra.mxu0 %v2795
        %v3117 = vpop.f32.mrf.mxu0
        %v3118 = vadd.f32 0.0, %v3117
        %3119 = vmatmul.f32.gmra.mxu0 %v2796
        %v3120 = vpop.f32.mrf.mxu0
        %v3121 = vadd.f32 0.0, %v3120
        %3122 = vmatmul.f32.gmra.mxu0 %v2797
        %v3123 = vpop.f32.mrf.mxu0
        %v3124 = vadd.f32 0.0, %v3123
        %3125 = vmatmul.f32.gmra.mxu0 %v2798
        %v3126 = vpop.f32.mrf.mxu0
        %v3127 = vadd.f32 0.0, %v3126
        %3128 = vmatmul.f32.gmra.mxu0 %v2799
        %v3129 = vpop.f32.mrf.mxu0
        %v3130 = vadd.f32 0.0, %v3129
        %3131 = vmatmul.f32.gmra.mxu0 %v2800
        %v3132 = vpop.f32.mrf.mxu0
        %v3133 = vadd.f32 0.0, %v3132
        %3134 = vmatmul.f32.gmra.mxu0 %v2801
        %v3135 = vpop.f32.mrf.mxu0
        %v3136 = vadd.f32 0.0, %v3135
        %3137 = vmatmul.f32.gmra.mxu0 %v2802
        %v3138 = vpop.f32.mrf.mxu0
        %v3139 = vadd.f32 0.0, %v3138
        %3140 = vdwg.mxu0
        %3141 = vmatpush.msra.mxu0 0.0
        %3142 = vmatpush.msra.mxu0 0.0
        %3143 = vmatpush.msra.mxu0 0.0
        %3144 = vmatpush.msra.mxu0 0.0
        %3145 = vmatpush.msra.mxu0 0.0
        %3146 = vmatpush.msra.mxu0 0.0
        %3147 = vmatpush.msra.mxu0 0.0
        %3148 = vmatpush.msra.mxu0 0.0
        %3149 = vmatpush.msra.mxu0 %v3095
        %3150 = vmatpush.msra.mxu0 %v3094
        %3151 = vmatpush.msra.mxu0 %v3093
        %3152 = vmatpush.msra.mxu0 %v3092
        %3153 = vmatpush.msra.mxu0 %v3091
        %3154 = vmatpush.msra.mxu0 %v3090
        %3155 = vmatpush.msra.mxu0 %v3089
        %3156 = vmatpush.msra.mxu0 %v3088
        %3157 = vmatmul.f32.gmra.mxu0 %v2829
        %v3158 = vpop.f32.mrf.mxu0
        %3159 = vmatmul.f32.gmra.mxu0 %v2832
        %v3160 = vpop.f32.mrf.mxu0
        %3161 = vmatmul.f32.gmra.mxu0 %v2835
        %v3162 = vpop.f32.mrf.mxu0
        %v3163 = vadd.f32 %v3118, %v3162
        %3164 = vmatmul.f32.gmra.mxu0 %v2838
        %v3165 = vpop.f32.mrf.mxu0
        %v3166 = vadd.f32 %v3121, %v3165
        %3167 = vmatmul.f32.gmra.mxu0 %v2841
        %v3168 = vpop.f32.mrf.mxu0
        %v3169 = vadd.f32 %v3124, %v3168
        %3170 = vmatmul.f32.gmra.mxu0 %v2844
        %v3171 = vpop.f32.mrf.mxu0
        %v3172 = vadd.f32 %v3127, %v3171
        %3173 = vmatmul.f32.gmra.mxu0 %v2847
        %v3174 = vpop.f32.mrf.mxu0
        %v3175 = vadd.f32 %v3130, %v3174
        %3176 = vmatmul.f32.gmra.mxu0 %v2850
        %v3177 = vpop.f32.mrf.mxu0
        %v3178 = vadd.f32 %v3133, %v3177
        %3179 = vmatmul.f32.gmra.mxu0 %v2853
        %v3180 = vpop.f32.mrf.mxu0
        %v3181 = vadd.f32 %v3136, %v3180
        %3182 = vmatmul.f32.gmra.mxu0 %v2856
        %v3183 = vpop.f32.mrf.mxu0
        %v3184 = vadd.f32 %v3139, %v3183
        %3185 = vdwg.mxu0
        %v3186 = vadd.f32 %v3063, %v3163
        %v3187 = vadd.f32 %v3064, %v3166
        %v3188 = vadd.f32 %v3065, %v3169
        %v3189 = vadd.f32 %v3066, %v3172
        %v3190 = vadd.f32 %v3067, %v3175
        %v3191 = vadd.f32 %v3068, %v3178
        %v3192 = vadd.f32 %v3069, %v3181
        %v3193 = vadd.f32 %v3070, %v3184
        %v3194 = vmul.f32 %v3186, 0.2
        %v3195 = vmul.f32 %v3187, 0.2
        %v3196 = vmul.f32 %v3188, 0.2
        %v3197 = vmul.f32 %v3189, 0.2
        %v3198 = vmul.f32 %v3190, 0.2
        %v3199 = vmul.f32 %v3191, 0.2
        %v3200 = vmul.f32 %v3192, 0.2
        %v3201 = vmul.f32 %v3193, 0.2
        %v3202 = vmax.f32 %v3186, %v3194
        %v3203 = vmax.f32 %v3187, %v3195
        %v3204 = vmax.f32 %v3188, %v3196
        %v3205 = vmax.f32 %v3189, %v3197
        %v3206 = vmax.f32 %v3190, %v3198
        %v3207 = vmax.f32 %v3191, %v3199
        %v3208 = vmax.f32 %v3192, %v3200
        %v3209 = vmax.f32 %v3193, %v3201
        %3210 = vst.msk [vmem:[%s240 + $0x1] sm:$0xff] %vm210, %v3202
        %3211 = vst.msk [vmem:[%s240 + $0x11] sm:$0xff] %vm210, %v3203
        %3212 = vst.msk [vmem:[%s240 + $0x21] sm:$0xff] %vm210, %v3204
        %3213 = vst.msk [vmem:[%s240 + $0x31] sm:$0xff] %vm210, %v3205
        %3214 = vst.msk [vmem:[%s240 + $0x41] sm:$0xff] %vm210, %v3206
        %3215 = vst.msk [vmem:[%s240 + $0x51] sm:$0xff] %vm210, %v3207
        %3216 = vst.msk [vmem:[%s240 + $0x61] sm:$0xff] %vm210, %v3208
        %3217 = vst.msk [vmem:[%s240 + $0x71] sm:$0xff] %vm210, %v3209
        %v3218 = vld [vmem:[#allocation2] sm:$0xff]
        %v3219 = vld [vmem:[#allocation2 + $0x10] sm:$0xff]
        %v3220 = vld [vmem:[#allocation2 + $0x20] sm:$0xff]
        %v3221 = vld [vmem:[#allocation2 + $0x30] sm:$0xff]
        %v3222 = vld [vmem:[#allocation2 + $0x40] sm:$0xff]
        %v3223 = vld [vmem:[#allocation2 + $0x50] sm:$0xff]
        %v3224 = vld [vmem:[#allocation2 + $0x60] sm:$0xff]
        %v3225 = vld [vmem:[#allocation2 + $0x70] sm:$0xff]
        %v3226 = vld [vmem:[#allocation2 + $0x80] sm:$0xff]
        %v3227 = vld [vmem:[#allocation2 + $0x90] sm:$0xff]
        %v3228 = vld [vmem:[#allocation2 + $0x1] sm:$0xff]
        %v3229 = vld [vmem:[#allocation2 + $0x11] sm:$0xff]
        %v3230 = vld [vmem:[#allocation2 + $0x21] sm:$0xff]
        %v3231 = vld [vmem:[#allocation2 + $0x31] sm:$0xff]
        %v3232 = vld [vmem:[#allocation2 + $0x41] sm:$0xff]
        %v3233 = vld [vmem:[#allocation2 + $0x51] sm:$0xff]
        %v3234 = vld [vmem:[#allocation2 + $0x61] sm:$0xff]
        %v3235 = vld [vmem:[#allocation2 + $0x71] sm:$0xff]
        %v3236 = vld [vmem:[#allocation2 + $0x81] sm:$0xff]
        %v3237 = vld [vmem:[#allocation2 + $0x91] sm:$0xff]
        %v3238 = vld [vmem:[#allocation2 + $0x2] sm:$0xff]
        %v3239 = vld [vmem:[#allocation2 + $0x12] sm:$0xff]
        %v3240 = vld [vmem:[#allocation2 + $0x22] sm:$0xff]
        %v3241 = vld [vmem:[#allocation2 + $0x32] sm:$0xff]
        %v3242 = vld [vmem:[#allocation2 + $0x42] sm:$0xff]
        %v3243 = vld [vmem:[#allocation2 + $0x52] sm:$0xff]
        %v3244 = vld [vmem:[#allocation2 + $0x62] sm:$0xff]
        %v3245 = vld [vmem:[#allocation2 + $0x72] sm:$0xff]
        %v3246 = vld [vmem:[#allocation2 + $0x82] sm:$0xff]
        %v3247 = vld [vmem:[#allocation2 + $0x92] sm:$0xff]
        %3258 = vrot.lane.b32.xlu0 %v3228, 64
        %v3259 = vpop.permute.xlu0 %3258
        %3260 = vrot.lane.b32.xlu0 %v3229, 64
        %v3261 = vpop.permute.xlu0 %3260
        %3262 = vrot.lane.b32.xlu0 %v3230, 64
        %v3263 = vpop.permute.xlu0 %3262
        %3264 = vrot.lane.b32.xlu0 %v3231, 64
        %v3265 = vpop.permute.xlu0 %3264
        %3266 = vrot.lane.b32.xlu0 %v3232, 64
        %v3267 = vpop.permute.xlu0 %3266
        %3268 = vrot.lane.b32.xlu0 %v3233, 64
        %v3269 = vpop.permute.xlu0 %3268
        %3270 = vrot.lane.b32.xlu0 %v3234, 64
        %v3271 = vpop.permute.xlu0 %3270
        %3272 = vrot.lane.b32.xlu0 %v3235, 64
        %v3273 = vpop.permute.xlu0 %3272
        %3274 = vrot.lane.b32.xlu0 %v3236, 64
        %v3275 = vpop.permute.xlu0 %3274
        %3276 = vrot.lane.b32.xlu0 %v3237, 64
        %v3277 = vpop.permute.xlu0 %3276
        %v3288 = vsel %vm210, %v3218, %v3259
        %v3289 = vsel %vm210, %v3219, %v3261
        %v3290 = vsel %vm210, %v3220, %v3263
        %v3291 = vsel %vm210, %v3221, %v3265
        %v3292 = vsel %vm210, %v3222, %v3267
        %v3293 = vsel %vm210, %v3223, %v3269
        %v3294 = vsel %vm210, %v3224, %v3271
        %v3295 = vsel %vm210, %v3225, %v3273
        %v3296 = vsel %vm210, %v3226, %v3275
        %v3297 = vsel %vm210, %v3227, %v3277
        %s3298 = scalar_lea.vmem [#allocation5], 3456
        %v3299 = vld [vmem:[%s3298] sm:$0xff]
        %v3300 = vld [vmem:[%s3298 + $0x8] sm:$0xff]
        %v3301 = vld [vmem:[%s3298 + $0x10] sm:$0xff]
        %v3302 = vld [vmem:[%s3298 + $0x18] sm:$0xff]
        %v3303 = vld [vmem:[%s3298 + $0x20] sm:$0xff]
        %v3304 = vld [vmem:[%s3298 + $0x28] sm:$0xff]
        %v3305 = vld [vmem:[%s3298 + $0x30] sm:$0xff]
        %v3306 = vld [vmem:[%s3298 + $0x38] sm:$0xff]
        %v3307 = vld [vmem:[%s3298 + $0x40] sm:$0xff]
        %v3308 = vld [vmem:[%s3298 + $0x48] sm:$0xff]
        %v3309 = vld [vmem:[%s3298 + $0x50] sm:$0xff]
        %v3310 = vld [vmem:[%s3298 + $0x58] sm:$0xff]
        %v3311 = vld [vmem:[%s3298 + $0x60] sm:$0xff]
        %v3312 = vld [vmem:[%s3298 + $0x68] sm:$0xff]
        %v3313 = vld [vmem:[%s3298 + $0x70] sm:$0xff]
        %v3314 = vld [vmem:[%s3298 + $0x78] sm:$0xff]
        %v3315 = vld [vmem:[%s3298 + $0x80] sm:$0xff]
        %v3316 = vld [vmem:[%s3298 + $0x88] sm:$0xff]
        %v3317 = vld [vmem:[%s3298 + $0x90] sm:$0xff]
        %v3318 = vld [vmem:[%s3298 + $0x98] sm:$0xff]
        %v3319 = vld [vmem:[%s3298 + $0xa0] sm:$0xff]
        %v3320 = vld [vmem:[%s3298 + $0xa8] sm:$0xff]
        %v3321 = vld [vmem:[%s3298 + $0xb0] sm:$0xff]
        %v3322 = vld [vmem:[%s3298 + $0xb8] sm:$0xff]
        %v3324 = vsel %vm210, %v3238, 0
        %v3327 = vsel %vm210, %v3239, 0
        %v3330 = vsel %vm210, %v3240, 0
        %v3333 = vsel %vm210, %v3241, 0
        %v3336 = vsel %vm210, %v3242, 0
        %v3339 = vsel %vm210, %v3243, 0
        %v3342 = vsel %vm210, %v3244, 0
        %v3345 = vsel %vm210, %v3245, 0
        %v3348 = vsel %vm210, %v3246, 0
        %v3351 = vsel %vm210, %v3247, 0
        %3353 = vmatpush.msra.mxu0 %v3314
        %3354 = vmatpush.msra.mxu0 %v3313
        %3355 = vmatpush.msra.mxu0 %v3312
        %3356 = vmatpush.msra.mxu0 %v3311
        %3357 = vmatpush.msra.mxu0 %v3310
        %3358 = vmatpush.msra.mxu0 %v3309
        %3359 = vmatpush.msra.mxu0 %v3308
        %3360 = vmatpush.msra.mxu0 %v3307
        %3361 = vmatpush.msra.mxu0 %v3306
        %3362 = vmatpush.msra.mxu0 %v3305
        %3363 = vmatpush.msra.mxu0 %v3304
        %3364 = vmatpush.msra.mxu0 %v3303
        %3365 = vmatpush.msra.mxu0 %v3302
        %3366 = vmatpush.msra.mxu0 %v3301
        %3367 = vmatpush.msra.mxu0 %v3300
        %3368 = vmatpush.msra.mxu0 %v3299
        %3369 = vmatmul.f32.gmra.mxu0 %v3288
        %v3370 = vpop.f32.mrf.mxu0
        %v3371 = vadd.f32 0.0, %v3370
        %3372 = vmatmul.f32.gmra.mxu0 %v3289
        %v3373 = vpop.f32.mrf.mxu0
        %v3374 = vadd.f32 0.0, %v3373
        %3375 = vmatmul.f32.gmra.mxu0 %v3290
        %v3376 = vpop.f32.mrf.mxu0
        %v3377 = vadd.f32 0.0, %v3376
        %3378 = vmatmul.f32.gmra.mxu0 %v3291
        %v3379 = vpop.f32.mrf.mxu0
        %v3380 = vadd.f32 0.0, %v3379
        %3381 = vmatmul.f32.gmra.mxu0 %v3292
        %v3382 = vpop.f32.mrf.mxu0
        %v3383 = vadd.f32 0.0, %v3382
        %3384 = vmatmul.f32.gmra.mxu0 %v3293
        %v3385 = vpop.f32.mrf.mxu0
        %v3386 = vadd.f32 0.0, %v3385
        %3387 = vmatmul.f32.gmra.mxu0 %v3294
        %v3388 = vpop.f32.mrf.mxu0
        %v3389 = vadd.f32 0.0, %v3388
        %3390 = vmatmul.f32.gmra.mxu0 %v3295
        %v3391 = vpop.f32.mrf.mxu0
        %v3392 = vadd.f32 0.0, %v3391
        %3393 = vmatmul.f32.gmra.mxu0 %v3296
        %v3394 = vpop.f32.mrf.mxu0
        %3395 = vmatmul.f32.gmra.mxu0 %v3297
        %v3396 = vpop.f32.mrf.mxu0
        %3397 = vdwg.mxu0
        %3398 = vmatpush.msra.mxu0 0.0
        %3399 = vmatpush.msra.mxu0 0.0
        %3400 = vmatpush.msra.mxu0 0.0
        %3401 = vmatpush.msra.mxu0 0.0
        %3402 = vmatpush.msra.mxu0 0.0
        %3403 = vmatpush.msra.mxu0 0.0
        %3404 = vmatpush.msra.mxu0 0.0
        %3405 = vmatpush.msra.mxu0 0.0
        %3406 = vmatpush.msra.mxu0 %v3322
        %3407 = vmatpush.msra.mxu0 %v3321
        %3408 = vmatpush.msra.mxu0 %v3320
        %3409 = vmatpush.msra.mxu0 %v3319
        %3410 = vmatpush.msra.mxu0 %v3318
        %3411 = vmatpush.msra.mxu0 %v3317
        %3412 = vmatpush.msra.mxu0 %v3316
        %3413 = vmatpush.msra.mxu0 %v3315
        %3414 = vmatmul.f32.gmra.mxu0 %v3324
        %v3415 = vpop.f32.mrf.mxu0
        %v3416 = vadd.f32 %v3371, %v3415
        %3417 = vmatmul.f32.gmra.mxu0 %v3327
        %v3418 = vpop.f32.mrf.mxu0
        %v3419 = vadd.f32 %v3374, %v3418
        %3420 = vmatmul.f32.gmra.mxu0 %v3330
        %v3421 = vpop.f32.mrf.mxu0
        %v3422 = vadd.f32 %v3377, %v3421
        %3423 = vmatmul.f32.gmra.mxu0 %v3333
        %v3424 = vpop.f32.mrf.mxu0
        %v3425 = vadd.f32 %v3380, %v3424
        %3426 = vmatmul.f32.gmra.mxu0 %v3336
        %v3427 = vpop.f32.mrf.mxu0
        %v3428 = vadd.f32 %v3383, %v3427
        %3429 = vmatmul.f32.gmra.mxu0 %v3339
        %v3430 = vpop.f32.mrf.mxu0
        %v3431 = vadd.f32 %v3386, %v3430
        %3432 = vmatmul.f32.gmra.mxu0 %v3342
        %v3433 = vpop.f32.mrf.mxu0
        %v3434 = vadd.f32 %v3389, %v3433
        %3435 = vmatmul.f32.gmra.mxu0 %v3345
        %v3436 = vpop.f32.mrf.mxu0
        %v3437 = vadd.f32 %v3392, %v3436
        %3438 = vmatmul.f32.gmra.mxu0 %v3348
        %v3439 = vpop.f32.mrf.mxu0
        %3440 = vmatmul.f32.gmra.mxu0 %v3351
        %v3441 = vpop.f32.mrf.mxu0
        %3442 = vdwg.mxu0
        %s3443 = scalar_lea.vmem [#allocation5], 3648
        %v3444 = vld [vmem:[%s3443] sm:$0xff]
        %v3445 = vld [vmem:[%s3443 + $0x8] sm:$0xff]
        %v3446 = vld [vmem:[%s3443 + $0x10] sm:$0xff]
        %v3447 = vld [vmem:[%s3443 + $0x18] sm:$0xff]
        %v3448 = vld [vmem:[%s3443 + $0x20] sm:$0xff]
        %v3449 = vld [vmem:[%s3443 + $0x28] sm:$0xff]
        %v3450 = vld [vmem:[%s3443 + $0x30] sm:$0xff]
        %v3451 = vld [vmem:[%s3443 + $0x38] sm:$0xff]
        %v3452 = vld [vmem:[%s3443 + $0x40] sm:$0xff]
        %v3453 = vld [vmem:[%s3443 + $0x48] sm:$0xff]
        %v3454 = vld [vmem:[%s3443 + $0x50] sm:$0xff]
        %v3455 = vld [vmem:[%s3443 + $0x58] sm:$0xff]
        %v3456 = vld [vmem:[%s3443 + $0x60] sm:$0xff]
        %v3457 = vld [vmem:[%s3443 + $0x68] sm:$0xff]
        %v3458 = vld [vmem:[%s3443 + $0x70] sm:$0xff]
        %v3459 = vld [vmem:[%s3443 + $0x78] sm:$0xff]
        %v3460 = vld [vmem:[%s3443 + $0x80] sm:$0xff]
        %v3461 = vld [vmem:[%s3443 + $0x88] sm:$0xff]
        %v3462 = vld [vmem:[%s3443 + $0x90] sm:$0xff]
        %v3463 = vld [vmem:[%s3443 + $0x98] sm:$0xff]
        %v3464 = vld [vmem:[%s3443 + $0xa0] sm:$0xff]
        %v3465 = vld [vmem:[%s3443 + $0xa8] sm:$0xff]
        %v3466 = vld [vmem:[%s3443 + $0xb0] sm:$0xff]
        %v3467 = vld [vmem:[%s3443 + $0xb8] sm:$0xff]
        %3468 = vmatpush.msra.mxu0 %v3459
        %3469 = vmatpush.msra.mxu0 %v3458
        %3470 = vmatpush.msra.mxu0 %v3457
        %3471 = vmatpush.msra.mxu0 %v3456
        %3472 = vmatpush.msra.mxu0 %v3455
        %3473 = vmatpush.msra.mxu0 %v3454
        %3474 = vmatpush.msra.mxu0 %v3453
        %3475 = vmatpush.msra.mxu0 %v3452
        %3476 = vmatpush.msra.mxu0 %v3451
        %3477 = vmatpush.msra.mxu0 %v3450
        %3478 = vmatpush.msra.mxu0 %v3449
        %3479 = vmatpush.msra.mxu0 %v3448
        %3480 = vmatpush.msra.mxu0 %v3447
        %3481 = vmatpush.msra.mxu0 %v3446
        %3482 = vmatpush.msra.mxu0 %v3445
        %3483 = vmatpush.msra.mxu0 %v3444
        %3484 = vmatmul.f32.gmra.mxu0 %v3288
        %v3485 = vpop.f32.mrf.mxu0
        %3486 = vmatmul.f32.gmra.mxu0 %v3289
        %v3487 = vpop.f32.mrf.mxu0
        %v3488 = vadd.f32 0.0, %v3487
        %3489 = vmatmul.f32.gmra.mxu0 %v3290
        %v3490 = vpop.f32.mrf.mxu0
        %v3491 = vadd.f32 0.0, %v3490
        %3492 = vmatmul.f32.gmra.mxu0 %v3291
        %v3493 = vpop.f32.mrf.mxu0
        %v3494 = vadd.f32 0.0, %v3493
        %3495 = vmatmul.f32.gmra.mxu0 %v3292
        %v3496 = vpop.f32.mrf.mxu0
        %v3497 = vadd.f32 0.0, %v3496
        %3498 = vmatmul.f32.gmra.mxu0 %v3293
        %v3499 = vpop.f32.mrf.mxu0
        %v3500 = vadd.f32 0.0, %v3499
        %3501 = vmatmul.f32.gmra.mxu0 %v3294
        %v3502 = vpop.f32.mrf.mxu0
        %v3503 = vadd.f32 0.0, %v3502
        %3504 = vmatmul.f32.gmra.mxu0 %v3295
        %v3505 = vpop.f32.mrf.mxu0
        %v3506 = vadd.f32 0.0, %v3505
        %3507 = vmatmul.f32.gmra.mxu0 %v3296
        %v3508 = vpop.f32.mrf.mxu0
        %v3509 = vadd.f32 0.0, %v3508
        %3510 = vmatmul.f32.gmra.mxu0 %v3297
        %v3511 = vpop.f32.mrf.mxu0
        %3512 = vdwg.mxu0
        %3513 = vmatpush.msra.mxu0 0.0
        %3514 = vmatpush.msra.mxu0 0.0
        %3515 = vmatpush.msra.mxu0 0.0
        %3516 = vmatpush.msra.mxu0 0.0
        %3517 = vmatpush.msra.mxu0 0.0
        %3518 = vmatpush.msra.mxu0 0.0
        %3519 = vmatpush.msra.mxu0 0.0
        %3520 = vmatpush.msra.mxu0 0.0
        %3521 = vmatpush.msra.mxu0 %v3467
        %3522 = vmatpush.msra.mxu0 %v3466
        %3523 = vmatpush.msra.mxu0 %v3465
        %3524 = vmatpush.msra.mxu0 %v3464
        %3525 = vmatpush.msra.mxu0 %v3463
        %3526 = vmatpush.msra.mxu0 %v3462
        %3527 = vmatpush.msra.mxu0 %v3461
        %3528 = vmatpush.msra.mxu0 %v3460
        %3529 = vmatmul.f32.gmra.mxu0 %v3324
        %v3530 = vpop.f32.mrf.mxu0
        %3531 = vmatmul.f32.gmra.mxu0 %v3327
        %v3532 = vpop.f32.mrf.mxu0
        %v3533 = vadd.f32 %v3488, %v3532
        %3534 = vmatmul.f32.gmra.mxu0 %v3330
        %v3535 = vpop.f32.mrf.mxu0
        %v3536 = vadd.f32 %v3491, %v3535
        %3537 = vmatmul.f32.gmra.mxu0 %v3333
        %v3538 = vpop.f32.mrf.mxu0
        %v3539 = vadd.f32 %v3494, %v3538
        %3540 = vmatmul.f32.gmra.mxu0 %v3336
        %v3541 = vpop.f32.mrf.mxu0
        %v3542 = vadd.f32 %v3497, %v3541
        %3543 = vmatmul.f32.gmra.mxu0 %v3339
        %v3544 = vpop.f32.mrf.mxu0
        %v3545 = vadd.f32 %v3500, %v3544
        %3546 = vmatmul.f32.gmra.mxu0 %v3342
        %v3547 = vpop.f32.mrf.mxu0
        %v3548 = vadd.f32 %v3503, %v3547
        %3549 = vmatmul.f32.gmra.mxu0 %v3345
        %v3550 = vpop.f32.mrf.mxu0
        %v3551 = vadd.f32 %v3506, %v3550
        %3552 = vmatmul.f32.gmra.mxu0 %v3348
        %v3553 = vpop.f32.mrf.mxu0
        %v3554 = vadd.f32 %v3509, %v3553
        %3555 = vmatmul.f32.gmra.mxu0 %v3351
        %v3556 = vpop.f32.mrf.mxu0
        %3557 = vdwg.mxu0
        %v3558 = vadd.f32 %v3416, %v3533
        %v3559 = vadd.f32 %v3419, %v3536
        %v3560 = vadd.f32 %v3422, %v3539
        %v3561 = vadd.f32 %v3425, %v3542
        %v3562 = vadd.f32 %v3428, %v3545
        %v3563 = vadd.f32 %v3431, %v3548
        %v3564 = vadd.f32 %v3434, %v3551
        %v3565 = vadd.f32 %v3437, %v3554
        %s3566 = scalar_lea.vmem [#allocation5], 3840
        %v3567 = vld [vmem:[%s3566] sm:$0xff]
        %v3568 = vld [vmem:[%s3566 + $0x8] sm:$0xff]
        %v3569 = vld [vmem:[%s3566 + $0x10] sm:$0xff]
        %v3570 = vld [vmem:[%s3566 + $0x18] sm:$0xff]
        %v3571 = vld [vmem:[%s3566 + $0x20] sm:$0xff]
        %v3572 = vld [vmem:[%s3566 + $0x28] sm:$0xff]
        %v3573 = vld [vmem:[%s3566 + $0x30] sm:$0xff]
        %v3574 = vld [vmem:[%s3566 + $0x38] sm:$0xff]
        %v3575 = vld [vmem:[%s3566 + $0x40] sm:$0xff]
        %v3576 = vld [vmem:[%s3566 + $0x48] sm:$0xff]
        %v3577 = vld [vmem:[%s3566 + $0x50] sm:$0xff]
        %v3578 = vld [vmem:[%s3566 + $0x58] sm:$0xff]
        %v3579 = vld [vmem:[%s3566 + $0x60] sm:$0xff]
        %v3580 = vld [vmem:[%s3566 + $0x68] sm:$0xff]
        %v3581 = vld [vmem:[%s3566 + $0x70] sm:$0xff]
        %v3582 = vld [vmem:[%s3566 + $0x78] sm:$0xff]
        %v3583 = vld [vmem:[%s3566 + $0x80] sm:$0xff]
        %v3584 = vld [vmem:[%s3566 + $0x88] sm:$0xff]
        %v3585 = vld [vmem:[%s3566 + $0x90] sm:$0xff]
        %v3586 = vld [vmem:[%s3566 + $0x98] sm:$0xff]
        %v3587 = vld [vmem:[%s3566 + $0xa0] sm:$0xff]
        %v3588 = vld [vmem:[%s3566 + $0xa8] sm:$0xff]
        %v3589 = vld [vmem:[%s3566 + $0xb0] sm:$0xff]
        %v3590 = vld [vmem:[%s3566 + $0xb8] sm:$0xff]
        %3591 = vmatpush.msra.mxu0 %v3582
        %3592 = vmatpush.msra.mxu0 %v3581
        %3593 = vmatpush.msra.mxu0 %v3580
        %3594 = vmatpush.msra.mxu0 %v3579
        %3595 = vmatpush.msra.mxu0 %v3578
        %3596 = vmatpush.msra.mxu0 %v3577
        %3597 = vmatpush.msra.mxu0 %v3576
        %3598 = vmatpush.msra.mxu0 %v3575
        %3599 = vmatpush.msra.mxu0 %v3574
        %3600 = vmatpush.msra.mxu0 %v3573
        %3601 = vmatpush.msra.mxu0 %v3572
        %3602 = vmatpush.msra.mxu0 %v3571
        %3603 = vmatpush.msra.mxu0 %v3570
        %3604 = vmatpush.msra.mxu0 %v3569
        %3605 = vmatpush.msra.mxu0 %v3568
        %3606 = vmatpush.msra.mxu0 %v3567
        %3607 = vmatmul.f32.gmra.mxu0 %v3288
        %v3608 = vpop.f32.mrf.mxu0
        %3609 = vmatmul.f32.gmra.mxu0 %v3289
        %v3610 = vpop.f32.mrf.mxu0
        %3611 = vmatmul.f32.gmra.mxu0 %v3290
        %v3612 = vpop.f32.mrf.mxu0
        %v3613 = vadd.f32 0.0, %v3612
        %3614 = vmatmul.f32.gmra.mxu0 %v3291
        %v3615 = vpop.f32.mrf.mxu0
        %v3616 = vadd.f32 0.0, %v3615
        %3617 = vmatmul.f32.gmra.mxu0 %v3292
        %v3618 = vpop.f32.mrf.mxu0
        %v3619 = vadd.f32 0.0, %v3618
        %3620 = vmatmul.f32.gmra.mxu0 %v3293
        %v3621 = vpop.f32.mrf.mxu0
        %v3622 = vadd.f32 0.0, %v3621
        %3623 = vmatmul.f32.gmra.mxu0 %v3294
        %v3624 = vpop.f32.mrf.mxu0
        %v3625 = vadd.f32 0.0, %v3624
        %3626 = vmatmul.f32.gmra.mxu0 %v3295
        %v3627 = vpop.f32.mrf.mxu0
        %v3628 = vadd.f32 0.0, %v3627
        %3629 = vmatmul.f32.gmra.mxu0 %v3296
        %v3630 = vpop.f32.mrf.mxu0
        %v3631 = vadd.f32 0.0, %v3630
        %3632 = vmatmul.f32.gmra.mxu0 %v3297
        %v3633 = vpop.f32.mrf.mxu0
        %v3634 = vadd.f32 0.0, %v3633
        %3635 = vdwg.mxu0
        %3636 = vmatpush.msra.mxu0 0.0
        %3637 = vmatpush.msra.mxu0 0.0
        %3638 = vmatpush.msra.mxu0 0.0
        %3639 = vmatpush.msra.mxu0 0.0
        %3640 = vmatpush.msra.mxu0 0.0
        %3641 = vmatpush.msra.mxu0 0.0
        %3642 = vmatpush.msra.mxu0 0.0
        %3643 = vmatpush.msra.mxu0 0.0
        %3644 = vmatpush.msra.mxu0 %v3590
        %3645 = vmatpush.msra.mxu0 %v3589
        %3646 = vmatpush.msra.mxu0 %v3588
        %3647 = vmatpush.msra.mxu0 %v3587
        %3648 = vmatpush.msra.mxu0 %v3586
        %3649 = vmatpush.msra.mxu0 %v3585
        %3650 = vmatpush.msra.mxu0 %v3584
        %3651 = vmatpush.msra.mxu0 %v3583
        %3652 = vmatmul.f32.gmra.mxu0 %v3324
        %v3653 = vpop.f32.mrf.mxu0
        %3654 = vmatmul.f32.gmra.mxu0 %v3327
        %v3655 = vpop.f32.mrf.mxu0
        %3656 = vmatmul.f32.gmra.mxu0 %v3330
        %v3657 = vpop.f32.mrf.mxu0
        %v3658 = vadd.f32 %v3613, %v3657
        %3659 = vmatmul.f32.gmra.mxu0 %v3333
        %v3660 = vpop.f32.mrf.mxu0
        %v3661 = vadd.f32 %v3616, %v3660
        %3662 = vmatmul.f32.gmra.mxu0 %v3336
        %v3663 = vpop.f32.mrf.mxu0
        %v3664 = vadd.f32 %v3619, %v3663
        %3665 = vmatmul.f32.gmra.mxu0 %v3339
        %v3666 = vpop.f32.mrf.mxu0
        %v3667 = vadd.f32 %v3622, %v3666
        %3668 = vmatmul.f32.gmra.mxu0 %v3342
        %v3669 = vpop.f32.mrf.mxu0
        %v3670 = vadd.f32 %v3625, %v3669
        %3671 = vmatmul.f32.gmra.mxu0 %v3345
        %v3672 = vpop.f32.mrf.mxu0
        %v3673 = vadd.f32 %v3628, %v3672
        %3674 = vmatmul.f32.gmra.mxu0 %v3348
        %v3675 = vpop.f32.mrf.mxu0
        %v3676 = vadd.f32 %v3631, %v3675
        %3677 = vmatmul.f32.gmra.mxu0 %v3351
        %v3678 = vpop.f32.mrf.mxu0
        %v3679 = vadd.f32 %v3634, %v3678
        %3680 = vdwg.mxu0
        %v3681 = vadd.f32 %v3558, %v3658
        %v3682 = vadd.f32 %v3559, %v3661
        %v3683 = vadd.f32 %v3560, %v3664
        %v3684 = vadd.f32 %v3561, %v3667
        %v3685 = vadd.f32 %v3562, %v3670
        %v3686 = vadd.f32 %v3563, %v3673
        %v3687 = vadd.f32 %v3564, %v3676
        %v3688 = vadd.f32 %v3565, %v3679
        %v3689 = vmul.f32 %v3681, 0.2
        %v3690 = vmul.f32 %v3682, 0.2
        %v3691 = vmul.f32 %v3683, 0.2
        %v3692 = vmul.f32 %v3684, 0.2
        %v3693 = vmul.f32 %v3685, 0.2
        %v3694 = vmul.f32 %v3686, 0.2
        %v3695 = vmul.f32 %v3687, 0.2
        %v3696 = vmul.f32 %v3688, 0.2
        %v3697 = vmax.f32 %v3681, %v3689
        %v3698 = vmax.f32 %v3682, %v3690
        %v3699 = vmax.f32 %v3683, %v3691
        %v3700 = vmax.f32 %v3684, %v3692
        %v3701 = vmax.f32 %v3685, %v3693
        %v3702 = vmax.f32 %v3686, %v3694
        %v3703 = vmax.f32 %v3687, %v3695
        %v3704 = vmax.f32 %v3688, %v3696
        %3705 = vst.msk [vmem:[%s240 + $0x1] sm:$0xff] %vm210, %v3697
        %3706 = vst.msk [vmem:[%s240 + $0x11] sm:$0xff] %vm210, %v3698
        %3707 = vst.msk [vmem:[%s240 + $0x21] sm:$0xff] %vm210, %v3699
        %3708 = vst.msk [vmem:[%s240 + $0x31] sm:$0xff] %vm210, %v3700
        %3709 = vst.msk [vmem:[%s240 + $0x41] sm:$0xff] %vm210, %v3701
        %3710 = vst.msk [vmem:[%s240 + $0x51] sm:$0xff] %vm210, %v3702
        %3711 = vst.msk [vmem:[%s240 + $0x61] sm:$0xff] %vm210, %v3703
        %3712 = vst.msk [vmem:[%s240 + $0x71] sm:$0xff] %vm210, %v3704
        %v3713 = vld [vmem:[#allocation2] sm:$0xff]
        %v3714 = vld [vmem:[#allocation2 + $0x10] sm:$0xff]
        %v3715 = vld [vmem:[#allocation2 + $0x20] sm:$0xff]
        %v3716 = vld [vmem:[#allocation2 + $0x30] sm:$0xff]
        %v3717 = vld [vmem:[#allocation2 + $0x40] sm:$0xff]
        %v3718 = vld [vmem:[#allocation2 + $0x50] sm:$0xff]
        %v3719 = vld [vmem:[#allocation2 + $0x60] sm:$0xff]
        %v3720 = vld [vmem:[#allocation2 + $0x70] sm:$0xff]
        %v3721 = vld [vmem:[#allocation2 + $0x80] sm:$0xff]
        %v3722 = vld [vmem:[#allocation2 + $0x90] sm:$0xff]
        %v3723 = vld [vmem:[#allocation2 + $0x1] sm:$0xff]
        %v3724 = vld [vmem:[#allocation2 + $0x11] sm:$0xff]
        %v3725 = vld [vmem:[#allocation2 + $0x21] sm:$0xff]
        %v3726 = vld [vmem:[#allocation2 + $0x31] sm:$0xff]
        %v3727 = vld [vmem:[#allocation2 + $0x41] sm:$0xff]
        %v3728 = vld [vmem:[#allocation2 + $0x51] sm:$0xff]
        %v3729 = vld [vmem:[#allocation2 + $0x61] sm:$0xff]
        %v3730 = vld [vmem:[#allocation2 + $0x71] sm:$0xff]
        %v3731 = vld [vmem:[#allocation2 + $0x81] sm:$0xff]
        %v3732 = vld [vmem:[#allocation2 + $0x91] sm:$0xff]
        %v3733 = vld [vmem:[#allocation2 + $0x2] sm:$0xff]
        %v3734 = vld [vmem:[#allocation2 + $0x12] sm:$0xff]
        %v3735 = vld [vmem:[#allocation2 + $0x22] sm:$0xff]
        %v3736 = vld [vmem:[#allocation2 + $0x32] sm:$0xff]
        %v3737 = vld [vmem:[#allocation2 + $0x42] sm:$0xff]
        %v3738 = vld [vmem:[#allocation2 + $0x52] sm:$0xff]
        %v3739 = vld [vmem:[#allocation2 + $0x62] sm:$0xff]
        %v3740 = vld [vmem:[#allocation2 + $0x72] sm:$0xff]
        %v3741 = vld [vmem:[#allocation2 + $0x82] sm:$0xff]
        %v3742 = vld [vmem:[#allocation2 + $0x92] sm:$0xff]
        %3753 = vrot.lane.b32.xlu0 %v3723, 64
        %v3754 = vpop.permute.xlu0 %3753
        %3755 = vrot.lane.b32.xlu0 %v3724, 64
        %v3756 = vpop.permute.xlu0 %3755
        %3757 = vrot.lane.b32.xlu0 %v3725, 64
        %v3758 = vpop.permute.xlu0 %3757
        %3759 = vrot.lane.b32.xlu0 %v3726, 64
        %v3760 = vpop.permute.xlu0 %3759
        %3761 = vrot.lane.b32.xlu0 %v3727, 64
        %v3762 = vpop.permute.xlu0 %3761
        %3763 = vrot.lane.b32.xlu0 %v3728, 64
        %v3764 = vpop.permute.xlu0 %3763
        %3765 = vrot.lane.b32.xlu0 %v3729, 64
        %v3766 = vpop.permute.xlu0 %3765
        %3767 = vrot.lane.b32.xlu0 %v3730, 64
        %v3768 = vpop.permute.xlu0 %3767
        %3769 = vrot.lane.b32.xlu0 %v3731, 64
        %v3770 = vpop.permute.xlu0 %3769
        %3771 = vrot.lane.b32.xlu0 %v3732, 64
        %v3772 = vpop.permute.xlu0 %3771
        %v3783 = vsel %vm210, %v3713, %v3754
        %v3784 = vsel %vm210, %v3714, %v3756
        %v3785 = vsel %vm210, %v3715, %v3758
        %v3786 = vsel %vm210, %v3716, %v3760
        %v3787 = vsel %vm210, %v3717, %v3762
        %v3788 = vsel %vm210, %v3718, %v3764
        %v3789 = vsel %vm210, %v3719, %v3766
        %v3790 = vsel %vm210, %v3720, %v3768
        %v3791 = vsel %vm210, %v3721, %v3770
        %v3792 = vsel %vm210, %v3722, %v3772
        %s3793 = scalar_lea.vmem [#allocation5], 4032
        %v3794 = vld [vmem:[%s3793] sm:$0xff]
        %v3795 = vld [vmem:[%s3793 + $0x8] sm:$0xff]
        %v3796 = vld [vmem:[%s3793 + $0x10] sm:$0xff]
        %v3797 = vld [vmem:[%s3793 + $0x18] sm:$0xff]
        %v3798 = vld [vmem:[%s3793 + $0x20] sm:$0xff]
        %v3799 = vld [vmem:[%s3793 + $0x28] sm:$0xff]
        %v3800 = vld [vmem:[%s3793 + $0x30] sm:$0xff]
        %v3801 = vld [vmem:[%s3793 + $0x38] sm:$0xff]
        %v3802 = vld [vmem:[%s3793 + $0x40] sm:$0xff]
        %v3803 = vld [vmem:[%s3793 + $0x48] sm:$0xff]
        %v3804 = vld [vmem:[%s3793 + $0x50] sm:$0xff]
        %v3805 = vld [vmem:[%s3793 + $0x58] sm:$0xff]
        %v3806 = vld [vmem:[%s3793 + $0x60] sm:$0xff]
        %v3807 = vld [vmem:[%s3793 + $0x68] sm:$0xff]
        %v3808 = vld [vmem:[%s3793 + $0x70] sm:$0xff]
        %v3809 = vld [vmem:[%s3793 + $0x78] sm:$0xff]
        %v3810 = vld [vmem:[%s3793 + $0x80] sm:$0xff]
        %v3811 = vld [vmem:[%s3793 + $0x88] sm:$0xff]
        %v3812 = vld [vmem:[%s3793 + $0x90] sm:$0xff]
        %v3813 = vld [vmem:[%s3793 + $0x98] sm:$0xff]
        %v3814 = vld [vmem:[%s3793 + $0xa0] sm:$0xff]
        %v3815 = vld [vmem:[%s3793 + $0xa8] sm:$0xff]
        %v3816 = vld [vmem:[%s3793 + $0xb0] sm:$0xff]
        %v3817 = vld [vmem:[%s3793 + $0xb8] sm:$0xff]
        %v3819 = vsel %vm210, %v3733, 0
        %v3822 = vsel %vm210, %v3734, 0
        %v3825 = vsel %vm210, %v3735, 0
        %v3828 = vsel %vm210, %v3736, 0
        %v3831 = vsel %vm210, %v3737, 0
        %v3834 = vsel %vm210, %v3738, 0
        %v3837 = vsel %vm210, %v3739, 0
        %v3840 = vsel %vm210, %v3740, 0
        %v3843 = vsel %vm210, %v3741, 0
        %v3846 = vsel %vm210, %v3742, 0
        %3848 = vmatpush.msra.mxu0 %v3809
        %3849 = vmatpush.msra.mxu0 %v3808
        %3850 = vmatpush.msra.mxu0 %v3807
        %3851 = vmatpush.msra.mxu0 %v3806
        %3852 = vmatpush.msra.mxu0 %v3805
        %3853 = vmatpush.msra.mxu0 %v3804
        %3854 = vmatpush.msra.mxu0 %v3803
        %3855 = vmatpush.msra.mxu0 %v3802
        %3856 = vmatpush.msra.mxu0 %v3801
        %3857 = vmatpush.msra.mxu0 %v3800
        %3858 = vmatpush.msra.mxu0 %v3799
        %3859 = vmatpush.msra.mxu0 %v3798
        %3860 = vmatpush.msra.mxu0 %v3797
        %3861 = vmatpush.msra.mxu0 %v3796
        %3862 = vmatpush.msra.mxu0 %v3795
        %3863 = vmatpush.msra.mxu0 %v3794
        %3864 = vmatmul.f32.gmra.mxu0 %v3783
        %v3865 = vpop.f32.mrf.mxu0
        %v3866 = vadd.f32 0.0, %v3865
        %3867 = vmatmul.f32.gmra.mxu0 %v3784
        %v3868 = vpop.f32.mrf.mxu0
        %v3869 = vadd.f32 0.0, %v3868
        %3870 = vmatmul.f32.gmra.mxu0 %v3785
        %v3871 = vpop.f32.mrf.mxu0
        %v3872 = vadd.f32 0.0, %v3871
        %3873 = vmatmul.f32.gmra.mxu0 %v3786
        %v3874 = vpop.f32.mrf.mxu0
        %v3875 = vadd.f32 0.0, %v3874
        %3876 = vmatmul.f32.gmra.mxu0 %v3787
        %v3877 = vpop.f32.mrf.mxu0
        %v3878 = vadd.f32 0.0, %v3877
        %3879 = vmatmul.f32.gmra.mxu0 %v3788
        %v3880 = vpop.f32.mrf.mxu0
        %v3881 = vadd.f32 0.0, %v3880
        %3882 = vmatmul.f32.gmra.mxu0 %v3789
        %v3883 = vpop.f32.mrf.mxu0
        %v3884 = vadd.f32 0.0, %v3883
        %3885 = vmatmul.f32.gmra.mxu0 %v3790
        %v3886 = vpop.f32.mrf.mxu0
        %v3887 = vadd.f32 0.0, %v3886
        %3888 = vmatmul.f32.gmra.mxu0 %v3791
        %v3889 = vpop.f32.mrf.mxu0
        %3890 = vmatmul.f32.gmra.mxu0 %v3792
        %v3891 = vpop.f32.mrf.mxu0
        %3892 = vdwg.mxu0
        %3893 = vmatpush.msra.mxu0 0.0
        %3894 = vmatpush.msra.mxu0 0.0
        %3895 = vmatpush.msra.mxu0 0.0
        %3896 = vmatpush.msra.mxu0 0.0
        %3897 = vmatpush.msra.mxu0 0.0
        %3898 = vmatpush.msra.mxu0 0.0
        %3899 = vmatpush.msra.mxu0 0.0
        %3900 = vmatpush.msra.mxu0 0.0
        %3901 = vmatpush.msra.mxu0 %v3817
        %3902 = vmatpush.msra.mxu0 %v3816
        %3903 = vmatpush.msra.mxu0 %v3815
        %3904 = vmatpush.msra.mxu0 %v3814
        %3905 = vmatpush.msra.mxu0 %v3813
        %3906 = vmatpush.msra.mxu0 %v3812
        %3907 = vmatpush.msra.mxu0 %v3811
        %3908 = vmatpush.msra.mxu0 %v3810
        %3909 = vmatmul.f32.gmra.mxu0 %v3819
        %v3910 = vpop.f32.mrf.mxu0
        %v3911 = vadd.f32 %v3866, %v3910
        %3912 = vmatmul.f32.gmra.mxu0 %v3822
        %v3913 = vpop.f32.mrf.mxu0
        %v3914 = vadd.f32 %v3869, %v3913
        %3915 = vmatmul.f32.gmra.mxu0 %v3825
        %v3916 = vpop.f32.mrf.mxu0
        %v3917 = vadd.f32 %v3872, %v3916
        %3918 = vmatmul.f32.gmra.mxu0 %v3828
        %v3919 = vpop.f32.mrf.mxu0
        %v3920 = vadd.f32 %v3875, %v3919
        %3921 = vmatmul.f32.gmra.mxu0 %v3831
        %v3922 = vpop.f32.mrf.mxu0
        %v3923 = vadd.f32 %v3878, %v3922
        %3924 = vmatmul.f32.gmra.mxu0 %v3834
        %v3925 = vpop.f32.mrf.mxu0
        %v3926 = vadd.f32 %v3881, %v3925
        %3927 = vmatmul.f32.gmra.mxu0 %v3837
        %v3928 = vpop.f32.mrf.mxu0
        %v3929 = vadd.f32 %v3884, %v3928
        %3930 = vmatmul.f32.gmra.mxu0 %v3840
        %v3931 = vpop.f32.mrf.mxu0
        %v3932 = vadd.f32 %v3887, %v3931
        %3933 = vmatmul.f32.gmra.mxu0 %v3843
        %v3934 = vpop.f32.mrf.mxu0
        %3935 = vmatmul.f32.gmra.mxu0 %v3846
        %v3936 = vpop.f32.mrf.mxu0
        %3937 = vdwg.mxu0
        %s3938 = scalar_lea.vmem [#allocation5], 4224
        %v3939 = vld [vmem:[%s3938] sm:$0xff]
        %v3940 = vld [vmem:[%s3938 + $0x8] sm:$0xff]
        %v3941 = vld [vmem:[%s3938 + $0x10] sm:$0xff]
        %v3942 = vld [vmem:[%s3938 + $0x18] sm:$0xff]
        %v3943 = vld [vmem:[%s3938 + $0x20] sm:$0xff]
        %v3944 = vld [vmem:[%s3938 + $0x28] sm:$0xff]
        %v3945 = vld [vmem:[%s3938 + $0x30] sm:$0xff]
        %v3946 = vld [vmem:[%s3938 + $0x38] sm:$0xff]
        %v3947 = vld [vmem:[%s3938 + $0x40] sm:$0xff]
        %v3948 = vld [vmem:[%s3938 + $0x48] sm:$0xff]
        %v3949 = vld [vmem:[%s3938 + $0x50] sm:$0xff]
        %v3950 = vld [vmem:[%s3938 + $0x58] sm:$0xff]
        %v3951 = vld [vmem:[%s3938 + $0x60] sm:$0xff]
        %v3952 = vld [vmem:[%s3938 + $0x68] sm:$0xff]
        %v3953 = vld [vmem:[%s3938 + $0x70] sm:$0xff]
        %v3954 = vld [vmem:[%s3938 + $0x78] sm:$0xff]
        %v3955 = vld [vmem:[%s3938 + $0x80] sm:$0xff]
        %v3956 = vld [vmem:[%s3938 + $0x88] sm:$0xff]
        %v3957 = vld [vmem:[%s3938 + $0x90] sm:$0xff]
        %v3958 = vld [vmem:[%s3938 + $0x98] sm:$0xff]
        %v3959 = vld [vmem:[%s3938 + $0xa0] sm:$0xff]
        %v3960 = vld [vmem:[%s3938 + $0xa8] sm:$0xff]
        %v3961 = vld [vmem:[%s3938 + $0xb0] sm:$0xff]
        %v3962 = vld [vmem:[%s3938 + $0xb8] sm:$0xff]
        %3963 = vmatpush.msra.mxu0 %v3954
        %3964 = vmatpush.msra.mxu0 %v3953
        %3965 = vmatpush.msra.mxu0 %v3952
        %3966 = vmatpush.msra.mxu0 %v3951
        %3967 = vmatpush.msra.mxu0 %v3950
        %3968 = vmatpush.msra.mxu0 %v3949
        %3969 = vmatpush.msra.mxu0 %v3948
        %3970 = vmatpush.msra.mxu0 %v3947
        %3971 = vmatpush.msra.mxu0 %v3946
        %3972 = vmatpush.msra.mxu0 %v3945
        %3973 = vmatpush.msra.mxu0 %v3944
        %3974 = vmatpush.msra.mxu0 %v3943
        %3975 = vmatpush.msra.mxu0 %v3942
        %3976 = vmatpush.msra.mxu0 %v3941
        %3977 = vmatpush.msra.mxu0 %v3940
        %3978 = vmatpush.msra.mxu0 %v3939
        %3979 = vmatmul.f32.gmra.mxu0 %v3783
        %v3980 = vpop.f32.mrf.mxu0
        %3981 = vmatmul.f32.gmra.mxu0 %v3784
        %v3982 = vpop.f32.mrf.mxu0
        %v3983 = vadd.f32 0.0, %v3982
        %3984 = vmatmul.f32.gmra.mxu0 %v3785
        %v3985 = vpop.f32.mrf.mxu0
        %v3986 = vadd.f32 0.0, %v3985
        %3987 = vmatmul.f32.gmra.mxu0 %v3786
        %v3988 = vpop.f32.mrf.mxu0
        %v3989 = vadd.f32 0.0, %v3988
        %3990 = vmatmul.f32.gmra.mxu0 %v3787
        %v3991 = vpop.f32.mrf.mxu0
        %v3992 = vadd.f32 0.0, %v3991
        %3993 = vmatmul.f32.gmra.mxu0 %v3788
        %v3994 = vpop.f32.mrf.mxu0
        %v3995 = vadd.f32 0.0, %v3994
        %3996 = vmatmul.f32.gmra.mxu0 %v3789
        %v3997 = vpop.f32.mrf.mxu0
        %v3998 = vadd.f32 0.0, %v3997
        %3999 = vmatmul.f32.gmra.mxu0 %v3790
        %v4000 = vpop.f32.mrf.mxu0
        %v4001 = vadd.f32 0.0, %v4000
        %4002 = vmatmul.f32.gmra.mxu0 %v3791
        %v4003 = vpop.f32.mrf.mxu0
        %v4004 = vadd.f32 0.0, %v4003
        %4005 = vmatmul.f32.gmra.mxu0 %v3792
        %v4006 = vpop.f32.mrf.mxu0
        %4007 = vdwg.mxu0
        %4008 = vmatpush.msra.mxu0 0.0
        %4009 = vmatpush.msra.mxu0 0.0
        %4010 = vmatpush.msra.mxu0 0.0
        %4011 = vmatpush.msra.mxu0 0.0
        %4012 = vmatpush.msra.mxu0 0.0
        %4013 = vmatpush.msra.mxu0 0.0
        %4014 = vmatpush.msra.mxu0 0.0
        %4015 = vmatpush.msra.mxu0 0.0
        %4016 = vmatpush.msra.mxu0 %v3962
        %4017 = vmatpush.msra.mxu0 %v3961
        %4018 = vmatpush.msra.mxu0 %v3960
        %4019 = vmatpush.msra.mxu0 %v3959
        %4020 = vmatpush.msra.mxu0 %v3958
        %4021 = vmatpush.msra.mxu0 %v3957
        %4022 = vmatpush.msra.mxu0 %v3956
        %4023 = vmatpush.msra.mxu0 %v3955
        %4024 = vmatmul.f32.gmra.mxu0 %v3819
        %v4025 = vpop.f32.mrf.mxu0
        %4026 = vmatmul.f32.gmra.mxu0 %v3822
        %v4027 = vpop.f32.mrf.mxu0
        %v4028 = vadd.f32 %v3983, %v4027
        %4029 = vmatmul.f32.gmra.mxu0 %v3825
        %v4030 = vpop.f32.mrf.mxu0
        %v4031 = vadd.f32 %v3986, %v4030
        %4032 = vmatmul.f32.gmra.mxu0 %v3828
        %v4033 = vpop.f32.mrf.mxu0
        %v4034 = vadd.f32 %v3989, %v4033
        %4035 = vmatmul.f32.gmra.mxu0 %v3831
        %v4036 = vpop.f32.mrf.mxu0
        %v4037 = vadd.f32 %v3992, %v4036
        %4038 = vmatmul.f32.gmra.mxu0 %v3834
        %v4039 = vpop.f32.mrf.mxu0
        %v4040 = vadd.f32 %v3995, %v4039
        %4041 = vmatmul.f32.gmra.mxu0 %v3837
        %v4042 = vpop.f32.mrf.mxu0
        %v4043 = vadd.f32 %v3998, %v4042
        %4044 = vmatmul.f32.gmra.mxu0 %v3840
        %v4045 = vpop.f32.mrf.mxu0
        %v4046 = vadd.f32 %v4001, %v4045
        %4047 = vmatmul.f32.gmra.mxu0 %v3843
        %v4048 = vpop.f32.mrf.mxu0
        %v4049 = vadd.f32 %v4004, %v4048
        %4050 = vmatmul.f32.gmra.mxu0 %v3846
        %v4051 = vpop.f32.mrf.mxu0
        %4052 = vdwg.mxu0
        %v4053 = vadd.f32 %v3911, %v4028
        %v4054 = vadd.f32 %v3914, %v4031
        %v4055 = vadd.f32 %v3917, %v4034
        %v4056 = vadd.f32 %v3920, %v4037
        %v4057 = vadd.f32 %v3923, %v4040
        %v4058 = vadd.f32 %v3926, %v4043
        %v4059 = vadd.f32 %v3929, %v4046
        %v4060 = vadd.f32 %v3932, %v4049
        %s4061 = scalar_lea.vmem [#allocation5], 4416
        %v4062 = vld [vmem:[%s4061] sm:$0xff]
        %v4063 = vld [vmem:[%s4061 + $0x8] sm:$0xff]
        %v4064 = vld [vmem:[%s4061 + $0x10] sm:$0xff]
        %v4065 = vld [vmem:[%s4061 + $0x18] sm:$0xff]
        %v4066 = vld [vmem:[%s4061 + $0x20] sm:$0xff]
        %v4067 = vld [vmem:[%s4061 + $0x28] sm:$0xff]
        %v4068 = vld [vmem:[%s4061 + $0x30] sm:$0xff]
        %v4069 = vld [vmem:[%s4061 + $0x38] sm:$0xff]
        %v4070 = vld [vmem:[%s4061 + $0x40] sm:$0xff]
        %v4071 = vld [vmem:[%s4061 + $0x48] sm:$0xff]
        %v4072 = vld [vmem:[%s4061 + $0x50] sm:$0xff]
        %v4073 = vld [vmem:[%s4061 + $0x58] sm:$0xff]
        %v4074 = vld [vmem:[%s4061 + $0x60] sm:$0xff]
        %v4075 = vld [vmem:[%s4061 + $0x68] sm:$0xff]
        %v4076 = vld [vmem:[%s4061 + $0x70] sm:$0xff]
        %v4077 = vld [vmem:[%s4061 + $0x78] sm:$0xff]
        %v4078 = vld [vmem:[%s4061 + $0x80] sm:$0xff]
        %v4079 = vld [vmem:[%s4061 + $0x88] sm:$0xff]
        %v4080 = vld [vmem:[%s4061 + $0x90] sm:$0xff]
        %v4081 = vld [vmem:[%s4061 + $0x98] sm:$0xff]
        %v4082 = vld [vmem:[%s4061 + $0xa0] sm:$0xff]
        %v4083 = vld [vmem:[%s4061 + $0xa8] sm:$0xff]
        %v4084 = vld [vmem:[%s4061 + $0xb0] sm:$0xff]
        %v4085 = vld [vmem:[%s4061 + $0xb8] sm:$0xff]
        %4086 = vmatpush.msra.mxu0 %v4077
        %4087 = vmatpush.msra.mxu0 %v4076
        %4088 = vmatpush.msra.mxu0 %v4075
        %4089 = vmatpush.msra.mxu0 %v4074
        %4090 = vmatpush.msra.mxu0 %v4073
        %4091 = vmatpush.msra.mxu0 %v4072
        %4092 = vmatpush.msra.mxu0 %v4071
        %4093 = vmatpush.msra.mxu0 %v4070
        %4094 = vmatpush.msra.mxu0 %v4069
        %4095 = vmatpush.msra.mxu0 %v4068
        %4096 = vmatpush.msra.mxu0 %v4067
        %4097 = vmatpush.msra.mxu0 %v4066
        %4098 = vmatpush.msra.mxu0 %v4065
        %4099 = vmatpush.msra.mxu0 %v4064
        %4100 = vmatpush.msra.mxu0 %v4063
        %4101 = vmatpush.msra.mxu0 %v4062
        %4102 = vmatmul.f32.gmra.mxu0 %v3783
        %v4103 = vpop.f32.mrf.mxu0
        %4104 = vmatmul.f32.gmra.mxu0 %v3784
        %v4105 = vpop.f32.mrf.mxu0
        %4106 = vmatmul.f32.gmra.mxu0 %v3785
        %v4107 = vpop.f32.mrf.mxu0
        %v4108 = vadd.f32 0.0, %v4107
        %4109 = vmatmul.f32.gmra.mxu0 %v3786
        %v4110 = vpop.f32.mrf.mxu0
        %v4111 = vadd.f32 0.0, %v4110
        %4112 = vmatmul.f32.gmra.mxu0 %v3787
        %v4113 = vpop.f32.mrf.mxu0
        %v4114 = vadd.f32 0.0, %v4113
        %4115 = vmatmul.f32.gmra.mxu0 %v3788
        %v4116 = vpop.f32.mrf.mxu0
        %v4117 = vadd.f32 0.0, %v4116
        %4118 = vmatmul.f32.gmra.mxu0 %v3789
        %v4119 = vpop.f32.mrf.mxu0
        %v4120 = vadd.f32 0.0, %v4119
        %4121 = vmatmul.f32.gmra.mxu0 %v3790
        %v4122 = vpop.f32.mrf.mxu0
        %v4123 = vadd.f32 0.0, %v4122
        %4124 = vmatmul.f32.gmra.mxu0 %v3791
        %v4125 = vpop.f32.mrf.mxu0
        %v4126 = vadd.f32 0.0, %v4125
        %4127 = vmatmul.f32.gmra.mxu0 %v3792
        %v4128 = vpop.f32.mrf.mxu0
        %v4129 = vadd.f32 0.0, %v4128
        %4130 = vdwg.mxu0
        %4131 = vmatpush.msra.mxu0 0.0
        %4132 = vmatpush.msra.mxu0 0.0
        %4133 = vmatpush.msra.mxu0 0.0
        %4134 = vmatpush.msra.mxu0 0.0
        %4135 = vmatpush.msra.mxu0 0.0
        %4136 = vmatpush.msra.mxu0 0.0
        %4137 = vmatpush.msra.mxu0 0.0
        %4138 = vmatpush.msra.mxu0 0.0
        %4139 = vmatpush.msra.mxu0 %v4085
        %4140 = vmatpush.msra.mxu0 %v4084
        %4141 = vmatpush.msra.mxu0 %v4083
        %4142 = vmatpush.msra.mxu0 %v4082
        %4143 = vmatpush.msra.mxu0 %v4081
        %4144 = vmatpush.msra.mxu0 %v4080
        %4145 = vmatpush.msra.mxu0 %v4079
        %4146 = vmatpush.msra.mxu0 %v4078
        %4147 = vmatmul.f32.gmra.mxu0 %v3819
        %v4148 = vpop.f32.mrf.mxu0
        %4149 = vmatmul.f32.gmra.mxu0 %v3822
        %v4150 = vpop.f32.mrf.mxu0
        %4151 = vmatmul.f32.gmra.mxu0 %v3825
        %v4152 = vpop.f32.mrf.mxu0
        %v4153 = vadd.f32 %v4108, %v4152
        %4154 = vmatmul.f32.gmra.mxu0 %v3828
        %v4155 = vpop.f32.mrf.mxu0
        %v4156 = vadd.f32 %v4111, %v4155
        %4157 = vmatmul.f32.gmra.mxu0 %v3831
        %v4158 = vpop.f32.mrf.mxu0
        %v4159 = vadd.f32 %v4114, %v4158
        %4160 = vmatmul.f32.gmra.mxu0 %v3834
        %v4161 = vpop.f32.mrf.mxu0
        %v4162 = vadd.f32 %v4117, %v4161
        %4163 = vmatmul.f32.gmra.mxu0 %v3837
        %v4164 = vpop.f32.mrf.mxu0
        %v4165 = vadd.f32 %v4120, %v4164
        %4166 = vmatmul.f32.gmra.mxu0 %v3840
        %v4167 = vpop.f32.mrf.mxu0
        %v4168 = vadd.f32 %v4123, %v4167
        %4169 = vmatmul.f32.gmra.mxu0 %v3843
        %v4170 = vpop.f32.mrf.mxu0
        %v4171 = vadd.f32 %v4126, %v4170
        %4172 = vmatmul.f32.gmra.mxu0 %v3846
        %v4173 = vpop.f32.mrf.mxu0
        %v4174 = vadd.f32 %v4129, %v4173
        %4175 = vdwg.mxu0
        %v4176 = vadd.f32 %v4053, %v4153
        %v4177 = vadd.f32 %v4054, %v4156
        %v4178 = vadd.f32 %v4055, %v4159
        %v4179 = vadd.f32 %v4056, %v4162
        %v4180 = vadd.f32 %v4057, %v4165
        %v4181 = vadd.f32 %v4058, %v4168
        %v4182 = vadd.f32 %v4059, %v4171
        %v4183 = vadd.f32 %v4060, %v4174
        %v4184 = vmul.f32 %v4176, 0.2
        %v4185 = vmul.f32 %v4177, 0.2
        %v4186 = vmul.f32 %v4178, 0.2
        %v4187 = vmul.f32 %v4179, 0.2
        %v4188 = vmul.f32 %v4180, 0.2
        %v4189 = vmul.f32 %v4181, 0.2
        %v4190 = vmul.f32 %v4182, 0.2
        %v4191 = vmul.f32 %v4183, 0.2
        %v4192 = vmax.f32 %v4176, %v4184
        %v4193 = vmax.f32 %v4177, %v4185
        %v4194 = vmax.f32 %v4178, %v4186
        %v4195 = vmax.f32 %v4179, %v4187
        %v4196 = vmax.f32 %v4180, %v4188
        %v4197 = vmax.f32 %v4181, %v4189
        %v4198 = vmax.f32 %v4182, %v4190
        %v4199 = vmax.f32 %v4183, %v4191
        %4200 = vst.msk [vmem:[%s240 + $0x1] sm:$0xff] %vm210, %v4192
        %4201 = vst.msk [vmem:[%s240 + $0x11] sm:$0xff] %vm210, %v4193
        %4202 = vst.msk [vmem:[%s240 + $0x21] sm:$0xff] %vm210, %v4194
        %4203 = vst.msk [vmem:[%s240 + $0x31] sm:$0xff] %vm210, %v4195
        %4204 = vst.msk [vmem:[%s240 + $0x41] sm:$0xff] %vm210, %v4196
        %4205 = vst.msk [vmem:[%s240 + $0x51] sm:$0xff] %vm210, %v4197
        %4206 = vst.msk [vmem:[%s240 + $0x61] sm:$0xff] %vm210, %v4198
        %4207 = vst.msk [vmem:[%s240 + $0x71] sm:$0xff] %vm210, %v4199
        %v4208 = vld [vmem:[#allocation2] sm:$0xff]
        %v4209 = vld [vmem:[#allocation2 + $0x10] sm:$0xff]
        %v4210 = vld [vmem:[#allocation2 + $0x20] sm:$0xff]
        %v4211 = vld [vmem:[#allocation2 + $0x30] sm:$0xff]
        %v4212 = vld [vmem:[#allocation2 + $0x40] sm:$0xff]
        %v4213 = vld [vmem:[#allocation2 + $0x50] sm:$0xff]
        %v4214 = vld [vmem:[#allocation2 + $0x60] sm:$0xff]
        %v4215 = vld [vmem:[#allocation2 + $0x70] sm:$0xff]
        %v4216 = vld [vmem:[#allocation2 + $0x80] sm:$0xff]
        %v4217 = vld [vmem:[#allocation2 + $0x90] sm:$0xff]
        %v4218 = vld [vmem:[#allocation2 + $0x1] sm:$0xff]
        %v4219 = vld [vmem:[#allocation2 + $0x11] sm:$0xff]
        %v4220 = vld [vmem:[#allocation2 + $0x21] sm:$0xff]
        %v4221 = vld [vmem:[#allocation2 + $0x31] sm:$0xff]
        %v4222 = vld [vmem:[#allocation2 + $0x41] sm:$0xff]
        %v4223 = vld [vmem:[#allocation2 + $0x51] sm:$0xff]
        %v4224 = vld [vmem:[#allocation2 + $0x61] sm:$0xff]
        %v4225 = vld [vmem:[#allocation2 + $0x71] sm:$0xff]
        %v4226 = vld [vmem:[#allocation2 + $0x81] sm:$0xff]
        %v4227 = vld [vmem:[#allocation2 + $0x91] sm:$0xff]
        %v4228 = vld [vmem:[#allocation2 + $0x2] sm:$0xff]
        %v4229 = vld [vmem:[#allocation2 + $0x12] sm:$0xff]
        %v4230 = vld [vmem:[#allocation2 + $0x22] sm:$0xff]
        %v4231 = vld [vmem:[#allocation2 + $0x32] sm:$0xff]
        %v4232 = vld [vmem:[#allocation2 + $0x42] sm:$0xff]
        %v4233 = vld [vmem:[#allocation2 + $0x52] sm:$0xff]
        %v4234 = vld [vmem:[#allocation2 + $0x62] sm:$0xff]
        %v4235 = vld [vmem:[#allocation2 + $0x72] sm:$0xff]
        %v4236 = vld [vmem:[#allocation2 + $0x82] sm:$0xff]
        %v4237 = vld [vmem:[#allocation2 + $0x92] sm:$0xff]
        %4248 = vrot.lane.b32.xlu0 %v4218, 64
        %v4249 = vpop.permute.xlu0 %4248
        %4250 = vrot.lane.b32.xlu0 %v4219, 64
        %v4251 = vpop.permute.xlu0 %4250
        %4252 = vrot.lane.b32.xlu0 %v4220, 64
        %v4253 = vpop.permute.xlu0 %4252
        %4254 = vrot.lane.b32.xlu0 %v4221, 64
        %v4255 = vpop.permute.xlu0 %4254
        %4256 = vrot.lane.b32.xlu0 %v4222, 64
        %v4257 = vpop.permute.xlu0 %4256
        %4258 = vrot.lane.b32.xlu0 %v4223, 64
        %v4259 = vpop.permute.xlu0 %4258
        %4260 = vrot.lane.b32.xlu0 %v4224, 64
        %v4261 = vpop.permute.xlu0 %4260
        %4262 = vrot.lane.b32.xlu0 %v4225, 64
        %v4263 = vpop.permute.xlu0 %4262
        %4264 = vrot.lane.b32.xlu0 %v4226, 64
        %v4265 = vpop.permute.xlu0 %4264
        %4266 = vrot.lane.b32.xlu0 %v4227, 64
        %v4267 = vpop.permute.xlu0 %4266
        %v4278 = vsel %vm210, %v4208, %v4249
        %v4279 = vsel %vm210, %v4209, %v4251
        %v4280 = vsel %vm210, %v4210, %v4253
        %v4281 = vsel %vm210, %v4211, %v4255
        %v4282 = vsel %vm210, %v4212, %v4257
        %v4283 = vsel %vm210, %v4213, %v4259
        %v4284 = vsel %vm210, %v4214, %v4261
        %v4285 = vsel %vm210, %v4215, %v4263
        %v4286 = vsel %vm210, %v4216, %v4265
        %v4287 = vsel %vm210, %v4217, %v4267
        %s4288 = scalar_lea.vmem [#allocation5], 4608
        %v4289 = vld [vmem:[%s4288] sm:$0xff]
        %v4290 = vld [vmem:[%s4288 + $0x8] sm:$0xff]
        %v4291 = vld [vmem:[%s4288 + $0x10] sm:$0xff]
        %v4292 = vld [vmem:[%s4288 + $0x18] sm:$0xff]
        %v4293 = vld [vmem:[%s4288 + $0x20] sm:$0xff]
        %v4294 = vld [vmem:[%s4288 + $0x28] sm:$0xff]
        %v4295 = vld [vmem:[%s4288 + $0x30] sm:$0xff]
        %v4296 = vld [vmem:[%s4288 + $0x38] sm:$0xff]
        %v4297 = vld [vmem:[%s4288 + $0x40] sm:$0xff]
        %v4298 = vld [vmem:[%s4288 + $0x48] sm:$0xff]
        %v4299 = vld [vmem:[%s4288 + $0x50] sm:$0xff]
        %v4300 = vld [vmem:[%s4288 + $0x58] sm:$0xff]
        %v4301 = vld [vmem:[%s4288 + $0x60] sm:$0xff]
        %v4302 = vld [vmem:[%s4288 + $0x68] sm:$0xff]
        %v4303 = vld [vmem:[%s4288 + $0x70] sm:$0xff]
        %v4304 = vld [vmem:[%s4288 + $0x78] sm:$0xff]
        %v4305 = vld [vmem:[%s4288 + $0x80] sm:$0xff]
        %v4306 = vld [vmem:[%s4288 + $0x88] sm:$0xff]
        %v4307 = vld [vmem:[%s4288 + $0x90] sm:$0xff]
        %v4308 = vld [vmem:[%s4288 + $0x98] sm:$0xff]
        %v4309 = vld [vmem:[%s4288 + $0xa0] sm:$0xff]
        %v4310 = vld [vmem:[%s4288 + $0xa8] sm:$0xff]
        %v4311 = vld [vmem:[%s4288 + $0xb0] sm:$0xff]
        %v4312 = vld [vmem:[%s4288 + $0xb8] sm:$0xff]
        %v4314 = vsel %vm210, %v4228, 0
        %v4317 = vsel %vm210, %v4229, 0
        %v4320 = vsel %vm210, %v4230, 0
        %v4323 = vsel %vm210, %v4231, 0
        %v4326 = vsel %vm210, %v4232, 0
        %v4329 = vsel %vm210, %v4233, 0
        %v4332 = vsel %vm210, %v4234, 0
        %v4335 = vsel %vm210, %v4235, 0
        %v4338 = vsel %vm210, %v4236, 0
        %v4341 = vsel %vm210, %v4237, 0
        %4343 = vmatpush.msra.mxu0 %v4304
        %4344 = vmatpush.msra.mxu0 %v4303
        %4345 = vmatpush.msra.mxu0 %v4302
        %4346 = vmatpush.msra.mxu0 %v4301
        %4347 = vmatpush.msra.mxu0 %v4300
        %4348 = vmatpush.msra.mxu0 %v4299
        %4349 = vmatpush.msra.mxu0 %v4298
        %4350 = vmatpush.msra.mxu0 %v4297
        %4351 = vmatpush.msra.mxu0 %v4296
        %4352 = vmatpush.msra.mxu0 %v4295
        %4353 = vmatpush.msra.mxu0 %v4294
        %4354 = vmatpush.msra.mxu0 %v4293
        %4355 = vmatpush.msra.mxu0 %v4292
        %4356 = vmatpush.msra.mxu0 %v4291
        %4357 = vmatpush.msra.mxu0 %v4290
        %4358 = vmatpush.msra.mxu0 %v4289
        %4359 = vmatmul.f32.gmra.mxu0 %v4278
        %v4360 = vpop.f32.mrf.mxu0
        %v4361 = vadd.f32 0.0, %v4360
        %4362 = vmatmul.f32.gmra.mxu0 %v4279
        %v4363 = vpop.f32.mrf.mxu0
        %v4364 = vadd.f32 0.0, %v4363
        %4365 = vmatmul.f32.gmra.mxu0 %v4280
        %v4366 = vpop.f32.mrf.mxu0
        %v4367 = vadd.f32 0.0, %v4366
        %4368 = vmatmul.f32.gmra.mxu0 %v4281
        %v4369 = vpop.f32.mrf.mxu0
        %v4370 = vadd.f32 0.0, %v4369
        %4371 = vmatmul.f32.gmra.mxu0 %v4282
        %v4372 = vpop.f32.mrf.mxu0
        %v4373 = vadd.f32 0.0, %v4372
        %4374 = vmatmul.f32.gmra.mxu0 %v4283
        %v4375 = vpop.f32.mrf.mxu0
        %v4376 = vadd.f32 0.0, %v4375
        %4377 = vmatmul.f32.gmra.mxu0 %v4284
        %v4378 = vpop.f32.mrf.mxu0
        %v4379 = vadd.f32 0.0, %v4378
        %4380 = vmatmul.f32.gmra.mxu0 %v4285
        %v4381 = vpop.f32.mrf.mxu0
        %v4382 = vadd.f32 0.0, %v4381
        %4383 = vmatmul.f32.gmra.mxu0 %v4286
        %v4384 = vpop.f32.mrf.mxu0
        %4385 = vmatmul.f32.gmra.mxu0 %v4287
        %v4386 = vpop.f32.mrf.mxu0
        %4387 = vdwg.mxu0
        %4388 = vmatpush.msra.mxu0 0.0
        %4389 = vmatpush.msra.mxu0 0.0
        %4390 = vmatpush.msra.mxu0 0.0
        %4391 = vmatpush.msra.mxu0 0.0
        %4392 = vmatpush.msra.mxu0 0.0
        %4393 = vmatpush.msra.mxu0 0.0
        %4394 = vmatpush.msra.mxu0 0.0
        %4395 = vmatpush.msra.mxu0 0.0
        %4396 = vmatpush.msra.mxu0 %v4312
        %4397 = vmatpush.msra.mxu0 %v4311
        %4398 = vmatpush.msra.mxu0 %v4310
        %4399 = vmatpush.msra.mxu0 %v4309
        %4400 = vmatpush.msra.mxu0 %v4308
        %4401 = vmatpush.msra.mxu0 %v4307
        %4402 = vmatpush.msra.mxu0 %v4306
        %4403 = vmatpush.msra.mxu0 %v4305
        %4404 = vmatmul.f32.gmra.mxu0 %v4314
        %v4405 = vpop.f32.mrf.mxu0
        %v4406 = vadd.f32 %v4361, %v4405
        %4407 = vmatmul.f32.gmra.mxu0 %v4317
        %v4408 = vpop.f32.mrf.mxu0
        %v4409 = vadd.f32 %v4364, %v4408
        %4410 = vmatmul.f32.gmra.mxu0 %v4320
        %v4411 = vpop.f32.mrf.mxu0
        %v4412 = vadd.f32 %v4367, %v4411
        %4413 = vmatmul.f32.gmra.mxu0 %v4323
        %v4414 = vpop.f32.mrf.mxu0
        %v4415 = vadd.f32 %v4370, %v4414
        %4416 = vmatmul.f32.gmra.mxu0 %v4326
        %v4417 = vpop.f32.mrf.mxu0
        %v4418 = vadd.f32 %v4373, %v4417
        %4419 = vmatmul.f32.gmra.mxu0 %v4329
        %v4420 = vpop.f32.mrf.mxu0
        %v4421 = vadd.f32 %v4376, %v4420
        %4422 = vmatmul.f32.gmra.mxu0 %v4332
        %v4423 = vpop.f32.mrf.mxu0
        %v4424 = vadd.f32 %v4379, %v4423
        %4425 = vmatmul.f32.gmra.mxu0 %v4335
        %v4426 = vpop.f32.mrf.mxu0
        %v4427 = vadd.f32 %v4382, %v4426
        %4428 = vmatmul.f32.gmra.mxu0 %v4338
        %v4429 = vpop.f32.mrf.mxu0
        %4430 = vmatmul.f32.gmra.mxu0 %v4341
        %v4431 = vpop.f32.mrf.mxu0
        %4432 = vdwg.mxu0
        %s4433 = scalar_lea.vmem [#allocation5], 4800
        %v4434 = vld [vmem:[%s4433] sm:$0xff]
        %v4435 = vld [vmem:[%s4433 + $0x8] sm:$0xff]
        %v4436 = vld [vmem:[%s4433 + $0x10] sm:$0xff]
        %v4437 = vld [vmem:[%s4433 + $0x18] sm:$0xff]
        %v4438 = vld [vmem:[%s4433 + $0x20] sm:$0xff]
        %v4439 = vld [vmem:[%s4433 + $0x28] sm:$0xff]
        %v4440 = vld [vmem:[%s4433 + $0x30] sm:$0xff]
        %v4441 = vld [vmem:[%s4433 + $0x38] sm:$0xff]
        %v4442 = vld [vmem:[%s4433 + $0x40] sm:$0xff]
        %v4443 = vld [vmem:[%s4433 + $0x48] sm:$0xff]
        %v4444 = vld [vmem:[%s4433 + $0x50] sm:$0xff]
        %v4445 = vld [vmem:[%s4433 + $0x58] sm:$0xff]
        %v4446 = vld [vmem:[%s4433 + $0x60] sm:$0xff]
        %v4447 = vld [vmem:[%s4433 + $0x68] sm:$0xff]
        %v4448 = vld [vmem:[%s4433 + $0x70] sm:$0xff]
        %v4449 = vld [vmem:[%s4433 + $0x78] sm:$0xff]
        %v4450 = vld [vmem:[%s4433 + $0x80] sm:$0xff]
        %v4451 = vld [vmem:[%s4433 + $0x88] sm:$0xff]
        %v4452 = vld [vmem:[%s4433 + $0x90] sm:$0xff]
        %v4453 = vld [vmem:[%s4433 + $0x98] sm:$0xff]
        %v4454 = vld [vmem:[%s4433 + $0xa0] sm:$0xff]
        %v4455 = vld [vmem:[%s4433 + $0xa8] sm:$0xff]
        %v4456 = vld [vmem:[%s4433 + $0xb0] sm:$0xff]
        %v4457 = vld [vmem:[%s4433 + $0xb8] sm:$0xff]
        %4458 = vmatpush.msra.mxu0 %v4449
        %4459 = vmatpush.msra.mxu0 %v4448
        %4460 = vmatpush.msra.mxu0 %v4447
        %4461 = vmatpush.msra.mxu0 %v4446
        %4462 = vmatpush.msra.mxu0 %v4445
        %4463 = vmatpush.msra.mxu0 %v4444
        %4464 = vmatpush.msra.mxu0 %v4443
        %4465 = vmatpush.msra.mxu0 %v4442
        %4466 = vmatpush.msra.mxu0 %v4441
        %4467 = vmatpush.msra.mxu0 %v4440
        %4468 = vmatpush.msra.mxu0 %v4439
        %4469 = vmatpush.msra.mxu0 %v4438
        %4470 = vmatpush.msra.mxu0 %v4437
        %4471 = vmatpush.msra.mxu0 %v4436
        %4472 = vmatpush.msra.mxu0 %v4435
        %4473 = vmatpush.msra.mxu0 %v4434
        %4474 = vmatmul.f32.gmra.mxu0 %v4278
        %v4475 = vpop.f32.mrf.mxu0
        %4476 = vmatmul.f32.gmra.mxu0 %v4279
        %v4477 = vpop.f32.mrf.mxu0
        %v4478 = vadd.f32 0.0, %v4477
        %4479 = vmatmul.f32.gmra.mxu0 %v4280
        %v4480 = vpop.f32.mrf.mxu0
        %v4481 = vadd.f32 0.0, %v4480
        %4482 = vmatmul.f32.gmra.mxu0 %v4281
        %v4483 = vpop.f32.mrf.mxu0
        %v4484 = vadd.f32 0.0, %v4483
        %4485 = vmatmul.f32.gmra.mxu0 %v4282
        %v4486 = vpop.f32.mrf.mxu0
        %v4487 = vadd.f32 0.0, %v4486
        %4488 = vmatmul.f32.gmra.mxu0 %v4283
        %v4489 = vpop.f32.mrf.mxu0
        %v4490 = vadd.f32 0.0, %v4489
        %4491 = vmatmul.f32.gmra.mxu0 %v4284
        %v4492 = vpop.f32.mrf.mxu0
        %v4493 = vadd.f32 0.0, %v4492
        %4494 = vmatmul.f32.gmra.mxu0 %v4285
        %v4495 = vpop.f32.mrf.mxu0
        %v4496 = vadd.f32 0.0, %v4495
        %4497 = vmatmul.f32.gmra.mxu0 %v4286
        %v4498 = vpop.f32.mrf.mxu0
        %v4499 = vadd.f32 0.0, %v4498
        %4500 = vmatmul.f32.gmra.mxu0 %v4287
        %v4501 = vpop.f32.mrf.mxu0
        %4502 = vdwg.mxu0
        %4503 = vmatpush.msra.mxu0 0.0
        %4504 = vmatpush.msra.mxu0 0.0
        %4505 = vmatpush.msra.mxu0 0.0
        %4506 = vmatpush.msra.mxu0 0.0
        %4507 = vmatpush.msra.mxu0 0.0
        %4508 = vmatpush.msra.mxu0 0.0
        %4509 = vmatpush.msra.mxu0 0.0
        %4510 = vmatpush.msra.mxu0 0.0
        %4511 = vmatpush.msra.mxu0 %v4457
        %4512 = vmatpush.msra.mxu0 %v4456
        %4513 = vmatpush.msra.mxu0 %v4455
        %4514 = vmatpush.msra.mxu0 %v4454
        %4515 = vmatpush.msra.mxu0 %v4453
        %4516 = vmatpush.msra.mxu0 %v4452
        %4517 = vmatpush.msra.mxu0 %v4451
        %4518 = vmatpush.msra.mxu0 %v4450
        %4519 = vmatmul.f32.gmra.mxu0 %v4314
        %v4520 = vpop.f32.mrf.mxu0
        %4521 = vmatmul.f32.gmra.mxu0 %v4317
        %v4522 = vpop.f32.mrf.mxu0
        %v4523 = vadd.f32 %v4478, %v4522
        %4524 = vmatmul.f32.gmra.mxu0 %v4320
        %v4525 = vpop.f32.mrf.mxu0
        %v4526 = vadd.f32 %v4481, %v4525
        %4527 = vmatmul.f32.gmra.mxu0 %v4323
        %v4528 = vpop.f32.mrf.mxu0
        %v4529 = vadd.f32 %v4484, %v4528
        %4530 = vmatmul.f32.gmra.mxu0 %v4326
        %v4531 = vpop.f32.mrf.mxu0
        %v4532 = vadd.f32 %v4487, %v4531
        %4533 = vmatmul.f32.gmra.mxu0 %v4329
        %v4534 = vpop.f32.mrf.mxu0
        %v4535 = vadd.f32 %v4490, %v4534
        %4536 = vmatmul.f32.gmra.mxu0 %v4332
        %v4537 = vpop.f32.mrf.mxu0
        %v4538 = vadd.f32 %v4493, %v4537
        %4539 = vmatmul.f32.gmra.mxu0 %v4335
        %v4540 = vpop.f32.mrf.mxu0
        %v4541 = vadd.f32 %v4496, %v4540
        %4542 = vmatmul.f32.gmra.mxu0 %v4338
        %v4543 = vpop.f32.mrf.mxu0
        %v4544 = vadd.f32 %v4499, %v4543
        %4545 = vmatmul.f32.gmra.mxu0 %v4341
        %v4546 = vpop.f32.mrf.mxu0
        %4547 = vdwg.mxu0
        %v4548 = vadd.f32 %v4406, %v4523
        %v4549 = vadd.f32 %v4409, %v4526
        %v4550 = vadd.f32 %v4412, %v4529
        %v4551 = vadd.f32 %v4415, %v4532
        %v4552 = vadd.f32 %v4418, %v4535
        %v4553 = vadd.f32 %v4421, %v4538
        %v4554 = vadd.f32 %v4424, %v4541
        %v4555 = vadd.f32 %v4427, %v4544
        %s4556 = scalar_lea.vmem [#allocation5], 4992
        %v4557 = vld [vmem:[%s4556] sm:$0xff]
        %v4558 = vld [vmem:[%s4556 + $0x8] sm:$0xff]
        %v4559 = vld [vmem:[%s4556 + $0x10] sm:$0xff]
        %v4560 = vld [vmem:[%s4556 + $0x18] sm:$0xff]
        %v4561 = vld [vmem:[%s4556 + $0x20] sm:$0xff]
        %v4562 = vld [vmem:[%s4556 + $0x28] sm:$0xff]
        %v4563 = vld [vmem:[%s4556 + $0x30] sm:$0xff]
        %v4564 = vld [vmem:[%s4556 + $0x38] sm:$0xff]
        %v4565 = vld [vmem:[%s4556 + $0x40] sm:$0xff]
        %v4566 = vld [vmem:[%s4556 + $0x48] sm:$0xff]
        %v4567 = vld [vmem:[%s4556 + $0x50] sm:$0xff]
        %v4568 = vld [vmem:[%s4556 + $0x58] sm:$0xff]
        %v4569 = vld [vmem:[%s4556 + $0x60] sm:$0xff]
        %v4570 = vld [vmem:[%s4556 + $0x68] sm:$0xff]
        %v4571 = vld [vmem:[%s4556 + $0x70] sm:$0xff]
        %v4572 = vld [vmem:[%s4556 + $0x78] sm:$0xff]
        %v4573 = vld [vmem:[%s4556 + $0x80] sm:$0xff]
        %v4574 = vld [vmem:[%s4556 + $0x88] sm:$0xff]
        %v4575 = vld [vmem:[%s4556 + $0x90] sm:$0xff]
        %v4576 = vld [vmem:[%s4556 + $0x98] sm:$0xff]
        %v4577 = vld [vmem:[%s4556 + $0xa0] sm:$0xff]
        %v4578 = vld [vmem:[%s4556 + $0xa8] sm:$0xff]
        %v4579 = vld [vmem:[%s4556 + $0xb0] sm:$0xff]
        %v4580 = vld [vmem:[%s4556 + $0xb8] sm:$0xff]
        %4581 = vmatpush.msra.mxu0 %v4572
        %4582 = vmatpush.msra.mxu0 %v4571
        %4583 = vmatpush.msra.mxu0 %v4570
        %4584 = vmatpush.msra.mxu0 %v4569
        %4585 = vmatpush.msra.mxu0 %v4568
        %4586 = vmatpush.msra.mxu0 %v4567
        %4587 = vmatpush.msra.mxu0 %v4566
        %4588 = vmatpush.msra.mxu0 %v4565
        %4589 = vmatpush.msra.mxu0 %v4564
        %4590 = vmatpush.msra.mxu0 %v4563
        %4591 = vmatpush.msra.mxu0 %v4562
        %4592 = vmatpush.msra.mxu0 %v4561
        %4593 = vmatpush.msra.mxu0 %v4560
        %4594 = vmatpush.msra.mxu0 %v4559
        %4595 = vmatpush.msra.mxu0 %v4558
        %4596 = vmatpush.msra.mxu0 %v4557
        %4597 = vmatmul.f32.gmra.mxu0 %v4278
        %v4598 = vpop.f32.mrf.mxu0
        %4599 = vmatmul.f32.gmra.mxu0 %v4279
        %v4600 = vpop.f32.mrf.mxu0
        %4601 = vmatmul.f32.gmra.mxu0 %v4280
        %v4602 = vpop.f32.mrf.mxu0
        %v4603 = vadd.f32 0.0, %v4602
        %4604 = vmatmul.f32.gmra.mxu0 %v4281
        %v4605 = vpop.f32.mrf.mxu0
        %v4606 = vadd.f32 0.0, %v4605
        %4607 = vmatmul.f32.gmra.mxu0 %v4282
        %v4608 = vpop.f32.mrf.mxu0
        %v4609 = vadd.f32 0.0, %v4608
        %4610 = vmatmul.f32.gmra.mxu0 %v4283
        %v4611 = vpop.f32.mrf.mxu0
        %v4612 = vadd.f32 0.0, %v4611
        %4613 = vmatmul.f32.gmra.mxu0 %v4284
        %v4614 = vpop.f32.mrf.mxu0
        %v4615 = vadd.f32 0.0, %v4614
        %4616 = vmatmul.f32.gmra.mxu0 %v4285
        %v4617 = vpop.f32.mrf.mxu0
        %v4618 = vadd.f32 0.0, %v4617
        %4619 = vmatmul.f32.gmra.mxu0 %v4286
        %v4620 = vpop.f32.mrf.mxu0
        %v4621 = vadd.f32 0.0, %v4620
        %4622 = vmatmul.f32.gmra.mxu0 %v4287
        %v4623 = vpop.f32.mrf.mxu0
        %v4624 = vadd.f32 0.0, %v4623
        %4625 = vdwg.mxu0
        %4626 = vmatpush.msra.mxu0 0.0
        %4627 = vmatpush.msra.mxu0 0.0
        %4628 = vmatpush.msra.mxu0 0.0
        %4629 = vmatpush.msra.mxu0 0.0
        %4630 = vmatpush.msra.mxu0 0.0
        %4631 = vmatpush.msra.mxu0 0.0
        %4632 = vmatpush.msra.mxu0 0.0
        %4633 = vmatpush.msra.mxu0 0.0
        %4634 = vmatpush.msra.mxu0 %v4580
        %4635 = vmatpush.msra.mxu0 %v4579
        %4636 = vmatpush.msra.mxu0 %v4578
        %4637 = vmatpush.msra.mxu0 %v4577
        %4638 = vmatpush.msra.mxu0 %v4576
        %4639 = vmatpush.msra.mxu0 %v4575
        %4640 = vmatpush.msra.mxu0 %v4574
        %4641 = vmatpush.msra.mxu0 %v4573
        %4642 = vmatmul.f32.gmra.mxu0 %v4314
        %v4643 = vpop.f32.mrf.mxu0
        %4644 = vmatmul.f32.gmra.mxu0 %v4317
        %v4645 = vpop.f32.mrf.mxu0
        %4646 = vmatmul.f32.gmra.mxu0 %v4320
        %v4647 = vpop.f32.mrf.mxu0
        %v4648 = vadd.f32 %v4603, %v4647
        %4649 = vmatmul.f32.gmra.mxu0 %v4323
        %v4650 = vpop.f32.mrf.mxu0
        %v4651 = vadd.f32 %v4606, %v4650
        %4652 = vmatmul.f32.gmra.mxu0 %v4326
        %v4653 = vpop.f32.mrf.mxu0
        %v4654 = vadd.f32 %v4609, %v4653
        %4655 = vmatmul.f32.gmra.mxu0 %v4329
        %v4656 = vpop.f32.mrf.mxu0
        %v4657 = vadd.f32 %v4612, %v4656
        %4658 = vmatmul.f32.gmra.mxu0 %v4332
        %v4659 = vpop.f32.mrf.mxu0
        %v4660 = vadd.f32 %v4615, %v4659
        %4661 = vmatmul.f32.gmra.mxu0 %v4335
        %v4662 = vpop.f32.mrf.mxu0
        %v4663 = vadd.f32 %v4618, %v4662
        %4664 = vmatmul.f32.gmra.mxu0 %v4338
        %v4665 = vpop.f32.mrf.mxu0
        %v4666 = vadd.f32 %v4621, %v4665
        %4667 = vmatmul.f32.gmra.mxu0 %v4341
        %v4668 = vpop.f32.mrf.mxu0
        %v4669 = vadd.f32 %v4624, %v4668
        %4670 = vdwg.mxu0
        %v4671 = vadd.f32 %v4548, %v4648
        %v4672 = vadd.f32 %v4549, %v4651
        %v4673 = vadd.f32 %v4550, %v4654
        %v4674 = vadd.f32 %v4551, %v4657
        %v4675 = vadd.f32 %v4552, %v4660
        %v4676 = vadd.f32 %v4553, %v4663
        %v4677 = vadd.f32 %v4554, %v4666
        %v4678 = vadd.f32 %v4555, %v4669
        %v4679 = vmul.f32 %v4671, 0.2
        %v4680 = vmul.f32 %v4672, 0.2
        %v4681 = vmul.f32 %v4673, 0.2
        %v4682 = vmul.f32 %v4674, 0.2
        %v4683 = vmul.f32 %v4675, 0.2
        %v4684 = vmul.f32 %v4676, 0.2
        %v4685 = vmul.f32 %v4677, 0.2
        %v4686 = vmul.f32 %v4678, 0.2
        %v4687 = vmax.f32 %v4671, %v4679
        %v4688 = vmax.f32 %v4672, %v4680
        %v4689 = vmax.f32 %v4673, %v4681
        %v4690 = vmax.f32 %v4674, %v4682
        %v4691 = vmax.f32 %v4675, %v4683
        %v4692 = vmax.f32 %v4676, %v4684
        %v4693 = vmax.f32 %v4677, %v4685
        %v4694 = vmax.f32 %v4678, %v4686
        %4695 = vst.msk [vmem:[%s240 + $0x1] sm:$0xff] %vm210, %v4687
        %4696 = vst.msk [vmem:[%s240 + $0x11] sm:$0xff] %vm210, %v4688
        %4697 = vst.msk [vmem:[%s240 + $0x21] sm:$0xff] %vm210, %v4689
        %4698 = vst.msk [vmem:[%s240 + $0x31] sm:$0xff] %vm210, %v4690
        %4699 = vst.msk [vmem:[%s240 + $0x41] sm:$0xff] %vm210, %v4691
        %4700 = vst.msk [vmem:[%s240 + $0x51] sm:$0xff] %vm210, %v4692
        %4701 = vst.msk [vmem:[%s240 + $0x61] sm:$0xff] %vm210, %v4693
        %4702 = vst.msk [vmem:[%s240 + $0x71] sm:$0xff] %vm210, %v4694
        %v4703 = vld [vmem:[#allocation2] sm:$0xff]
        %v4704 = vld [vmem:[#allocation2 + $0x10] sm:$0xff]
        %v4705 = vld [vmem:[#allocation2 + $0x20] sm:$0xff]
        %v4706 = vld [vmem:[#allocation2 + $0x30] sm:$0xff]
        %v4707 = vld [vmem:[#allocation2 + $0x40] sm:$0xff]
        %v4708 = vld [vmem:[#allocation2 + $0x50] sm:$0xff]
        %v4709 = vld [vmem:[#allocation2 + $0x60] sm:$0xff]
        %v4710 = vld [vmem:[#allocation2 + $0x70] sm:$0xff]
        %v4711 = vld [vmem:[#allocation2 + $0x80] sm:$0xff]
        %v4712 = vld [vmem:[#allocation2 + $0x90] sm:$0xff]
        %v4713 = vld [vmem:[#allocation2 + $0x1] sm:$0xff]
        %v4714 = vld [vmem:[#allocation2 + $0x11] sm:$0xff]
        %v4715 = vld [vmem:[#allocation2 + $0x21] sm:$0xff]
        %v4716 = vld [vmem:[#allocation2 + $0x31] sm:$0xff]
        %v4717 = vld [vmem:[#allocation2 + $0x41] sm:$0xff]
        %v4718 = vld [vmem:[#allocation2 + $0x51] sm:$0xff]
        %v4719 = vld [vmem:[#allocation2 + $0x61] sm:$0xff]
        %v4720 = vld [vmem:[#allocation2 + $0x71] sm:$0xff]
        %v4721 = vld [vmem:[#allocation2 + $0x81] sm:$0xff]
        %v4722 = vld [vmem:[#allocation2 + $0x91] sm:$0xff]
        %v4723 = vld [vmem:[#allocation2 + $0x2] sm:$0xff]
        %v4724 = vld [vmem:[#allocation2 + $0x12] sm:$0xff]
        %v4725 = vld [vmem:[#allocation2 + $0x22] sm:$0xff]
        %v4726 = vld [vmem:[#allocation2 + $0x32] sm:$0xff]
        %v4727 = vld [vmem:[#allocation2 + $0x42] sm:$0xff]
        %v4728 = vld [vmem:[#allocation2 + $0x52] sm:$0xff]
        %v4729 = vld [vmem:[#allocation2 + $0x62] sm:$0xff]
        %v4730 = vld [vmem:[#allocation2 + $0x72] sm:$0xff]
        %v4731 = vld [vmem:[#allocation2 + $0x82] sm:$0xff]
        %v4732 = vld [vmem:[#allocation2 + $0x92] sm:$0xff]
        %4743 = vrot.lane.b32.xlu0 %v4713, 64
        %v4744 = vpop.permute.xlu0 %4743
        %4745 = vrot.lane.b32.xlu0 %v4714, 64
        %v4746 = vpop.permute.xlu0 %4745
        %4747 = vrot.lane.b32.xlu0 %v4715, 64
        %v4748 = vpop.permute.xlu0 %4747
        %4749 = vrot.lane.b32.xlu0 %v4716, 64
        %v4750 = vpop.permute.xlu0 %4749
        %4751 = vrot.lane.b32.xlu0 %v4717, 64
        %v4752 = vpop.permute.xlu0 %4751
        %4753 = vrot.lane.b32.xlu0 %v4718, 64
        %v4754 = vpop.permute.xlu0 %4753
        %4755 = vrot.lane.b32.xlu0 %v4719, 64
        %v4756 = vpop.permute.xlu0 %4755
        %4757 = vrot.lane.b32.xlu0 %v4720, 64
        %v4758 = vpop.permute.xlu0 %4757
        %4759 = vrot.lane.b32.xlu0 %v4721, 64
        %v4760 = vpop.permute.xlu0 %4759
        %4761 = vrot.lane.b32.xlu0 %v4722, 64
        %v4762 = vpop.permute.xlu0 %4761
        %v4773 = vsel %vm210, %v4703, %v4744
        %v4774 = vsel %vm210, %v4704, %v4746
        %v4775 = vsel %vm210, %v4705, %v4748
        %v4776 = vsel %vm210, %v4706, %v4750
        %v4777 = vsel %vm210, %v4707, %v4752
        %v4778 = vsel %vm210, %v4708, %v4754
        %v4779 = vsel %vm210, %v4709, %v4756
        %v4780 = vsel %vm210, %v4710, %v4758
        %v4781 = vsel %vm210, %v4711, %v4760
        %v4782 = vsel %vm210, %v4712, %v4762
        %s4783 = scalar_lea.vmem [#allocation5], 5184
        %v4784 = vld [vmem:[%s4783] sm:$0xff]
        %v4785 = vld [vmem:[%s4783 + $0x8] sm:$0xff]
        %v4786 = vld [vmem:[%s4783 + $0x10] sm:$0xff]
        %v4787 = vld [vmem:[%s4783 + $0x18] sm:$0xff]
        %v4788 = vld [vmem:[%s4783 + $0x20] sm:$0xff]
        %v4789 = vld [vmem:[%s4783 + $0x28] sm:$0xff]
        %v4790 = vld [vmem:[%s4783 + $0x30] sm:$0xff]
        %v4791 = vld [vmem:[%s4783 + $0x38] sm:$0xff]
        %v4792 = vld [vmem:[%s4783 + $0x40] sm:$0xff]
        %v4793 = vld [vmem:[%s4783 + $0x48] sm:$0xff]
        %v4794 = vld [vmem:[%s4783 + $0x50] sm:$0xff]
        %v4795 = vld [vmem:[%s4783 + $0x58] sm:$0xff]
        %v4796 = vld [vmem:[%s4783 + $0x60] sm:$0xff]
        %v4797 = vld [vmem:[%s4783 + $0x68] sm:$0xff]
        %v4798 = vld [vmem:[%s4783 + $0x70] sm:$0xff]
        %v4799 = vld [vmem:[%s4783 + $0x78] sm:$0xff]
        %v4800 = vld [vmem:[%s4783 + $0x80] sm:$0xff]
        %v4801 = vld [vmem:[%s4783 + $0x88] sm:$0xff]
        %v4802 = vld [vmem:[%s4783 + $0x90] sm:$0xff]
        %v4803 = vld [vmem:[%s4783 + $0x98] sm:$0xff]
        %v4804 = vld [vmem:[%s4783 + $0xa0] sm:$0xff]
        %v4805 = vld [vmem:[%s4783 + $0xa8] sm:$0xff]
        %v4806 = vld [vmem:[%s4783 + $0xb0] sm:$0xff]
        %v4807 = vld [vmem:[%s4783 + $0xb8] sm:$0xff]
        %v4809 = vsel %vm210, %v4723, 0
        %v4812 = vsel %vm210, %v4724, 0
        %v4815 = vsel %vm210, %v4725, 0
        %v4818 = vsel %vm210, %v4726, 0
        %v4821 = vsel %vm210, %v4727, 0
        %v4824 = vsel %vm210, %v4728, 0
        %v4827 = vsel %vm210, %v4729, 0
        %v4830 = vsel %vm210, %v4730, 0
        %v4833 = vsel %vm210, %v4731, 0
        %v4836 = vsel %vm210, %v4732, 0
        %4838 = vmatpush.msra.mxu0 %v4799
        %4839 = vmatpush.msra.mxu0 %v4798
        %4840 = vmatpush.msra.mxu0 %v4797
        %4841 = vmatpush.msra.mxu0 %v4796
        %4842 = vmatpush.msra.mxu0 %v4795
        %4843 = vmatpush.msra.mxu0 %v4794
        %4844 = vmatpush.msra.mxu0 %v4793
        %4845 = vmatpush.msra.mxu0 %v4792
        %4846 = vmatpush.msra.mxu0 %v4791
        %4847 = vmatpush.msra.mxu0 %v4790
        %4848 = vmatpush.msra.mxu0 %v4789
        %4849 = vmatpush.msra.mxu0 %v4788
        %4850 = vmatpush.msra.mxu0 %v4787
        %4851 = vmatpush.msra.mxu0 %v4786
        %4852 = vmatpush.msra.mxu0 %v4785
        %4853 = vmatpush.msra.mxu0 %v4784
        %4854 = vmatmul.f32.gmra.mxu0 %v4773
        %v4855 = vpop.f32.mrf.mxu0
        %v4856 = vadd.f32 0.0, %v4855
        %4857 = vmatmul.f32.gmra.mxu0 %v4774
        %v4858 = vpop.f32.mrf.mxu0
        %v4859 = vadd.f32 0.0, %v4858
        %4860 = vmatmul.f32.gmra.mxu0 %v4775
        %v4861 = vpop.f32.mrf.mxu0
        %v4862 = vadd.f32 0.0, %v4861
        %4863 = vmatmul.f32.gmra.mxu0 %v4776
        %v4864 = vpop.f32.mrf.mxu0
        %v4865 = vadd.f32 0.0, %v4864
        %4866 = vmatmul.f32.gmra.mxu0 %v4777
        %v4867 = vpop.f32.mrf.mxu0
        %v4868 = vadd.f32 0.0, %v4867
        %4869 = vmatmul.f32.gmra.mxu0 %v4778
        %v4870 = vpop.f32.mrf.mxu0
        %v4871 = vadd.f32 0.0, %v4870
        %4872 = vmatmul.f32.gmra.mxu0 %v4779
        %v4873 = vpop.f32.mrf.mxu0
        %v4874 = vadd.f32 0.0, %v4873
        %4875 = vmatmul.f32.gmra.mxu0 %v4780
        %v4876 = vpop.f32.mrf.mxu0
        %v4877 = vadd.f32 0.0, %v4876
        %4878 = vmatmul.f32.gmra.mxu0 %v4781
        %v4879 = vpop.f32.mrf.mxu0
        %4880 = vmatmul.f32.gmra.mxu0 %v4782
        %v4881 = vpop.f32.mrf.mxu0
        %4882 = vdwg.mxu0
        %4883 = vmatpush.msra.mxu0 0.0
        %4884 = vmatpush.msra.mxu0 0.0
        %4885 = vmatpush.msra.mxu0 0.0
        %4886 = vmatpush.msra.mxu0 0.0
        %4887 = vmatpush.msra.mxu0 0.0
        %4888 = vmatpush.msra.mxu0 0.0
        %4889 = vmatpush.msra.mxu0 0.0
        %4890 = vmatpush.msra.mxu0 0.0
        %4891 = vmatpush.msra.mxu0 %v4807
        %4892 = vmatpush.msra.mxu0 %v4806
        %4893 = vmatpush.msra.mxu0 %v4805
        %4894 = vmatpush.msra.mxu0 %v4804
        %4895 = vmatpush.msra.mxu0 %v4803
        %4896 = vmatpush.msra.mxu0 %v4802
        %4897 = vmatpush.msra.mxu0 %v4801
        %4898 = vmatpush.msra.mxu0 %v4800
        %4899 = vmatmul.f32.gmra.mxu0 %v4809
        %v4900 = vpop.f32.mrf.mxu0
        %v4901 = vadd.f32 %v4856, %v4900
        %4902 = vmatmul.f32.gmra.mxu0 %v4812
        %v4903 = vpop.f32.mrf.mxu0
        %v4904 = vadd.f32 %v4859, %v4903
        %4905 = vmatmul.f32.gmra.mxu0 %v4815
        %v4906 = vpop.f32.mrf.mxu0
        %v4907 = vadd.f32 %v4862, %v4906
        %4908 = vmatmul.f32.gmra.mxu0 %v4818
        %v4909 = vpop.f32.mrf.mxu0
        %v4910 = vadd.f32 %v4865, %v4909
        %4911 = vmatmul.f32.gmra.mxu0 %v4821
        %v4912 = vpop.f32.mrf.mxu0
        %v4913 = vadd.f32 %v4868, %v4912
        %4914 = vmatmul.f32.gmra.mxu0 %v4824
        %v4915 = vpop.f32.mrf.mxu0
        %v4916 = vadd.f32 %v4871, %v4915
        %4917 = vmatmul.f32.gmra.mxu0 %v4827
        %v4918 = vpop.f32.mrf.mxu0
        %v4919 = vadd.f32 %v4874, %v4918
        %4920 = vmatmul.f32.gmra.mxu0 %v4830
        %v4921 = vpop.f32.mrf.mxu0
        %v4922 = vadd.f32 %v4877, %v4921
        %4923 = vmatmul.f32.gmra.mxu0 %v4833
        %v4924 = vpop.f32.mrf.mxu0
        %4925 = vmatmul.f32.gmra.mxu0 %v4836
        %v4926 = vpop.f32.mrf.mxu0
        %4927 = vdwg.mxu0
        %s4928 = scalar_lea.vmem [#allocation5], 5376
        %v4929 = vld [vmem:[%s4928] sm:$0xff]
        %v4930 = vld [vmem:[%s4928 + $0x8] sm:$0xff]
        %v4931 = vld [vmem:[%s4928 + $0x10] sm:$0xff]
        %v4932 = vld [vmem:[%s4928 + $0x18] sm:$0xff]
        %v4933 = vld [vmem:[%s4928 + $0x20] sm:$0xff]
        %v4934 = vld [vmem:[%s4928 + $0x28] sm:$0xff]
        %v4935 = vld [vmem:[%s4928 + $0x30] sm:$0xff]
        %v4936 = vld [vmem:[%s4928 + $0x38] sm:$0xff]
        %v4937 = vld [vmem:[%s4928 + $0x40] sm:$0xff]
        %v4938 = vld [vmem:[%s4928 + $0x48] sm:$0xff]
        %v4939 = vld [vmem:[%s4928 + $0x50] sm:$0xff]
        %v4940 = vld [vmem:[%s4928 + $0x58] sm:$0xff]
        %v4941 = vld [vmem:[%s4928 + $0x60] sm:$0xff]
        %v4942 = vld [vmem:[%s4928 + $0x68] sm:$0xff]
        %v4943 = vld [vmem:[%s4928 + $0x70] sm:$0xff]
        %v4944 = vld [vmem:[%s4928 + $0x78] sm:$0xff]
        %v4945 = vld [vmem:[%s4928 + $0x80] sm:$0xff]
        %v4946 = vld [vmem:[%s4928 + $0x88] sm:$0xff]
        %v4947 = vld [vmem:[%s4928 + $0x90] sm:$0xff]
        %v4948 = vld [vmem:[%s4928 + $0x98] sm:$0xff]
        %v4949 = vld [vmem:[%s4928 + $0xa0] sm:$0xff]
        %v4950 = vld [vmem:[%s4928 + $0xa8] sm:$0xff]
        %v4951 = vld [vmem:[%s4928 + $0xb0] sm:$0xff]
        %v4952 = vld [vmem:[%s4928 + $0xb8] sm:$0xff]
        %4953 = vmatpush.msra.mxu0 %v4944
        %4954 = vmatpush.msra.mxu0 %v4943
        %4955 = vmatpush.msra.mxu0 %v4942
        %4956 = vmatpush.msra.mxu0 %v4941
        %4957 = vmatpush.msra.mxu0 %v4940
        %4958 = vmatpush.msra.mxu0 %v4939
        %4959 = vmatpush.msra.mxu0 %v4938
        %4960 = vmatpush.msra.mxu0 %v4937
        %4961 = vmatpush.msra.mxu0 %v4936
        %4962 = vmatpush.msra.mxu0 %v4935
        %4963 = vmatpush.msra.mxu0 %v4934
        %4964 = vmatpush.msra.mxu0 %v4933
        %4965 = vmatpush.msra.mxu0 %v4932
        %4966 = vmatpush.msra.mxu0 %v4931
        %4967 = vmatpush.msra.mxu0 %v4930
        %4968 = vmatpush.msra.mxu0 %v4929
        %4969 = vmatmul.f32.gmra.mxu0 %v4773
        %v4970 = vpop.f32.mrf.mxu0
        %4971 = vmatmul.f32.gmra.mxu0 %v4774
        %v4972 = vpop.f32.mrf.mxu0
        %v4973 = vadd.f32 0.0, %v4972
        %4974 = vmatmul.f32.gmra.mxu0 %v4775
        %v4975 = vpop.f32.mrf.mxu0
        %v4976 = vadd.f32 0.0, %v4975
        %4977 = vmatmul.f32.gmra.mxu0 %v4776
        %v4978 = vpop.f32.mrf.mxu0
        %v4979 = vadd.f32 0.0, %v4978
        %4980 = vmatmul.f32.gmra.mxu0 %v4777
        %v4981 = vpop.f32.mrf.mxu0
        %v4982 = vadd.f32 0.0, %v4981
        %4983 = vmatmul.f32.gmra.mxu0 %v4778
        %v4984 = vpop.f32.mrf.mxu0
        %v4985 = vadd.f32 0.0, %v4984
        %4986 = vmatmul.f32.gmra.mxu0 %v4779
        %v4987 = vpop.f32.mrf.mxu0
        %v4988 = vadd.f32 0.0, %v4987
        %4989 = vmatmul.f32.gmra.mxu0 %v4780
        %v4990 = vpop.f32.mrf.mxu0
        %v4991 = vadd.f32 0.0, %v4990
        %4992 = vmatmul.f32.gmra.mxu0 %v4781
        %v4993 = vpop.f32.mrf.mxu0
        %v4994 = vadd.f32 0.0, %v4993
        %4995 = vmatmul.f32.gmra.mxu0 %v4782
        %v4996 = vpop.f32.mrf.mxu0
        %4997 = vdwg.mxu0
        %4998 = vmatpush.msra.mxu0 0.0
        %4999 = vmatpush.msra.mxu0 0.0
        %5000 = vmatpush.msra.mxu0 0.0
        %5001 = vmatpush.msra.mxu0 0.0
        %5002 = vmatpush.msra.mxu0 0.0
        %5003 = vmatpush.msra.mxu0 0.0
        %5004 = vmatpush.msra.mxu0 0.0
        %5005 = vmatpush.msra.mxu0 0.0
        %5006 = vmatpush.msra.mxu0 %v4952
        %5007 = vmatpush.msra.mxu0 %v4951
        %5008 = vmatpush.msra.mxu0 %v4950
        %5009 = vmatpush.msra.mxu0 %v4949
        %5010 = vmatpush.msra.mxu0 %v4948
        %5011 = vmatpush.msra.mxu0 %v4947
        %5012 = vmatpush.msra.mxu0 %v4946
        %5013 = vmatpush.msra.mxu0 %v4945
        %5014 = vmatmul.f32.gmra.mxu0 %v4809
        %v5015 = vpop.f32.mrf.mxu0
        %5016 = vmatmul.f32.gmra.mxu0 %v4812
        %v5017 = vpop.f32.mrf.mxu0
        %v5018 = vadd.f32 %v4973, %v5017
        %5019 = vmatmul.f32.gmra.mxu0 %v4815
        %v5020 = vpop.f32.mrf.mxu0
        %v5021 = vadd.f32 %v4976, %v5020
        %5022 = vmatmul.f32.gmra.mxu0 %v4818
        %v5023 = vpop.f32.mrf.mxu0
        %v5024 = vadd.f32 %v4979, %v5023
        %5025 = vmatmul.f32.gmra.mxu0 %v4821
        %v5026 = vpop.f32.mrf.mxu0
        %v5027 = vadd.f32 %v4982, %v5026
        %5028 = vmatmul.f32.gmra.mxu0 %v4824
        %v5029 = vpop.f32.mrf.mxu0
        %v5030 = vadd.f32 %v4985, %v5029
        %5031 = vmatmul.f32.gmra.mxu0 %v4827
        %v5032 = vpop.f32.mrf.mxu0
        %v5033 = vadd.f32 %v4988, %v5032
        %5034 = vmatmul.f32.gmra.mxu0 %v4830
        %v5035 = vpop.f32.mrf.mxu0
        %v5036 = vadd.f32 %v4991, %v5035
        %5037 = vmatmul.f32.gmra.mxu0 %v4833
        %v5038 = vpop.f32.mrf.mxu0
        %v5039 = vadd.f32 %v4994, %v5038
        %5040 = vmatmul.f32.gmra.mxu0 %v4836
        %v5041 = vpop.f32.mrf.mxu0
        %5042 = vdwg.mxu0
        %v5043 = vadd.f32 %v4901, %v5018
        %v5044 = vadd.f32 %v4904, %v5021
        %v5045 = vadd.f32 %v4907, %v5024
        %v5046 = vadd.f32 %v4910, %v5027
        %v5047 = vadd.f32 %v4913, %v5030
        %v5048 = vadd.f32 %v4916, %v5033
        %v5049 = vadd.f32 %v4919, %v5036
        %v5050 = vadd.f32 %v4922, %v5039
        %s5051 = scalar_lea.vmem [#allocation5], 5568
        %v5052 = vld [vmem:[%s5051] sm:$0xff]
        %v5053 = vld [vmem:[%s5051 + $0x8] sm:$0xff]
        %v5054 = vld [vmem:[%s5051 + $0x10] sm:$0xff]
        %v5055 = vld [vmem:[%s5051 + $0x18] sm:$0xff]
        %v5056 = vld [vmem:[%s5051 + $0x20] sm:$0xff]
        %v5057 = vld [vmem:[%s5051 + $0x28] sm:$0xff]
        %v5058 = vld [vmem:[%s5051 + $0x30] sm:$0xff]
        %v5059 = vld [vmem:[%s5051 + $0x38] sm:$0xff]
        %v5060 = vld [vmem:[%s5051 + $0x40] sm:$0xff]
        %v5061 = vld [vmem:[%s5051 + $0x48] sm:$0xff]
        %v5062 = vld [vmem:[%s5051 + $0x50] sm:$0xff]
        %v5063 = vld [vmem:[%s5051 + $0x58] sm:$0xff]
        %v5064 = vld [vmem:[%s5051 + $0x60] sm:$0xff]
        %v5065 = vld [vmem:[%s5051 + $0x68] sm:$0xff]
        %v5066 = vld [vmem:[%s5051 + $0x70] sm:$0xff]
        %v5067 = vld [vmem:[%s5051 + $0x78] sm:$0xff]
        %v5068 = vld [vmem:[%s5051 + $0x80] sm:$0xff]
        %v5069 = vld [vmem:[%s5051 + $0x88] sm:$0xff]
        %v5070 = vld [vmem:[%s5051 + $0x90] sm:$0xff]
        %v5071 = vld [vmem:[%s5051 + $0x98] sm:$0xff]
        %v5072 = vld [vmem:[%s5051 + $0xa0] sm:$0xff]
        %v5073 = vld [vmem:[%s5051 + $0xa8] sm:$0xff]
        %v5074 = vld [vmem:[%s5051 + $0xb0] sm:$0xff]
        %v5075 = vld [vmem:[%s5051 + $0xb8] sm:$0xff]
        %5076 = vmatpush.msra.mxu0 %v5067
        %5077 = vmatpush.msra.mxu0 %v5066
        %5078 = vmatpush.msra.mxu0 %v5065
        %5079 = vmatpush.msra.mxu0 %v5064
        %5080 = vmatpush.msra.mxu0 %v5063
        %5081 = vmatpush.msra.mxu0 %v5062
        %5082 = vmatpush.msra.mxu0 %v5061
        %5083 = vmatpush.msra.mxu0 %v5060
        %5084 = vmatpush.msra.mxu0 %v5059
        %5085 = vmatpush.msra.mxu0 %v5058
        %5086 = vmatpush.msra.mxu0 %v5057
        %5087 = vmatpush.msra.mxu0 %v5056
        %5088 = vmatpush.msra.mxu0 %v5055
        %5089 = vmatpush.msra.mxu0 %v5054
        %5090 = vmatpush.msra.mxu0 %v5053
        %5091 = vmatpush.msra.mxu0 %v5052
        %5092 = vmatmul.f32.gmra.mxu0 %v4773
        %v5093 = vpop.f32.mrf.mxu0
        %5094 = vmatmul.f32.gmra.mxu0 %v4774
        %v5095 = vpop.f32.mrf.mxu0
        %5096 = vmatmul.f32.gmra.mxu0 %v4775
        %v5097 = vpop.f32.mrf.mxu0
        %v5098 = vadd.f32 0.0, %v5097
        %5099 = vmatmul.f32.gmra.mxu0 %v4776
        %v5100 = vpop.f32.mrf.mxu0
        %v5101 = vadd.f32 0.0, %v5100
        %5102 = vmatmul.f32.gmra.mxu0 %v4777
        %v5103 = vpop.f32.mrf.mxu0
        %v5104 = vadd.f32 0.0, %v5103
        %5105 = vmatmul.f32.gmra.mxu0 %v4778
        %v5106 = vpop.f32.mrf.mxu0
        %v5107 = vadd.f32 0.0, %v5106
        %5108 = vmatmul.f32.gmra.mxu0 %v4779
        %v5109 = vpop.f32.mrf.mxu0
        %v5110 = vadd.f32 0.0, %v5109
        %5111 = vmatmul.f32.gmra.mxu0 %v4780
        %v5112 = vpop.f32.mrf.mxu0
        %v5113 = vadd.f32 0.0, %v5112
        %5114 = vmatmul.f32.gmra.mxu0 %v4781
        %v5115 = vpop.f32.mrf.mxu0
        %v5116 = vadd.f32 0.0, %v5115
        %5117 = vmatmul.f32.gmra.mxu0 %v4782
        %v5118 = vpop.f32.mrf.mxu0
        %v5119 = vadd.f32 0.0, %v5118
        %5120 = vdwg.mxu0
        %5121 = vmatpush.msra.mxu0 0.0
        %5122 = vmatpush.msra.mxu0 0.0
        %5123 = vmatpush.msra.mxu0 0.0
        %5124 = vmatpush.msra.mxu0 0.0
        %5125 = vmatpush.msra.mxu0 0.0
        %5126 = vmatpush.msra.mxu0 0.0
        %5127 = vmatpush.msra.mxu0 0.0
        %5128 = vmatpush.msra.mxu0 0.0
        %5129 = vmatpush.msra.mxu0 %v5075
        %5130 = vmatpush.msra.mxu0 %v5074
        %5131 = vmatpush.msra.mxu0 %v5073
        %5132 = vmatpush.msra.mxu0 %v5072
        %5133 = vmatpush.msra.mxu0 %v5071
        %5134 = vmatpush.msra.mxu0 %v5070
        %5135 = vmatpush.msra.mxu0 %v5069
        %5136 = vmatpush.msra.mxu0 %v5068
        %5137 = vmatmul.f32.gmra.mxu0 %v4809
        %v5138 = vpop.f32.mrf.mxu0
        %5139 = vmatmul.f32.gmra.mxu0 %v4812
        %v5140 = vpop.f32.mrf.mxu0
        %5141 = vmatmul.f32.gmra.mxu0 %v4815
        %v5142 = vpop.f32.mrf.mxu0
        %v5143 = vadd.f32 %v5098, %v5142
        %5144 = vmatmul.f32.gmra.mxu0 %v4818
        %v5145 = vpop.f32.mrf.mxu0
        %v5146 = vadd.f32 %v5101, %v5145
        %5147 = vmatmul.f32.gmra.mxu0 %v4821
        %v5148 = vpop.f32.mrf.mxu0
        %v5149 = vadd.f32 %v5104, %v5148
        %5150 = vmatmul.f32.gmra.mxu0 %v4824
        %v5151 = vpop.f32.mrf.mxu0
        %v5152 = vadd.f32 %v5107, %v5151
        %5153 = vmatmul.f32.gmra.mxu0 %v4827
        %v5154 = vpop.f32.mrf.mxu0
        %v5155 = vadd.f32 %v5110, %v5154
        %5156 = vmatmul.f32.gmra.mxu0 %v4830
        %v5157 = vpop.f32.mrf.mxu0
        %v5158 = vadd.f32 %v5113, %v5157
        %5159 = vmatmul.f32.gmra.mxu0 %v4833
        %v5160 = vpop.f32.mrf.mxu0
        %v5161 = vadd.f32 %v5116, %v5160
        %5162 = vmatmul.f32.gmra.mxu0 %v4836
        %v5163 = vpop.f32.mrf.mxu0
        %v5164 = vadd.f32 %v5119, %v5163
        %5165 = vdwg.mxu0
        %v5166 = vadd.f32 %v5043, %v5143
        %v5167 = vadd.f32 %v5044, %v5146
        %v5168 = vadd.f32 %v5045, %v5149
        %v5169 = vadd.f32 %v5046, %v5152
        %v5170 = vadd.f32 %v5047, %v5155
        %v5171 = vadd.f32 %v5048, %v5158
        %v5172 = vadd.f32 %v5049, %v5161
        %v5173 = vadd.f32 %v5050, %v5164
        %v5174 = vmul.f32 %v5166, 0.2
        %v5175 = vmul.f32 %v5167, 0.2
        %v5176 = vmul.f32 %v5168, 0.2
        %v5177 = vmul.f32 %v5169, 0.2
        %v5178 = vmul.f32 %v5170, 0.2
        %v5179 = vmul.f32 %v5171, 0.2
        %v5180 = vmul.f32 %v5172, 0.2
        %v5181 = vmul.f32 %v5173, 0.2
        %v5182 = vmax.f32 %v5166, %v5174
        %v5183 = vmax.f32 %v5167, %v5175
        %v5184 = vmax.f32 %v5168, %v5176
        %v5185 = vmax.f32 %v5169, %v5177
        %v5186 = vmax.f32 %v5170, %v5178
        %v5187 = vmax.f32 %v5171, %v5179
        %v5188 = vmax.f32 %v5172, %v5180
        %v5189 = vmax.f32 %v5173, %v5181
        %5190 = vst.msk [vmem:[%s240 + $0x1] sm:$0xff] %vm210, %v5182
        %5191 = vst.msk [vmem:[%s240 + $0x11] sm:$0xff] %vm210, %v5183
        %5192 = vst.msk [vmem:[%s240 + $0x21] sm:$0xff] %vm210, %v5184
        %5193 = vst.msk [vmem:[%s240 + $0x31] sm:$0xff] %vm210, %v5185
        %5194 = vst.msk [vmem:[%s240 + $0x41] sm:$0xff] %vm210, %v5186
        %5195 = vst.msk [vmem:[%s240 + $0x51] sm:$0xff] %vm210, %v5187
        %5196 = vst.msk [vmem:[%s240 + $0x61] sm:$0xff] %vm210, %v5188
        %5197 = vst.msk [vmem:[%s240 + $0x71] sm:$0xff] %vm210, %v5189
        %v5198 = vld [vmem:[#allocation2] sm:$0xff]
        %v5199 = vld [vmem:[#allocation2 + $0x10] sm:$0xff]
        %v5200 = vld [vmem:[#allocation2 + $0x20] sm:$0xff]
        %v5201 = vld [vmem:[#allocation2 + $0x30] sm:$0xff]
        %v5202 = vld [vmem:[#allocation2 + $0x40] sm:$0xff]
        %v5203 = vld [vmem:[#allocation2 + $0x50] sm:$0xff]
        %v5204 = vld [vmem:[#allocation2 + $0x60] sm:$0xff]
        %v5205 = vld [vmem:[#allocation2 + $0x70] sm:$0xff]
        %v5206 = vld [vmem:[#allocation2 + $0x80] sm:$0xff]
        %v5207 = vld [vmem:[#allocation2 + $0x90] sm:$0xff]
        %v5208 = vld [vmem:[#allocation2 + $0x1] sm:$0xff]
        %v5209 = vld [vmem:[#allocation2 + $0x11] sm:$0xff]
        %v5210 = vld [vmem:[#allocation2 + $0x21] sm:$0xff]
        %v5211 = vld [vmem:[#allocation2 + $0x31] sm:$0xff]
        %v5212 = vld [vmem:[#allocation2 + $0x41] sm:$0xff]
        %v5213 = vld [vmem:[#allocation2 + $0x51] sm:$0xff]
        %v5214 = vld [vmem:[#allocation2 + $0x61] sm:$0xff]
        %v5215 = vld [vmem:[#allocation2 + $0x71] sm:$0xff]
        %v5216 = vld [vmem:[#allocation2 + $0x81] sm:$0xff]
        %v5217 = vld [vmem:[#allocation2 + $0x91] sm:$0xff]
        %v5218 = vld [vmem:[#allocation2 + $0x2] sm:$0xff]
        %v5219 = vld [vmem:[#allocation2 + $0x12] sm:$0xff]
        %v5220 = vld [vmem:[#allocation2 + $0x22] sm:$0xff]
        %v5221 = vld [vmem:[#allocation2 + $0x32] sm:$0xff]
        %v5222 = vld [vmem:[#allocation2 + $0x42] sm:$0xff]
        %v5223 = vld [vmem:[#allocation2 + $0x52] sm:$0xff]
        %v5224 = vld [vmem:[#allocation2 + $0x62] sm:$0xff]
        %v5225 = vld [vmem:[#allocation2 + $0x72] sm:$0xff]
        %v5226 = vld [vmem:[#allocation2 + $0x82] sm:$0xff]
        %v5227 = vld [vmem:[#allocation2 + $0x92] sm:$0xff]
        %5238 = vrot.lane.b32.xlu0 %v5208, 64
        %v5239 = vpop.permute.xlu0 %5238
        %5240 = vrot.lane.b32.xlu0 %v5209, 64
        %v5241 = vpop.permute.xlu0 %5240
        %5242 = vrot.lane.b32.xlu0 %v5210, 64
        %v5243 = vpop.permute.xlu0 %5242
        %5244 = vrot.lane.b32.xlu0 %v5211, 64
        %v5245 = vpop.permute.xlu0 %5244
        %5246 = vrot.lane.b32.xlu0 %v5212, 64
        %v5247 = vpop.permute.xlu0 %5246
        %5248 = vrot.lane.b32.xlu0 %v5213, 64
        %v5249 = vpop.permute.xlu0 %5248
        %5250 = vrot.lane.b32.xlu0 %v5214, 64
        %v5251 = vpop.permute.xlu0 %5250
        %5252 = vrot.lane.b32.xlu0 %v5215, 64
        %v5253 = vpop.permute.xlu0 %5252
        %5254 = vrot.lane.b32.xlu0 %v5216, 64
        %v5255 = vpop.permute.xlu0 %5254
        %5256 = vrot.lane.b32.xlu0 %v5217, 64
        %v5257 = vpop.permute.xlu0 %5256
        %v5268 = vsel %vm210, %v5198, %v5239
        %v5269 = vsel %vm210, %v5199, %v5241
        %v5270 = vsel %vm210, %v5200, %v5243
        %v5271 = vsel %vm210, %v5201, %v5245
        %v5272 = vsel %vm210, %v5202, %v5247
        %v5273 = vsel %vm210, %v5203, %v5249
        %v5274 = vsel %vm210, %v5204, %v5251
        %v5275 = vsel %vm210, %v5205, %v5253
        %v5276 = vsel %vm210, %v5206, %v5255
        %v5277 = vsel %vm210, %v5207, %v5257
        %s5278 = scalar_lea.vmem %s2, 192
        %v5279 = vld [vmem:[%s5278] sm:$0xff]
        %v5280 = vld [vmem:[%s5278 + $0x8] sm:$0xff]
        %v5281 = vld [vmem:[%s5278 + $0x10] sm:$0xff]
        %v5282 = vld [vmem:[%s5278 + $0x18] sm:$0xff]
        %v5283 = vld [vmem:[%s5278 + $0x20] sm:$0xff]
        %v5284 = vld [vmem:[%s5278 + $0x28] sm:$0xff]
        %v5285 = vld [vmem:[%s5278 + $0x30] sm:$0xff]
        %v5286 = vld [vmem:[%s5278 + $0x38] sm:$0xff]
        %v5287 = vld [vmem:[%s5278 + $0x40] sm:$0xff]
        %v5288 = vld [vmem:[%s5278 + $0x48] sm:$0xff]
        %v5289 = vld [vmem:[%s5278 + $0x50] sm:$0xff]
        %v5290 = vld [vmem:[%s5278 + $0x58] sm:$0xff]
        %v5291 = vld [vmem:[%s5278 + $0x60] sm:$0xff]
        %v5292 = vld [vmem:[%s5278 + $0x68] sm:$0xff]
        %v5293 = vld [vmem:[%s5278 + $0x70] sm:$0xff]
        %v5294 = vld [vmem:[%s5278 + $0x78] sm:$0xff]
        %v5295 = vld [vmem:[%s5278 + $0x80] sm:$0xff]
        %v5296 = vld [vmem:[%s5278 + $0x88] sm:$0xff]
        %v5297 = vld [vmem:[%s5278 + $0x90] sm:$0xff]
        %v5298 = vld [vmem:[%s5278 + $0x98] sm:$0xff]
        %v5299 = vld [vmem:[%s5278 + $0xa0] sm:$0xff]
        %v5300 = vld [vmem:[%s5278 + $0xa8] sm:$0xff]
        %v5301 = vld [vmem:[%s5278 + $0xb0] sm:$0xff]
        %v5302 = vld [vmem:[%s5278 + $0xb8] sm:$0xff]
        %v5304 = vsel %vm210, %v5218, 0
        %v5307 = vsel %vm210, %v5219, 0
        %v5310 = vsel %vm210, %v5220, 0
        %v5313 = vsel %vm210, %v5221, 0
        %v5316 = vsel %vm210, %v5222, 0
        %v5319 = vsel %vm210, %v5223, 0
        %v5322 = vsel %vm210, %v5224, 0
        %v5325 = vsel %vm210, %v5225, 0
        %v5328 = vsel %vm210, %v5226, 0
        %v5331 = vsel %vm210, %v5227, 0
        %5333 = vmatpush.msra.mxu0 %v5294
        %5334 = vmatpush.msra.mxu0 %v5293
        %5335 = vmatpush.msra.mxu0 %v5292
        %5336 = vmatpush.msra.mxu0 %v5291
        %5337 = vmatpush.msra.mxu0 %v5290
        %5338 = vmatpush.msra.mxu0 %v5289
        %5339 = vmatpush.msra.mxu0 %v5288
        %5340 = vmatpush.msra.mxu0 %v5287
        %5341 = vmatpush.msra.mxu0 %v5286
        %5342 = vmatpush.msra.mxu0 %v5285
        %5343 = vmatpush.msra.mxu0 %v5284
        %5344 = vmatpush.msra.mxu0 %v5283
        %5345 = vmatpush.msra.mxu0 %v5282
        %5346 = vmatpush.msra.mxu0 %v5281
        %5347 = vmatpush.msra.mxu0 %v5280
        %5348 = vmatpush.msra.mxu0 %v5279
        %5349 = vmatmul.f32.gmra.mxu0 %v5268
        %v5350 = vpop.f32.mrf.mxu0
        %5351 = vmatmul.f32.gmra.mxu0 %v5269
        %v5352 = vpop.f32.mrf.mxu0
        %v5353 = vadd.f32 0.0, %v5352
        %5354 = vmatmul.f32.gmra.mxu0 %v5270
        %v5355 = vpop.f32.mrf.mxu0
        %v5356 = vadd.f32 0.0, %v5355
        %5357 = vmatmul.f32.gmra.mxu0 %v5271
        %v5358 = vpop.f32.mrf.mxu0
        %v5359 = vadd.f32 0.0, %v5358
        %5360 = vmatmul.f32.gmra.mxu0 %v5272
        %v5361 = vpop.f32.mrf.mxu0
        %v5362 = vadd.f32 0.0, %v5361
        %5363 = vmatmul.f32.gmra.mxu0 %v5273
        %v5364 = vpop.f32.mrf.mxu0
        %v5365 = vadd.f32 0.0, %v5364
        %5366 = vmatmul.f32.gmra.mxu0 %v5274
        %v5367 = vpop.f32.mrf.mxu0
        %v5368 = vadd.f32 0.0, %v5367
        %5369 = vmatmul.f32.gmra.mxu0 %v5275
        %v5370 = vpop.f32.mrf.mxu0
        %v5371 = vadd.f32 0.0, %v5370
        %5372 = vmatmul.f32.gmra.mxu0 %v5276
        %v5373 = vpop.f32.mrf.mxu0
        %v5374 = vadd.f32 0.0, %v5373
        %5375 = vmatmul.f32.gmra.mxu0 %v5277
        %v5376 = vpop.f32.mrf.mxu0
        %5377 = vdwg.mxu0
        %5378 = vmatpush.msra.mxu0 0.0
        %5379 = vmatpush.msra.mxu0 0.0
        %5380 = vmatpush.msra.mxu0 0.0
        %5381 = vmatpush.msra.mxu0 0.0
        %5382 = vmatpush.msra.mxu0 0.0
        %5383 = vmatpush.msra.mxu0 0.0
        %5384 = vmatpush.msra.mxu0 0.0
        %5385 = vmatpush.msra.mxu0 0.0
        %5386 = vmatpush.msra.mxu0 %v5302
        %5387 = vmatpush.msra.mxu0 %v5301
        %5388 = vmatpush.msra.mxu0 %v5300
        %5389 = vmatpush.msra.mxu0 %v5299
        %5390 = vmatpush.msra.mxu0 %v5298
        %5391 = vmatpush.msra.mxu0 %v5297
        %5392 = vmatpush.msra.mxu0 %v5296
        %5393 = vmatpush.msra.mxu0 %v5295
        %5394 = vmatmul.f32.gmra.mxu0 %v5304
        %v5395 = vpop.f32.mrf.mxu0
        %5396 = vmatmul.f32.gmra.mxu0 %v5307
        %v5397 = vpop.f32.mrf.mxu0
        %v5398 = vadd.f32 %v5353, %v5397
        %5399 = vmatmul.f32.gmra.mxu0 %v5310
        %v5400 = vpop.f32.mrf.mxu0
        %v5401 = vadd.f32 %v5356, %v5400
        %5402 = vmatmul.f32.gmra.mxu0 %v5313
        %v5403 = vpop.f32.mrf.mxu0
        %v5404 = vadd.f32 %v5359, %v5403
        %5405 = vmatmul.f32.gmra.mxu0 %v5316
        %v5406 = vpop.f32.mrf.mxu0
        %v5407 = vadd.f32 %v5362, %v5406
        %5408 = vmatmul.f32.gmra.mxu0 %v5319
        %v5409 = vpop.f32.mrf.mxu0
        %v5410 = vadd.f32 %v5365, %v5409
        %5411 = vmatmul.f32.gmra.mxu0 %v5322
        %v5412 = vpop.f32.mrf.mxu0
        %v5413 = vadd.f32 %v5368, %v5412
        %5414 = vmatmul.f32.gmra.mxu0 %v5325
        %v5415 = vpop.f32.mrf.mxu0
        %v5416 = vadd.f32 %v5371, %v5415
        %5417 = vmatmul.f32.gmra.mxu0 %v5328
        %v5418 = vpop.f32.mrf.mxu0
        %v5419 = vadd.f32 %v5374, %v5418
        %5420 = vmatmul.f32.gmra.mxu0 %v5331
        %v5421 = vpop.f32.mrf.mxu0
        %5422 = vdwg.mxu0
        %s5423 = scalar_lea.vmem %s2, 576
        %v5424 = vld [vmem:[%s5423] sm:$0xff]
        %v5425 = vld [vmem:[%s5423 + $0x8] sm:$0xff]
        %v5426 = vld [vmem:[%s5423 + $0x10] sm:$0xff]
        %v5427 = vld [vmem:[%s5423 + $0x18] sm:$0xff]
        %v5428 = vld [vmem:[%s5423 + $0x20] sm:$0xff]
        %v5429 = vld [vmem:[%s5423 + $0x28] sm:$0xff]
        %v5430 = vld [vmem:[%s5423 + $0x30] sm:$0xff]
        %v5431 = vld [vmem:[%s5423 + $0x38] sm:$0xff]
        %v5432 = vld [vmem:[%s5423 + $0x40] sm:$0xff]
        %v5433 = vld [vmem:[%s5423 + $0x48] sm:$0xff]
        %v5434 = vld [vmem:[%s5423 + $0x50] sm:$0xff]
        %v5435 = vld [vmem:[%s5423 + $0x58] sm:$0xff]
        %v5436 = vld [vmem:[%s5423 + $0x60] sm:$0xff]
        %v5437 = vld [vmem:[%s5423 + $0x68] sm:$0xff]
        %v5438 = vld [vmem:[%s5423 + $0x70] sm:$0xff]
        %v5439 = vld [vmem:[%s5423 + $0x78] sm:$0xff]
        %v5440 = vld [vmem:[%s5423 + $0x80] sm:$0xff]
        %v5441 = vld [vmem:[%s5423 + $0x88] sm:$0xff]
        %v5442 = vld [vmem:[%s5423 + $0x90] sm:$0xff]
        %v5443 = vld [vmem:[%s5423 + $0x98] sm:$0xff]
        %v5444 = vld [vmem:[%s5423 + $0xa0] sm:$0xff]
        %v5445 = vld [vmem:[%s5423 + $0xa8] sm:$0xff]
        %v5446 = vld [vmem:[%s5423 + $0xb0] sm:$0xff]
        %v5447 = vld [vmem:[%s5423 + $0xb8] sm:$0xff]
        %5448 = vmatpush.msra.mxu0 %v5439
        %5449 = vmatpush.msra.mxu0 %v5438
        %5450 = vmatpush.msra.mxu0 %v5437
        %5451 = vmatpush.msra.mxu0 %v5436
        %5452 = vmatpush.msra.mxu0 %v5435
        %5453 = vmatpush.msra.mxu0 %v5434
        %5454 = vmatpush.msra.mxu0 %v5433
        %5455 = vmatpush.msra.mxu0 %v5432
        %5456 = vmatpush.msra.mxu0 %v5431
        %5457 = vmatpush.msra.mxu0 %v5430
        %5458 = vmatpush.msra.mxu0 %v5429
        %5459 = vmatpush.msra.mxu0 %v5428
        %5460 = vmatpush.msra.mxu0 %v5427
        %5461 = vmatpush.msra.mxu0 %v5426
        %5462 = vmatpush.msra.mxu0 %v5425
        %5463 = vmatpush.msra.mxu0 %v5424
        %5464 = vmatmul.f32.gmra.mxu0 %v5268
        %v5465 = vpop.f32.mrf.mxu0
        %v5466 = vadd.f32 0.0, %v5465
        %5467 = vmatmul.f32.gmra.mxu0 %v5269
        %v5468 = vpop.f32.mrf.mxu0
        %v5469 = vadd.f32 0.0, %v5468
        %5470 = vmatmul.f32.gmra.mxu0 %v5270
        %v5471 = vpop.f32.mrf.mxu0
        %v5472 = vadd.f32 0.0, %v5471
        %5473 = vmatmul.f32.gmra.mxu0 %v5271
        %v5474 = vpop.f32.mrf.mxu0
        %v5475 = vadd.f32 0.0, %v5474
        %5476 = vmatmul.f32.gmra.mxu0 %v5272
        %v5477 = vpop.f32.mrf.mxu0
        %v5478 = vadd.f32 0.0, %v5477
        %5479 = vmatmul.f32.gmra.mxu0 %v5273
        %v5480 = vpop.f32.mrf.mxu0
        %v5481 = vadd.f32 0.0, %v5480
        %5482 = vmatmul.f32.gmra.mxu0 %v5274
        %v5483 = vpop.f32.mrf.mxu0
        %v5484 = vadd.f32 0.0, %v5483
        %5485 = vmatmul.f32.gmra.mxu0 %v5275
        %v5486 = vpop.f32.mrf.mxu0
        %v5487 = vadd.f32 0.0, %v5486
        %5488 = vmatmul.f32.gmra.mxu0 %v5276
        %v5489 = vpop.f32.mrf.mxu0
        %5490 = vmatmul.f32.gmra.mxu0 %v5277
        %v5491 = vpop.f32.mrf.mxu0
        %5492 = vdwg.mxu0
        %5493 = vmatpush.msra.mxu0 0.0
        %5494 = vmatpush.msra.mxu0 0.0
        %5495 = vmatpush.msra.mxu0 0.0
        %5496 = vmatpush.msra.mxu0 0.0
        %5497 = vmatpush.msra.mxu0 0.0
        %5498 = vmatpush.msra.mxu0 0.0
        %5499 = vmatpush.msra.mxu0 0.0
        %5500 = vmatpush.msra.mxu0 0.0
        %5501 = vmatpush.msra.mxu0 %v5447
        %5502 = vmatpush.msra.mxu0 %v5446
        %5503 = vmatpush.msra.mxu0 %v5445
        %5504 = vmatpush.msra.mxu0 %v5444
        %5505 = vmatpush.msra.mxu0 %v5443
        %5506 = vmatpush.msra.mxu0 %v5442
        %5507 = vmatpush.msra.mxu0 %v5441
        %5508 = vmatpush.msra.mxu0 %v5440
        %5509 = vmatmul.f32.gmra.mxu0 %v5304
        %v5510 = vpop.f32.mrf.mxu0
        %v5511 = vadd.f32 %v5466, %v5510
        %5512 = vmatmul.f32.gmra.mxu0 %v5307
        %v5513 = vpop.f32.mrf.mxu0
        %v5514 = vadd.f32 %v5469, %v5513
        %5515 = vmatmul.f32.gmra.mxu0 %v5310
        %v5516 = vpop.f32.mrf.mxu0
        %v5517 = vadd.f32 %v5472, %v5516
        %5518 = vmatmul.f32.gmra.mxu0 %v5313
        %v5519 = vpop.f32.mrf.mxu0
        %v5520 = vadd.f32 %v5475, %v5519
        %5521 = vmatmul.f32.gmra.mxu0 %v5316
        %v5522 = vpop.f32.mrf.mxu0
        %v5523 = vadd.f32 %v5478, %v5522
        %5524 = vmatmul.f32.gmra.mxu0 %v5319
        %v5525 = vpop.f32.mrf.mxu0
        %v5526 = vadd.f32 %v5481, %v5525
        %5527 = vmatmul.f32.gmra.mxu0 %v5322
        %v5528 = vpop.f32.mrf.mxu0
        %v5529 = vadd.f32 %v5484, %v5528
        %5530 = vmatmul.f32.gmra.mxu0 %v5325
        %v5531 = vpop.f32.mrf.mxu0
        %v5532 = vadd.f32 %v5487, %v5531
        %5533 = vmatmul.f32.gmra.mxu0 %v5328
        %v5534 = vpop.f32.mrf.mxu0
        %5535 = vmatmul.f32.gmra.mxu0 %v5331
        %v5536 = vpop.f32.mrf.mxu0
        %5537 = vdwg.mxu0
        %v5538 = vadd.f32 %v5398, %v5511
        %v5539 = vadd.f32 %v5401, %v5514
        %v5540 = vadd.f32 %v5404, %v5517
        %v5541 = vadd.f32 %v5407, %v5520
        %v5542 = vadd.f32 %v5410, %v5523
        %v5543 = vadd.f32 %v5413, %v5526
        %v5544 = vadd.f32 %v5416, %v5529
        %v5545 = vadd.f32 %v5419, %v5532
        %v5546 = vmul.f32 %v5538, 0.2
        %v5547 = vmul.f32 %v5539, 0.2
        %v5548 = vmul.f32 %v5540, 0.2
        %v5549 = vmul.f32 %v5541, 0.2
        %v5550 = vmul.f32 %v5542, 0.2
        %v5551 = vmul.f32 %v5543, 0.2
        %v5552 = vmul.f32 %v5544, 0.2
        %v5553 = vmul.f32 %v5545, 0.2
        %v5554 = vmax.f32 %v5538, %v5546
        %v5555 = vmax.f32 %v5539, %v5547
        %v5556 = vmax.f32 %v5540, %v5548
        %v5557 = vmax.f32 %v5541, %v5549
        %v5558 = vmax.f32 %v5542, %v5550
        %v5559 = vmax.f32 %v5543, %v5551
        %v5560 = vmax.f32 %v5544, %v5552
        %v5561 = vmax.f32 %v5545, %v5553
        %v5562 = vld [vmem:[%s2] sm:$0xff]
        %v5563 = vld [vmem:[%s2 + $0x8] sm:$0xff]
        %v5564 = vld [vmem:[%s2 + $0x10] sm:$0xff]
        %v5565 = vld [vmem:[%s2 + $0x18] sm:$0xff]
        %v5566 = vld [vmem:[%s2 + $0x20] sm:$0xff]
        %v5567 = vld [vmem:[%s2 + $0x28] sm:$0xff]
        %v5568 = vld [vmem:[%s2 + $0x30] sm:$0xff]
        %v5569 = vld [vmem:[%s2 + $0x38] sm:$0xff]
        %v5570 = vld [vmem:[%s2 + $0x40] sm:$0xff]
        %v5571 = vld [vmem:[%s2 + $0x48] sm:$0xff]
        %v5572 = vld [vmem:[%s2 + $0x50] sm:$0xff]
        %v5573 = vld [vmem:[%s2 + $0x58] sm:$0xff]
        %v5574 = vld [vmem:[%s2 + $0x60] sm:$0xff]
        %v5575 = vld [vmem:[%s2 + $0x68] sm:$0xff]
        %v5576 = vld [vmem:[%s2 + $0x70] sm:$0xff]
        %v5577 = vld [vmem:[%s2 + $0x78] sm:$0xff]
        %v5578 = vld [vmem:[%s2 + $0x80] sm:$0xff]
        %v5579 = vld [vmem:[%s2 + $0x88] sm:$0xff]
        %v5580 = vld [vmem:[%s2 + $0x90] sm:$0xff]
        %v5581 = vld [vmem:[%s2 + $0x98] sm:$0xff]
        %v5582 = vld [vmem:[%s2 + $0xa0] sm:$0xff]
        %v5583 = vld [vmem:[%s2 + $0xa8] sm:$0xff]
        %v5584 = vld [vmem:[%s2 + $0xb0] sm:$0xff]
        %v5585 = vld [vmem:[%s2 + $0xb8] sm:$0xff]
        %5586 = vmatpush.msra.mxu0 %v5577
        %5587 = vmatpush.msra.mxu0 %v5576
        %5588 = vmatpush.msra.mxu0 %v5575
        %5589 = vmatpush.msra.mxu0 %v5574
        %5590 = vmatpush.msra.mxu0 %v5573
        %5591 = vmatpush.msra.mxu0 %v5572
        %5592 = vmatpush.msra.mxu0 %v5571
        %5593 = vmatpush.msra.mxu0 %v5570
        %5594 = vmatpush.msra.mxu0 %v5569
        %5595 = vmatpush.msra.mxu0 %v5568
        %5596 = vmatpush.msra.mxu0 %v5567
        %5597 = vmatpush.msra.mxu0 %v5566
        %5598 = vmatpush.msra.mxu0 %v5565
        %5599 = vmatpush.msra.mxu0 %v5564
        %5600 = vmatpush.msra.mxu0 %v5563
        %5601 = vmatpush.msra.mxu0 %v5562
        %5602 = vmatmul.f32.gmra.mxu0 %v5268
        %v5603 = vpop.f32.mrf.mxu0
        %5604 = vmatmul.f32.gmra.mxu0 %v5269
        %v5605 = vpop.f32.mrf.mxu0
        %5606 = vmatmul.f32.gmra.mxu0 %v5270
        %v5607 = vpop.f32.mrf.mxu0
        %v5608 = vadd.f32 0.0, %v5607
        %5609 = vmatmul.f32.gmra.mxu0 %v5271
        %v5610 = vpop.f32.mrf.mxu0
        %v5611 = vadd.f32 0.0, %v5610
        %5612 = vmatmul.f32.gmra.mxu0 %v5272
        %v5613 = vpop.f32.mrf.mxu0
        %v5614 = vadd.f32 0.0, %v5613
        %5615 = vmatmul.f32.gmra.mxu0 %v5273
        %v5616 = vpop.f32.mrf.mxu0
        %v5617 = vadd.f32 0.0, %v5616
        %5618 = vmatmul.f32.gmra.mxu0 %v5274
        %v5619 = vpop.f32.mrf.mxu0
        %v5620 = vadd.f32 0.0, %v5619
        %5621 = vmatmul.f32.gmra.mxu0 %v5275
        %v5622 = vpop.f32.mrf.mxu0
        %v5623 = vadd.f32 0.0, %v5622
        %5624 = vmatmul.f32.gmra.mxu0 %v5276
        %v5625 = vpop.f32.mrf.mxu0
        %v5626 = vadd.f32 0.0, %v5625
        %5627 = vmatmul.f32.gmra.mxu0 %v5277
        %v5628 = vpop.f32.mrf.mxu0
        %v5629 = vadd.f32 0.0, %v5628
        %5630 = vdwg.mxu0
        %5631 = vmatpush.msra.mxu0 0.0
        %5632 = vmatpush.msra.mxu0 0.0
        %5633 = vmatpush.msra.mxu0 0.0
        %5634 = vmatpush.msra.mxu0 0.0
        %5635 = vmatpush.msra.mxu0 0.0
        %5636 = vmatpush.msra.mxu0 0.0
        %5637 = vmatpush.msra.mxu0 0.0
        %5638 = vmatpush.msra.mxu0 0.0
        %5639 = vmatpush.msra.mxu0 %v5585
        %5640 = vmatpush.msra.mxu0 %v5584
        %5641 = vmatpush.msra.mxu0 %v5583
        %5642 = vmatpush.msra.mxu0 %v5582
        %5643 = vmatpush.msra.mxu0 %v5581
        %5644 = vmatpush.msra.mxu0 %v5580
        %5645 = vmatpush.msra.mxu0 %v5579
        %5646 = vmatpush.msra.mxu0 %v5578
        %5647 = vmatmul.f32.gmra.mxu0 %v5304
        %v5648 = vpop.f32.mrf.mxu0
        %5649 = vmatmul.f32.gmra.mxu0 %v5307
        %v5650 = vpop.f32.mrf.mxu0
        %5651 = vmatmul.f32.gmra.mxu0 %v5310
        %v5652 = vpop.f32.mrf.mxu0
        %v5653 = vadd.f32 %v5608, %v5652
        %5654 = vmatmul.f32.gmra.mxu0 %v5313
        %v5655 = vpop.f32.mrf.mxu0
        %v5656 = vadd.f32 %v5611, %v5655
        %5657 = vmatmul.f32.gmra.mxu0 %v5316
        %v5658 = vpop.f32.mrf.mxu0
        %v5659 = vadd.f32 %v5614, %v5658
        %5660 = vmatmul.f32.gmra.mxu0 %v5319
        %v5661 = vpop.f32.mrf.mxu0
        %v5662 = vadd.f32 %v5617, %v5661
        %5663 = vmatmul.f32.gmra.mxu0 %v5322
        %v5664 = vpop.f32.mrf.mxu0
        %v5665 = vadd.f32 %v5620, %v5664
        %5666 = vmatmul.f32.gmra.mxu0 %v5325
        %v5667 = vpop.f32.mrf.mxu0
        %v5668 = vadd.f32 %v5623, %v5667
        %5669 = vmatmul.f32.gmra.mxu0 %v5328
        %v5670 = vpop.f32.mrf.mxu0
        %v5671 = vadd.f32 %v5626, %v5670
        %5672 = vmatmul.f32.gmra.mxu0 %v5331
        %v5673 = vpop.f32.mrf.mxu0
        %v5674 = vadd.f32 %v5629, %v5673
        %5675 = vdwg.mxu0
        %s5676 = scalar_lea.vmem %s2, 384
        %v5677 = vld [vmem:[%s5676] sm:$0xff]
        %v5678 = vld [vmem:[%s5676 + $0x8] sm:$0xff]
        %v5679 = vld [vmem:[%s5676 + $0x10] sm:$0xff]
        %v5680 = vld [vmem:[%s5676 + $0x18] sm:$0xff]
        %v5681 = vld [vmem:[%s5676 + $0x20] sm:$0xff]
        %v5682 = vld [vmem:[%s5676 + $0x28] sm:$0xff]
        %v5683 = vld [vmem:[%s5676 + $0x30] sm:$0xff]
        %v5684 = vld [vmem:[%s5676 + $0x38] sm:$0xff]
        %v5685 = vld [vmem:[%s5676 + $0x40] sm:$0xff]
        %v5686 = vld [vmem:[%s5676 + $0x48] sm:$0xff]
        %v5687 = vld [vmem:[%s5676 + $0x50] sm:$0xff]
        %v5688 = vld [vmem:[%s5676 + $0x58] sm:$0xff]
        %v5689 = vld [vmem:[%s5676 + $0x60] sm:$0xff]
        %v5690 = vld [vmem:[%s5676 + $0x68] sm:$0xff]
        %v5691 = vld [vmem:[%s5676 + $0x70] sm:$0xff]
        %v5692 = vld [vmem:[%s5676 + $0x78] sm:$0xff]
        %v5693 = vld [vmem:[%s5676 + $0x80] sm:$0xff]
        %v5694 = vld [vmem:[%s5676 + $0x88] sm:$0xff]
        %v5695 = vld [vmem:[%s5676 + $0x90] sm:$0xff]
        %v5696 = vld [vmem:[%s5676 + $0x98] sm:$0xff]
        %v5697 = vld [vmem:[%s5676 + $0xa0] sm:$0xff]
        %v5698 = vld [vmem:[%s5676 + $0xa8] sm:$0xff]
        %v5699 = vld [vmem:[%s5676 + $0xb0] sm:$0xff]
        %v5700 = vld [vmem:[%s5676 + $0xb8] sm:$0xff]
        %5701 = vmatpush.msra.mxu0 %v5692
        %5702 = vmatpush.msra.mxu0 %v5691
        %5703 = vmatpush.msra.mxu0 %v5690
        %5704 = vmatpush.msra.mxu0 %v5689
        %5705 = vmatpush.msra.mxu0 %v5688
        %5706 = vmatpush.msra.mxu0 %v5687
        %5707 = vmatpush.msra.mxu0 %v5686
        %5708 = vmatpush.msra.mxu0 %v5685
        %5709 = vmatpush.msra.mxu0 %v5684
        %5710 = vmatpush.msra.mxu0 %v5683
        %5711 = vmatpush.msra.mxu0 %v5682
        %5712 = vmatpush.msra.mxu0 %v5681
        %5713 = vmatpush.msra.mxu0 %v5680
        %5714 = vmatpush.msra.mxu0 %v5679
        %5715 = vmatpush.msra.mxu0 %v5678
        %5716 = vmatpush.msra.mxu0 %v5677
        %5717 = vmatmul.f32.gmra.mxu0 %v5268
        %v5718 = vpop.f32.mrf.mxu0
        %5719 = vmatmul.f32.gmra.mxu0 %v5269
        %v5720 = vpop.f32.mrf.mxu0
        %v5721 = vadd.f32 0.0, %v5720
        %5722 = vmatmul.f32.gmra.mxu0 %v5270
        %v5723 = vpop.f32.mrf.mxu0
        %v5724 = vadd.f32 0.0, %v5723
        %5725 = vmatmul.f32.gmra.mxu0 %v5271
        %v5726 = vpop.f32.mrf.mxu0
        %v5727 = vadd.f32 0.0, %v5726
        %5728 = vmatmul.f32.gmra.mxu0 %v5272
        %v5729 = vpop.f32.mrf.mxu0
        %v5730 = vadd.f32 0.0, %v5729
        %5731 = vmatmul.f32.gmra.mxu0 %v5273
        %v5732 = vpop.f32.mrf.mxu0
        %v5733 = vadd.f32 0.0, %v5732
        %5734 = vmatmul.f32.gmra.mxu0 %v5274
        %v5735 = vpop.f32.mrf.mxu0
        %v5736 = vadd.f32 0.0, %v5735
        %5737 = vmatmul.f32.gmra.mxu0 %v5275
        %v5738 = vpop.f32.mrf.mxu0
        %v5739 = vadd.f32 0.0, %v5738
        %5740 = vmatmul.f32.gmra.mxu0 %v5276
        %v5741 = vpop.f32.mrf.mxu0
        %v5742 = vadd.f32 0.0, %v5741
        %5743 = vmatmul.f32.gmra.mxu0 %v5277
        %v5744 = vpop.f32.mrf.mxu0
        %5745 = vdwg.mxu0
        %5746 = vmatpush.msra.mxu0 0.0
        %5747 = vmatpush.msra.mxu0 0.0
        %5748 = vmatpush.msra.mxu0 0.0
        %5749 = vmatpush.msra.mxu0 0.0
        %5750 = vmatpush.msra.mxu0 0.0
        %5751 = vmatpush.msra.mxu0 0.0
        %5752 = vmatpush.msra.mxu0 0.0
        %5753 = vmatpush.msra.mxu0 0.0
        %5754 = vmatpush.msra.mxu0 %v5700
        %5755 = vmatpush.msra.mxu0 %v5699
        %5756 = vmatpush.msra.mxu0 %v5698
        %5757 = vmatpush.msra.mxu0 %v5697
        %5758 = vmatpush.msra.mxu0 %v5696
        %5759 = vmatpush.msra.mxu0 %v5695
        %5760 = vmatpush.msra.mxu0 %v5694
        %5761 = vmatpush.msra.mxu0 %v5693
        %5762 = vmatmul.f32.gmra.mxu0 %v5304
        %v5763 = vpop.f32.mrf.mxu0
        %5764 = vmatmul.f32.gmra.mxu0 %v5307
        %v5765 = vpop.f32.mrf.mxu0
        %v5766 = vadd.f32 %v5721, %v5765
        %5767 = vmatmul.f32.gmra.mxu0 %v5310
        %v5768 = vpop.f32.mrf.mxu0
        %v5769 = vadd.f32 %v5724, %v5768
        %5770 = vmatmul.f32.gmra.mxu0 %v5313
        %v5771 = vpop.f32.mrf.mxu0
        %v5772 = vadd.f32 %v5727, %v5771
        %5773 = vmatmul.f32.gmra.mxu0 %v5316
        %v5774 = vpop.f32.mrf.mxu0
        %v5775 = vadd.f32 %v5730, %v5774
        %5776 = vmatmul.f32.gmra.mxu0 %v5319
        %v5777 = vpop.f32.mrf.mxu0
        %v5778 = vadd.f32 %v5733, %v5777
        %5779 = vmatmul.f32.gmra.mxu0 %v5322
        %v5780 = vpop.f32.mrf.mxu0
        %v5781 = vadd.f32 %v5736, %v5780
        %5782 = vmatmul.f32.gmra.mxu0 %v5325
        %v5783 = vpop.f32.mrf.mxu0
        %v5784 = vadd.f32 %v5739, %v5783
        %5785 = vmatmul.f32.gmra.mxu0 %v5328
        %v5786 = vpop.f32.mrf.mxu0
        %v5787 = vadd.f32 %v5742, %v5786
        %5788 = vmatmul.f32.gmra.mxu0 %v5331
        %v5789 = vpop.f32.mrf.mxu0
        %5790 = vdwg.mxu0
        %v5791 = vadd.f32 %v5653, %v5766
        %v5792 = vadd.f32 %v5656, %v5769
        %v5793 = vadd.f32 %v5659, %v5772
        %v5794 = vadd.f32 %v5662, %v5775
        %v5795 = vadd.f32 %v5665, %v5778
        %v5796 = vadd.f32 %v5668, %v5781
        %v5797 = vadd.f32 %v5671, %v5784
        %v5798 = vadd.f32 %v5674, %v5787
        %v5799 = vmul.f32 %v5791, 0.2
        %v5800 = vmul.f32 %v5792, 0.2
        %v5801 = vmul.f32 %v5793, 0.2
        %v5802 = vmul.f32 %v5794, 0.2
        %v5803 = vmul.f32 %v5795, 0.2
        %v5804 = vmul.f32 %v5796, 0.2
        %v5805 = vmul.f32 %v5797, 0.2
        %v5806 = vmul.f32 %v5798, 0.2
        %v5807 = vmax.f32 %v5791, %v5799
        %v5808 = vmax.f32 %v5792, %v5800
        %v5809 = vmax.f32 %v5793, %v5801
        %v5810 = vmax.f32 %v5794, %v5802
        %v5811 = vmax.f32 %v5795, %v5803
        %v5812 = vmax.f32 %v5796, %v5804
        %v5813 = vmax.f32 %v5797, %v5805
        %v5814 = vmax.f32 %v5798, %v5806
        %5815 = vst [vmem:[%s209] sm:$0xff] %v5554
        %5816 = vst [vmem:[%s209 + $0x8] sm:$0xff] %v5807
        %5817 = vst [vmem:[%s209 + $0x10] sm:$0xff] %v5555
        %5818 = vst [vmem:[%s209 + $0x18] sm:$0xff] %v5808
        %5819 = vst [vmem:[%s209 + $0x20] sm:$0xff] %v5556
        %5820 = vst [vmem:[%s209 + $0x28] sm:$0xff] %v5809
        %5821 = vst [vmem:[%s209 + $0x30] sm:$0xff] %v5557
        %5822 = vst [vmem:[%s209 + $0x38] sm:$0xff] %v5810
        %5823 = vst [vmem:[%s209 + $0x40] sm:$0xff] %v5558
        %5824 = vst [vmem:[%s209 + $0x48] sm:$0xff] %v5811
        %5825 = vst [vmem:[%s209 + $0x50] sm:$0xff] %v5559
        %5826 = vst [vmem:[%s209 + $0x58] sm:$0xff] %v5812
        %5827 = vst [vmem:[%s209 + $0x60] sm:$0xff] %v5560
        %5828 = vst [vmem:[%s209 + $0x68] sm:$0xff] %v5813
        %5829 = vst [vmem:[%s209 + $0x70] sm:$0xff] %v5561
        %5830 = vst [vmem:[%s209 + $0x78] sm:$0xff] %v5814
        %p5831 = scmp.lt.s32.totalorder %s18, 1
        %s5832 = scalar_select %p5831, %s18, 1
        %s5833 = smul.addr %s5832, 16
        %s5834 = smul.addr %s5833, 8
        %s5835 = scalar_lea.vmem %s3, %s5834
        // Predicated region
        $region41: #{conv_block_forward.1} parent=31 // pred_check
          %p5836 = pneg %p104
        $region42: #{conv_block_forward.1} parent=31 // pred_check_branch
          %5838 = sbr.rel (%p5836) target = $region44
        $region43: #{conv_block_forward.1} parent=31 // pred_region
          _
        $region44: #{conv_block_forward.1} parent=31 // pred_fallthru
          _
      $region32: #{conv_block_forward.1} parent=5 // pred_fallthru
        _
      %p5839 = scmp.le.s32.totalorder 2, %s13
      // Predicated region
      $region45: #{conv_block_forward.1} parent=5 // pred_check
        %p5840 = pneg %p5839
      $region46: #{conv_block_forward.1} parent=5 // pred_check_branch
        %5842 = sbr.rel (%p5840) target = $region48
      $region47: #{conv_block_forward.1} parent=5 // pred_region
        %s5843 = ssub.s32 %s13, 2
        // Predicated region
        $region49: #{conv_block_forward.1} parent=47 // pred_check
          %p5844 = pneg %p110
        $region50: #{conv_block_forward.1} parent=47 // pred_check_branch
          %5846 = sbr.rel (%p5844) target = $region52
        $region51: #{conv_block_forward.1} parent=47 // pred_region
          %p5847 = scmp.lt.s32.totalorder %s19, 1
          %s5848 = scalar_select %p5847, %s19, 1
          %s5849 = smul.addr %s5848, 16
          %s5850 = smul.addr %s5849, 8
          %s5851 = scalar_lea.vmem %s3, %s5850
        $region52: #{conv_block_forward.1} parent=47 // pred_fallthru
          _
      $region48: #{conv_block_forward.1} parent=5 // pred_fallthru
        _
    $region6: #{conv_block_forward.1} parent=1 // loop_footer
      %s17 = sadd.s32 1, %s13
    $region7: #{conv_block_forward.1} parent=1 // loop_footer_branch
      %12 = sbr.rel target = $region3
    $region8: #{conv_block_forward.1} parent=1 // loop_exit
      _
    %5852 = vsyncpa [#allocation4], 1
    %s5853 = scalar_lea.sflag [#allocation4], 1
    %5854 = vsyncpa %s5853, 1
    %5855 = vsyncpa [#allocation6], 1

</llo_original>
